<compile_context>
chip_gen: v6e
topology: v6e:2x2x1
jax: 0.10.0
libtpu: 0.0.40
codegen_flags: <defaults>
</compile_context>

<pallas_src>
import functools

import numpy as np
import jax
import jax.numpy as jnp
from jax.experimental import pallas as pl
from jax.experimental.pallas import tpu as pltpu


# ---------------- config (the nn.Module's `args`) ----------------
class Args:
    dim_input = 32          # = 32 channels * H_out(=1) after the two convs
    dim_model = 32
    num_heads = 4
    dim_key = 8
    dim_value = 8
    dim_inner = 64
    num_layers_encoder = 2


ARGS = Args()
EPS = 1e-5

# Conv geometry of Input_Embedding (fixed by the PyTorch module)
KH1, KW1, SH1, SW1, PW1 = 41, 11, 2, 2, 10      # conv1 kernel / stride / width pad
KH2, KW2, SH2, SW2 = 21, 11, 2, 1               # conv2 kernel / stride (no pad)
C = 32                                          # conv channel count


# ---------------- the single fused Pallas kernel ----------------
def net_kernel(pat_ref, wt1_ref, w2s_ref, cb_ref, pk_ref, o_ref, *,
               n, kh2, ow2, dm, di, inv_w, pe1_mean, num_layers):
    f32 = jnp.float32
    bf16 = jnp.bfloat16

    # ---- conv1 (+ folded BN1) + Hardtanh(0,20).
    #      pat rows = (oh1, n) height windows; the width taps live in the bf16
    #      block-Toeplitz weight.  Output lanes = (ow1, C) -> lane-dense 416.
    cb = cb_ref[...]
    h1 = jnp.dot(pat_ref[...], wt1_ref[...], preferred_element_type=f32)
    h1 = jnp.clip(h1 + cb[0:1, :], 0.0, 20.0)           # (oh1*n, ow1*C)
    h1b = h1.astype(bf16)

    # ---- conv2 (+ folded BN2) + Hardtanh: accumulate over kernel height.
    #      Dense (de-duplicated) weight, stacked along lanes by kh:
    #      w2s[:, kh*C:(kh+1)*C] is the (KW2*C, C) tap matrix for kernel row kh.
    #      The ow2 output-width positions are column-shifted LHS slices stacked
    #      on the M axis -> one (ow2*n, KW2*C) x (KW2*C, C) dot per tap.
    kw_c = w2s_ref.shape[0]                              # KW2 * C
    acc = jnp.zeros((ow2 * n, C), f32)                   # rows ordered (ow, sample)
    for kh in range(kh2):                                # static unroll (21)
        rows = h1b[kh * n:(kh + 1) * n, :]               # samples at input height kh
        lhs = jnp.concatenate(
            [rows[:, j * C:j * C + kw_c] for j in range(ow2)], axis=0)
        rhs = w2s_ref[:, pl.ds(kh * C, C)]
        acc = acc + jnp.dot(lhs, rhs, preferred_element_type=f32)
    z = jnp.clip(acc + cb[1:2, 0:C], 0.0, 20.0)          # (ow2*n, C)

    # ---- 1st positional encoding (folds to a scalar: H_out==1 and the PE
    #      broadcasts over batch & channels) + x.mean(3) + Flatten (drp1 = id).
    x = jnp.zeros((n, C), f32)
    for j in range(ow2):
        x = x + z[j * n:(j + 1) * n, :]
    x = x * inv_w + pe1_mean                             # (n, dim_input)

    # ---- Encoder (single packed operand; all dropouts identity in eval).
    vec0 = 2 * dm + di

    def wblk(r0, nr, c0, nc):
        return pk_ref[pl.ds(r0, nr), pl.ds(c0, nc)]

    def vrow(r, nc):
        return pk_ref[pl.ds(vec0 + r, 1), pl.ds(0, nc)]

    def layernorm(h, g, b):
        mu = jnp.mean(h, axis=-1, keepdims=True)
        var = jnp.mean((h - mu) * (h - mu), axis=-1, keepdims=True)
        return (h - mu) * jax.lax.rsqrt(var + EPS) * g + b

    w1 = wblk(0, dm, 0, dm)
    wq = wblk(0, dm, dm, dm)
    wk = wblk(0, dm, 2 * dm, dm)
    wv = wblk(0, dm, 3 * dm, dm)
    w2 = wblk(dm, dm, 0, dm)
    w3 = wblk(dm, dm, dm, di)
    w4 = wblk(2 * dm, di, 0, dm)
    b1, g1, be1 = vrow(0, dm), vrow(1, dm), vrow(2, dm)
    bq, bk, bv = vrow(3, dm), vrow(4, dm), vrow(5, dm)
    b2, g2, be2 = vrow(6, dm), vrow(7, dm), vrow(8, dm)
    b3, b4 = vrow(9, di), vrow(10, dm)
    g3, be3 = vrow(11, dm), vrow(12, dm)
    pe2 = pk_ref[pl.ds(vec0 + 13, n), pl.ds(0, dm)]      # (n, dm) 2nd pos. encoding

    h = jnp.dot(x, w1, preferred_element_type=f32) + b1          # linear1
    h = layernorm(h, g1, be1) + pe2                              # layernorm1 + PE
    # NOTE: the torch reference literally chains the Q/K/V linears and applies
    # softmax over the feature dim of V (no QK^T score) -- replicated verbatim.
    q = jnp.dot(h, wq, preferred_element_type=f32) + bq          # query_linear
    k = jnp.dot(q, wk, preferred_element_type=f32) + bk          # key_linear
    v = jnp.dot(k, wv, preferred_element_type=f32) + bv          # value_linear
    m = jnp.max(v, axis=-1, keepdims=True)                       # softmax(dim=2)
    e = jnp.exp(v - m)
    a = e / jnp.sum(e, axis=-1, keepdims=True)
    o = jnp.dot(a, w2, preferred_element_type=f32) + b2          # linear2
    o = layernorm(o, g2, be2)                                    # layernorm2
    f = jnp.dot(o, w3, preferred_element_type=f32) + b3          # conv3 (1x1 Conv1d)
    f = jnp.dot(f, w4, preferred_element_type=f32) + b4          # conv4 (1x1 Conv1d)
    f = layernorm(f, g3, be3)                                    # layernorm3
    # The reference multiplies ONE encoder layer's output by num_layers_encoder.
    o_ref[...] = num_layers * f


# ---------------- positional-encoding table (exact replica, trace-time numpy) ----------------
def positional_embedding(last_dim, rows, max_steps=5000):
    max_dims = last_dim + (last_dim % 2)
    p, i = np.meshgrid(np.arange(max_steps), np.arange(max_dims // 2))
    pos = np.empty((max_steps, max_dims), dtype=np.float64)
    pos[:, 0::2] = np.sin(p / 10000 ** (2 * i / max_dims)).T
    pos[:, 1::2] = np.cos(p / 10000 ** (2 * i / max_dims)).T
    return pos[:rows, :last_dim].astype(np.float32)


# ---------------- one-time weight preprocessing (BN fold, reorder, packing) ----------------
def prepare_params(p, n, h_in, w_in):
    dm, di = ARGS.dim_model, ARGS.dim_inner
    wp_pad = w_in + 2 * PW1
    oh1 = (h_in - KH1) // SH1 + 1
    ow1 = (wp_pad - KW1) // SW1 + 1
    oh2 = (oh1 - KH2) // SH2 + 1
    ow2 = (ow1 - KW2) // SW2 + 1
    assert oh2 == 1 and C * oh2 == ARGS.dim_input and oh1 >= KH2 and ow1 >= KW2
    assert 4 * dm <= 128 and dm + di <= 128

    g = {k: np.asarray(v) for k, v in p.items()}
    # BatchNorm (eval running stats) folded into conv weights / biases.
    s1 = g['bn1_gamma'] / np.sqrt(g['bn1_var'] + EPS)
    t1 = g['bn1_beta'] - g['bn1_mean'] * s1
    s2 = g['bn2_gamma'] / np.sqrt(g['bn2_var'] + EPS)
    t2 = g['bn2_beta'] - g['bn2_mean'] * s2

    # conv1 -> block-Toeplitz matmul weight (KH1*wp_pad, ow1*C), BN1 folded, bf16.
    w1t = np.transpose(g['conv1_w'][:, 0], (1, 2, 0)) * s1           # (KH1, KW1, C)
    wt1 = np.zeros((KH1, wp_pad, ow1, C), np.float32)
    for ow in range(ow1):
        wt1[:, SW1 * ow:SW1 * ow + KW1, ow, :] = w1t
    wt1 = wt1.reshape(KH1 * wp_pad, ow1 * C)

    # conv2 -> dense (de-duplicated) per-kh weight, BN2 folded, kh stacked on lanes:
    #   w2s[kw*C + cin, kh*C + cout] = conv2_w[cout, cin, kh, kw] * s2[cout]
    w2r = (np.transpose(g['conv2_w'], (2, 3, 1, 0)) * s2).reshape(KH2, KW2 * C, C)
    w2s = np.transpose(w2r, (1, 0, 2)).reshape(KW2 * C, KH2 * C)

    # folded conv biases: row0 = conv1 bias tiled over ow1 lanes, row1 = conv2 bias
    cb = np.zeros((2, ow1 * C), np.float32)
    cb[0] = np.tile(g['conv1_b'] * s1 + t1, ow1)
    cb[1, :C] = g['conv2_b'] * s2 + t2

    # encoder pack: one lane-dense (rows, 128) f32 operand (weights + vectors + PE2)
    nrow = ((2 * dm + di + 13 + n + 7) // 8) * 8
    pk = np.zeros((nrow, 128), np.float32)
    pk[0:dm, 0:dm] = g['w1']
    pk[0:dm, dm:2 * dm] = g['wq']
    pk[0:dm, 2 * dm:3 * dm] = g['wk']
    pk[0:dm, 3 * dm:4 * dm] = g['wv']
    pk[dm:2 * dm, 0:dm] = g['w2']
    pk[dm:2 * dm, dm:dm + di] = g['w3']
    pk[2 * dm:2 * dm + di, 0:dm] = g['w4']
    vec0 = 2 * dm + di
    vnames = ['b1', 'ln1_g', 'ln1_b', 'bq', 'bk', 'bv',
              'b2', 'ln2_g', 'ln2_b', 'b3', 'b4', 'ln3_g', 'ln3_b']
    for r, vn in enumerate(vnames):
        v = g[vn]
        pk[vec0 + r, :v.shape[0]] = v
    pk[vec0 + 13:vec0 + 13 + n, :dm] = positional_embedding(dm, n)   # 2nd PE rows

    # 1st PE folds to a scalar (H_out=1, PE broadcasts over batch & channels).
    pe1_mean = float(positional_embedding(ow2, oh2).mean())

    prep = dict(wt1=jnp.asarray(wt1, jnp.bfloat16),
                w2s=jnp.asarray(w2s, jnp.bfloat16),
                cb=jnp.asarray(cb),
                pk=jnp.asarray(pk))
    geom = dict(oh1=oh1, ow1=ow1, ow2=ow2, wp_pad=wp_pad, pe1_mean=pe1_mean)
    return prep, geom


# ---------------- full forward ----------------
def net_forward(x, prep, geom, n):
    dm, di = ARGS.dim_model, ARGS.dim_inner
    oh1, ow2, wp_pad = geom['oh1'], geom['ow2'], geom['wp_pad']

    # conv1 patch rows over HEIGHT windows only (static slices + stack, no gather);
    # rows ordered (oh1, n), columns (kh, padded width); bf16 for the MXU.
    xp = jnp.pad(x[:, 0], ((0, 0), (0, 0), (PW1, PW1)))              # (n, H, W + 2*pad)
    wins = jnp.stack([xp[:, SH1 * oh:SH1 * oh + KH1, :] for oh in range(oh1)], axis=0)
    pat = wins.reshape(oh1 * n, KH1 * wp_pad).astype(jnp.bfloat16)

    kern = functools.partial(
        net_kernel, n=n, kh2=KH2, ow2=ow2, dm=dm, di=di,
        inv_w=1.0 / ow2, pe1_mean=geom['pe1_mean'],
        num_layers=float(ARGS.num_layers_encoder))

    vmem = pl.BlockSpec(memory_space=pltpu.MemorySpace.VMEM)
    out = pl.pallas_call(
        kern,
        out_shape=jax.ShapeDtypeStruct((n, dm), jnp.float32),
        in_specs=[vmem] * 5,
        out_specs=vmem,
    )(pat, prep['wt1'], prep['w2s'], prep['cb'], prep['pk'])

    # torch's 2nd PE add broadcasts a leading dim of 1 -> final shape (1, N, dim_model)
    return out[None, :, :]


# ---------------- deterministic parameter init ----------------
def init_params(key):
    ks = jax.random.split(key, 12)
    D = ARGS.dim_model
    HK = ARGS.num_heads * ARGS.dim_key
    HV = ARGS.num_heads * ARGS.dim_value
    DI = ARGS.dim_inner
    DIN = ARGS.dim_input

    def lin(k, fan_in, fan_out, scale=0.05):
        kw, kb = jax.random.split(k)
        return (jax.random.normal(kw, (fan_in, fan_out), jnp.float32) * scale,
                jax.random.normal(kb, (fan_out,), jnp.float32) * 0.01)

    p = {}
    p['conv1_w'] = jax.random.normal(ks[0], (32, 1, 41, 11), jnp.float32) * 0.05
    p['conv1_b'] = jax.random.normal(ks[1], (32,), jnp.float32) * 0.01
    p['conv2_w'] = jax.random.normal(ks[2], (32, 32, 21, 11), jnp.float32) * 0.02
    p['conv2_b'] = jax.random.normal(ks[3], (32,), jnp.float32) * 0.01
    for nme in ("bn1", "bn2"):  # BatchNorm eval: freshly initialized buffers/affine
        p[f'{nme}_gamma'] = jnp.ones((32,), jnp.float32)
        p[f'{nme}_beta'] = jnp.zeros((32,), jnp.float32)
        p[f'{nme}_mean'] = jnp.zeros((32,), jnp.float32)
        p[f'{nme}_var'] = jnp.ones((32,), jnp.float32)
    p['w1'], p['b1'] = lin(ks[4], DIN, D)
    p['wq'], p['bq'] = lin(ks[5], D, HK)
    p['wk'], p['bk'] = lin(ks[6], HK, D)
    p['wv'], p['bv'] = lin(ks[7], D, HV)
    p['w2'], p['b2'] = lin(ks[8], HV, D)
    p['w3'], p['b3'] = lin(ks[9], D, DI)    # conv3, kernel size 1
    p['w4'], p['b4'] = lin(ks[10], DI, D)   # conv4, kernel size 1
    for nme in ("ln1", "ln2", "ln3"):
        p[f'{nme}_g'] = jnp.ones((D,), jnp.float32)
        p[f'{nme}_b'] = jnp.zeros((D,), jnp.float32)
    return p


if __name__ == "__main__":
    key = jax.random.PRNGKey(0)
    kx, kp = jax.random.split(key)
    # NCHW spectrogram-like input, 1 channel; H=81 is the smallest height that
    # survives the (41,stride2) then (21,stride2) conv stack (-> H_out = 1).
    x = jax.random.normal(kx, (2, 1, 81, 16), jnp.float32)
    params = init_params(kp)

    n, h_in, w_in = x.shape[0], x.shape[2], x.shape[3]
    # one-time weight preprocessing (BN folding, Toeplitz reorder, operand packing)
    prep, geom = prepare_params(params, n, h_in, w_in)

    fwd = jax.jit(functools.partial(net_forward, geom=geom, n=n))
    out = fwd(x, prep)
    out = jax.block_until_ready(out)

    assert out.shape == (1, n, ARGS.dim_model), out.shape
    assert out.dtype == jnp.float32
    assert bool(jnp.all(jnp.isfinite(out)))
    print("KERNEL_OK")
</pallas_src>

<mosaic_0001>
module attributes {stable_mosaic.version = 11 : i64} {
  func.func @net_kernel(%arg0: memref<42x1476xbf16, #tpu.memory_space<vmem>>, %arg1: memref<1476x416xbf16, #tpu.memory_space<vmem>>, %arg2: memref<352x672xbf16, #tpu.memory_space<vmem>>, %arg3: memref<2x416xf32, #tpu.memory_space<vmem>>, %arg4: memref<144x128xf32, #tpu.memory_space<vmem>>, %arg5: memref<2x32xf32, #tpu.memory_space<vmem>>) attributes {dimension_semantics = [], scalar_prefetch = 0 : i64, scratch_operands = 0 : i64, tpu.core_type = #tpu.core_type<tc>} {
    %c0 = arith.constant 0 : index
    %c0_0 = arith.constant 0 : index
    %0 = vector.load %arg3[%c0, %c0_0] : memref<2x416xf32, #tpu.memory_space<vmem>>, vector<2x416xf32>
    %c0_1 = arith.constant 0 : index
    %c0_2 = arith.constant 0 : index
    %1 = vector.load %arg0[%c0_1, %c0_2] : memref<42x1476xbf16, #tpu.memory_space<vmem>>, vector<42x1476xbf16>
    %c0_3 = arith.constant 0 : index
    %c0_4 = arith.constant 0 : index
    %2 = vector.load %arg1[%c0_3, %c0_4] : memref<1476x416xbf16, #tpu.memory_space<vmem>>, vector<1476x416xbf16>
    %cst = arith.constant dense<0.000000e+00> : vector<42x416xf32>
    %3 = tpu.matmul %1, %2, %cst {dimension_numbers = #tpu.dot_dimension_numbers<[1], [0], [0], [1], [0, 0, 1, 1], [], []>} : vector<42x1476xbf16>, vector<1476x416xbf16>, vector<42x416xf32> -> vector<42x416xf32>
    %4 = vector.extract_strided_slice %0 {offsets = [0, 0], sizes = [1, 416], strides = [1, 1]} : vector<2x416xf32> to vector<1x416xf32>
    %5 = vector.broadcast %4 : vector<1x416xf32> to vector<42x416xf32>
    %6 = arith.addf %3, %5 : vector<42x416xf32>
    %cst_5 = arith.constant 0.000000e+00 : f32
    %cst_6 = arith.constant 2.000000e+01 : f32
    %7 = vector.broadcast %cst_5 : f32 to vector<42x416xf32>
    %8 = arith.maximumf %7, %6 : vector<42x416xf32>
    %9 = vector.broadcast %cst_6 : f32 to vector<42x416xf32>
    %10 = arith.minimumf %9, %8 : vector<42x416xf32>
    %11 = arith.truncf %10 : vector<42x416xf32> to vector<42x416xbf16>
    %cst_7 = arith.constant 0.000000e+00 : f32
    %12 = vector.broadcast %cst_7 : f32 to vector<6x32xf32>
    %13 = vector.extract_strided_slice %11 {offsets = [0, 0], sizes = [2, 416], strides = [1, 1]} : vector<42x416xbf16> to vector<2x416xbf16>
    %14 = vector.extract_strided_slice %13 {offsets = [0, 0], sizes = [2, 352], strides = [1, 1]} : vector<2x416xbf16> to vector<2x352xbf16>
    %15 = vector.extract_strided_slice %13 {offsets = [0, 32], sizes = [2, 352], strides = [1, 1]} : vector<2x416xbf16> to vector<2x352xbf16>
    %16 = vector.extract_strided_slice %13 {offsets = [0, 64], sizes = [2, 352], strides = [1, 1]} : vector<2x416xbf16> to vector<2x352xbf16>
    %17 = tpu.concatenate %14, %15, %16 in 0 : vector<2x352xbf16>, vector<2x352xbf16>, vector<2x352xbf16> -> vector<6x352xbf16>
    %c0_8 = arith.constant 0 : index
    %c0_9 = arith.constant 0 : index
    %18 = vector.load %arg2[%c0_8, %c0_9] : memref<352x672xbf16, #tpu.memory_space<vmem>>, vector<352x32xbf16>
    %cst_10 = arith.constant dense<0.000000e+00> : vector<6x32xf32>
    %19 = tpu.matmul %17, %18, %cst_10 {dimension_numbers = #tpu.dot_dimension_numbers<[1], [0], [0], [1], [0, 0, 1, 1], [], []>} : vector<6x352xbf16>, vector<352x32xbf16>, vector<6x32xf32> -> vector<6x32xf32>
    %20 = arith.addf %12, %19 : vector<6x32xf32>
    %21 = vector.extract_strided_slice %11 {offsets = [2, 0], sizes = [2, 416], strides = [1, 1]} : vector<42x416xbf16> to vector<2x416xbf16>
    %22 = vector.extract_strided_slice %21 {offsets = [0, 0], sizes = [2, 352], strides = [1, 1]} : vector<2x416xbf16> to vector<2x352xbf16>
    %23 = vector.extract_strided_slice %21 {offsets = [0, 32], sizes = [2, 352], strides = [1, 1]} : vector<2x416xbf16> to vector<2x352xbf16>
    %24 = vector.extract_strided_slice %21 {offsets = [0, 64], sizes = [2, 352], strides = [1, 1]} : vector<2x416xbf16> to vector<2x352xbf16>
    %25 = tpu.concatenate %22, %23, %24 in 0 : vector<2x352xbf16>, vector<2x352xbf16>, vector<2x352xbf16> -> vector<6x352xbf16>
    %c0_11 = arith.constant 0 : index
    %c32 = arith.constant 32 : index
    %26 = vector.load %arg2[%c0_11, %c32] : memref<352x672xbf16, #tpu.memory_space<vmem>>, vector<352x32xbf16>
    %cst_12 = arith.constant dense<0.000000e+00> : vector<6x32xf32>
    %27 = tpu.matmul %25, %26, %cst_12 {dimension_numbers = #tpu.dot_dimension_numbers<[1], [0], [0], [1], [0, 0, 1, 1], [], []>} : vector<6x352xbf16>, vector<352x32xbf16>, vector<6x32xf32> -> vector<6x32xf32>
    %28 = arith.addf %20, %27 : vector<6x32xf32>
    %29 = vector.extract_strided_slice %11 {offsets = [4, 0], sizes = [2, 416], strides = [1, 1]} : vector<42x416xbf16> to vector<2x416xbf16>
    %30 = vector.extract_strided_slice %29 {offsets = [0, 0], sizes = [2, 352], strides = [1, 1]} : vector<2x416xbf16> to vector<2x352xbf16>
    %31 = vector.extract_strided_slice %29 {offsets = [0, 32], sizes = [2, 352], strides = [1, 1]} : vector<2x416xbf16> to vector<2x352xbf16>
    %32 = vector.extract_strided_slice %29 {offsets = [0, 64], sizes = [2, 352], strides = [1, 1]} : vector<2x416xbf16> to vector<2x352xbf16>
    %33 = tpu.concatenate %30, %31, %32 in 0 : vector<2x352xbf16>, vector<2x352xbf16>, vector<2x352xbf16> -> vector<6x352xbf16>
    %c0_13 = arith.constant 0 : index
    %c64 = arith.constant 64 : index
    %34 = vector.load %arg2[%c0_13, %c64] : memref<352x672xbf16, #tpu.memory_space<vmem>>, vector<352x32xbf16>
    %cst_14 = arith.constant dense<0.000000e+00> : vector<6x32xf32>
    %35 = tpu.matmul %33, %34, %cst_14 {dimension_numbers = #tpu.dot_dimension_numbers<[1], [0], [0], [1], [0, 0, 1, 1], [], []>} : vector<6x352xbf16>, vector<352x32xbf16>, vector<6x32xf32> -> vector<6x32xf32>
    %36 = arith.addf %28, %35 : vector<6x32xf32>
    %37 = vector.extract_strided_slice %11 {offsets = [6, 0], sizes = [2, 416], strides = [1, 1]} : vector<42x416xbf16> to vector<2x416xbf16>
    %38 = vector.extract_strided_slice %37 {offsets = [0, 0], sizes = [2, 352], strides = [1, 1]} : vector<2x416xbf16> to vector<2x352xbf16>
    %39 = vector.extract_strided_slice %37 {offsets = [0, 32], sizes = [2, 352], strides = [1, 1]} : vector<2x416xbf16> to vector<2x352xbf16>
    %40 = vector.extract_strided_slice %37 {offsets = [0, 64], sizes = [2, 352], strides = [1, 1]} : vector<2x416xbf16> to vector<2x352xbf16>
    %41 = tpu.concatenate %38, %39, %40 in 0 : vector<2x352xbf16>, vector<2x352xbf16>, vector<2x352xbf16> -> vector<6x352xbf16>
    %c0_15 = arith.constant 0 : index
    %c96 = arith.constant 96 : index
    %42 = vector.load %arg2[%c0_15, %c96] : memref<352x672xbf16, #tpu.memory_space<vmem>>, vector<352x32xbf16>
    %cst_16 = arith.constant dense<0.000000e+00> : vector<6x32xf32>
    %43 = tpu.matmul %41, %42, %cst_16 {dimension_numbers = #tpu.dot_dimension_numbers<[1], [0], [0], [1], [0, 0, 1, 1], [], []>} : vector<6x352xbf16>, vector<352x32xbf16>, vector<6x32xf32> -> vector<6x32xf32>
    %44 = arith.addf %36, %43 : vector<6x32xf32>
    %45 = vector.extract_strided_slice %11 {offsets = [8, 0], sizes = [2, 416], strides = [1, 1]} : vector<42x416xbf16> to vector<2x416xbf16>
    %46 = vector.extract_strided_slice %45 {offsets = [0, 0], sizes = [2, 352], strides = [1, 1]} : vector<2x416xbf16> to vector<2x352xbf16>
    %47 = vector.extract_strided_slice %45 {offsets = [0, 32], sizes = [2, 352], strides = [1, 1]} : vector<2x416xbf16> to vector<2x352xbf16>
    %48 = vector.extract_strided_slice %45 {offsets = [0, 64], sizes = [2, 352], strides = [1, 1]} : vector<2x416xbf16> to vector<2x352xbf16>
    %49 = tpu.concatenate %46, %47, %48 in 0 : vector<2x352xbf16>, vector<2x352xbf16>, vector<2x352xbf16> -> vector<6x352xbf16>
    %c0_17 = arith.constant 0 : index
    %c128 = arith.constant 128 : index
    %50 = vector.load %arg2[%c0_17, %c128] : memref<352x672xbf16, #tpu.memory_space<vmem>>, vector<352x32xbf16>
    %cst_18 = arith.constant dense<0.000000e+00> : vector<6x32xf32>
    %51 = tpu.matmul %49, %50, %cst_18 {dimension_numbers = #tpu.dot_dimension_numbers<[1], [0], [0], [1], [0, 0, 1, 1], [], []>} : vector<6x352xbf16>, vector<352x32xbf16>, vector<6x32xf32> -> vector<6x32xf32>
    %52 = arith.addf %44, %51 : vector<6x32xf32>
    %53 = vector.extract_strided_slice %11 {offsets = [10, 0], sizes = [2, 416], strides = [1, 1]} : vector<42x416xbf16> to vector<2x416xbf16>
    %54 = vector.extract_strided_slice %53 {offsets = [0, 0], sizes = [2, 352], strides = [1, 1]} : vector<2x416xbf16> to vector<2x352xbf16>
    %55 = vector.extract_strided_slice %53 {offsets = [0, 32], sizes = [2, 352], strides = [1, 1]} : vector<2x416xbf16> to vector<2x352xbf16>
    %56 = vector.extract_strided_slice %53 {offsets = [0, 64], sizes = [2, 352], strides = [1, 1]} : vector<2x416xbf16> to vector<2x352xbf16>
    %57 = tpu.concatenate %54, %55, %56 in 0 : vector<2x352xbf16>, vector<2x352xbf16>, vector<2x352xbf16> -> vector<6x352xbf16>
    %c0_19 = arith.constant 0 : index
    %c160 = arith.constant 160 : index
    %58 = vector.load %arg2[%c0_19, %c160] : memref<352x672xbf16, #tpu.memory_space<vmem>>, vector<352x32xbf16>
    %cst_20 = arith.constant dense<0.000000e+00> : vector<6x32xf32>
    %59 = tpu.matmul %57, %58, %cst_20 {dimension_numbers = #tpu.dot_dimension_numbers<[1], [0], [0], [1], [0, 0, 1, 1], [], []>} : vector<6x352xbf16>, vector<352x32xbf16>, vector<6x32xf32> -> vector<6x32xf32>
    %60 = arith.addf %52, %59 : vector<6x32xf32>
    %61 = vector.extract_strided_slice %11 {offsets = [12, 0], sizes = [2, 416], strides = [1, 1]} : vector<42x416xbf16> to vector<2x416xbf16>
    %62 = vector.extract_strided_slice %61 {offsets = [0, 0], sizes = [2, 352], strides = [1, 1]} : vector<2x416xbf16> to vector<2x352xbf16>
    %63 = vector.extract_strided_slice %61 {offsets = [0, 32], sizes = [2, 352], strides = [1, 1]} : vector<2x416xbf16> to vector<2x352xbf16>
    %64 = vector.extract_strided_slice %61 {offsets = [0, 64], sizes = [2, 352], strides = [1, 1]} : vector<2x416xbf16> to vector<2x352xbf16>
    %65 = tpu.concatenate %62, %63, %64 in 0 : vector<2x352xbf16>, vector<2x352xbf16>, vector<2x352xbf16> -> vector<6x352xbf16>
    %c0_21 = arith.constant 0 : index
    %c192 = arith.constant 192 : index
    %66 = vector.load %arg2[%c0_21, %c192] : memref<352x672xbf16, #tpu.memory_space<vmem>>, vector<352x32xbf16>
    %cst_22 = arith.constant dense<0.000000e+00> : vector<6x32xf32>
    %67 = tpu.matmul %65, %66, %cst_22 {dimension_numbers = #tpu.dot_dimension_numbers<[1], [0], [0], [1], [0, 0, 1, 1], [], []>} : vector<6x352xbf16>, vector<352x32xbf16>, vector<6x32xf32> -> vector<6x32xf32>
    %68 = arith.addf %60, %67 : vector<6x32xf32>
    %69 = vector.extract_strided_slice %11 {offsets = [14, 0], sizes = [2, 416], strides = [1, 1]} : vector<42x416xbf16> to vector<2x416xbf16>
    %70 = vector.extract_strided_slice %69 {offsets = [0, 0], sizes = [2, 352], strides = [1, 1]} : vector<2x416xbf16> to vector<2x352xbf16>
    %71 = vector.extract_strided_slice %69 {offsets = [0, 32], sizes = [2, 352], strides = [1, 1]} : vector<2x416xbf16> to vector<2x352xbf16>
    %72 = vector.extract_strided_slice %69 {offsets = [0, 64], sizes = [2, 352], strides = [1, 1]} : vector<2x416xbf16> to vector<2x352xbf16>
    %73 = tpu.concatenate %70, %71, %72 in 0 : vector<2x352xbf16>, vector<2x352xbf16>, vector<2x352xbf16> -> vector<6x352xbf16>
    %c0_23 = arith.constant 0 : index
    %c224 = arith.constant 224 : index
    %74 = vector.load %arg2[%c0_23, %c224] : memref<352x672xbf16, #tpu.memory_space<vmem>>, vector<352x32xbf16>
    %cst_24 = arith.constant dense<0.000000e+00> : vector<6x32xf32>
    %75 = tpu.matmul %73, %74, %cst_24 {dimension_numbers = #tpu.dot_dimension_numbers<[1], [0], [0], [1], [0, 0, 1, 1], [], []>} : vector<6x352xbf16>, vector<352x32xbf16>, vector<6x32xf32> -> vector<6x32xf32>
    %76 = arith.addf %68, %75 : vector<6x32xf32>
    %77 = vector.extract_strided_slice %11 {offsets = [16, 0], sizes = [2, 416], strides = [1, 1]} : vector<42x416xbf16> to vector<2x416xbf16>
    %78 = vector.extract_strided_slice %77 {offsets = [0, 0], sizes = [2, 352], strides = [1, 1]} : vector<2x416xbf16> to vector<2x352xbf16>
    %79 = vector.extract_strided_slice %77 {offsets = [0, 32], sizes = [2, 352], strides = [1, 1]} : vector<2x416xbf16> to vector<2x352xbf16>
    %80 = vector.extract_strided_slice %77 {offsets = [0, 64], sizes = [2, 352], strides = [1, 1]} : vector<2x416xbf16> to vector<2x352xbf16>
    %81 = tpu.concatenate %78, %79, %80 in 0 : vector<2x352xbf16>, vector<2x352xbf16>, vector<2x352xbf16> -> vector<6x352xbf16>
    %c0_25 = arith.constant 0 : index
    %c256 = arith.constant 256 : index
    %82 = vector.load %arg2[%c0_25, %c256] : memref<352x672xbf16, #tpu.memory_space<vmem>>, vector<352x32xbf16>
    %cst_26 = arith.constant dense<0.000000e+00> : vector<6x32xf32>
    %83 = tpu.matmul %81, %82, %cst_26 {dimension_numbers = #tpu.dot_dimension_numbers<[1], [0], [0], [1], [0, 0, 1, 1], [], []>} : vector<6x352xbf16>, vector<352x32xbf16>, vector<6x32xf32> -> vector<6x32xf32>
    %84 = arith.addf %76, %83 : vector<6x32xf32>
    %85 = vector.extract_strided_slice %11 {offsets = [18, 0], sizes = [2, 416], strides = [1, 1]} : vector<42x416xbf16> to vector<2x416xbf16>
    %86 = vector.extract_strided_slice %85 {offsets = [0, 0], sizes = [2, 352], strides = [1, 1]} : vector<2x416xbf16> to vector<2x352xbf16>
    %87 = vector.extract_strided_slice %85 {offsets = [0, 32], sizes = [2, 352], strides = [1, 1]} : vector<2x416xbf16> to vector<2x352xbf16>
    %88 = vector.extract_strided_slice %85 {offsets = [0, 64], sizes = [2, 352], strides = [1, 1]} : vector<2x416xbf16> to vector<2x352xbf16>
    %89 = tpu.concatenate %86, %87, %88 in 0 : vector<2x352xbf16>, vector<2x352xbf16>, vector<2x352xbf16> -> vector<6x352xbf16>
    %c0_27 = arith.constant 0 : index
    %c288 = arith.constant 288 : index
    %90 = vector.load %arg2[%c0_27, %c288] : memref<352x672xbf16, #tpu.memory_space<vmem>>, vector<352x32xbf16>
    %cst_28 = arith.constant dense<0.000000e+00> : vector<6x32xf32>
    %91 = tpu.matmul %89, %90, %cst_28 {dimension_numbers = #tpu.dot_dimension_numbers<[1], [0], [0], [1], [0, 0, 1, 1], [], []>} : vector<6x352xbf16>, vector<352x32xbf16>, vector<6x32xf32> -> vector<6x32xf32>
    %92 = arith.addf %84, %91 : vector<6x32xf32>
    %93 = vector.extract_strided_slice %11 {offsets = [20, 0], sizes = [2, 416], strides = [1, 1]} : vector<42x416xbf16> to vector<2x416xbf16>
    %94 = vector.extract_strided_slice %93 {offsets = [0, 0], sizes = [2, 352], strides = [1, 1]} : vector<2x416xbf16> to vector<2x352xbf16>
    %95 = vector.extract_strided_slice %93 {offsets = [0, 32], sizes = [2, 352], strides = [1, 1]} : vector<2x416xbf16> to vector<2x352xbf16>
    %96 = vector.extract_strided_slice %93 {offsets = [0, 64], sizes = [2, 352], strides = [1, 1]} : vector<2x416xbf16> to vector<2x352xbf16>
    %97 = tpu.concatenate %94, %95, %96 in 0 : vector<2x352xbf16>, vector<2x352xbf16>, vector<2x352xbf16> -> vector<6x352xbf16>
    %c0_29 = arith.constant 0 : index
    %c320 = arith.constant 320 : index
    %98 = vector.load %arg2[%c0_29, %c320] : memref<352x672xbf16, #tpu.memory_space<vmem>>, vector<352x32xbf16>
    %cst_30 = arith.constant dense<0.000000e+00> : vector<6x32xf32>
    %99 = tpu.matmul %97, %98, %cst_30 {dimension_numbers = #tpu.dot_dimension_numbers<[1], [0], [0], [1], [0, 0, 1, 1], [], []>} : vector<6x352xbf16>, vector<352x32xbf16>, vector<6x32xf32> -> vector<6x32xf32>
    %100 = arith.addf %92, %99 : vector<6x32xf32>
    %101 = vector.extract_strided_slice %11 {offsets = [22, 0], sizes = [2, 416], strides = [1, 1]} : vector<42x416xbf16> to vector<2x416xbf16>
    %102 = vector.extract_strided_slice %101 {offsets = [0, 0], sizes = [2, 352], strides = [1, 1]} : vector<2x416xbf16> to vector<2x352xbf16>
    %103 = vector.extract_strided_slice %101 {offsets = [0, 32], sizes = [2, 352], strides = [1, 1]} : vector<2x416xbf16> to vector<2x352xbf16>
    %104 = vector.extract_strided_slice %101 {offsets = [0, 64], sizes = [2, 352], strides = [1, 1]} : vector<2x416xbf16> to vector<2x352xbf16>
    %105 = tpu.concatenate %102, %103, %104 in 0 : vector<2x352xbf16>, vector<2x352xbf16>, vector<2x352xbf16> -> vector<6x352xbf16>
    %c0_31 = arith.constant 0 : index
    %c352 = arith.constant 352 : index
    %106 = vector.load %arg2[%c0_31, %c352] : memref<352x672xbf16, #tpu.memory_space<vmem>>, vector<352x32xbf16>
    %cst_32 = arith.constant dense<0.000000e+00> : vector<6x32xf32>
    %107 = tpu.matmul %105, %106, %cst_32 {dimension_numbers = #tpu.dot_dimension_numbers<[1], [0], [0], [1], [0, 0, 1, 1], [], []>} : vector<6x352xbf16>, vector<352x32xbf16>, vector<6x32xf32> -> vector<6x32xf32>
    %108 = arith.addf %100, %107 : vector<6x32xf32>
    %109 = vector.extract_strided_slice %11 {offsets = [24, 0], sizes = [2, 416], strides = [1, 1]} : vector<42x416xbf16> to vector<2x416xbf16>
    %110 = vector.extract_strided_slice %109 {offsets = [0, 0], sizes = [2, 352], strides = [1, 1]} : vector<2x416xbf16> to vector<2x352xbf16>
    %111 = vector.extract_strided_slice %109 {offsets = [0, 32], sizes = [2, 352], strides = [1, 1]} : vector<2x416xbf16> to vector<2x352xbf16>
    %112 = vector.extract_strided_slice %109 {offsets = [0, 64], sizes = [2, 352], strides = [1, 1]} : vector<2x416xbf16> to vector<2x352xbf16>
    %113 = tpu.concatenate %110, %111, %112 in 0 : vector<2x352xbf16>, vector<2x352xbf16>, vector<2x352xbf16> -> vector<6x352xbf16>
    %c0_33 = arith.constant 0 : index
    %c384 = arith.constant 384 : index
    %114 = vector.load %arg2[%c0_33, %c384] : memref<352x672xbf16, #tpu.memory_space<vmem>>, vector<352x32xbf16>
    %cst_34 = arith.constant dense<0.000000e+00> : vector<6x32xf32>
    %115 = tpu.matmul %113, %114, %cst_34 {dimension_numbers = #tpu.dot_dimension_numbers<[1], [0], [0], [1], [0, 0, 1, 1], [], []>} : vector<6x352xbf16>, vector<352x32xbf16>, vector<6x32xf32> -> vector<6x32xf32>
    %116 = arith.addf %108, %115 : vector<6x32xf32>
    %117 = vector.extract_strided_slice %11 {offsets = [26, 0], sizes = [2, 416], strides = [1, 1]} : vector<42x416xbf16> to vector<2x416xbf16>
    %118 = vector.extract_strided_slice %117 {offsets = [0, 0], sizes = [2, 352], strides = [1, 1]} : vector<2x416xbf16> to vector<2x352xbf16>
    %119 = vector.extract_strided_slice %117 {offsets = [0, 32], sizes = [2, 352], strides = [1, 1]} : vector<2x416xbf16> to vector<2x352xbf16>
    %120 = vector.extract_strided_slice %117 {offsets = [0, 64], sizes = [2, 352], strides = [1, 1]} : vector<2x416xbf16> to vector<2x352xbf16>
    %121 = tpu.concatenate %118, %119, %120 in 0 : vector<2x352xbf16>, vector<2x352xbf16>, vector<2x352xbf16> -> vector<6x352xbf16>
    %c0_35 = arith.constant 0 : index
    %c416 = arith.constant 416 : index
    %122 = vector.load %arg2[%c0_35, %c416] : memref<352x672xbf16, #tpu.memory_space<vmem>>, vector<352x32xbf16>
    %cst_36 = arith.constant dense<0.000000e+00> : vector<6x32xf32>
    %123 = tpu.matmul %121, %122, %cst_36 {dimension_numbers = #tpu.dot_dimension_numbers<[1], [0], [0], [1], [0, 0, 1, 1], [], []>} : vector<6x352xbf16>, vector<352x32xbf16>, vector<6x32xf32> -> vector<6x32xf32>
    %124 = arith.addf %116, %123 : vector<6x32xf32>
    %125 = vector.extract_strided_slice %11 {offsets = [28, 0], sizes = [2, 416], strides = [1, 1]} : vector<42x416xbf16> to vector<2x416xbf16>
    %126 = vector.extract_strided_slice %125 {offsets = [0, 0], sizes = [2, 352], strides = [1, 1]} : vector<2x416xbf16> to vector<2x352xbf16>
    %127 = vector.extract_strided_slice %125 {offsets = [0, 32], sizes = [2, 352], strides = [1, 1]} : vector<2x416xbf16> to vector<2x352xbf16>
    %128 = vector.extract_strided_slice %125 {offsets = [0, 64], sizes = [2, 352], strides = [1, 1]} : vector<2x416xbf16> to vector<2x352xbf16>
    %129 = tpu.concatenate %126, %127, %128 in 0 : vector<2x352xbf16>, vector<2x352xbf16>, vector<2x352xbf16> -> vector<6x352xbf16>
    %c0_37 = arith.constant 0 : index
    %c448 = arith.constant 448 : index
    %130 = vector.load %arg2[%c0_37, %c448] : memref<352x672xbf16, #tpu.memory_space<vmem>>, vector<352x32xbf16>
    %cst_38 = arith.constant dense<0.000000e+00> : vector<6x32xf32>
    %131 = tpu.matmul %129, %130, %cst_38 {dimension_numbers = #tpu.dot_dimension_numbers<[1], [0], [0], [1], [0, 0, 1, 1], [], []>} : vector<6x352xbf16>, vector<352x32xbf16>, vector<6x32xf32> -> vector<6x32xf32>
    %132 = arith.addf %124, %131 : vector<6x32xf32>
    %133 = vector.extract_strided_slice %11 {offsets = [30, 0], sizes = [2, 416], strides = [1, 1]} : vector<42x416xbf16> to vector<2x416xbf16>
    %134 = vector.extract_strided_slice %133 {offsets = [0, 0], sizes = [2, 352], strides = [1, 1]} : vector<2x416xbf16> to vector<2x352xbf16>
    %135 = vector.extract_strided_slice %133 {offsets = [0, 32], sizes = [2, 352], strides = [1, 1]} : vector<2x416xbf16> to vector<2x352xbf16>
    %136 = vector.extract_strided_slice %133 {offsets = [0, 64], sizes = [2, 352], strides = [1, 1]} : vector<2x416xbf16> to vector<2x352xbf16>
    %137 = tpu.concatenate %134, %135, %136 in 0 : vector<2x352xbf16>, vector<2x352xbf16>, vector<2x352xbf16> -> vector<6x352xbf16>
    %c0_39 = arith.constant 0 : index
    %c480 = arith.constant 480 : index
    %138 = vector.load %arg2[%c0_39, %c480] : memref<352x672xbf16, #tpu.memory_space<vmem>>, vector<352x32xbf16>
    %cst_40 = arith.constant dense<0.000000e+00> : vector<6x32xf32>
    %139 = tpu.matmul %137, %138, %cst_40 {dimension_numbers = #tpu.dot_dimension_numbers<[1], [0], [0], [1], [0, 0, 1, 1], [], []>} : vector<6x352xbf16>, vector<352x32xbf16>, vector<6x32xf32> -> vector<6x32xf32>
    %140 = arith.addf %132, %139 : vector<6x32xf32>
    %141 = vector.extract_strided_slice %11 {offsets = [32, 0], sizes = [2, 416], strides = [1, 1]} : vector<42x416xbf16> to vector<2x416xbf16>
    %142 = vector.extract_strided_slice %141 {offsets = [0, 0], sizes = [2, 352], strides = [1, 1]} : vector<2x416xbf16> to vector<2x352xbf16>
    %143 = vector.extract_strided_slice %141 {offsets = [0, 32], sizes = [2, 352], strides = [1, 1]} : vector<2x416xbf16> to vector<2x352xbf16>
    %144 = vector.extract_strided_slice %141 {offsets = [0, 64], sizes = [2, 352], strides = [1, 1]} : vector<2x416xbf16> to vector<2x352xbf16>
    %145 = tpu.concatenate %142, %143, %144 in 0 : vector<2x352xbf16>, vector<2x352xbf16>, vector<2x352xbf16> -> vector<6x352xbf16>
    %c0_41 = arith.constant 0 : index
    %c512 = arith.constant 512 : index
    %146 = vector.load %arg2[%c0_41, %c512] : memref<352x672xbf16, #tpu.memory_space<vmem>>, vector<352x32xbf16>
    %cst_42 = arith.constant dense<0.000000e+00> : vector<6x32xf32>
    %147 = tpu.matmul %145, %146, %cst_42 {dimension_numbers = #tpu.dot_dimension_numbers<[1], [0], [0], [1], [0, 0, 1, 1], [], []>} : vector<6x352xbf16>, vector<352x32xbf16>, vector<6x32xf32> -> vector<6x32xf32>
    %148 = arith.addf %140, %147 : vector<6x32xf32>
    %149 = vector.extract_strided_slice %11 {offsets = [34, 0], sizes = [2, 416], strides = [1, 1]} : vector<42x416xbf16> to vector<2x416xbf16>
    %150 = vector.extract_strided_slice %149 {offsets = [0, 0], sizes = [2, 352], strides = [1, 1]} : vector<2x416xbf16> to vector<2x352xbf16>
    %151 = vector.extract_strided_slice %149 {offsets = [0, 32], sizes = [2, 352], strides = [1, 1]} : vector<2x416xbf16> to vector<2x352xbf16>
    %152 = vector.extract_strided_slice %149 {offsets = [0, 64], sizes = [2, 352], strides = [1, 1]} : vector<2x416xbf16> to vector<2x352xbf16>
    %153 = tpu.concatenate %150, %151, %152 in 0 : vector<2x352xbf16>, vector<2x352xbf16>, vector<2x352xbf16> -> vector<6x352xbf16>
    %c0_43 = arith.constant 0 : index
    %c544 = arith.constant 544 : index
    %154 = vector.load %arg2[%c0_43, %c544] : memref<352x672xbf16, #tpu.memory_space<vmem>>, vector<352x32xbf16>
    %cst_44 = arith.constant dense<0.000000e+00> : vector<6x32xf32>
    %155 = tpu.matmul %153, %154, %cst_44 {dimension_numbers = #tpu.dot_dimension_numbers<[1], [0], [0], [1], [0, 0, 1, 1], [], []>} : vector<6x352xbf16>, vector<352x32xbf16>, vector<6x32xf32> -> vector<6x32xf32>
    %156 = arith.addf %148, %155 : vector<6x32xf32>
    %157 = vector.extract_strided_slice %11 {offsets = [36, 0], sizes = [2, 416], strides = [1, 1]} : vector<42x416xbf16> to vector<2x416xbf16>
    %158 = vector.extract_strided_slice %157 {offsets = [0, 0], sizes = [2, 352], strides = [1, 1]} : vector<2x416xbf16> to vector<2x352xbf16>
    %159 = vector.extract_strided_slice %157 {offsets = [0, 32], sizes = [2, 352], strides = [1, 1]} : vector<2x416xbf16> to vector<2x352xbf16>
    %160 = vector.extract_strided_slice %157 {offsets = [0, 64], sizes = [2, 352], strides = [1, 1]} : vector<2x416xbf16> to vector<2x352xbf16>
    %161 = tpu.concatenate %158, %159, %160 in 0 : vector<2x352xbf16>, vector<2x352xbf16>, vector<2x352xbf16> -> vector<6x352xbf16>
    %c0_45 = arith.constant 0 : index
    %c576 = arith.constant 576 : index
    %162 = vector.load %arg2[%c0_45, %c576] : memref<352x672xbf16, #tpu.memory_space<vmem>>, vector<352x32xbf16>
    %cst_46 = arith.constant dense<0.000000e+00> : vector<6x32xf32>
    %163 = tpu.matmul %161, %162, %cst_46 {dimension_numbers = #tpu.dot_dimension_numbers<[1], [0], [0], [1], [0, 0, 1, 1], [], []>} : vector<6x352xbf16>, vector<352x32xbf16>, vector<6x32xf32> -> vector<6x32xf32>
    %164 = arith.addf %156, %163 : vector<6x32xf32>
    %165 = vector.extract_strided_slice %11 {offsets = [38, 0], sizes = [2, 416], strides = [1, 1]} : vector<42x416xbf16> to vector<2x416xbf16>
    %166 = vector.extract_strided_slice %165 {offsets = [0, 0], sizes = [2, 352], strides = [1, 1]} : vector<2x416xbf16> to vector<2x352xbf16>
    %167 = vector.extract_strided_slice %165 {offsets = [0, 32], sizes = [2, 352], strides = [1, 1]} : vector<2x416xbf16> to vector<2x352xbf16>
    %168 = vector.extract_strided_slice %165 {offsets = [0, 64], sizes = [2, 352], strides = [1, 1]} : vector<2x416xbf16> to vector<2x352xbf16>
    %169 = tpu.concatenate %166, %167, %168 in 0 : vector<2x352xbf16>, vector<2x352xbf16>, vector<2x352xbf16> -> vector<6x352xbf16>
    %c0_47 = arith.constant 0 : index
    %c608 = arith.constant 608 : index
    %170 = vector.load %arg2[%c0_47, %c608] : memref<352x672xbf16, #tpu.memory_space<vmem>>, vector<352x32xbf16>
    %cst_48 = arith.constant dense<0.000000e+00> : vector<6x32xf32>
    %171 = tpu.matmul %169, %170, %cst_48 {dimension_numbers = #tpu.dot_dimension_numbers<[1], [0], [0], [1], [0, 0, 1, 1], [], []>} : vector<6x352xbf16>, vector<352x32xbf16>, vector<6x32xf32> -> vector<6x32xf32>
    %172 = arith.addf %164, %171 : vector<6x32xf32>
    %173 = vector.extract_strided_slice %11 {offsets = [40, 0], sizes = [2, 416], strides = [1, 1]} : vector<42x416xbf16> to vector<2x416xbf16>
    %174 = vector.extract_strided_slice %173 {offsets = [0, 0], sizes = [2, 352], strides = [1, 1]} : vector<2x416xbf16> to vector<2x352xbf16>
    %175 = vector.extract_strided_slice %173 {offsets = [0, 32], sizes = [2, 352], strides = [1, 1]} : vector<2x416xbf16> to vector<2x352xbf16>
    %176 = vector.extract_strided_slice %173 {offsets = [0, 64], sizes = [2, 352], strides = [1, 1]} : vector<2x416xbf16> to vector<2x352xbf16>
    %177 = tpu.concatenate %174, %175, %176 in 0 : vector<2x352xbf16>, vector<2x352xbf16>, vector<2x352xbf16> -> vector<6x352xbf16>
    %c0_49 = arith.constant 0 : index
    %c640 = arith.constant 640 : index
    %178 = vector.load %arg2[%c0_49, %c640] : memref<352x672xbf16, #tpu.memory_space<vmem>>, vector<352x32xbf16>
    %cst_50 = arith.constant dense<0.000000e+00> : vector<6x32xf32>
    %179 = tpu.matmul %177, %178, %cst_50 {dimension_numbers = #tpu.dot_dimension_numbers<[1], [0], [0], [1], [0, 0, 1, 1], [], []>} : vector<6x352xbf16>, vector<352x32xbf16>, vector<6x32xf32> -> vector<6x32xf32>
    %180 = arith.addf %172, %179 : vector<6x32xf32>
    %181 = vector.extract_strided_slice %0 {offsets = [1, 0], sizes = [1, 32], strides = [1, 1]} : vector<2x416xf32> to vector<1x32xf32>
    %182 = vector.broadcast %181 : vector<1x32xf32> to vector<6x32xf32>
    %183 = arith.addf %180, %182 : vector<6x32xf32>
    %cst_51 = arith.constant 0.000000e+00 : f32
    %cst_52 = arith.constant 2.000000e+01 : f32
    %184 = vector.broadcast %cst_51 : f32 to vector<6x32xf32>
    %185 = arith.maximumf %184, %183 : vector<6x32xf32>
    %186 = vector.broadcast %cst_52 : f32 to vector<6x32xf32>
    %187 = arith.minimumf %186, %185 : vector<6x32xf32>
    %cst_53 = arith.constant 0.000000e+00 : f32
    %188 = vector.broadcast %cst_53 : f32 to vector<2x32xf32>
    %189 = vector.extract_strided_slice %187 {offsets = [0, 0], sizes = [2, 32], strides = [1, 1]} : vector<6x32xf32> to vector<2x32xf32>
    %190 = arith.addf %188, %189 : vector<2x32xf32>
    %191 = vector.extract_strided_slice %187 {offsets = [2, 0], sizes = [2, 32], strides = [1, 1]} : vector<6x32xf32> to vector<2x32xf32>
    %192 = arith.addf %190, %191 : vector<2x32xf32>
    %193 = vector.extract_strided_slice %187 {offsets = [4, 0], sizes = [2, 32], strides = [1, 1]} : vector<6x32xf32> to vector<2x32xf32>
    %194 = arith.addf %192, %193 : vector<2x32xf32>
    %cst_54 = arith.constant 0.333333343 : f32
    %195 = vector.broadcast %cst_54 : f32 to vector<2x32xf32>
    %196 = arith.mulf %194, %195 : vector<2x32xf32>
    %cst_55 = arith.constant 0.333333343 : f32
    %197 = vector.broadcast %cst_55 : f32 to vector<2x32xf32>
    %198 = arith.addf %196, %197 : vector<2x32xf32>
    %c0_56 = arith.constant 0 : index
    %c0_57 = arith.constant 0 : index
    %199 = vector.load %arg4[%c0_56, %c0_57] : memref<144x128xf32, #tpu.memory_space<vmem>>, vector<32x32xf32>
    %c0_58 = arith.constant 0 : index
    %c32_59 = arith.constant 32 : index
    %200 = vector.load %arg4[%c0_58, %c32_59] : memref<144x128xf32, #tpu.memory_space<vmem>>, vector<32x32xf32>
    %c0_60 = arith.constant 0 : index
    %c64_61 = arith.constant 64 : index
    %201 = vector.load %arg4[%c0_60, %c64_61] : memref<144x128xf32, #tpu.memory_space<vmem>>, vector<32x32xf32>
    %c0_62 = arith.constant 0 : index
    %c96_63 = arith.constant 96 : index
    %202 = vector.load %arg4[%c0_62, %c96_63] : memref<144x128xf32, #tpu.memory_space<vmem>>, vector<32x32xf32>
    %c32_64 = arith.constant 32 : index
    %c0_65 = arith.constant 0 : index
    %203 = vector.load %arg4[%c32_64, %c0_65] : memref<144x128xf32, #tpu.memory_space<vmem>>, vector<32x32xf32>
    %c32_66 = arith.constant 32 : index
    %c32_67 = arith.constant 32 : index
    %204 = vector.load %arg4[%c32_66, %c32_67] : memref<144x128xf32, #tpu.memory_space<vmem>>, vector<32x64xf32>
    %c64_68 = arith.constant 64 : index
    %c0_69 = arith.constant 0 : index
    %205 = vector.load %arg4[%c64_68, %c0_69] : memref<144x128xf32, #tpu.memory_space<vmem>>, vector<64x32xf32>
    %c128_70 = arith.constant 128 : index
    %c0_71 = arith.constant 0 : index
    %206 = vector.load %arg4[%c128_70, %c0_71] : memref<144x128xf32, #tpu.memory_space<vmem>>, vector<1x32xf32>
    %c129 = arith.constant 129 : index
    %c0_72 = arith.constant 0 : index
    %207 = vector.load %arg4[%c129, %c0_72] : memref<144x128xf32, #tpu.memory_space<vmem>>, vector<1x32xf32>
    %c130 = arith.constant 130 : index
    %c0_73 = arith.constant 0 : index
    %208 = vector.load %arg4[%c130, %c0_73] : memref<144x128xf32, #tpu.memory_space<vmem>>, vector<1x32xf32>
    %c131 = arith.constant 131 : index
    %c0_74 = arith.constant 0 : index
    %209 = vector.load %arg4[%c131, %c0_74] : memref<144x128xf32, #tpu.memory_space<vmem>>, vector<1x32xf32>
    %c132 = arith.constant 132 : index
    %c0_75 = arith.constant 0 : index
    %210 = vector.load %arg4[%c132, %c0_75] : memref<144x128xf32, #tpu.memory_space<vmem>>, vector<1x32xf32>
    %c133 = arith.constant 133 : index
    %c0_76 = arith.constant 0 : index
    %211 = vector.load %arg4[%c133, %c0_76] : memref<144x128xf32, #tpu.memory_space<vmem>>, vector<1x32xf32>
    %c134 = arith.constant 134 : index
    %c0_77 = arith.constant 0 : index
    %212 = vector.load %arg4[%c134, %c0_77] : memref<144x128xf32, #tpu.memory_space<vmem>>, vector<1x32xf32>
    %c135 = arith.constant 135 : index
    %c0_78 = arith.constant 0 : index
    %213 = vector.load %arg4[%c135, %c0_78] : memref<144x128xf32, #tpu.memory_space<vmem>>, vector<1x32xf32>
    %c136 = arith.constant 136 : index
    %c0_79 = arith.constant 0 : index
    %214 = vector.load %arg4[%c136, %c0_79] : memref<144x128xf32, #tpu.memory_space<vmem>>, vector<1x32xf32>
    %c137 = arith.constant 137 : index
    %c0_80 = arith.constant 0 : index
    %215 = vector.load %arg4[%c137, %c0_80] : memref<144x128xf32, #tpu.memory_space<vmem>>, vector<1x64xf32>
    %c138 = arith.constant 138 : index
    %c0_81 = arith.constant 0 : index
    %216 = vector.load %arg4[%c138, %c0_81] : memref<144x128xf32, #tpu.memory_space<vmem>>, vector<1x32xf32>
    %c139 = arith.constant 139 : index
    %c0_82 = arith.constant 0 : index
    %217 = vector.load %arg4[%c139, %c0_82] : memref<144x128xf32, #tpu.memory_space<vmem>>, vector<1x32xf32>
    %c140 = arith.constant 140 : index
    %c0_83 = arith.constant 0 : index
    %218 = vector.load %arg4[%c140, %c0_83] : memref<144x128xf32, #tpu.memory_space<vmem>>, vector<1x32xf32>
    %c141 = arith.constant 141 : index
    %c0_84 = arith.constant 0 : index
    %219 = vector.load %arg4[%c141, %c0_84] : memref<144x128xf32, #tpu.memory_space<vmem>>, vector<2x32xf32>
    %cst_85 = arith.constant dense<0.000000e+00> : vector<2x32xf32>
    %220 = tpu.matmul %198, %199, %cst_85 {dimension_numbers = #tpu.dot_dimension_numbers<[1], [0], [0], [1], [0, 0, 1, 1], [], []>} : vector<2x32xf32>, vector<32x32xf32>, vector<2x32xf32> -> vector<2x32xf32>
    %221 = vector.broadcast %206 : vector<1x32xf32> to vector<2x32xf32>
    %222 = arith.addf %220, %221 : vector<2x32xf32>
    %cst_86 = arith.constant dense<0.000000e+00> : vector<2xf32>
    %223 = vector.multi_reduction <add>, %222, %cst_86 [1] : vector<2x32xf32> to vector<2xf32>
    %224 = vector.shape_cast %223 : vector<2xf32> to vector<2x1xf32>
    %cst_87 = arith.constant 3.200000e+01 : f32
    %225 = vector.broadcast %cst_87 : f32 to vector<2x1xf32>
    %226 = arith.divf %224, %225 : vector<2x1xf32>
    %227 = vector.broadcast %226 : vector<2x1xf32> to vector<2x32xf32>
    %228 = arith.subf %222, %227 : vector<2x32xf32>
    %229 = vector.broadcast %226 : vector<2x1xf32> to vector<2x32xf32>
    %230 = arith.subf %222, %229 : vector<2x32xf32>
    %231 = arith.mulf %228, %230 : vector<2x32xf32>
    %cst_88 = arith.constant dense<0.000000e+00> : vector<2xf32>
    %232 = vector.multi_reduction <add>, %231, %cst_88 [1] : vector<2x32xf32> to vector<2xf32>
    %233 = vector.shape_cast %232 : vector<2xf32> to vector<2x1xf32>
    %cst_89 = arith.constant 3.200000e+01 : f32
    %234 = vector.broadcast %cst_89 : f32 to vector<2x1xf32>
    %235 = arith.divf %233, %234 : vector<2x1xf32>
    %236 = vector.broadcast %226 : vector<2x1xf32> to vector<2x32xf32>
    %237 = arith.subf %222, %236 : vector<2x32xf32>
    %cst_90 = arith.constant 9.99999974E-6 : f32
    %238 = vector.broadcast %cst_90 : f32 to vector<2x1xf32>
    %239 = arith.addf %235, %238 : vector<2x1xf32>
    %240 = math.rsqrt %239 : vector<2x1xf32>
    %241 = vector.broadcast %240 : vector<2x1xf32> to vector<2x32xf32>
    %242 = arith.mulf %237, %241 : vector<2x32xf32>
    %243 = vector.broadcast %207 : vector<1x32xf32> to vector<2x32xf32>
    %244 = arith.mulf %242, %243 : vector<2x32xf32>
    %245 = vector.broadcast %208 : vector<1x32xf32> to vector<2x32xf32>
    %246 = arith.addf %244, %245 : vector<2x32xf32>
    %247 = arith.addf %246, %219 : vector<2x32xf32>
    %cst_91 = arith.constant dense<0.000000e+00> : vector<2x32xf32>
    %248 = tpu.matmul %247, %200, %cst_91 {dimension_numbers = #tpu.dot_dimension_numbers<[1], [0], [0], [1], [0, 0, 1, 1], [], []>} : vector<2x32xf32>, vector<32x32xf32>, vector<2x32xf32> -> vector<2x32xf32>
    %249 = vector.broadcast %209 : vector<1x32xf32> to vector<2x32xf32>
    %250 = arith.addf %248, %249 : vector<2x32xf32>
    %cst_92 = arith.constant dense<0.000000e+00> : vector<2x32xf32>
    %251 = tpu.matmul %250, %201, %cst_92 {dimension_numbers = #tpu.dot_dimension_numbers<[1], [0], [0], [1], [0, 0, 1, 1], [], []>} : vector<2x32xf32>, vector<32x32xf32>, vector<2x32xf32> -> vector<2x32xf32>
    %252 = vector.broadcast %210 : vector<1x32xf32> to vector<2x32xf32>
    %253 = arith.addf %251, %252 : vector<2x32xf32>
    %cst_93 = arith.constant dense<0.000000e+00> : vector<2x32xf32>
    %254 = tpu.matmul %253, %202, %cst_93 {dimension_numbers = #tpu.dot_dimension_numbers<[1], [0], [0], [1], [0, 0, 1, 1], [], []>} : vector<2x32xf32>, vector<32x32xf32>, vector<2x32xf32> -> vector<2x32xf32>
    %255 = vector.broadcast %211 : vector<1x32xf32> to vector<2x32xf32>
    %256 = arith.addf %254, %255 : vector<2x32xf32>
    %cst_94 = arith.constant dense<0xFF800000> : vector<2xf32>
    %257 = vector.multi_reduction <maximumf>, %256, %cst_94 [1] : vector<2x32xf32> to vector<2xf32>
    %258 = vector.shape_cast %257 : vector<2xf32> to vector<2x1xf32>
    %259 = vector.broadcast %258 : vector<2x1xf32> to vector<2x32xf32>
    %260 = arith.subf %256, %259 : vector<2x32xf32>
    %261 = math.exp %260 : vector<2x32xf32>
    %cst_95 = arith.constant dense<0.000000e+00> : vector<2xf32>
    %262 = vector.multi_reduction <add>, %261, %cst_95 [1] : vector<2x32xf32> to vector<2xf32>
    %263 = vector.shape_cast %262 : vector<2xf32> to vector<2x1xf32>
    %264 = vector.broadcast %263 : vector<2x1xf32> to vector<2x32xf32>
    %265 = arith.divf %261, %264 : vector<2x32xf32>
    %cst_96 = arith.constant dense<0.000000e+00> : vector<2x32xf32>
    %266 = tpu.matmul %265, %203, %cst_96 {dimension_numbers = #tpu.dot_dimension_numbers<[1], [0], [0], [1], [0, 0, 1, 1], [], []>} : vector<2x32xf32>, vector<32x32xf32>, vector<2x32xf32> -> vector<2x32xf32>
    %267 = vector.broadcast %212 : vector<1x32xf32> to vector<2x32xf32>
    %268 = arith.addf %266, %267 : vector<2x32xf32>
    %cst_97 = arith.constant dense<0.000000e+00> : vector<2xf32>
    %269 = vector.multi_reduction <add>, %268, %cst_97 [1] : vector<2x32xf32> to vector<2xf32>
    %270 = vector.shape_cast %269 : vector<2xf32> to vector<2x1xf32>
    %cst_98 = arith.constant 3.200000e+01 : f32
    %271 = vector.broadcast %cst_98 : f32 to vector<2x1xf32>
    %272 = arith.divf %270, %271 : vector<2x1xf32>
    %273 = vector.broadcast %272 : vector<2x1xf32> to vector<2x32xf32>
    %274 = arith.subf %268, %273 : vector<2x32xf32>
    %275 = vector.broadcast %272 : vector<2x1xf32> to vector<2x32xf32>
    %276 = arith.subf %268, %275 : vector<2x32xf32>
    %277 = arith.mulf %274, %276 : vector<2x32xf32>
    %cst_99 = arith.constant dense<0.000000e+00> : vector<2xf32>
    %278 = vector.multi_reduction <add>, %277, %cst_99 [1] : vector<2x32xf32> to vector<2xf32>
    %279 = vector.shape_cast %278 : vector<2xf32> to vector<2x1xf32>
    %cst_100 = arith.constant 3.200000e+01 : f32
    %280 = vector.broadcast %cst_100 : f32 to vector<2x1xf32>
    %281 = arith.divf %279, %280 : vector<2x1xf32>
    %282 = vector.broadcast %272 : vector<2x1xf32> to vector<2x32xf32>
    %283 = arith.subf %268, %282 : vector<2x32xf32>
    %cst_101 = arith.constant 9.99999974E-6 : f32
    %284 = vector.broadcast %cst_101 : f32 to vector<2x1xf32>
    %285 = arith.addf %281, %284 : vector<2x1xf32>
    %286 = math.rsqrt %285 : vector<2x1xf32>
    %287 = vector.broadcast %286 : vector<2x1xf32> to vector<2x32xf32>
    %288 = arith.mulf %283, %287 : vector<2x32xf32>
    %289 = vector.broadcast %213 : vector<1x32xf32> to vector<2x32xf32>
    %290 = arith.mulf %288, %289 : vector<2x32xf32>
    %291 = vector.broadcast %214 : vector<1x32xf32> to vector<2x32xf32>
    %292 = arith.addf %290, %291 : vector<2x32xf32>
    %cst_102 = arith.constant dense<0.000000e+00> : vector<2x64xf32>
    %293 = tpu.matmul %292, %204, %cst_102 {dimension_numbers = #tpu.dot_dimension_numbers<[1], [0], [0], [1], [0, 0, 1, 1], [], []>} : vector<2x32xf32>, vector<32x64xf32>, vector<2x64xf32> -> vector<2x64xf32>
    %294 = vector.broadcast %215 : vector<1x64xf32> to vector<2x64xf32>
    %295 = arith.addf %293, %294 : vector<2x64xf32>
    %cst_103 = arith.constant dense<0.000000e+00> : vector<2x32xf32>
    %296 = tpu.matmul %295, %205, %cst_103 {dimension_numbers = #tpu.dot_dimension_numbers<[1], [0], [0], [1], [0, 0, 1, 1], [], []>} : vector<2x64xf32>, vector<64x32xf32>, vector<2x32xf32> -> vector<2x32xf32>
    %297 = vector.broadcast %216 : vector<1x32xf32> to vector<2x32xf32>
    %298 = arith.addf %296, %297 : vector<2x32xf32>
    %cst_104 = arith.constant dense<0.000000e+00> : vector<2xf32>
    %299 = vector.multi_reduction <add>, %298, %cst_104 [1] : vector<2x32xf32> to vector<2xf32>
    %300 = vector.shape_cast %299 : vector<2xf32> to vector<2x1xf32>
    %cst_105 = arith.constant 3.200000e+01 : f32
    %301 = vector.broadcast %cst_105 : f32 to vector<2x1xf32>
    %302 = arith.divf %300, %301 : vector<2x1xf32>
    %303 = vector.broadcast %302 : vector<2x1xf32> to vector<2x32xf32>
    %304 = arith.subf %298, %303 : vector<2x32xf32>
    %305 = vector.broadcast %302 : vector<2x1xf32> to vector<2x32xf32>
    %306 = arith.subf %298, %305 : vector<2x32xf32>
    %307 = arith.mulf %304, %306 : vector<2x32xf32>
    %cst_106 = arith.constant dense<0.000000e+00> : vector<2xf32>
    %308 = vector.multi_reduction <add>, %307, %cst_106 [1] : vector<2x32xf32> to vector<2xf32>
    %309 = vector.shape_cast %308 : vector<2xf32> to vector<2x1xf32>
    %cst_107 = arith.constant 3.200000e+01 : f32
    %310 = vector.broadcast %cst_107 : f32 to vector<2x1xf32>
    %311 = arith.divf %309, %310 : vector<2x1xf32>
    %312 = vector.broadcast %302 : vector<2x1xf32> to vector<2x32xf32>
    %313 = arith.subf %298, %312 : vector<2x32xf32>
    %cst_108 = arith.constant 9.99999974E-6 : f32
    %314 = vector.broadcast %cst_108 : f32 to vector<2x1xf32>
    %315 = arith.addf %311, %314 : vector<2x1xf32>
    %316 = math.rsqrt %315 : vector<2x1xf32>
    %317 = vector.broadcast %316 : vector<2x1xf32> to vector<2x32xf32>
    %318 = arith.mulf %313, %317 : vector<2x32xf32>
    %319 = vector.broadcast %217 : vector<1x32xf32> to vector<2x32xf32>
    %320 = arith.mulf %318, %319 : vector<2x32xf32>
    %321 = vector.broadcast %218 : vector<1x32xf32> to vector<2x32xf32>
    %322 = arith.addf %320, %321 : vector<2x32xf32>
    %cst_109 = arith.constant 2.000000e+00 : f32
    %323 = vector.broadcast %cst_109 : f32 to vector<2x32xf32>
    %324 = arith.mulf %323, %322 : vector<2x32xf32>
    %c0_110 = arith.constant 0 : index
    %c0_111 = arith.constant 0 : index
    %325 = vector.load %arg5[%c0_110, %c0_111] : memref<2x32xf32, #tpu.memory_space<vmem>>, vector<2x32xf32>
    tpu.vector_store %arg5[%c0_110, %c0_111], %324 {strides = array<i32>} : memref<2x32xf32, #tpu.memory_space<vmem>>, vector<2x32xf32>,
    return
  }
}

</mosaic_0001>

<llo_original>
// kernel: net_forward.1
$region0: #{net_forward.1}
  #allocation0 [shape = 'u32[]', space=smem, size = 0x4, offset = 0x4, fixed_abs, tag = 'smem constant byte address 0x4 - core index']
  #allocation1 [shape = 'u32[144,128]{1,0:T(1,128)}', space=vmem, size = 0x12000, scoped, tag = 'internal scratch']
  %s0 = inlined_call_operand.vmem [shape: bf16[42,1476], index: 0, kind: input, shape index: {}]
  %s1 = inlined_call_operand.vmem [shape: bf16[1476,416], index: 1, kind: input, shape index: {}]
  %s2 = inlined_call_operand.vmem [shape: bf16[352,672], index: 2, kind: input, shape index: {}]
  %s3 = inlined_call_operand.vmem [shape: f32[2,416], index: 3, kind: input, shape index: {}]
  %s4 = inlined_call_operand.vmem [shape: f32[144,128], index: 4, kind: input, shape index: {}]
  %s5 = inlined_call_operand.hbm [shape: f32[2,32], index: 5, kind: output, shape index: {}]
  %s6 = sld [smem:[#allocation0]]
  $region30: #{net_forward.1} parent=0
    _
  %s8 = ssub.s32 1, %s6
  %s9 = scalar_select 0, %s8, %s6
  $region1: #{net_forward.1} parent=0
    #allocation2 [shape = 'u8[1024]{0}', space=vmem, size = 0x400, scoped, tag = 'output window, operand 0, single buffered']
    #allocation3 [shape = 's32[1]{0}', space=sflag, size = 0x4, scoped, tag = 'scoped memory for net_forward.1']
    %10 = vsyncpa [#allocation3], 0
    // Predicated region
    $region2: #{net_forward.1} parent=1 // pred_check
      _
    $region3: #{net_forward.1} parent=1 // pred_check_branch
      %12 = sbr.rel (0) target = $region5
    $region4: #{net_forward.1} parent=1 // pred_region
      _
    $region5: #{net_forward.1} parent=1 // pred_fallthru
      _
    // Predicated region
    $region6: #{net_forward.1} parent=1 // pred_check
      _
    $region7: #{net_forward.1} parent=1 // pred_check_branch
      %14 = sbr.rel (0) target = $region9
    $region8: #{net_forward.1} parent=1 // pred_region
      _
    $region9: #{net_forward.1} parent=1 // pred_fallthru
      _
    // Predicated region
    $region10: #{net_forward.1} parent=1 // pred_check
      _
    $region11: #{net_forward.1} parent=1 // pred_check_branch
      %16 = sbr.rel (0) target = $region13
    $region12: #{net_forward.1} parent=1 // pred_region
      _
    $region13: #{net_forward.1} parent=1 // pred_fallthru
      _
    // Predicated region
    $region14: #{net_forward.1} parent=1 // pred_check
      _
    $region15: #{net_forward.1} parent=1 // pred_check_branch
      %18 = sbr.rel (0) target = $region17
    $region16: #{net_forward.1} parent=1 // pred_region
      _
    $region17: #{net_forward.1} parent=1 // pred_fallthru
      _
    // Predicated region
    $region18: #{net_forward.1} parent=1 // pred_check
      _
    $region19: #{net_forward.1} parent=1 // pred_check_branch
      %20 = sbr.rel (0) target = $region21
    $region20: #{net_forward.1} parent=1 // pred_region
      _
    $region21: #{net_forward.1} parent=1 // pred_fallthru
      _
    %v22 = vld [vmem:[%s3] sm:$0xff]
    %v23 = vld [vmem:[%s0] sm:$0xff]
    %v24 = vld [vmem:[%s0 + $0x8] sm:$0xff]
    %v25 = vld [vmem:[%s0 + $0x10] sm:$0xff]
    %v26 = vld [vmem:[%s0 + $0x18] sm:$0xff]
    %v27 = vld [vmem:[%s0 + $0x20] sm:$0xff]
    %v28 = vld [vmem:[%s0 + $0x28] sm:$0xff]
    %v29 = vld [vmem:[%s0 + $0x30] sm:$0xff]
    %v30 = vld [vmem:[%s0 + $0x38] sm:$0xff]
    %v31 = vld [vmem:[%s0 + $0x40] sm:$0xff]
    %v32 = vld [vmem:[%s0 + $0x48] sm:$0xff]
    %v33 = vld [vmem:[%s0 + $0x50] sm:$0xff]
    %v34 = vld [vmem:[%s0 + $0x58] sm:$0xff]
    %v35 = vld [vmem:[%s0 + $0x60] sm:$0xff]
    %v36 = vld [vmem:[%s0 + $0x68] sm:$0xff]
    %v37 = vld [vmem:[%s0 + $0x70] sm:$0xff]
    %v38 = vld [vmem:[%s0 + $0x78] sm:$0xff]
    %v39 = vld [vmem:[%s0 + $0x80] sm:$0xff]
    %v40 = vld [vmem:[%s0 + $0x88] sm:$0xff]
    %v41 = vld [vmem:[%s0 + $0x90] sm:$0xff]
    %v42 = vld [vmem:[%s0 + $0x98] sm:$0xff]
    %v43 = vld [vmem:[%s0 + $0xa0] sm:$0xff]
    %v44 = vld [vmem:[%s0 + $0xa8] sm:$0xff]
    %v45 = vld [vmem:[%s0 + $0xb0] sm:$0xff]
    %v46 = vld [vmem:[%s0 + $0xb8] sm:$0xff]
    %v47 = vld [vmem:[%s0 + $0xc0] sm:$0xff]
    %v48 = vld [vmem:[%s0 + $0xc8] sm:$0xff]
    %v49 = vld [vmem:[%s0 + $0xd0] sm:$0xff]
    %v50 = vld [vmem:[%s0 + $0xd8] sm:$0xff]
    %v51 = vld [vmem:[%s0 + $0xe0] sm:$0xff]
    %v52 = vld [vmem:[%s0 + $0xe8] sm:$0xff]
    %v53 = vld [vmem:[%s0 + $0xf0] sm:$0x11]
    %v54 = vld [vmem:[%s0 + $0xf8] sm:$0x11]
    %v55 = vld [vmem:[%s0 + $0x100] sm:$0x11]
    %v56 = vld [vmem:[%s0 + $0x108] sm:$0x11]
    %v57 = vld [vmem:[%s0 + $0x110] sm:$0x11]
    %v58 = vld [vmem:[%s0 + $0x118] sm:$0x11]
    %v59 = vld [vmem:[%s1] sm:$0xff]
    %v60 = vld [vmem:[%s1 + $0x8] sm:$0xff]
    %v61 = vld [vmem:[%s1 + $0x10] sm:$0xff]
    %v62 = vld [vmem:[%s1 + $0x18] sm:$0xff]
    %v63 = vld [vmem:[%s1 + $0x20] sm:$0xff]
    %v64 = vld [vmem:[%s1 + $0x28] sm:$0xff]
    %v65 = vld [vmem:[%s1 + $0x30] sm:$0xff]
    %v66 = vld [vmem:[%s1 + $0x38] sm:$0xff]
    %v67 = vld [vmem:[%s1 + $0x40] sm:$0xff]
    %v68 = vld [vmem:[%s1 + $0x48] sm:$0xff]
    %v69 = vld [vmem:[%s1 + $0x50] sm:$0xff]
    %v70 = vld [vmem:[%s1 + $0x58] sm:$0xff]
    %v71 = vld [vmem:[%s1 + $0x60] sm:$0xff]
    %v72 = vld [vmem:[%s1 + $0x68] sm:$0xff]
    %v73 = vld [vmem:[%s1 + $0x70] sm:$0xff]
    %v74 = vld [vmem:[%s1 + $0x78] sm:$0xff]
    %v75 = vld [vmem:[%s1 + $0x80] sm:$0xff]
    %v76 = vld [vmem:[%s1 + $0x88] sm:$0xff]
    %v77 = vld [vmem:[%s1 + $0x90] sm:$0xff]
    %v78 = vld [vmem:[%s1 + $0x98] sm:$0xff]
    %v79 = vld [vmem:[%s1 + $0xa0] sm:$0xff]
    %v80 = vld [vmem:[%s1 + $0xa8] sm:$0xff]
    %v81 = vld [vmem:[%s1 + $0xb0] sm:$0xff]
    %v82 = vld [vmem:[%s1 + $0xb8] sm:$0xff]
    %v83 = vld [vmem:[%s1 + $0xc0] sm:$0xff]
    %v84 = vld [vmem:[%s1 + $0xc8] sm:$0xff]
    %v85 = vld [vmem:[%s1 + $0xd0] sm:$0xff]
    %v86 = vld [vmem:[%s1 + $0xd8] sm:$0xff]
    %v87 = vld [vmem:[%s1 + $0xe0] sm:$0xff]
    %v88 = vld [vmem:[%s1 + $0xe8] sm:$0xff]
    %v89 = vld [vmem:[%s1 + $0xf0] sm:$0xff]
    %v90 = vld [vmem:[%s1 + $0xf8] sm:$0xff]
    %v91 = vld [vmem:[%s1 + $0x100] sm:$0xff]
    %v92 = vld [vmem:[%s1 + $0x108] sm:$0xff]
    %v93 = vld [vmem:[%s1 + $0x110] sm:$0xff]
    %v94 = vld [vmem:[%s1 + $0x118] sm:$0xff]
    %v95 = vld [vmem:[%s1 + $0x120] sm:$0xff]
    %v96 = vld [vmem:[%s1 + $0x128] sm:$0xff]
    %v97 = vld [vmem:[%s1 + $0x130] sm:$0xff]
    %v98 = vld [vmem:[%s1 + $0x138] sm:$0xff]
    %v99 = vld [vmem:[%s1 + $0x140] sm:$0xff]
    %v100 = vld [vmem:[%s1 + $0x148] sm:$0xff]
    %v101 = vld [vmem:[%s1 + $0x150] sm:$0xff]
    %v102 = vld [vmem:[%s1 + $0x158] sm:$0xff]
    %v103 = vld [vmem:[%s1 + $0x160] sm:$0xff]
    %v104 = vld [vmem:[%s1 + $0x168] sm:$0xff]
    %v105 = vld [vmem:[%s1 + $0x170] sm:$0xff]
    %v106 = vld [vmem:[%s1 + $0x178] sm:$0xff]
    %v107 = vld [vmem:[%s1 + $0x180] sm:$0xff]
    %v108 = vld [vmem:[%s1 + $0x188] sm:$0xff]
    %v109 = vld [vmem:[%s1 + $0x190] sm:$0xff]
    %v110 = vld [vmem:[%s1 + $0x198] sm:$0xff]
    %v111 = vld [vmem:[%s1 + $0x1a0] sm:$0xff]
    %v112 = vld [vmem:[%s1 + $0x1a8] sm:$0xff]
    %v113 = vld [vmem:[%s1 + $0x1b0] sm:$0xff]
    %v114 = vld [vmem:[%s1 + $0x1b8] sm:$0xff]
    %v115 = vld [vmem:[%s1 + $0x1c0] sm:$0xff]
    %v116 = vld [vmem:[%s1 + $0x1c8] sm:$0xff]
    %v117 = vld [vmem:[%s1 + $0x1d0] sm:$0xff]
    %v118 = vld [vmem:[%s1 + $0x1d8] sm:$0xff]
    %v119 = vld [vmem:[%s1 + $0x1e0] sm:$0xff]
    %v120 = vld [vmem:[%s1 + $0x1e8] sm:$0xff]
    %v121 = vld [vmem:[%s1 + $0x1f0] sm:$0xff]
    %v122 = vld [vmem:[%s1 + $0x1f8] sm:$0xff]
    %v123 = vld [vmem:[%s1 + $0x200] sm:$0xff]
    %v124 = vld [vmem:[%s1 + $0x208] sm:$0xff]
    %v125 = vld [vmem:[%s1 + $0x210] sm:$0xff]
    %v126 = vld [vmem:[%s1 + $0x218] sm:$0xff]
    %v127 = vld [vmem:[%s1 + $0x220] sm:$0xff]
    %v128 = vld [vmem:[%s1 + $0x228] sm:$0xff]
    %v129 = vld [vmem:[%s1 + $0x230] sm:$0xff]
    %v130 = vld [vmem:[%s1 + $0x238] sm:$0xff]
    %v131 = vld [vmem:[%s1 + $0x240] sm:$0xff]
    %v132 = vld [vmem:[%s1 + $0x248] sm:$0xff]
    %v133 = vld [vmem:[%s1 + $0x250] sm:$0xff]
    %v134 = vld [vmem:[%s1 + $0x258] sm:$0xff]
    %v135 = vld [vmem:[%s1 + $0x260] sm:$0xff]
    %v136 = vld [vmem:[%s1 + $0x268] sm:$0xff]
    %v137 = vld [vmem:[%s1 + $0x270] sm:$0xff]
    %v138 = vld [vmem:[%s1 + $0x278] sm:$0xff]
    %v139 = vld [vmem:[%s1 + $0x280] sm:$0xff]
    %v140 = vld [vmem:[%s1 + $0x288] sm:$0xff]
    %v141 = vld [vmem:[%s1 + $0x290] sm:$0xff]
    %v142 = vld [vmem:[%s1 + $0x298] sm:$0xff]
    %v143 = vld [vmem:[%s1 + $0x2a0] sm:$0xff]
    %v144 = vld [vmem:[%s1 + $0x2a8] sm:$0xff]
    %v145 = vld [vmem:[%s1 + $0x2b0] sm:$0xff]
    %v146 = vld [vmem:[%s1 + $0x2b8] sm:$0xff]
    %v147 = vld [vmem:[%s1 + $0x2c0] sm:$0xff]
    %v148 = vld [vmem:[%s1 + $0x2c8] sm:$0xff]
    %v149 = vld [vmem:[%s1 + $0x2d0] sm:$0xff]
    %v150 = vld [vmem:[%s1 + $0x2d8] sm:$0xff]
    %v151 = vld [vmem:[%s1 + $0x2e0] sm:$0xff]
    %v152 = vld [vmem:[%s1 + $0x2e8] sm:$0xff]
    %v153 = vld [vmem:[%s1 + $0x2f0] sm:$0xff]
    %v154 = vld [vmem:[%s1 + $0x2f8] sm:$0xff]
    %v155 = vld [vmem:[%s1 + $0x300] sm:$0xff]
    %v156 = vld [vmem:[%s1 + $0x308] sm:$0xff]
    %v157 = vld [vmem:[%s1 + $0x310] sm:$0xff]
    %v158 = vld [vmem:[%s1 + $0x318] sm:$0xff]
    %v159 = vld [vmem:[%s1 + $0x320] sm:$0xff]
    %v160 = vld [vmem:[%s1 + $0x328] sm:$0xff]
    %v161 = vld [vmem:[%s1 + $0x330] sm:$0xff]
    %v162 = vld [vmem:[%s1 + $0x338] sm:$0xff]
    %v163 = vld [vmem:[%s1 + $0x340] sm:$0xff]
    %v164 = vld [vmem:[%s1 + $0x348] sm:$0xff]
    %v165 = vld [vmem:[%s1 + $0x350] sm:$0xff]
    %v166 = vld [vmem:[%s1 + $0x358] sm:$0xff]
    %v167 = vld [vmem:[%s1 + $0x360] sm:$0xff]
    %v168 = vld [vmem:[%s1 + $0x368] sm:$0xff]
    %v169 = vld [vmem:[%s1 + $0x370] sm:$0xff]
    %v170 = vld [vmem:[%s1 + $0x378] sm:$0xff]
    %v171 = vld [vmem:[%s1 + $0x380] sm:$0xff]
    %v172 = vld [vmem:[%s1 + $0x388] sm:$0xff]
    %v173 = vld [vmem:[%s1 + $0x390] sm:$0xff]
    %v174 = vld [vmem:[%s1 + $0x398] sm:$0xff]
    %v175 = vld [vmem:[%s1 + $0x3a0] sm:$0xff]
    %v176 = vld [vmem:[%s1 + $0x3a8] sm:$0xff]
    %v177 = vld [vmem:[%s1 + $0x3b0] sm:$0xff]
    %v178 = vld [vmem:[%s1 + $0x3b8] sm:$0xff]
    %v179 = vld [vmem:[%s1 + $0x3c0] sm:$0xff]
    %v180 = vld [vmem:[%s1 + $0x3c8] sm:$0xff]
    %v181 = vld [vmem:[%s1 + $0x3d0] sm:$0xff]
    %v182 = vld [vmem:[%s1 + $0x3d8] sm:$0xff]
    %v183 = vld [vmem:[%s1 + $0x3e0] sm:$0xff]
    %v184 = vld [vmem:[%s1 + $0x3e8] sm:$0xff]
    %v185 = vld [vmem:[%s1 + $0x3f0] sm:$0xff]
    %v186 = vld [vmem:[%s1 + $0x3f8] sm:$0xff]
    %v187 = vld [vmem:[%s1 + $0x400] sm:$0xff]
    %v188 = vld [vmem:[%s1 + $0x408] sm:$0xff]
    %v189 = vld [vmem:[%s1 + $0x410] sm:$0xff]
    %v190 = vld [vmem:[%s1 + $0x418] sm:$0xff]
    %v191 = vld [vmem:[%s1 + $0x420] sm:$0xff]
    %v192 = vld [vmem:[%s1 + $0x428] sm:$0xff]
    %v193 = vld [vmem:[%s1 + $0x430] sm:$0xff]
    %v194 = vld [vmem:[%s1 + $0x438] sm:$0xff]
    %v195 = vld [vmem:[%s1 + $0x440] sm:$0xff]
    %v196 = vld [vmem:[%s1 + $0x448] sm:$0xff]
    %v197 = vld [vmem:[%s1 + $0x450] sm:$0xff]
    %v198 = vld [vmem:[%s1 + $0x458] sm:$0xff]
    %v199 = vld [vmem:[%s1 + $0x460] sm:$0xff]
    %v200 = vld [vmem:[%s1 + $0x468] sm:$0xff]
    %v201 = vld [vmem:[%s1 + $0x470] sm:$0xff]
    %v202 = vld [vmem:[%s1 + $0x478] sm:$0xff]
    %v203 = vld [vmem:[%s1 + $0x480] sm:$0xff]
    %v204 = vld [vmem:[%s1 + $0x488] sm:$0xff]
    %v205 = vld [vmem:[%s1 + $0x490] sm:$0xff]
    %v206 = vld [vmem:[%s1 + $0x498] sm:$0xff]
    %v207 = vld [vmem:[%s1 + $0x4a0] sm:$0xff]
    %v208 = vld [vmem:[%s1 + $0x4a8] sm:$0xff]
    %v209 = vld [vmem:[%s1 + $0x4b0] sm:$0xff]
    %v210 = vld [vmem:[%s1 + $0x4b8] sm:$0xff]
    %v211 = vld [vmem:[%s1 + $0x4c0] sm:$0xff]
    %v212 = vld [vmem:[%s1 + $0x4c8] sm:$0xff]
    %v213 = vld [vmem:[%s1 + $0x4d0] sm:$0xff]
    %v214 = vld [vmem:[%s1 + $0x4d8] sm:$0xff]
    %v215 = vld [vmem:[%s1 + $0x4e0] sm:$0xff]
    %v216 = vld [vmem:[%s1 + $0x4e8] sm:$0xff]
    %v217 = vld [vmem:[%s1 + $0x4f0] sm:$0xff]
    %v218 = vld [vmem:[%s1 + $0x4f8] sm:$0xff]
    %v219 = vld [vmem:[%s1 + $0x500] sm:$0xff]
    %v220 = vld [vmem:[%s1 + $0x508] sm:$0xff]
    %v221 = vld [vmem:[%s1 + $0x510] sm:$0xff]
    %v222 = vld [vmem:[%s1 + $0x518] sm:$0xff]
    %v223 = vld [vmem:[%s1 + $0x520] sm:$0xff]
    %v224 = vld [vmem:[%s1 + $0x528] sm:$0xff]
    %v225 = vld [vmem:[%s1 + $0x530] sm:$0xff]
    %v226 = vld [vmem:[%s1 + $0x538] sm:$0xff]
    %v227 = vld [vmem:[%s1 + $0x540] sm:$0xff]
    %v228 = vld [vmem:[%s1 + $0x548] sm:$0xff]
    %v229 = vld [vmem:[%s1 + $0x550] sm:$0xff]
    %v230 = vld [vmem:[%s1 + $0x558] sm:$0xff]
    %v231 = vld [vmem:[%s1 + $0x560] sm:$0xff]
    %v232 = vld [vmem:[%s1 + $0x568] sm:$0xff]
    %v233 = vld [vmem:[%s1 + $0x570] sm:$0xff]
    %v234 = vld [vmem:[%s1 + $0x578] sm:$0xff]
    %v235 = vld [vmem:[%s1 + $0x580] sm:$0xff]
    %v236 = vld [vmem:[%s1 + $0x588] sm:$0xff]
    %v237 = vld [vmem:[%s1 + $0x590] sm:$0xff]
    %v238 = vld [vmem:[%s1 + $0x598] sm:$0xff]
    %v239 = vld [vmem:[%s1 + $0x5a0] sm:$0xff]
    %v240 = vld [vmem:[%s1 + $0x5a8] sm:$0xff]
    %v241 = vld [vmem:[%s1 + $0x5b0] sm:$0xff]
    %v242 = vld [vmem:[%s1 + $0x5b8] sm:$0xff]
    %v243 = vld [vmem:[%s1 + $0x5c0] sm:$0xff]
    %v244 = vld [vmem:[%s1 + $0x5c8] sm:$0xff]
    %v245 = vld [vmem:[%s1 + $0x5d0] sm:$0xff]
    %v246 = vld [vmem:[%s1 + $0x5d8] sm:$0xff]
    %v247 = vld [vmem:[%s1 + $0x5e0] sm:$0xff]
    %v248 = vld [vmem:[%s1 + $0x5e8] sm:$0xff]
    %v249 = vld [vmem:[%s1 + $0x5f0] sm:$0xff]
    %v250 = vld [vmem:[%s1 + $0x5f8] sm:$0xff]
    %v251 = vld [vmem:[%s1 + $0x600] sm:$0xff]
    %v252 = vld [vmem:[%s1 + $0x608] sm:$0xff]
    %v253 = vld [vmem:[%s1 + $0x610] sm:$0xff]
    %v254 = vld [vmem:[%s1 + $0x618] sm:$0xff]
    %v255 = vld [vmem:[%s1 + $0x620] sm:$0xff]
    %v256 = vld [vmem:[%s1 + $0x628] sm:$0xff]
    %v257 = vld [vmem:[%s1 + $0x630] sm:$0xff]
    %v258 = vld [vmem:[%s1 + $0x638] sm:$0xff]
    %v259 = vld [vmem:[%s1 + $0x640] sm:$0xff]
    %v260 = vld [vmem:[%s1 + $0x648] sm:$0xff]
    %v261 = vld [vmem:[%s1 + $0x650] sm:$0xff]
    %v262 = vld [vmem:[%s1 + $0x658] sm:$0xff]
    %v263 = vld [vmem:[%s1 + $0x660] sm:$0xff]
    %v264 = vld [vmem:[%s1 + $0x668] sm:$0xff]
    %v265 = vld [vmem:[%s1 + $0x670] sm:$0xff]
    %v266 = vld [vmem:[%s1 + $0x678] sm:$0xff]
    %v267 = vld [vmem:[%s1 + $0x680] sm:$0xff]
    %v268 = vld [vmem:[%s1 + $0x688] sm:$0xff]
    %v269 = vld [vmem:[%s1 + $0x690] sm:$0xff]
    %v270 = vld [vmem:[%s1 + $0x698] sm:$0xff]
    %v271 = vld [vmem:[%s1 + $0x6a0] sm:$0xff]
    %v272 = vld [vmem:[%s1 + $0x6a8] sm:$0xff]
    %v273 = vld [vmem:[%s1 + $0x6b0] sm:$0xff]
    %v274 = vld [vmem:[%s1 + $0x6b8] sm:$0xff]
    %v275 = vld [vmem:[%s1 + $0x6c0] sm:$0xff]
    %v276 = vld [vmem:[%s1 + $0x6c8] sm:$0xff]
    %v277 = vld [vmem:[%s1 + $0x6d0] sm:$0xff]
    %v278 = vld [vmem:[%s1 + $0x6d8] sm:$0xff]
    %v279 = vld [vmem:[%s1 + $0x6e0] sm:$0xff]
    %v280 = vld [vmem:[%s1 + $0x6e8] sm:$0xff]
    %v281 = vld [vmem:[%s1 + $0x6f0] sm:$0xff]
    %v282 = vld [vmem:[%s1 + $0x6f8] sm:$0xff]
    %v283 = vld [vmem:[%s1 + $0x700] sm:$0xff]
    %v284 = vld [vmem:[%s1 + $0x708] sm:$0xff]
    %v285 = vld [vmem:[%s1 + $0x710] sm:$0xff]
    %v286 = vld [vmem:[%s1 + $0x718] sm:$0xff]
    %v287 = vld [vmem:[%s1 + $0x720] sm:$0xff]
    %v288 = vld [vmem:[%s1 + $0x728] sm:$0xff]
    %v289 = vld [vmem:[%s1 + $0x730] sm:$0xff]
    %v290 = vld [vmem:[%s1 + $0x738] sm:$0xff]
    %v291 = vld [vmem:[%s1 + $0x740] sm:$0xff]
    %v292 = vld [vmem:[%s1 + $0x748] sm:$0xff]
    %v293 = vld [vmem:[%s1 + $0x750] sm:$0xff]
    %v294 = vld [vmem:[%s1 + $0x758] sm:$0xff]
    %v295 = vld [vmem:[%s1 + $0x760] sm:$0xff]
    %v296 = vld [vmem:[%s1 + $0x768] sm:$0xff]
    %v297 = vld [vmem:[%s1 + $0x770] sm:$0xff]
    %v298 = vld [vmem:[%s1 + $0x778] sm:$0xff]
    %v299 = vld [vmem:[%s1 + $0x780] sm:$0xff]
    %v300 = vld [vmem:[%s1 + $0x788] sm:$0xff]
    %v301 = vld [vmem:[%s1 + $0x790] sm:$0xff]
    %v302 = vld [vmem:[%s1 + $0x798] sm:$0xff]
    %v303 = vld [vmem:[%s1 + $0x7a0] sm:$0xff]
    %v304 = vld [vmem:[%s1 + $0x7a8] sm:$0xff]
    %v305 = vld [vmem:[%s1 + $0x7b0] sm:$0xff]
    %v306 = vld [vmem:[%s1 + $0x7b8] sm:$0xff]
    %v307 = vld [vmem:[%s1 + $0x7c0] sm:$0xff]
    %v308 = vld [vmem:[%s1 + $0x7c8] sm:$0xff]
    %v309 = vld [vmem:[%s1 + $0x7d0] sm:$0xff]
    %v310 = vld [vmem:[%s1 + $0x7d8] sm:$0xff]
    %v311 = vld [vmem:[%s1 + $0x7e0] sm:$0xff]
    %v312 = vld [vmem:[%s1 + $0x7e8] sm:$0xff]
    %v313 = vld [vmem:[%s1 + $0x7f0] sm:$0xff]
    %v314 = vld [vmem:[%s1 + $0x7f8] sm:$0xff]
    %v315 = vld [vmem:[%s1 + $0x800] sm:$0xff]
    %v316 = vld [vmem:[%s1 + $0x808] sm:$0xff]
    %v317 = vld [vmem:[%s1 + $0x810] sm:$0xff]
    %v318 = vld [vmem:[%s1 + $0x818] sm:$0xff]
    %v319 = vld [vmem:[%s1 + $0x820] sm:$0xff]
    %v320 = vld [vmem:[%s1 + $0x828] sm:$0xff]
    %v321 = vld [vmem:[%s1 + $0x830] sm:$0xff]
    %v322 = vld [vmem:[%s1 + $0x838] sm:$0xff]
    %v323 = vld [vmem:[%s1 + $0x840] sm:$0xff]
    %v324 = vld [vmem:[%s1 + $0x848] sm:$0xff]
    %v325 = vld [vmem:[%s1 + $0x850] sm:$0xff]
    %v326 = vld [vmem:[%s1 + $0x858] sm:$0xff]
    %v327 = vld [vmem:[%s1 + $0x860] sm:$0xff]
    %v328 = vld [vmem:[%s1 + $0x868] sm:$0xff]
    %v329 = vld [vmem:[%s1 + $0x870] sm:$0xff]
    %v330 = vld [vmem:[%s1 + $0x878] sm:$0xff]
    %v331 = vld [vmem:[%s1 + $0x880] sm:$0xff]
    %v332 = vld [vmem:[%s1 + $0x888] sm:$0xff]
    %v333 = vld [vmem:[%s1 + $0x890] sm:$0xff]
    %v334 = vld [vmem:[%s1 + $0x898] sm:$0xff]
    %v335 = vld [vmem:[%s1 + $0x8a0] sm:$0xff]
    %v336 = vld [vmem:[%s1 + $0x8a8] sm:$0xff]
    %v337 = vld [vmem:[%s1 + $0x8b0] sm:$0xff]
    %v338 = vld [vmem:[%s1 + $0x8b8] sm:$0xff]
    %v339 = vld [vmem:[%s1 + $0x8c0] sm:$0xff]
    %v340 = vld [vmem:[%s1 + $0x8c8] sm:$0xff]
    %v341 = vld [vmem:[%s1 + $0x8d0] sm:$0xff]
    %v342 = vld [vmem:[%s1 + $0x8d8] sm:$0xff]
    %v343 = vld [vmem:[%s1 + $0x8e0] sm:$0xff]
    %v344 = vld [vmem:[%s1 + $0x8e8] sm:$0xff]
    %v345 = vld [vmem:[%s1 + $0x8f0] sm:$0xff]
    %v346 = vld [vmem:[%s1 + $0x8f8] sm:$0xff]
    %v347 = vld [vmem:[%s1 + $0x900] sm:$0xff]
    %v348 = vld [vmem:[%s1 + $0x908] sm:$0xff]
    %v349 = vld [vmem:[%s1 + $0x910] sm:$0xff]
    %v350 = vld [vmem:[%s1 + $0x918] sm:$0xff]
    %v351 = vld [vmem:[%s1 + $0x920] sm:$0xff]
    %v352 = vld [vmem:[%s1 + $0x928] sm:$0xff]
    %v353 = vld [vmem:[%s1 + $0x930] sm:$0xff]
    %v354 = vld [vmem:[%s1 + $0x938] sm:$0xff]
    %v355 = vld [vmem:[%s1 + $0x940] sm:$0xff]
    %v356 = vld [vmem:[%s1 + $0x948] sm:$0xff]
    %v357 = vld [vmem:[%s1 + $0x950] sm:$0xff]
    %v358 = vld [vmem:[%s1 + $0x958] sm:$0xff]
    %v359 = vld [vmem:[%s1 + $0x960] sm:$0xff]
    %v360 = vld [vmem:[%s1 + $0x968] sm:$0xff]
    %v361 = vld [vmem:[%s1 + $0x970] sm:$0xff]
    %v362 = vld [vmem:[%s1 + $0x978] sm:$0xff]
    %v363 = vld [vmem:[%s1 + $0x980] sm:$0xff]
    %v364 = vld [vmem:[%s1 + $0x988] sm:$0xff]
    %v365 = vld [vmem:[%s1 + $0x990] sm:$0xff]
    %v366 = vld [vmem:[%s1 + $0x998] sm:$0xff]
    %v367 = vld [vmem:[%s1 + $0x9a0] sm:$0xff]
    %v368 = vld [vmem:[%s1 + $0x9a8] sm:$0xff]
    %v369 = vld [vmem:[%s1 + $0x9b0] sm:$0xff]
    %v370 = vld [vmem:[%s1 + $0x9b8] sm:$0xff]
    %v371 = vld [vmem:[%s1 + $0x9c0] sm:$0xff]
    %v372 = vld [vmem:[%s1 + $0x9c8] sm:$0xff]
    %v373 = vld [vmem:[%s1 + $0x9d0] sm:$0xff]
    %v374 = vld [vmem:[%s1 + $0x9d8] sm:$0xff]
    %v375 = vld [vmem:[%s1 + $0x9e0] sm:$0xff]
    %v376 = vld [vmem:[%s1 + $0x9e8] sm:$0xff]
    %v377 = vld [vmem:[%s1 + $0x9f0] sm:$0xff]
    %v378 = vld [vmem:[%s1 + $0x9f8] sm:$0xff]
    %v379 = vld [vmem:[%s1 + $0xa00] sm:$0xff]
    %v380 = vld [vmem:[%s1 + $0xa08] sm:$0xff]
    %v381 = vld [vmem:[%s1 + $0xa10] sm:$0xff]
    %v382 = vld [vmem:[%s1 + $0xa18] sm:$0xff]
    %v383 = vld [vmem:[%s1 + $0xa20] sm:$0xff]
    %v384 = vld [vmem:[%s1 + $0xa28] sm:$0xff]
    %v385 = vld [vmem:[%s1 + $0xa30] sm:$0xff]
    %v386 = vld [vmem:[%s1 + $0xa38] sm:$0xff]
    %v387 = vld [vmem:[%s1 + $0xa40] sm:$0xff]
    %v388 = vld [vmem:[%s1 + $0xa48] sm:$0xff]
    %v389 = vld [vmem:[%s1 + $0xa50] sm:$0xff]
    %v390 = vld [vmem:[%s1 + $0xa58] sm:$0xff]
    %v391 = vld [vmem:[%s1 + $0xa60] sm:$0xff]
    %v392 = vld [vmem:[%s1 + $0xa68] sm:$0xff]
    %v393 = vld [vmem:[%s1 + $0xa70] sm:$0xff]
    %v394 = vld [vmem:[%s1 + $0xa78] sm:$0xff]
    %v395 = vld [vmem:[%s1 + $0xa80] sm:$0xff]
    %v396 = vld [vmem:[%s1 + $0xa88] sm:$0xff]
    %v397 = vld [vmem:[%s1 + $0xa90] sm:$0xff]
    %v398 = vld [vmem:[%s1 + $0xa98] sm:$0xff]
    %v399 = vld [vmem:[%s1 + $0xaa0] sm:$0xff]
    %v400 = vld [vmem:[%s1 + $0xaa8] sm:$0xff]
    %v401 = vld [vmem:[%s1 + $0xab0] sm:$0xff]
    %v402 = vld [vmem:[%s1 + $0xab8] sm:$0xff]
    %v403 = vld [vmem:[%s1 + $0xac0] sm:$0xff]
    %v404 = vld [vmem:[%s1 + $0xac8] sm:$0xff]
    %v405 = vld [vmem:[%s1 + $0xad0] sm:$0xff]
    %v406 = vld [vmem:[%s1 + $0xad8] sm:$0xff]
    %v407 = vld [vmem:[%s1 + $0xae0] sm:$0xff]
    %v408 = vld [vmem:[%s1 + $0xae8] sm:$0xff]
    %v409 = vld [vmem:[%s1 + $0xaf0] sm:$0xff]
    %v410 = vld [vmem:[%s1 + $0xaf8] sm:$0xff]
    %v411 = vld [vmem:[%s1 + $0xb00] sm:$0xff]
    %v412 = vld [vmem:[%s1 + $0xb08] sm:$0xff]
    %v413 = vld [vmem:[%s1 + $0xb10] sm:$0xff]
    %v414 = vld [vmem:[%s1 + $0xb18] sm:$0xff]
    %v415 = vld [vmem:[%s1 + $0xb20] sm:$0xff]
    %v416 = vld [vmem:[%s1 + $0xb28] sm:$0xff]
    %v417 = vld [vmem:[%s1 + $0xb30] sm:$0xff]
    %v418 = vld [vmem:[%s1 + $0xb38] sm:$0xff]
    %v419 = vld [vmem:[%s1 + $0xb40] sm:$0xff]
    %v420 = vld [vmem:[%s1 + $0xb48] sm:$0xff]
    %v421 = vld [vmem:[%s1 + $0xb50] sm:$0xff]
    %v422 = vld [vmem:[%s1 + $0xb58] sm:$0xff]
    %v423 = vld [vmem:[%s1 + $0xb60] sm:$0xff]
    %v424 = vld [vmem:[%s1 + $0xb68] sm:$0xff]
    %v425 = vld [vmem:[%s1 + $0xb70] sm:$0xff]
    %v426 = vld [vmem:[%s1 + $0xb78] sm:$0xff]
    %v427 = vld [vmem:[%s1 + $0xb80] sm:$0x33]
    %v428 = vld [vmem:[%s1 + $0xb88] sm:$0x33]
    %v430 = vlaneseq
    %v431 = vshrl.u32 %v430, 7
    %v432 = vsub.s32 0, %v431
    %v433 = vrot.slane %v22, %v432
    %v434 = vlaneseq
    %v435 = vshrl.u32 %v434, 7
    %v436 = vsub.s32 2, %v435
    %v437 = vrot.slane %v22, %v436
    %v438 = vlaneseq
    %v439 = vshrl.u32 %v438, 7
    %v440 = vsub.s32 4, %v439
    %v441 = vrot.slane %v22, %v440
    %v442 = vlaneseq
    %v443 = vshrl.u32 %v442, 7
    %v444 = vsub.s32 6, %v443
    %v445 = vrot.slane %v22, %v444
    %v450 = vlaneseq
    %v451 = vshrl.u32 %v450, 7
    %v452 = vsub.s32 0, %v451
    %v453 = vrot.slane %v433, %v452
    %v454 = vlaneseq
    %v455 = vshrl.u32 %v454, 7
    %v456 = vsub.s32 0, %v455
    %v457 = vrot.slane %v437, %v456
    %v458 = vlaneseq
    %v459 = vshrl.u32 %v458, 7
    %v460 = vsub.s32 0, %v459
    %v461 = vrot.slane %v441, %v460
    %v462 = vlaneseq
    %v463 = vshrl.u32 %v462, 7
    %v464 = vsub.s32 0, %v463
    %v465 = vrot.slane %v445, %v464
    %v502 = vunpack.c.l.b16 %v23
    %v503 = vunpack.c.h.b16 %v23
    %v504 = vunpack.c.l.b16 %v24
    %v505 = vunpack.c.h.b16 %v24
    %v506 = vunpack.c.l.b16 %v25
    %v507 = vunpack.c.h.b16 %v25
    %v508 = vunpack.c.l.b16 %v26
    %v509 = vunpack.c.h.b16 %v26
    %v510 = vunpack.c.l.b16 %v27
    %v511 = vunpack.c.h.b16 %v27
    %v512 = vunpack.c.l.b16 %v28
    %v513 = vunpack.c.h.b16 %v28
    %v514 = vunpack.c.l.b16 %v29
    %v515 = vunpack.c.h.b16 %v29
    %v516 = vunpack.c.l.b16 %v30
    %v517 = vunpack.c.h.b16 %v30
    %v518 = vunpack.c.l.b16 %v31
    %v519 = vunpack.c.h.b16 %v31
    %v520 = vunpack.c.l.b16 %v32
    %v521 = vunpack.c.h.b16 %v32
    %v522 = vunpack.c.l.b16 %v33
    %v523 = vunpack.c.h.b16 %v33
    %v524 = vunpack.c.l.b16 %v34
    %v525 = vunpack.c.h.b16 %v34
    %v526 = vunpack.c.l.b16 %v35
    %v527 = vunpack.c.h.b16 %v35
    %v528 = vunpack.c.l.b16 %v36
    %v529 = vunpack.c.h.b16 %v36
    %v530 = vunpack.c.l.b16 %v37
    %v531 = vunpack.c.h.b16 %v37
    %v532 = vunpack.c.l.b16 %v38
    %v533 = vunpack.c.h.b16 %v38
    %v534 = vunpack.c.l.b16 %v39
    %v535 = vunpack.c.h.b16 %v39
    %v536 = vunpack.c.l.b16 %v40
    %v537 = vunpack.c.h.b16 %v40
    %v538 = vunpack.c.l.b16 %v41
    %v539 = vunpack.c.h.b16 %v41
    %v540 = vunpack.c.l.b16 %v42
    %v541 = vunpack.c.h.b16 %v42
    %v542 = vunpack.c.l.b16 %v43
    %v543 = vunpack.c.h.b16 %v43
    %v544 = vunpack.c.l.b16 %v44
    %v545 = vunpack.c.h.b16 %v44
    %v546 = vunpack.c.l.b16 %v45
    %v547 = vunpack.c.h.b16 %v45
    %v548 = vunpack.c.l.b16 %v46
    %v549 = vunpack.c.h.b16 %v46
    %v550 = vunpack.c.l.b16 %v47
    %v551 = vunpack.c.h.b16 %v47
    %v552 = vunpack.c.l.b16 %v48
    %v553 = vunpack.c.h.b16 %v48
    %v554 = vunpack.c.l.b16 %v49
    %v555 = vunpack.c.h.b16 %v49
    %v556 = vunpack.c.l.b16 %v50
    %v557 = vunpack.c.h.b16 %v50
    %v558 = vunpack.c.l.b16 %v51
    %v559 = vunpack.c.h.b16 %v51
    %v560 = vunpack.c.l.b16 %v52
    %v561 = vunpack.c.h.b16 %v52
    %v562 = vunpack.c.l.b16 %v53
    %v563 = vunpack.c.h.b16 %v53
    %v564 = vunpack.c.l.b16 %v54
    %v565 = vunpack.c.h.b16 %v54
    %v566 = vunpack.c.l.b16 %v55
    %v567 = vunpack.c.h.b16 %v55
    %v568 = vunpack.c.l.b16 %v56
    %v569 = vunpack.c.h.b16 %v56
    %v570 = vunpack.c.l.b16 %v57
    %v571 = vunpack.c.h.b16 %v57
    %v572 = vunpack.c.l.b16 %v58
    %v573 = vunpack.c.h.b16 %v58
    %v574 = vpack.c.b16 %v514, %v502
    %v575 = vpack.c.b16 %v515, %v503
    %v576 = vpack.c.b16 %v516, %v504
    %v577 = vpack.c.b16 %v517, %v505
    %v578 = vpack.c.b16 %v518, %v506
    %v579 = vpack.c.b16 %v519, %v507
    %v580 = vpack.c.b16 %v520, %v508
    %v581 = vpack.c.b16 %v521, %v509
    %v582 = vpack.c.b16 %v522, %v510
    %v583 = vpack.c.b16 %v523, %v511
    %v584 = vpack.c.b16 %v524, %v512
    %v585 = vpack.c.b16 %v525, %v513
    %v586 = vpack.c.b16 %v538, %v526
    %v587 = vpack.c.b16 %v539, %v527
    %v588 = vpack.c.b16 %v540, %v528
    %v589 = vpack.c.b16 %v541, %v529
    %v590 = vpack.c.b16 %v542, %v530
    %v591 = vpack.c.b16 %v543, %v531
    %v592 = vpack.c.b16 %v544, %v532
    %v593 = vpack.c.b16 %v545, %v533
    %v594 = vpack.c.b16 %v546, %v534
    %v595 = vpack.c.b16 %v547, %v535
    %v596 = vpack.c.b16 %v548, %v536
    %v597 = vpack.c.b16 %v549, %v537
    %v598 = vpack.c.b16 %v562, %v550
    %v599 = vpack.c.b16 %v563, %v551
    %v600 = vpack.c.b16 %v564, %v552
    %v601 = vpack.c.b16 %v565, %v553
    %v602 = vpack.c.b16 %v566, %v554
    %v603 = vpack.c.b16 %v567, %v555
    %v604 = vpack.c.b16 %v568, %v556
    %v605 = vpack.c.b16 %v569, %v557
    %v606 = vpack.c.b16 %v570, %v558
    %v607 = vpack.c.b16 %v571, %v559
    %v608 = vpack.c.b16 %v572, %v560
    %v609 = vpack.c.b16 %v573, %v561
    %v1013 = vunpack.c.l.b16 %v59
    %v1014 = vunpack.c.h.b16 %v59
    %v1015 = vunpack.c.l.b16 %v60
    %v1016 = vunpack.c.h.b16 %v60
    %v1017 = vunpack.c.l.b16 %v61
    %v1018 = vunpack.c.h.b16 %v61
    %v1019 = vunpack.c.l.b16 %v62
    %v1020 = vunpack.c.h.b16 %v62
    %v1021 = vunpack.c.l.b16 %v63
    %v1022 = vunpack.c.h.b16 %v63
    %v1023 = vunpack.c.l.b16 %v64
    %v1024 = vunpack.c.h.b16 %v64
    %v1025 = vunpack.c.l.b16 %v65
    %v1026 = vunpack.c.h.b16 %v65
    %v1027 = vunpack.c.l.b16 %v66
    %v1028 = vunpack.c.h.b16 %v66
    %v1029 = vunpack.c.l.b16 %v67
    %v1030 = vunpack.c.h.b16 %v67
    %v1031 = vunpack.c.l.b16 %v68
    %v1032 = vunpack.c.h.b16 %v68
    %v1033 = vunpack.c.l.b16 %v69
    %v1034 = vunpack.c.h.b16 %v69
    %v1035 = vunpack.c.l.b16 %v70
    %v1036 = vunpack.c.h.b16 %v70
    %v1037 = vunpack.c.l.b16 %v71
    %v1038 = vunpack.c.h.b16 %v71
    %v1039 = vunpack.c.l.b16 %v72
    %v1040 = vunpack.c.h.b16 %v72
    %v1041 = vunpack.c.l.b16 %v73
    %v1042 = vunpack.c.h.b16 %v73
    %v1043 = vunpack.c.l.b16 %v74
    %v1044 = vunpack.c.h.b16 %v74
    %v1045 = vunpack.c.l.b16 %v75
    %v1046 = vunpack.c.h.b16 %v75
    %v1047 = vunpack.c.l.b16 %v76
    %v1048 = vunpack.c.h.b16 %v76
    %v1049 = vunpack.c.l.b16 %v77
    %v1050 = vunpack.c.h.b16 %v77
    %v1051 = vunpack.c.l.b16 %v78
    %v1052 = vunpack.c.h.b16 %v78
    %v1053 = vunpack.c.l.b16 %v79
    %v1054 = vunpack.c.h.b16 %v79
    %v1055 = vunpack.c.l.b16 %v80
    %v1056 = vunpack.c.h.b16 %v80
    %v1057 = vunpack.c.l.b16 %v81
    %v1058 = vunpack.c.h.b16 %v81
    %v1059 = vunpack.c.l.b16 %v82
    %v1060 = vunpack.c.h.b16 %v82
    %v1061 = vunpack.c.l.b16 %v83
    %v1062 = vunpack.c.h.b16 %v83
    %v1063 = vunpack.c.l.b16 %v84
    %v1064 = vunpack.c.h.b16 %v84
    %v1065 = vunpack.c.l.b16 %v85
    %v1066 = vunpack.c.h.b16 %v85
    %v1067 = vunpack.c.l.b16 %v86
    %v1068 = vunpack.c.h.b16 %v86
    %v1069 = vunpack.c.l.b16 %v87
    %v1070 = vunpack.c.h.b16 %v87
    %v1071 = vunpack.c.l.b16 %v88
    %v1072 = vunpack.c.h.b16 %v88
    %v1073 = vunpack.c.l.b16 %v89
    %v1074 = vunpack.c.h.b16 %v89
    %v1075 = vunpack.c.l.b16 %v90
    %v1076 = vunpack.c.h.b16 %v90
    %v1077 = vunpack.c.l.b16 %v91
    %v1078 = vunpack.c.h.b16 %v91
    %v1079 = vunpack.c.l.b16 %v92
    %v1080 = vunpack.c.h.b16 %v92
    %v1081 = vunpack.c.l.b16 %v93
    %v1082 = vunpack.c.h.b16 %v93
    %v1083 = vunpack.c.l.b16 %v94
    %v1084 = vunpack.c.h.b16 %v94
    %v1085 = vunpack.c.l.b16 %v95
    %v1086 = vunpack.c.h.b16 %v95
    %v1087 = vunpack.c.l.b16 %v96
    %v1088 = vunpack.c.h.b16 %v96
    %v1089 = vunpack.c.l.b16 %v97
    %v1090 = vunpack.c.h.b16 %v97
    %v1091 = vunpack.c.l.b16 %v98
    %v1092 = vunpack.c.h.b16 %v98
    %v1093 = vunpack.c.l.b16 %v99
    %v1094 = vunpack.c.h.b16 %v99
    %v1095 = vunpack.c.l.b16 %v100
    %v1096 = vunpack.c.h.b16 %v100
    %v1097 = vunpack.c.l.b16 %v101
    %v1098 = vunpack.c.h.b16 %v101
    %v1099 = vunpack.c.l.b16 %v102
    %v1100 = vunpack.c.h.b16 %v102
    %v1101 = vunpack.c.l.b16 %v103
    %v1102 = vunpack.c.h.b16 %v103
    %v1103 = vunpack.c.l.b16 %v104
    %v1104 = vunpack.c.h.b16 %v104
    %v1105 = vunpack.c.l.b16 %v105
    %v1106 = vunpack.c.h.b16 %v105
    %v1107 = vunpack.c.l.b16 %v106
    %v1108 = vunpack.c.h.b16 %v106
    %v1109 = vunpack.c.l.b16 %v107
    %v1110 = vunpack.c.h.b16 %v107
    %v1111 = vunpack.c.l.b16 %v108
    %v1112 = vunpack.c.h.b16 %v108
    %v1113 = vunpack.c.l.b16 %v109
    %v1114 = vunpack.c.h.b16 %v109
    %v1115 = vunpack.c.l.b16 %v110
    %v1116 = vunpack.c.h.b16 %v110
    %v1117 = vunpack.c.l.b16 %v111
    %v1118 = vunpack.c.h.b16 %v111
    %v1119 = vunpack.c.l.b16 %v112
    %v1120 = vunpack.c.h.b16 %v112
    %v1121 = vunpack.c.l.b16 %v113
    %v1122 = vunpack.c.h.b16 %v113
    %v1123 = vunpack.c.l.b16 %v114
    %v1124 = vunpack.c.h.b16 %v114
    %v1125 = vunpack.c.l.b16 %v115
    %v1126 = vunpack.c.h.b16 %v115
    %v1127 = vunpack.c.l.b16 %v116
    %v1128 = vunpack.c.h.b16 %v116
    %v1129 = vunpack.c.l.b16 %v117
    %v1130 = vunpack.c.h.b16 %v117
    %v1131 = vunpack.c.l.b16 %v118
    %v1132 = vunpack.c.h.b16 %v118
    %v1133 = vunpack.c.l.b16 %v119
    %v1134 = vunpack.c.h.b16 %v119
    %v1135 = vunpack.c.l.b16 %v120
    %v1136 = vunpack.c.h.b16 %v120
    %v1137 = vunpack.c.l.b16 %v121
    %v1138 = vunpack.c.h.b16 %v121
    %v1139 = vunpack.c.l.b16 %v122
    %v1140 = vunpack.c.h.b16 %v122
    %v1141 = vunpack.c.l.b16 %v123
    %v1142 = vunpack.c.h.b16 %v123
    %v1143 = vunpack.c.l.b16 %v124
    %v1144 = vunpack.c.h.b16 %v124
    %v1145 = vunpack.c.l.b16 %v125
    %v1146 = vunpack.c.h.b16 %v125
    %v1147 = vunpack.c.l.b16 %v126
    %v1148 = vunpack.c.h.b16 %v126
    %v1149 = vunpack.c.l.b16 %v127
    %v1150 = vunpack.c.h.b16 %v127
    %v1151 = vunpack.c.l.b16 %v128
    %v1152 = vunpack.c.h.b16 %v128
    %v1153 = vunpack.c.l.b16 %v129
    %v1154 = vunpack.c.h.b16 %v129
    %v1155 = vunpack.c.l.b16 %v130
    %v1156 = vunpack.c.h.b16 %v130
    %v1157 = vunpack.c.l.b16 %v131
    %v1158 = vunpack.c.h.b16 %v131
    %v1159 = vunpack.c.l.b16 %v132
    %v1160 = vunpack.c.h.b16 %v132
    %v1161 = vunpack.c.l.b16 %v133
    %v1162 = vunpack.c.h.b16 %v133
    %v1163 = vunpack.c.l.b16 %v134
    %v1164 = vunpack.c.h.b16 %v134
    %v1165 = vunpack.c.l.b16 %v135
    %v1166 = vunpack.c.h.b16 %v135
    %v1167 = vunpack.c.l.b16 %v136
    %v1168 = vunpack.c.h.b16 %v136
    %v1169 = vunpack.c.l.b16 %v137
    %v1170 = vunpack.c.h.b16 %v137
    %v1171 = vunpack.c.l.b16 %v138
    %v1172 = vunpack.c.h.b16 %v138
    %v1173 = vunpack.c.l.b16 %v139
    %v1174 = vunpack.c.h.b16 %v139
    %v1175 = vunpack.c.l.b16 %v140
    %v1176 = vunpack.c.h.b16 %v140
    %v1177 = vunpack.c.l.b16 %v141
    %v1178 = vunpack.c.h.b16 %v141
    %v1179 = vunpack.c.l.b16 %v142
    %v1180 = vunpack.c.h.b16 %v142
    %v1181 = vunpack.c.l.b16 %v143
    %v1182 = vunpack.c.h.b16 %v143
    %v1183 = vunpack.c.l.b16 %v144
    %v1184 = vunpack.c.h.b16 %v144
    %v1185 = vunpack.c.l.b16 %v145
    %v1186 = vunpack.c.h.b16 %v145
    %v1187 = vunpack.c.l.b16 %v146
    %v1188 = vunpack.c.h.b16 %v146
    %v1189 = vunpack.c.l.b16 %v147
    %v1190 = vunpack.c.h.b16 %v147
    %v1191 = vunpack.c.l.b16 %v148
    %v1192 = vunpack.c.h.b16 %v148
    %v1193 = vunpack.c.l.b16 %v149
    %v1194 = vunpack.c.h.b16 %v149
    %v1195 = vunpack.c.l.b16 %v150
    %v1196 = vunpack.c.h.b16 %v150
    %v1197 = vunpack.c.l.b16 %v151
    %v1198 = vunpack.c.h.b16 %v151
    %v1199 = vunpack.c.l.b16 %v152
    %v1200 = vunpack.c.h.b16 %v152
    %v1201 = vunpack.c.l.b16 %v153
    %v1202 = vunpack.c.h.b16 %v153
    %v1203 = vunpack.c.l.b16 %v154
    %v1204 = vunpack.c.h.b16 %v154
    %v1205 = vunpack.c.l.b16 %v155
    %v1206 = vunpack.c.h.b16 %v155
    %v1207 = vunpack.c.l.b16 %v156
    %v1208 = vunpack.c.h.b16 %v156
    %v1209 = vunpack.c.l.b16 %v157
    %v1210 = vunpack.c.h.b16 %v157
    %v1211 = vunpack.c.l.b16 %v158
    %v1212 = vunpack.c.h.b16 %v158
    %v1213 = vunpack.c.l.b16 %v159
    %v1214 = vunpack.c.h.b16 %v159
    %v1215 = vunpack.c.l.b16 %v160
    %v1216 = vunpack.c.h.b16 %v160
    %v1217 = vunpack.c.l.b16 %v161
    %v1218 = vunpack.c.h.b16 %v161
    %v1219 = vunpack.c.l.b16 %v162
    %v1220 = vunpack.c.h.b16 %v162
    %v1221 = vunpack.c.l.b16 %v163
    %v1222 = vunpack.c.h.b16 %v163
    %v1223 = vunpack.c.l.b16 %v164
    %v1224 = vunpack.c.h.b16 %v164
    %v1225 = vunpack.c.l.b16 %v165
    %v1226 = vunpack.c.h.b16 %v165
    %v1227 = vunpack.c.l.b16 %v166
    %v1228 = vunpack.c.h.b16 %v166
    %v1229 = vunpack.c.l.b16 %v167
    %v1230 = vunpack.c.h.b16 %v167
    %v1231 = vunpack.c.l.b16 %v168
    %v1232 = vunpack.c.h.b16 %v168
    %v1233 = vunpack.c.l.b16 %v169
    %v1234 = vunpack.c.h.b16 %v169
    %v1235 = vunpack.c.l.b16 %v170
    %v1236 = vunpack.c.h.b16 %v170
    %v1237 = vunpack.c.l.b16 %v171
    %v1238 = vunpack.c.h.b16 %v171
    %v1239 = vunpack.c.l.b16 %v172
    %v1240 = vunpack.c.h.b16 %v172
    %v1241 = vunpack.c.l.b16 %v173
    %v1242 = vunpack.c.h.b16 %v173
    %v1243 = vunpack.c.l.b16 %v174
    %v1244 = vunpack.c.h.b16 %v174
    %v1245 = vunpack.c.l.b16 %v175
    %v1246 = vunpack.c.h.b16 %v175
    %v1247 = vunpack.c.l.b16 %v176
    %v1248 = vunpack.c.h.b16 %v176
    %v1249 = vunpack.c.l.b16 %v177
    %v1250 = vunpack.c.h.b16 %v177
    %v1251 = vunpack.c.l.b16 %v178
    %v1252 = vunpack.c.h.b16 %v178
    %v1253 = vunpack.c.l.b16 %v179
    %v1254 = vunpack.c.h.b16 %v179
    %v1255 = vunpack.c.l.b16 %v180
    %v1256 = vunpack.c.h.b16 %v180
    %v1257 = vunpack.c.l.b16 %v181
    %v1258 = vunpack.c.h.b16 %v181
    %v1259 = vunpack.c.l.b16 %v182
    %v1260 = vunpack.c.h.b16 %v182
    %v1261 = vunpack.c.l.b16 %v183
    %v1262 = vunpack.c.h.b16 %v183
    %v1263 = vunpack.c.l.b16 %v184
    %v1264 = vunpack.c.h.b16 %v184
    %v1265 = vunpack.c.l.b16 %v185
    %v1266 = vunpack.c.h.b16 %v185
    %v1267 = vunpack.c.l.b16 %v186
    %v1268 = vunpack.c.h.b16 %v186
    %v1269 = vunpack.c.l.b16 %v187
    %v1270 = vunpack.c.h.b16 %v187
    %v1271 = vunpack.c.l.b16 %v188
    %v1272 = vunpack.c.h.b16 %v188
    %v1273 = vunpack.c.l.b16 %v189
    %v1274 = vunpack.c.h.b16 %v189
    %v1275 = vunpack.c.l.b16 %v190
    %v1276 = vunpack.c.h.b16 %v190
    %v1277 = vunpack.c.l.b16 %v191
    %v1278 = vunpack.c.h.b16 %v191
    %v1279 = vunpack.c.l.b16 %v192
    %v1280 = vunpack.c.h.b16 %v192
    %v1281 = vunpack.c.l.b16 %v193
    %v1282 = vunpack.c.h.b16 %v193
    %v1283 = vunpack.c.l.b16 %v194
    %v1284 = vunpack.c.h.b16 %v194
    %v1285 = vunpack.c.l.b16 %v195
    %v1286 = vunpack.c.h.b16 %v195
    %v1287 = vunpack.c.l.b16 %v196
    %v1288 = vunpack.c.h.b16 %v196
    %v1289 = vunpack.c.l.b16 %v197
    %v1290 = vunpack.c.h.b16 %v197
    %v1291 = vunpack.c.l.b16 %v198
    %v1292 = vunpack.c.h.b16 %v198
    %v1293 = vunpack.c.l.b16 %v199
    %v1294 = vunpack.c.h.b16 %v199
    %v1295 = vunpack.c.l.b16 %v200
    %v1296 = vunpack.c.h.b16 %v200
    %v1297 = vunpack.c.l.b16 %v201
    %v1298 = vunpack.c.h.b16 %v201
    %v1299 = vunpack.c.l.b16 %v202
    %v1300 = vunpack.c.h.b16 %v202
    %v1301 = vunpack.c.l.b16 %v203
    %v1302 = vunpack.c.h.b16 %v203
    %v1303 = vunpack.c.l.b16 %v204
    %v1304 = vunpack.c.h.b16 %v204
    %v1305 = vunpack.c.l.b16 %v205
    %v1306 = vunpack.c.h.b16 %v205
    %v1307 = vunpack.c.l.b16 %v206
    %v1308 = vunpack.c.h.b16 %v206
    %v1309 = vunpack.c.l.b16 %v207
    %v1310 = vunpack.c.h.b16 %v207
    %v1311 = vunpack.c.l.b16 %v208
    %v1312 = vunpack.c.h.b16 %v208
    %v1313 = vunpack.c.l.b16 %v209
    %v1314 = vunpack.c.h.b16 %v209
    %v1315 = vunpack.c.l.b16 %v210
    %v1316 = vunpack.c.h.b16 %v210
    %v1317 = vunpack.c.l.b16 %v211
    %v1318 = vunpack.c.h.b16 %v211
    %v1319 = vunpack.c.l.b16 %v212
    %v1320 = vunpack.c.h.b16 %v212
    %v1321 = vunpack.c.l.b16 %v213
    %v1322 = vunpack.c.h.b16 %v213
    %v1323 = vunpack.c.l.b16 %v214
    %v1324 = vunpack.c.h.b16 %v214
    %v1325 = vunpack.c.l.b16 %v215
    %v1326 = vunpack.c.h.b16 %v215
    %v1327 = vunpack.c.l.b16 %v216
    %v1328 = vunpack.c.h.b16 %v216
    %v1329 = vunpack.c.l.b16 %v217
    %v1330 = vunpack.c.h.b16 %v217
    %v1331 = vunpack.c.l.b16 %v218
    %v1332 = vunpack.c.h.b16 %v218
    %v1333 = vunpack.c.l.b16 %v219
    %v1334 = vunpack.c.h.b16 %v219
    %v1335 = vunpack.c.l.b16 %v220
    %v1336 = vunpack.c.h.b16 %v220
    %v1337 = vunpack.c.l.b16 %v221
    %v1338 = vunpack.c.h.b16 %v221
    %v1339 = vunpack.c.l.b16 %v222
    %v1340 = vunpack.c.h.b16 %v222
    %v1341 = vunpack.c.l.b16 %v223
    %v1342 = vunpack.c.h.b16 %v223
    %v1343 = vunpack.c.l.b16 %v224
    %v1344 = vunpack.c.h.b16 %v224
    %v1345 = vunpack.c.l.b16 %v225
    %v1346 = vunpack.c.h.b16 %v225
    %v1347 = vunpack.c.l.b16 %v226
    %v1348 = vunpack.c.h.b16 %v226
    %v1349 = vunpack.c.l.b16 %v227
    %v1350 = vunpack.c.h.b16 %v227
    %v1351 = vunpack.c.l.b16 %v228
    %v1352 = vunpack.c.h.b16 %v228
    %v1353 = vunpack.c.l.b16 %v229
    %v1354 = vunpack.c.h.b16 %v229
    %v1355 = vunpack.c.l.b16 %v230
    %v1356 = vunpack.c.h.b16 %v230
    %v1357 = vunpack.c.l.b16 %v231
    %v1358 = vunpack.c.h.b16 %v231
    %v1359 = vunpack.c.l.b16 %v232
    %v1360 = vunpack.c.h.b16 %v232
    %v1361 = vunpack.c.l.b16 %v233
    %v1362 = vunpack.c.h.b16 %v233
    %v1363 = vunpack.c.l.b16 %v234
    %v1364 = vunpack.c.h.b16 %v234
    %v1365 = vunpack.c.l.b16 %v235
    %v1366 = vunpack.c.h.b16 %v235
    %v1367 = vunpack.c.l.b16 %v236
    %v1368 = vunpack.c.h.b16 %v236
    %v1369 = vunpack.c.l.b16 %v237
    %v1370 = vunpack.c.h.b16 %v237
    %v1371 = vunpack.c.l.b16 %v238
    %v1372 = vunpack.c.h.b16 %v238
    %v1373 = vunpack.c.l.b16 %v239
    %v1374 = vunpack.c.h.b16 %v239
    %v1375 = vunpack.c.l.b16 %v240
    %v1376 = vunpack.c.h.b16 %v240
    %v1377 = vunpack.c.l.b16 %v241
    %v1378 = vunpack.c.h.b16 %v241
    %v1379 = vunpack.c.l.b16 %v242
    %v1380 = vunpack.c.h.b16 %v242
    %v1381 = vunpack.c.l.b16 %v243
    %v1382 = vunpack.c.h.b16 %v243
    %v1383 = vunpack.c.l.b16 %v244
    %v1384 = vunpack.c.h.b16 %v244
    %v1385 = vunpack.c.l.b16 %v245
    %v1386 = vunpack.c.h.b16 %v245
    %v1387 = vunpack.c.l.b16 %v246
    %v1388 = vunpack.c.h.b16 %v246
    %v1389 = vunpack.c.l.b16 %v247
    %v1390 = vunpack.c.h.b16 %v247
    %v1391 = vunpack.c.l.b16 %v248
    %v1392 = vunpack.c.h.b16 %v248
    %v1393 = vunpack.c.l.b16 %v249
    %v1394 = vunpack.c.h.b16 %v249
    %v1395 = vunpack.c.l.b16 %v250
    %v1396 = vunpack.c.h.b16 %v250
    %v1397 = vunpack.c.l.b16 %v251
    %v1398 = vunpack.c.h.b16 %v251
    %v1399 = vunpack.c.l.b16 %v252
    %v1400 = vunpack.c.h.b16 %v252
    %v1401 = vunpack.c.l.b16 %v253
    %v1402 = vunpack.c.h.b16 %v253
    %v1403 = vunpack.c.l.b16 %v254
    %v1404 = vunpack.c.h.b16 %v254
    %v1405 = vunpack.c.l.b16 %v255
    %v1406 = vunpack.c.h.b16 %v255
    %v1407 = vunpack.c.l.b16 %v256
    %v1408 = vunpack.c.h.b16 %v256
    %v1409 = vunpack.c.l.b16 %v257
    %v1410 = vunpack.c.h.b16 %v257
    %v1411 = vunpack.c.l.b16 %v258
    %v1412 = vunpack.c.h.b16 %v258
    %v1413 = vunpack.c.l.b16 %v259
    %v1414 = vunpack.c.h.b16 %v259
    %v1415 = vunpack.c.l.b16 %v260
    %v1416 = vunpack.c.h.b16 %v260
    %v1417 = vunpack.c.l.b16 %v261
    %v1418 = vunpack.c.h.b16 %v261
    %v1419 = vunpack.c.l.b16 %v262
    %v1420 = vunpack.c.h.b16 %v262
    %v1421 = vunpack.c.l.b16 %v263
    %v1422 = vunpack.c.h.b16 %v263
    %v1423 = vunpack.c.l.b16 %v264
    %v1424 = vunpack.c.h.b16 %v264
    %v1425 = vunpack.c.l.b16 %v265
    %v1426 = vunpack.c.h.b16 %v265
    %v1427 = vunpack.c.l.b16 %v266
    %v1428 = vunpack.c.h.b16 %v266
    %v1429 = vunpack.c.l.b16 %v267
    %v1430 = vunpack.c.h.b16 %v267
    %v1431 = vunpack.c.l.b16 %v268
    %v1432 = vunpack.c.h.b16 %v268
    %v1433 = vunpack.c.l.b16 %v269
    %v1434 = vunpack.c.h.b16 %v269
    %v1435 = vunpack.c.l.b16 %v270
    %v1436 = vunpack.c.h.b16 %v270
    %v1437 = vunpack.c.l.b16 %v271
    %v1438 = vunpack.c.h.b16 %v271
    %v1439 = vunpack.c.l.b16 %v272
    %v1440 = vunpack.c.h.b16 %v272
    %v1441 = vunpack.c.l.b16 %v273
    %v1442 = vunpack.c.h.b16 %v273
    %v1443 = vunpack.c.l.b16 %v274
    %v1444 = vunpack.c.h.b16 %v274
    %v1445 = vunpack.c.l.b16 %v275
    %v1446 = vunpack.c.h.b16 %v275
    %v1447 = vunpack.c.l.b16 %v276
    %v1448 = vunpack.c.h.b16 %v276
    %v1449 = vunpack.c.l.b16 %v277
    %v1450 = vunpack.c.h.b16 %v277
    %v1451 = vunpack.c.l.b16 %v278
    %v1452 = vunpack.c.h.b16 %v278
    %v1453 = vunpack.c.l.b16 %v279
    %v1454 = vunpack.c.h.b16 %v279
    %v1455 = vunpack.c.l.b16 %v280
    %v1456 = vunpack.c.h.b16 %v280
    %v1457 = vunpack.c.l.b16 %v281
    %v1458 = vunpack.c.h.b16 %v281
    %v1459 = vunpack.c.l.b16 %v282
    %v1460 = vunpack.c.h.b16 %v282
    %v1461 = vunpack.c.l.b16 %v283
    %v1462 = vunpack.c.h.b16 %v283
    %v1463 = vunpack.c.l.b16 %v284
    %v1464 = vunpack.c.h.b16 %v284
    %v1465 = vunpack.c.l.b16 %v285
    %v1466 = vunpack.c.h.b16 %v285
    %v1467 = vunpack.c.l.b16 %v286
    %v1468 = vunpack.c.h.b16 %v286
    %v1469 = vunpack.c.l.b16 %v287
    %v1470 = vunpack.c.h.b16 %v287
    %v1471 = vunpack.c.l.b16 %v288
    %v1472 = vunpack.c.h.b16 %v288
    %v1473 = vunpack.c.l.b16 %v289
    %v1474 = vunpack.c.h.b16 %v289
    %v1475 = vunpack.c.l.b16 %v290
    %v1476 = vunpack.c.h.b16 %v290
    %v1477 = vunpack.c.l.b16 %v291
    %v1478 = vunpack.c.h.b16 %v291
    %v1479 = vunpack.c.l.b16 %v292
    %v1480 = vunpack.c.h.b16 %v292
    %v1481 = vunpack.c.l.b16 %v293
    %v1482 = vunpack.c.h.b16 %v293
    %v1483 = vunpack.c.l.b16 %v294
    %v1484 = vunpack.c.h.b16 %v294
    %v1485 = vunpack.c.l.b16 %v295
    %v1486 = vunpack.c.h.b16 %v295
    %v1487 = vunpack.c.l.b16 %v296
    %v1488 = vunpack.c.h.b16 %v296
    %v1489 = vunpack.c.l.b16 %v297
    %v1490 = vunpack.c.h.b16 %v297
    %v1491 = vunpack.c.l.b16 %v298
    %v1492 = vunpack.c.h.b16 %v298
    %v1493 = vunpack.c.l.b16 %v299
    %v1494 = vunpack.c.h.b16 %v299
    %v1495 = vunpack.c.l.b16 %v300
    %v1496 = vunpack.c.h.b16 %v300
    %v1497 = vunpack.c.l.b16 %v301
    %v1498 = vunpack.c.h.b16 %v301
    %v1499 = vunpack.c.l.b16 %v302
    %v1500 = vunpack.c.h.b16 %v302
    %v1501 = vunpack.c.l.b16 %v303
    %v1502 = vunpack.c.h.b16 %v303
    %v1503 = vunpack.c.l.b16 %v304
    %v1504 = vunpack.c.h.b16 %v304
    %v1505 = vunpack.c.l.b16 %v305
    %v1506 = vunpack.c.h.b16 %v305
    %v1507 = vunpack.c.l.b16 %v306
    %v1508 = vunpack.c.h.b16 %v306
    %v1509 = vunpack.c.l.b16 %v307
    %v1510 = vunpack.c.h.b16 %v307
    %v1511 = vunpack.c.l.b16 %v308
    %v1512 = vunpack.c.h.b16 %v308
    %v1513 = vunpack.c.l.b16 %v309
    %v1514 = vunpack.c.h.b16 %v309
    %v1515 = vunpack.c.l.b16 %v310
    %v1516 = vunpack.c.h.b16 %v310
    %v1517 = vunpack.c.l.b16 %v311
    %v1518 = vunpack.c.h.b16 %v311
    %v1519 = vunpack.c.l.b16 %v312
    %v1520 = vunpack.c.h.b16 %v312
    %v1521 = vunpack.c.l.b16 %v313
    %v1522 = vunpack.c.h.b16 %v313
    %v1523 = vunpack.c.l.b16 %v314
    %v1524 = vunpack.c.h.b16 %v314
    %v1525 = vunpack.c.l.b16 %v315
    %v1526 = vunpack.c.h.b16 %v315
    %v1527 = vunpack.c.l.b16 %v316
    %v1528 = vunpack.c.h.b16 %v316
    %v1529 = vunpack.c.l.b16 %v317
    %v1530 = vunpack.c.h.b16 %v317
    %v1531 = vunpack.c.l.b16 %v318
    %v1532 = vunpack.c.h.b16 %v318
    %v1533 = vunpack.c.l.b16 %v319
    %v1534 = vunpack.c.h.b16 %v319
    %v1535 = vunpack.c.l.b16 %v320
    %v1536 = vunpack.c.h.b16 %v320
    %v1537 = vunpack.c.l.b16 %v321
    %v1538 = vunpack.c.h.b16 %v321
    %v1539 = vunpack.c.l.b16 %v322
    %v1540 = vunpack.c.h.b16 %v322
    %v1541 = vunpack.c.l.b16 %v323
    %v1542 = vunpack.c.h.b16 %v323
    %v1543 = vunpack.c.l.b16 %v324
    %v1544 = vunpack.c.h.b16 %v324
    %v1545 = vunpack.c.l.b16 %v325
    %v1546 = vunpack.c.h.b16 %v325
    %v1547 = vunpack.c.l.b16 %v326
    %v1548 = vunpack.c.h.b16 %v326
    %v1549 = vunpack.c.l.b16 %v327
    %v1550 = vunpack.c.h.b16 %v327
    %v1551 = vunpack.c.l.b16 %v328
    %v1552 = vunpack.c.h.b16 %v328
    %v1553 = vunpack.c.l.b16 %v329
    %v1554 = vunpack.c.h.b16 %v329
    %v1555 = vunpack.c.l.b16 %v330
    %v1556 = vunpack.c.h.b16 %v330
    %v1557 = vunpack.c.l.b16 %v331
    %v1558 = vunpack.c.h.b16 %v331
    %v1559 = vunpack.c.l.b16 %v332
    %v1560 = vunpack.c.h.b16 %v332
    %v1561 = vunpack.c.l.b16 %v333
    %v1562 = vunpack.c.h.b16 %v333
    %v1563 = vunpack.c.l.b16 %v334
    %v1564 = vunpack.c.h.b16 %v334
    %v1565 = vunpack.c.l.b16 %v335
    %v1566 = vunpack.c.h.b16 %v335
    %v1567 = vunpack.c.l.b16 %v336
    %v1568 = vunpack.c.h.b16 %v336
    %v1569 = vunpack.c.l.b16 %v337
    %v1570 = vunpack.c.h.b16 %v337
    %v1571 = vunpack.c.l.b16 %v338
    %v1572 = vunpack.c.h.b16 %v338
    %v1573 = vunpack.c.l.b16 %v339
    %v1574 = vunpack.c.h.b16 %v339
    %v1575 = vunpack.c.l.b16 %v340
    %v1576 = vunpack.c.h.b16 %v340
    %v1577 = vunpack.c.l.b16 %v341
    %v1578 = vunpack.c.h.b16 %v341
    %v1579 = vunpack.c.l.b16 %v342
    %v1580 = vunpack.c.h.b16 %v342
    %v1581 = vunpack.c.l.b16 %v343
    %v1582 = vunpack.c.h.b16 %v343
    %v1583 = vunpack.c.l.b16 %v344
    %v1584 = vunpack.c.h.b16 %v344
    %v1585 = vunpack.c.l.b16 %v345
    %v1586 = vunpack.c.h.b16 %v345
    %v1587 = vunpack.c.l.b16 %v346
    %v1588 = vunpack.c.h.b16 %v346
    %v1589 = vunpack.c.l.b16 %v347
    %v1590 = vunpack.c.h.b16 %v347
    %v1591 = vunpack.c.l.b16 %v348
    %v1592 = vunpack.c.h.b16 %v348
    %v1593 = vunpack.c.l.b16 %v349
    %v1594 = vunpack.c.h.b16 %v349
    %v1595 = vunpack.c.l.b16 %v350
    %v1596 = vunpack.c.h.b16 %v350
    %v1597 = vunpack.c.l.b16 %v351
    %v1598 = vunpack.c.h.b16 %v351
    %v1599 = vunpack.c.l.b16 %v352
    %v1600 = vunpack.c.h.b16 %v352
    %v1601 = vunpack.c.l.b16 %v353
    %v1602 = vunpack.c.h.b16 %v353
    %v1603 = vunpack.c.l.b16 %v354
    %v1604 = vunpack.c.h.b16 %v354
    %v1605 = vunpack.c.l.b16 %v355
    %v1606 = vunpack.c.h.b16 %v355
    %v1607 = vunpack.c.l.b16 %v356
    %v1608 = vunpack.c.h.b16 %v356
    %v1609 = vunpack.c.l.b16 %v357
    %v1610 = vunpack.c.h.b16 %v357
    %v1611 = vunpack.c.l.b16 %v358
    %v1612 = vunpack.c.h.b16 %v358
    %v1613 = vunpack.c.l.b16 %v359
    %v1614 = vunpack.c.h.b16 %v359
    %v1615 = vunpack.c.l.b16 %v360
    %v1616 = vunpack.c.h.b16 %v360
    %v1617 = vunpack.c.l.b16 %v361
    %v1618 = vunpack.c.h.b16 %v361
    %v1619 = vunpack.c.l.b16 %v362
    %v1620 = vunpack.c.h.b16 %v362
    %v1621 = vunpack.c.l.b16 %v363
    %v1622 = vunpack.c.h.b16 %v363
    %v1623 = vunpack.c.l.b16 %v364
    %v1624 = vunpack.c.h.b16 %v364
    %v1625 = vunpack.c.l.b16 %v365
    %v1626 = vunpack.c.h.b16 %v365
    %v1627 = vunpack.c.l.b16 %v366
    %v1628 = vunpack.c.h.b16 %v366
    %v1629 = vunpack.c.l.b16 %v367
    %v1630 = vunpack.c.h.b16 %v367
    %v1631 = vunpack.c.l.b16 %v368
    %v1632 = vunpack.c.h.b16 %v368
    %v1633 = vunpack.c.l.b16 %v369
    %v1634 = vunpack.c.h.b16 %v369
    %v1635 = vunpack.c.l.b16 %v370
    %v1636 = vunpack.c.h.b16 %v370
    %v1637 = vunpack.c.l.b16 %v371
    %v1638 = vunpack.c.h.b16 %v371
    %v1639 = vunpack.c.l.b16 %v372
    %v1640 = vunpack.c.h.b16 %v372
    %v1641 = vunpack.c.l.b16 %v373
    %v1642 = vunpack.c.h.b16 %v373
    %v1643 = vunpack.c.l.b16 %v374
    %v1644 = vunpack.c.h.b16 %v374
    %v1645 = vunpack.c.l.b16 %v375
    %v1646 = vunpack.c.h.b16 %v375
    %v1647 = vunpack.c.l.b16 %v376
    %v1648 = vunpack.c.h.b16 %v376
    %v1649 = vunpack.c.l.b16 %v377
    %v1650 = vunpack.c.h.b16 %v377
    %v1651 = vunpack.c.l.b16 %v378
    %v1652 = vunpack.c.h.b16 %v378
    %v1653 = vunpack.c.l.b16 %v379
    %v1654 = vunpack.c.h.b16 %v379
    %v1655 = vunpack.c.l.b16 %v380
    %v1656 = vunpack.c.h.b16 %v380
    %v1657 = vunpack.c.l.b16 %v381
    %v1658 = vunpack.c.h.b16 %v381
    %v1659 = vunpack.c.l.b16 %v382
    %v1660 = vunpack.c.h.b16 %v382
    %v1661 = vunpack.c.l.b16 %v383
    %v1662 = vunpack.c.h.b16 %v383
    %v1663 = vunpack.c.l.b16 %v384
    %v1664 = vunpack.c.h.b16 %v384
    %v1665 = vunpack.c.l.b16 %v385
    %v1666 = vunpack.c.h.b16 %v385
    %v1667 = vunpack.c.l.b16 %v386
    %v1668 = vunpack.c.h.b16 %v386
    %v1669 = vunpack.c.l.b16 %v387
    %v1670 = vunpack.c.h.b16 %v387
    %v1671 = vunpack.c.l.b16 %v388
    %v1672 = vunpack.c.h.b16 %v388
    %v1673 = vunpack.c.l.b16 %v389
    %v1674 = vunpack.c.h.b16 %v389
    %v1675 = vunpack.c.l.b16 %v390
    %v1676 = vunpack.c.h.b16 %v390
    %v1677 = vunpack.c.l.b16 %v391
    %v1678 = vunpack.c.h.b16 %v391
    %v1679 = vunpack.c.l.b16 %v392
    %v1680 = vunpack.c.h.b16 %v392
    %v1681 = vunpack.c.l.b16 %v393
    %v1682 = vunpack.c.h.b16 %v393
    %v1683 = vunpack.c.l.b16 %v394
    %v1684 = vunpack.c.h.b16 %v394
    %v1685 = vunpack.c.l.b16 %v395
    %v1686 = vunpack.c.h.b16 %v395
    %v1687 = vunpack.c.l.b16 %v396
    %v1688 = vunpack.c.h.b16 %v396
    %v1689 = vunpack.c.l.b16 %v397
    %v1690 = vunpack.c.h.b16 %v397
    %v1691 = vunpack.c.l.b16 %v398
    %v1692 = vunpack.c.h.b16 %v398
    %v1693 = vunpack.c.l.b16 %v399
    %v1694 = vunpack.c.h.b16 %v399
    %v1695 = vunpack.c.l.b16 %v400
    %v1696 = vunpack.c.h.b16 %v400
    %v1697 = vunpack.c.l.b16 %v401
    %v1698 = vunpack.c.h.b16 %v401
    %v1699 = vunpack.c.l.b16 %v402
    %v1700 = vunpack.c.h.b16 %v402
    %v1701 = vunpack.c.l.b16 %v403
    %v1702 = vunpack.c.h.b16 %v403
    %v1703 = vunpack.c.l.b16 %v404
    %v1704 = vunpack.c.h.b16 %v404
    %v1705 = vunpack.c.l.b16 %v405
    %v1706 = vunpack.c.h.b16 %v405
    %v1707 = vunpack.c.l.b16 %v406
    %v1708 = vunpack.c.h.b16 %v406
    %v1709 = vunpack.c.l.b16 %v407
    %v1710 = vunpack.c.h.b16 %v407
    %v1711 = vunpack.c.l.b16 %v408
    %v1712 = vunpack.c.h.b16 %v408
    %v1713 = vunpack.c.l.b16 %v409
    %v1714 = vunpack.c.h.b16 %v409
    %v1715 = vunpack.c.l.b16 %v410
    %v1716 = vunpack.c.h.b16 %v410
    %v1717 = vunpack.c.l.b16 %v411
    %v1718 = vunpack.c.h.b16 %v411
    %v1719 = vunpack.c.l.b16 %v412
    %v1720 = vunpack.c.h.b16 %v412
    %v1721 = vunpack.c.l.b16 %v413
    %v1722 = vunpack.c.h.b16 %v413
    %v1723 = vunpack.c.l.b16 %v414
    %v1724 = vunpack.c.h.b16 %v414
    %v1725 = vunpack.c.l.b16 %v415
    %v1726 = vunpack.c.h.b16 %v415
    %v1727 = vunpack.c.l.b16 %v416
    %v1728 = vunpack.c.h.b16 %v416
    %v1729 = vunpack.c.l.b16 %v417
    %v1730 = vunpack.c.h.b16 %v417
    %v1731 = vunpack.c.l.b16 %v418
    %v1732 = vunpack.c.h.b16 %v418
    %v1733 = vunpack.c.l.b16 %v419
    %v1734 = vunpack.c.h.b16 %v419
    %v1735 = vunpack.c.l.b16 %v420
    %v1736 = vunpack.c.h.b16 %v420
    %v1737 = vunpack.c.l.b16 %v421
    %v1738 = vunpack.c.h.b16 %v421
    %v1739 = vunpack.c.l.b16 %v422
    %v1740 = vunpack.c.h.b16 %v422
    %v1741 = vunpack.c.l.b16 %v423
    %v1742 = vunpack.c.h.b16 %v423
    %v1743 = vunpack.c.l.b16 %v424
    %v1744 = vunpack.c.h.b16 %v424
    %v1745 = vunpack.c.l.b16 %v425
    %v1746 = vunpack.c.h.b16 %v425
    %v1747 = vunpack.c.l.b16 %v426
    %v1748 = vunpack.c.h.b16 %v426
    %v1749 = vunpack.c.l.b16 %v427
    %v1750 = vunpack.c.h.b16 %v427
    %v1751 = vunpack.c.l.b16 %v428
    %v1752 = vunpack.c.h.b16 %v428
    %v1753 = vpack.c.b16 %v1017, %v1013
    %v1754 = vpack.c.b16 %v1018, %v1014
    %v1755 = vpack.c.b16 %v1019, %v1015
    %v1756 = vpack.c.b16 %v1020, %v1016
    %v1757 = vpack.c.b16 %v1025, %v1021
    %v1758 = vpack.c.b16 %v1026, %v1022
    %v1759 = vpack.c.b16 %v1027, %v1023
    %v1760 = vpack.c.b16 %v1028, %v1024
    %v1761 = vpack.c.b16 %v1033, %v1029
    %v1762 = vpack.c.b16 %v1034, %v1030
    %v1763 = vpack.c.b16 %v1035, %v1031
    %v1764 = vpack.c.b16 %v1036, %v1032
    %v1765 = vpack.c.b16 %v1041, %v1037
    %v1766 = vpack.c.b16 %v1042, %v1038
    %v1767 = vpack.c.b16 %v1043, %v1039
    %v1768 = vpack.c.b16 %v1044, %v1040
    %v1769 = vpack.c.b16 %v1049, %v1045
    %v1770 = vpack.c.b16 %v1050, %v1046
    %v1771 = vpack.c.b16 %v1051, %v1047
    %v1772 = vpack.c.b16 %v1052, %v1048
    %v1773 = vpack.c.b16 %v1057, %v1053
    %v1774 = vpack.c.b16 %v1058, %v1054
    %v1775 = vpack.c.b16 %v1059, %v1055
    %v1776 = vpack.c.b16 %v1060, %v1056
    %v1777 = vpack.c.b16 %v1065, %v1061
    %v1778 = vpack.c.b16 %v1066, %v1062
    %v1779 = vpack.c.b16 %v1067, %v1063
    %v1780 = vpack.c.b16 %v1068, %v1064
    %v1781 = vpack.c.b16 %v1073, %v1069
    %v1782 = vpack.c.b16 %v1074, %v1070
    %v1783 = vpack.c.b16 %v1075, %v1071
    %v1784 = vpack.c.b16 %v1076, %v1072
    %v1785 = vpack.c.b16 %v1081, %v1077
    %v1786 = vpack.c.b16 %v1082, %v1078
    %v1787 = vpack.c.b16 %v1083, %v1079
    %v1788 = vpack.c.b16 %v1084, %v1080
    %v1789 = vpack.c.b16 %v1089, %v1085
    %v1790 = vpack.c.b16 %v1090, %v1086
    %v1791 = vpack.c.b16 %v1091, %v1087
    %v1792 = vpack.c.b16 %v1092, %v1088
    %v1793 = vpack.c.b16 %v1097, %v1093
    %v1794 = vpack.c.b16 %v1098, %v1094
    %v1795 = vpack.c.b16 %v1099, %v1095
    %v1796 = vpack.c.b16 %v1100, %v1096
    %v1797 = vpack.c.b16 %v1105, %v1101
    %v1798 = vpack.c.b16 %v1106, %v1102
    %v1799 = vpack.c.b16 %v1107, %v1103
    %v1800 = vpack.c.b16 %v1108, %v1104
    %v1801 = vpack.c.b16 %v1113, %v1109
    %v1802 = vpack.c.b16 %v1114, %v1110
    %v1803 = vpack.c.b16 %v1115, %v1111
    %v1804 = vpack.c.b16 %v1116, %v1112
    %v1805 = vpack.c.b16 %v1121, %v1117
    %v1806 = vpack.c.b16 %v1122, %v1118
    %v1807 = vpack.c.b16 %v1123, %v1119
    %v1808 = vpack.c.b16 %v1124, %v1120
    %v1809 = vpack.c.b16 %v1129, %v1125
    %v1810 = vpack.c.b16 %v1130, %v1126
    %v1811 = vpack.c.b16 %v1131, %v1127
    %v1812 = vpack.c.b16 %v1132, %v1128
    %v1813 = vpack.c.b16 %v1137, %v1133
    %v1814 = vpack.c.b16 %v1138, %v1134
    %v1815 = vpack.c.b16 %v1139, %v1135
    %v1816 = vpack.c.b16 %v1140, %v1136
    %v1817 = vpack.c.b16 %v1145, %v1141
    %v1818 = vpack.c.b16 %v1146, %v1142
    %v1819 = vpack.c.b16 %v1147, %v1143
    %v1820 = vpack.c.b16 %v1148, %v1144
    %v1821 = vpack.c.b16 %v1153, %v1149
    %v1822 = vpack.c.b16 %v1154, %v1150
    %v1823 = vpack.c.b16 %v1155, %v1151
    %v1824 = vpack.c.b16 %v1156, %v1152
    %v1825 = vpack.c.b16 %v1161, %v1157
    %v1826 = vpack.c.b16 %v1162, %v1158
    %v1827 = vpack.c.b16 %v1163, %v1159
    %v1828 = vpack.c.b16 %v1164, %v1160
    %v1829 = vpack.c.b16 %v1169, %v1165
    %v1830 = vpack.c.b16 %v1170, %v1166
    %v1831 = vpack.c.b16 %v1171, %v1167
    %v1832 = vpack.c.b16 %v1172, %v1168
    %v1833 = vpack.c.b16 %v1177, %v1173
    %v1834 = vpack.c.b16 %v1178, %v1174
    %v1835 = vpack.c.b16 %v1179, %v1175
    %v1836 = vpack.c.b16 %v1180, %v1176
    %v1837 = vpack.c.b16 %v1185, %v1181
    %v1838 = vpack.c.b16 %v1186, %v1182
    %v1839 = vpack.c.b16 %v1187, %v1183
    %v1840 = vpack.c.b16 %v1188, %v1184
    %v1841 = vpack.c.b16 %v1193, %v1189
    %v1842 = vpack.c.b16 %v1194, %v1190
    %v1843 = vpack.c.b16 %v1195, %v1191
    %v1844 = vpack.c.b16 %v1196, %v1192
    %v1845 = vpack.c.b16 %v1201, %v1197
    %v1846 = vpack.c.b16 %v1202, %v1198
    %v1847 = vpack.c.b16 %v1203, %v1199
    %v1848 = vpack.c.b16 %v1204, %v1200
    %v1849 = vpack.c.b16 %v1209, %v1205
    %v1850 = vpack.c.b16 %v1210, %v1206
    %v1851 = vpack.c.b16 %v1211, %v1207
    %v1852 = vpack.c.b16 %v1212, %v1208
    %v1853 = vpack.c.b16 %v1217, %v1213
    %v1854 = vpack.c.b16 %v1218, %v1214
    %v1855 = vpack.c.b16 %v1219, %v1215
    %v1856 = vpack.c.b16 %v1220, %v1216
    %v1857 = vpack.c.b16 %v1225, %v1221
    %v1858 = vpack.c.b16 %v1226, %v1222
    %v1859 = vpack.c.b16 %v1227, %v1223
    %v1860 = vpack.c.b16 %v1228, %v1224
    %v1861 = vpack.c.b16 %v1233, %v1229
    %v1862 = vpack.c.b16 %v1234, %v1230
    %v1863 = vpack.c.b16 %v1235, %v1231
    %v1864 = vpack.c.b16 %v1236, %v1232
    %v1865 = vpack.c.b16 %v1241, %v1237
    %v1866 = vpack.c.b16 %v1242, %v1238
    %v1867 = vpack.c.b16 %v1243, %v1239
    %v1868 = vpack.c.b16 %v1244, %v1240
    %v1869 = vpack.c.b16 %v1249, %v1245
    %v1870 = vpack.c.b16 %v1250, %v1246
    %v1871 = vpack.c.b16 %v1251, %v1247
    %v1872 = vpack.c.b16 %v1252, %v1248
    %v1873 = vpack.c.b16 %v1257, %v1253
    %v1874 = vpack.c.b16 %v1258, %v1254
    %v1875 = vpack.c.b16 %v1259, %v1255
    %v1876 = vpack.c.b16 %v1260, %v1256
    %v1877 = vpack.c.b16 %v1265, %v1261
    %v1878 = vpack.c.b16 %v1266, %v1262
    %v1879 = vpack.c.b16 %v1267, %v1263
    %v1880 = vpack.c.b16 %v1268, %v1264
    %v1881 = vpack.c.b16 %v1273, %v1269
    %v1882 = vpack.c.b16 %v1274, %v1270
    %v1883 = vpack.c.b16 %v1275, %v1271
    %v1884 = vpack.c.b16 %v1276, %v1272
    %v1885 = vpack.c.b16 %v1281, %v1277
    %v1886 = vpack.c.b16 %v1282, %v1278
    %v1887 = vpack.c.b16 %v1283, %v1279
    %v1888 = vpack.c.b16 %v1284, %v1280
    %v1889 = vpack.c.b16 %v1289, %v1285
    %v1890 = vpack.c.b16 %v1290, %v1286
    %v1891 = vpack.c.b16 %v1291, %v1287
    %v1892 = vpack.c.b16 %v1292, %v1288
    %v1893 = vpack.c.b16 %v1297, %v1293
    %v1894 = vpack.c.b16 %v1298, %v1294
    %v1895 = vpack.c.b16 %v1299, %v1295
    %v1896 = vpack.c.b16 %v1300, %v1296
    %v1897 = vpack.c.b16 %v1305, %v1301
    %v1898 = vpack.c.b16 %v1306, %v1302
    %v1899 = vpack.c.b16 %v1307, %v1303
    %v1900 = vpack.c.b16 %v1308, %v1304
    %v1901 = vpack.c.b16 %v1313, %v1309
    %v1902 = vpack.c.b16 %v1314, %v1310
    %v1903 = vpack.c.b16 %v1315, %v1311
    %v1904 = vpack.c.b16 %v1316, %v1312
    %v1905 = vpack.c.b16 %v1321, %v1317
    %v1906 = vpack.c.b16 %v1322, %v1318
    %v1907 = vpack.c.b16 %v1323, %v1319
    %v1908 = vpack.c.b16 %v1324, %v1320
    %v1909 = vpack.c.b16 %v1329, %v1325
    %v1910 = vpack.c.b16 %v1330, %v1326
    %v1911 = vpack.c.b16 %v1331, %v1327
    %v1912 = vpack.c.b16 %v1332, %v1328
    %v1913 = vpack.c.b16 %v1337, %v1333
    %v1914 = vpack.c.b16 %v1338, %v1334
    %v1915 = vpack.c.b16 %v1339, %v1335
    %v1916 = vpack.c.b16 %v1340, %v1336
    %v1917 = vpack.c.b16 %v1345, %v1341
    %v1918 = vpack.c.b16 %v1346, %v1342
    %v1919 = vpack.c.b16 %v1347, %v1343
    %v1920 = vpack.c.b16 %v1348, %v1344
    %v1921 = vpack.c.b16 %v1353, %v1349
    %v1922 = vpack.c.b16 %v1354, %v1350
    %v1923 = vpack.c.b16 %v1355, %v1351
    %v1924 = vpack.c.b16 %v1356, %v1352
    %v1925 = vpack.c.b16 %v1361, %v1357
    %v1926 = vpack.c.b16 %v1362, %v1358
    %v1927 = vpack.c.b16 %v1363, %v1359
    %v1928 = vpack.c.b16 %v1364, %v1360
    %v1929 = vpack.c.b16 %v1369, %v1365
    %v1930 = vpack.c.b16 %v1370, %v1366
    %v1931 = vpack.c.b16 %v1371, %v1367
    %v1932 = vpack.c.b16 %v1372, %v1368
    %v1933 = vpack.c.b16 %v1377, %v1373
    %v1934 = vpack.c.b16 %v1378, %v1374
    %v1935 = vpack.c.b16 %v1379, %v1375
    %v1936 = vpack.c.b16 %v1380, %v1376
    %v1937 = vpack.c.b16 %v1385, %v1381
    %v1938 = vpack.c.b16 %v1386, %v1382
    %v1939 = vpack.c.b16 %v1387, %v1383
    %v1940 = vpack.c.b16 %v1388, %v1384
    %v1941 = vpack.c.b16 %v1393, %v1389
    %v1942 = vpack.c.b16 %v1394, %v1390
    %v1943 = vpack.c.b16 %v1395, %v1391
    %v1944 = vpack.c.b16 %v1396, %v1392
    %v1945 = vpack.c.b16 %v1401, %v1397
    %v1946 = vpack.c.b16 %v1402, %v1398
    %v1947 = vpack.c.b16 %v1403, %v1399
    %v1948 = vpack.c.b16 %v1404, %v1400
    %v1949 = vpack.c.b16 %v1409, %v1405
    %v1950 = vpack.c.b16 %v1410, %v1406
    %v1951 = vpack.c.b16 %v1411, %v1407
    %v1952 = vpack.c.b16 %v1412, %v1408
    %v1953 = vpack.c.b16 %v1417, %v1413
    %v1954 = vpack.c.b16 %v1418, %v1414
    %v1955 = vpack.c.b16 %v1419, %v1415
    %v1956 = vpack.c.b16 %v1420, %v1416
    %v1957 = vpack.c.b16 %v1425, %v1421
    %v1958 = vpack.c.b16 %v1426, %v1422
    %v1959 = vpack.c.b16 %v1427, %v1423
    %v1960 = vpack.c.b16 %v1428, %v1424
    %v1961 = vpack.c.b16 %v1433, %v1429
    %v1962 = vpack.c.b16 %v1434, %v1430
    %v1963 = vpack.c.b16 %v1435, %v1431
    %v1964 = vpack.c.b16 %v1436, %v1432
    %v1965 = vpack.c.b16 %v1441, %v1437
    %v1966 = vpack.c.b16 %v1442, %v1438
    %v1967 = vpack.c.b16 %v1443, %v1439
    %v1968 = vpack.c.b16 %v1444, %v1440
    %v1969 = vpack.c.b16 %v1449, %v1445
    %v1970 = vpack.c.b16 %v1450, %v1446
    %v1971 = vpack.c.b16 %v1451, %v1447
    %v1972 = vpack.c.b16 %v1452, %v1448
    %v1973 = vpack.c.b16 %v1457, %v1453
    %v1974 = vpack.c.b16 %v1458, %v1454
    %v1975 = vpack.c.b16 %v1459, %v1455
    %v1976 = vpack.c.b16 %v1460, %v1456
    %v1977 = vpack.c.b16 %v1465, %v1461
    %v1978 = vpack.c.b16 %v1466, %v1462
    %v1979 = vpack.c.b16 %v1467, %v1463
    %v1980 = vpack.c.b16 %v1468, %v1464
    %v1981 = vpack.c.b16 %v1473, %v1469
    %v1982 = vpack.c.b16 %v1474, %v1470
    %v1983 = vpack.c.b16 %v1475, %v1471
    %v1984 = vpack.c.b16 %v1476, %v1472
    %v1985 = vpack.c.b16 %v1481, %v1477
    %v1986 = vpack.c.b16 %v1482, %v1478
    %v1987 = vpack.c.b16 %v1483, %v1479
    %v1988 = vpack.c.b16 %v1484, %v1480
    %v1989 = vpack.c.b16 %v1489, %v1485
    %v1990 = vpack.c.b16 %v1490, %v1486
    %v1991 = vpack.c.b16 %v1491, %v1487
    %v1992 = vpack.c.b16 %v1492, %v1488
    %v1993 = vpack.c.b16 %v1497, %v1493
    %v1994 = vpack.c.b16 %v1498, %v1494
    %v1995 = vpack.c.b16 %v1499, %v1495
    %v1996 = vpack.c.b16 %v1500, %v1496
    %v1997 = vpack.c.b16 %v1505, %v1501
    %v1998 = vpack.c.b16 %v1506, %v1502
    %v1999 = vpack.c.b16 %v1507, %v1503
    %v2000 = vpack.c.b16 %v1508, %v1504
    %v2001 = vpack.c.b16 %v1513, %v1509
    %v2002 = vpack.c.b16 %v1514, %v1510
    %v2003 = vpack.c.b16 %v1515, %v1511
    %v2004 = vpack.c.b16 %v1516, %v1512
    %v2005 = vpack.c.b16 %v1521, %v1517
    %v2006 = vpack.c.b16 %v1522, %v1518
    %v2007 = vpack.c.b16 %v1523, %v1519
    %v2008 = vpack.c.b16 %v1524, %v1520
    %v2009 = vpack.c.b16 %v1529, %v1525
    %v2010 = vpack.c.b16 %v1530, %v1526
    %v2011 = vpack.c.b16 %v1531, %v1527
    %v2012 = vpack.c.b16 %v1532, %v1528
    %v2013 = vpack.c.b16 %v1537, %v1533
    %v2014 = vpack.c.b16 %v1538, %v1534
    %v2015 = vpack.c.b16 %v1539, %v1535
    %v2016 = vpack.c.b16 %v1540, %v1536
    %v2017 = vpack.c.b16 %v1545, %v1541
    %v2018 = vpack.c.b16 %v1546, %v1542
    %v2019 = vpack.c.b16 %v1547, %v1543
    %v2020 = vpack.c.b16 %v1548, %v1544
    %v2021 = vpack.c.b16 %v1553, %v1549
    %v2022 = vpack.c.b16 %v1554, %v1550
    %v2023 = vpack.c.b16 %v1555, %v1551
    %v2024 = vpack.c.b16 %v1556, %v1552
    %v2025 = vpack.c.b16 %v1561, %v1557
    %v2026 = vpack.c.b16 %v1562, %v1558
    %v2027 = vpack.c.b16 %v1563, %v1559
    %v2028 = vpack.c.b16 %v1564, %v1560
    %v2029 = vpack.c.b16 %v1569, %v1565
    %v2030 = vpack.c.b16 %v1570, %v1566
    %v2031 = vpack.c.b16 %v1571, %v1567
    %v2032 = vpack.c.b16 %v1572, %v1568
    %v2033 = vpack.c.b16 %v1577, %v1573
    %v2034 = vpack.c.b16 %v1578, %v1574
    %v2035 = vpack.c.b16 %v1579, %v1575
    %v2036 = vpack.c.b16 %v1580, %v1576
    %v2037 = vpack.c.b16 %v1585, %v1581
    %v2038 = vpack.c.b16 %v1586, %v1582
    %v2039 = vpack.c.b16 %v1587, %v1583
    %v2040 = vpack.c.b16 %v1588, %v1584
    %v2041 = vpack.c.b16 %v1593, %v1589
    %v2042 = vpack.c.b16 %v1594, %v1590
    %v2043 = vpack.c.b16 %v1595, %v1591
    %v2044 = vpack.c.b16 %v1596, %v1592
    %v2045 = vpack.c.b16 %v1601, %v1597
    %v2046 = vpack.c.b16 %v1602, %v1598
    %v2047 = vpack.c.b16 %v1603, %v1599
    %v2048 = vpack.c.b16 %v1604, %v1600
    %v2049 = vpack.c.b16 %v1609, %v1605
    %v2050 = vpack.c.b16 %v1610, %v1606
    %v2051 = vpack.c.b16 %v1611, %v1607
    %v2052 = vpack.c.b16 %v1612, %v1608
    %v2053 = vpack.c.b16 %v1617, %v1613
    %v2054 = vpack.c.b16 %v1618, %v1614
    %v2055 = vpack.c.b16 %v1619, %v1615
    %v2056 = vpack.c.b16 %v1620, %v1616
    %v2057 = vpack.c.b16 %v1625, %v1621
    %v2058 = vpack.c.b16 %v1626, %v1622
    %v2059 = vpack.c.b16 %v1627, %v1623
    %v2060 = vpack.c.b16 %v1628, %v1624
    %v2061 = vpack.c.b16 %v1633, %v1629
    %v2062 = vpack.c.b16 %v1634, %v1630
    %v2063 = vpack.c.b16 %v1635, %v1631
    %v2064 = vpack.c.b16 %v1636, %v1632
    %v2065 = vpack.c.b16 %v1641, %v1637
    %v2066 = vpack.c.b16 %v1642, %v1638
    %v2067 = vpack.c.b16 %v1643, %v1639
    %v2068 = vpack.c.b16 %v1644, %v1640
    %v2069 = vpack.c.b16 %v1649, %v1645
    %v2070 = vpack.c.b16 %v1650, %v1646
    %v2071 = vpack.c.b16 %v1651, %v1647
    %v2072 = vpack.c.b16 %v1652, %v1648
    %v2073 = vpack.c.b16 %v1657, %v1653
    %v2074 = vpack.c.b16 %v1658, %v1654
    %v2075 = vpack.c.b16 %v1659, %v1655
    %v2076 = vpack.c.b16 %v1660, %v1656
    %v2077 = vpack.c.b16 %v1665, %v1661
    %v2078 = vpack.c.b16 %v1666, %v1662
    %v2079 = vpack.c.b16 %v1667, %v1663
    %v2080 = vpack.c.b16 %v1668, %v1664
    %v2081 = vpack.c.b16 %v1673, %v1669
    %v2082 = vpack.c.b16 %v1674, %v1670
    %v2083 = vpack.c.b16 %v1675, %v1671
    %v2084 = vpack.c.b16 %v1676, %v1672
    %v2085 = vpack.c.b16 %v1681, %v1677
    %v2086 = vpack.c.b16 %v1682, %v1678
    %v2087 = vpack.c.b16 %v1683, %v1679
    %v2088 = vpack.c.b16 %v1684, %v1680
    %v2089 = vpack.c.b16 %v1689, %v1685
    %v2090 = vpack.c.b16 %v1690, %v1686
    %v2091 = vpack.c.b16 %v1691, %v1687
    %v2092 = vpack.c.b16 %v1692, %v1688
    %v2093 = vpack.c.b16 %v1697, %v1693
    %v2094 = vpack.c.b16 %v1698, %v1694
    %v2095 = vpack.c.b16 %v1699, %v1695
    %v2096 = vpack.c.b16 %v1700, %v1696
    %v2097 = vpack.c.b16 %v1705, %v1701
    %v2098 = vpack.c.b16 %v1706, %v1702
    %v2099 = vpack.c.b16 %v1707, %v1703
    %v2100 = vpack.c.b16 %v1708, %v1704
    %v2101 = vpack.c.b16 %v1713, %v1709
    %v2102 = vpack.c.b16 %v1714, %v1710
    %v2103 = vpack.c.b16 %v1715, %v1711
    %v2104 = vpack.c.b16 %v1716, %v1712
    %v2105 = vpack.c.b16 %v1721, %v1717
    %v2106 = vpack.c.b16 %v1722, %v1718
    %v2107 = vpack.c.b16 %v1723, %v1719
    %v2108 = vpack.c.b16 %v1724, %v1720
    %v2109 = vpack.c.b16 %v1729, %v1725
    %v2110 = vpack.c.b16 %v1730, %v1726
    %v2111 = vpack.c.b16 %v1731, %v1727
    %v2112 = vpack.c.b16 %v1732, %v1728
    %v2113 = vpack.c.b16 %v1737, %v1733
    %v2114 = vpack.c.b16 %v1738, %v1734
    %v2115 = vpack.c.b16 %v1739, %v1735
    %v2116 = vpack.c.b16 %v1740, %v1736
    %v2117 = vpack.c.b16 %v1745, %v1741
    %v2118 = vpack.c.b16 %v1746, %v1742
    %v2119 = vpack.c.b16 %v1747, %v1743
    %v2120 = vpack.c.b16 %v1748, %v1744
    %v2121 = vpack.c.b16 %v1749, %v1749
    %v2122 = vpack.c.b16 %v1750, %v1750
    %v2123 = vpack.c.b16 %v1751, %v1751
    %v2124 = vpack.c.b16 %v1752, %v1752
    %vm2493 = vcmask 556032
    %v2495 = vsel %vm2493, %v585, 0
    %v2498 = vsel %vm2493, %v597, 0
    %v2501 = vsel %vm2493, %v609, 0
    %vm2503 = vcmask 1041408
    %v2505 = vsel %vm2503, %v2121, 0
    %v2508 = vsel %vm2503, %v2122, 0
    %v2511 = vsel %vm2503, %v2123, 0
    %v2514 = vsel %vm2503, %v2124, 0
    %2516 = vmatprep.subr.bf16.mxu0 %v1782
    %2517 = vmatpush1.bf16.msra.mxu0 %v1781
    %2518 = vmatprep.subr.bf16.mxu0 %v1778
    %2519 = vmatpush1.bf16.msra.mxu0 %v1777
    %2520 = vmatprep.subr.bf16.mxu0 %v1774
    %2521 = vmatpush1.bf16.msra.mxu0 %v1773
    %2522 = vmatprep.subr.bf16.mxu0 %v1770
    %2523 = vmatpush1.bf16.msra.mxu0 %v1769
    %2524 = vmatprep.subr.bf16.mxu0 %v1766
    %2525 = vmatpush1.bf16.msra.mxu0 %v1765
    %2526 = vmatprep.subr.bf16.mxu0 %v1762
    %2527 = vmatpush1.bf16.msra.mxu0 %v1761
    %2528 = vmatprep.subr.bf16.mxu0 %v1758
    %2529 = vmatpush1.bf16.msra.mxu0 %v1757
    %2530 = vmatprep.subr.bf16.mxu0 %v1754
    %2531 = vmatpush1.bf16.msra.mxu0 %v1753
    %2532 = vmatprep.subr.bf16.mxu0 %v1814
    %2533 = vmatpush2.bf16.msra.mxu0 %v1813
    %2534 = vmatprep.subr.bf16.mxu0 %v1810
    %2535 = vmatpush2.bf16.msra.mxu0 %v1809
    %2536 = vmatprep.subr.bf16.mxu0 %v1806
    %2537 = vmatpush2.bf16.msra.mxu0 %v1805
    %2538 = vmatprep.subr.bf16.mxu0 %v1802
    %2539 = vmatpush2.bf16.msra.mxu0 %v1801
    %2540 = vmatprep.subr.bf16.mxu0 %v1798
    %2541 = vmatpush2.bf16.msra.mxu0 %v1797
    %2542 = vmatprep.subr.bf16.mxu0 %v1794
    %2543 = vmatpush2.bf16.msra.mxu0 %v1793
    %2544 = vmatprep.subr.bf16.mxu0 %v1790
    %2545 = vmatpush2.bf16.msra.mxu0 %v1789
    %2546 = vmatprep.subr.bf16.mxu0 %v1786
    %2547 = vmatpush2.bf16.msra.mxu0 %v1785
    %2548 = vmatprep.mubr.bf16.mxu0 %v575
    %2549 = vmatmul.mubr.bf16.gmra.mxu0 %v574
    %v2550 = vpop.f32.mrf.mxu0
    %v2551 = vadd.f32 %v453, %v2550
    %v2552 = vpop.f32.mrf.mxu0
    %v2553 = vadd.f32 %v457, %v2552
    %v2554 = vpop.f32.mrf.mxu0
    %v2555 = vadd.f32 %v453, %v2554
    %v2556 = vpop.f32.mrf.mxu0
    %v2557 = vadd.f32 %v457, %v2556
    %2558 = vmatprep.mubr.bf16.mxu0 %v587
    %2559 = vmatmul.mubr.bf16.gmra.mxu0 %v586
    %v2560 = vpop.f32.mrf.mxu0
    %v2561 = vadd.f32 %v453, %v2560
    %v2562 = vpop.f32.mrf.mxu0
    %v2563 = vadd.f32 %v457, %v2562
    %v2564 = vpop.f32.mrf.mxu0
    %v2565 = vadd.f32 %v453, %v2564
    %v2566 = vpop.f32.mrf.mxu0
    %v2567 = vadd.f32 %v457, %v2566
    %2568 = vmatprep.mubr.bf16.mxu0 %v599
    %2569 = vmatmul.mubr.bf16.gmra.mxu0 %v598
    %v2570 = vpop.f32.mrf.mxu0
    %v2571 = vadd.f32 %v453, %v2570
    %v2572 = vpop.f32.mrf.mxu0
    %v2573 = vadd.f32 %v457, %v2572
    %v2574 = vpop.f32.mrf.mxu0
    %v2575 = vadd.f32 %v453, %v2574
    %v2576 = vpop.f32.mrf.mxu0
    %v2577 = vadd.f32 %v457, %v2576
    %2578 = vdwg.mxu0
    %2579 = vmatprep.subr.bf16.mxu0 %v1846
    %2580 = vmatpush1.bf16.msra.mxu0 %v1845
    %2581 = vmatprep.subr.bf16.mxu0 %v1842
    %2582 = vmatpush1.bf16.msra.mxu0 %v1841
    %2583 = vmatprep.subr.bf16.mxu0 %v1838
    %2584 = vmatpush1.bf16.msra.mxu0 %v1837
    %2585 = vmatprep.subr.bf16.mxu0 %v1834
    %2586 = vmatpush1.bf16.msra.mxu0 %v1833
    %2587 = vmatprep.subr.bf16.mxu0 %v1830
    %2588 = vmatpush1.bf16.msra.mxu0 %v1829
    %2589 = vmatprep.subr.bf16.mxu0 %v1826
    %2590 = vmatpush1.bf16.msra.mxu0 %v1825
    %2591 = vmatprep.subr.bf16.mxu0 %v1822
    %2592 = vmatpush1.bf16.msra.mxu0 %v1821
    %2593 = vmatprep.subr.bf16.mxu0 %v1818
    %2594 = vmatpush1.bf16.msra.mxu0 %v1817
    %2595 = vmatprep.subr.bf16.mxu0 %v1878
    %2596 = vmatpush2.bf16.msra.mxu0 %v1877
    %2597 = vmatprep.subr.bf16.mxu0 %v1874
    %2598 = vmatpush2.bf16.msra.mxu0 %v1873
    %2599 = vmatprep.subr.bf16.mxu0 %v1870
    %2600 = vmatpush2.bf16.msra.mxu0 %v1869
    %2601 = vmatprep.subr.bf16.mxu0 %v1866
    %2602 = vmatpush2.bf16.msra.mxu0 %v1865
    %2603 = vmatprep.subr.bf16.mxu0 %v1862
    %2604 = vmatpush2.bf16.msra.mxu0 %v1861
    %2605 = vmatprep.subr.bf16.mxu0 %v1858
    %2606 = vmatpush2.bf16.msra.mxu0 %v1857
    %2607 = vmatprep.subr.bf16.mxu0 %v1854
    %2608 = vmatpush2.bf16.msra.mxu0 %v1853
    %2609 = vmatprep.subr.bf16.mxu0 %v1850
    %2610 = vmatpush2.bf16.msra.mxu0 %v1849
    %2611 = vmatprep.mubr.bf16.mxu0 %v577
    %2612 = vmatmul.mubr.bf16.gmra.mxu0 %v576
    %v2613 = vpop.f32.mrf.mxu0
    %v2614 = vadd.f32 %v2551, %v2613
    %v2615 = vpop.f32.mrf.mxu0
    %v2616 = vadd.f32 %v2553, %v2615
    %v2617 = vpop.f32.mrf.mxu0
    %v2618 = vadd.f32 %v2555, %v2617
    %v2619 = vpop.f32.mrf.mxu0
    %v2620 = vadd.f32 %v2557, %v2619
    %2621 = vmatprep.mubr.bf16.mxu0 %v589
    %2622 = vmatmul.mubr.bf16.gmra.mxu0 %v588
    %v2623 = vpop.f32.mrf.mxu0
    %v2624 = vadd.f32 %v2561, %v2623
    %v2625 = vpop.f32.mrf.mxu0
    %v2626 = vadd.f32 %v2563, %v2625
    %v2627 = vpop.f32.mrf.mxu0
    %v2628 = vadd.f32 %v2565, %v2627
    %v2629 = vpop.f32.mrf.mxu0
    %v2630 = vadd.f32 %v2567, %v2629
    %2631 = vmatprep.mubr.bf16.mxu0 %v601
    %2632 = vmatmul.mubr.bf16.gmra.mxu0 %v600
    %v2633 = vpop.f32.mrf.mxu0
    %v2634 = vadd.f32 %v2571, %v2633
    %v2635 = vpop.f32.mrf.mxu0
    %v2636 = vadd.f32 %v2573, %v2635
    %v2637 = vpop.f32.mrf.mxu0
    %v2638 = vadd.f32 %v2575, %v2637
    %v2639 = vpop.f32.mrf.mxu0
    %v2640 = vadd.f32 %v2577, %v2639
    %2641 = vdwg.mxu0
    %2642 = vmatprep.subr.bf16.mxu0 %v1910
    %2643 = vmatpush1.bf16.msra.mxu0 %v1909
    %2644 = vmatprep.subr.bf16.mxu0 %v1906
    %2645 = vmatpush1.bf16.msra.mxu0 %v1905
    %2646 = vmatprep.subr.bf16.mxu0 %v1902
    %2647 = vmatpush1.bf16.msra.mxu0 %v1901
    %2648 = vmatprep.subr.bf16.mxu0 %v1898
    %2649 = vmatpush1.bf16.msra.mxu0 %v1897
    %2650 = vmatprep.subr.bf16.mxu0 %v1894
    %2651 = vmatpush1.bf16.msra.mxu0 %v1893
    %2652 = vmatprep.subr.bf16.mxu0 %v1890
    %2653 = vmatpush1.bf16.msra.mxu0 %v1889
    %2654 = vmatprep.subr.bf16.mxu0 %v1886
    %2655 = vmatpush1.bf16.msra.mxu0 %v1885
    %2656 = vmatprep.subr.bf16.mxu0 %v1882
    %2657 = vmatpush1.bf16.msra.mxu0 %v1881
    %2658 = vmatprep.subr.bf16.mxu0 %v1942
    %2659 = vmatpush2.bf16.msra.mxu0 %v1941
    %2660 = vmatprep.subr.bf16.mxu0 %v1938
    %2661 = vmatpush2.bf16.msra.mxu0 %v1937
    %2662 = vmatprep.subr.bf16.mxu0 %v1934
    %2663 = vmatpush2.bf16.msra.mxu0 %v1933
    %2664 = vmatprep.subr.bf16.mxu0 %v1930
    %2665 = vmatpush2.bf16.msra.mxu0 %v1929
    %2666 = vmatprep.subr.bf16.mxu0 %v1926
    %2667 = vmatpush2.bf16.msra.mxu0 %v1925
    %2668 = vmatprep.subr.bf16.mxu0 %v1922
    %2669 = vmatpush2.bf16.msra.mxu0 %v1921
    %2670 = vmatprep.subr.bf16.mxu0 %v1918
    %2671 = vmatpush2.bf16.msra.mxu0 %v1917
    %2672 = vmatprep.subr.bf16.mxu0 %v1914
    %2673 = vmatpush2.bf16.msra.mxu0 %v1913
    %2674 = vmatprep.mubr.bf16.mxu0 %v579
    %2675 = vmatmul.mubr.bf16.gmra.mxu0 %v578
    %v2676 = vpop.f32.mrf.mxu0
    %v2677 = vadd.f32 %v2614, %v2676
    %v2678 = vpop.f32.mrf.mxu0
    %v2679 = vadd.f32 %v2616, %v2678
    %v2680 = vpop.f32.mrf.mxu0
    %v2681 = vadd.f32 %v2618, %v2680
    %v2682 = vpop.f32.mrf.mxu0
    %v2683 = vadd.f32 %v2620, %v2682
    %2684 = vmatprep.mubr.bf16.mxu0 %v591
    %2685 = vmatmul.mubr.bf16.gmra.mxu0 %v590
    %v2686 = vpop.f32.mrf.mxu0
    %v2687 = vadd.f32 %v2624, %v2686
    %v2688 = vpop.f32.mrf.mxu0
    %v2689 = vadd.f32 %v2626, %v2688
    %v2690 = vpop.f32.mrf.mxu0
    %v2691 = vadd.f32 %v2628, %v2690
    %v2692 = vpop.f32.mrf.mxu0
    %v2693 = vadd.f32 %v2630, %v2692
    %2694 = vmatprep.mubr.bf16.mxu0 %v603
    %2695 = vmatmul.mubr.bf16.gmra.mxu0 %v602
    %v2696 = vpop.f32.mrf.mxu0
    %v2697 = vadd.f32 %v2634, %v2696
    %v2698 = vpop.f32.mrf.mxu0
    %v2699 = vadd.f32 %v2636, %v2698
    %v2700 = vpop.f32.mrf.mxu0
    %v2701 = vadd.f32 %v2638, %v2700
    %v2702 = vpop.f32.mrf.mxu0
    %v2703 = vadd.f32 %v2640, %v2702
    %2704 = vdwg.mxu0
    %2705 = vmatprep.subr.bf16.mxu0 %v1974
    %2706 = vmatpush1.bf16.msra.mxu0 %v1973
    %2707 = vmatprep.subr.bf16.mxu0 %v1970
    %2708 = vmatpush1.bf16.msra.mxu0 %v1969
    %2709 = vmatprep.subr.bf16.mxu0 %v1966
    %2710 = vmatpush1.bf16.msra.mxu0 %v1965
    %2711 = vmatprep.subr.bf16.mxu0 %v1962
    %2712 = vmatpush1.bf16.msra.mxu0 %v1961
    %2713 = vmatprep.subr.bf16.mxu0 %v1958
    %2714 = vmatpush1.bf16.msra.mxu0 %v1957
    %2715 = vmatprep.subr.bf16.mxu0 %v1954
    %2716 = vmatpush1.bf16.msra.mxu0 %v1953
    %2717 = vmatprep.subr.bf16.mxu0 %v1950
    %2718 = vmatpush1.bf16.msra.mxu0 %v1949
    %2719 = vmatprep.subr.bf16.mxu0 %v1946
    %2720 = vmatpush1.bf16.msra.mxu0 %v1945
    %2721 = vmatprep.subr.bf16.mxu0 %v2006
    %2722 = vmatpush2.bf16.msra.mxu0 %v2005
    %2723 = vmatprep.subr.bf16.mxu0 %v2002
    %2724 = vmatpush2.bf16.msra.mxu0 %v2001
    %2725 = vmatprep.subr.bf16.mxu0 %v1998
    %2726 = vmatpush2.bf16.msra.mxu0 %v1997
    %2727 = vmatprep.subr.bf16.mxu0 %v1994
    %2728 = vmatpush2.bf16.msra.mxu0 %v1993
    %2729 = vmatprep.subr.bf16.mxu0 %v1990
    %2730 = vmatpush2.bf16.msra.mxu0 %v1989
    %2731 = vmatprep.subr.bf16.mxu0 %v1986
    %2732 = vmatpush2.bf16.msra.mxu0 %v1985
    %2733 = vmatprep.subr.bf16.mxu0 %v1982
    %2734 = vmatpush2.bf16.msra.mxu0 %v1981
    %2735 = vmatprep.subr.bf16.mxu0 %v1978
    %2736 = vmatpush2.bf16.msra.mxu0 %v1977
    %2737 = vmatprep.mubr.bf16.mxu0 %v581
    %2738 = vmatmul.mubr.bf16.gmra.mxu0 %v580
    %v2739 = vpop.f32.mrf.mxu0
    %v2740 = vadd.f32 %v2677, %v2739
    %v2741 = vpop.f32.mrf.mxu0
    %v2742 = vadd.f32 %v2679, %v2741
    %v2743 = vpop.f32.mrf.mxu0
    %v2744 = vadd.f32 %v2681, %v2743
    %v2745 = vpop.f32.mrf.mxu0
    %v2746 = vadd.f32 %v2683, %v2745
    %2747 = vmatprep.mubr.bf16.mxu0 %v593
    %2748 = vmatmul.mubr.bf16.gmra.mxu0 %v592
    %v2749 = vpop.f32.mrf.mxu0
    %v2750 = vadd.f32 %v2687, %v2749
    %v2751 = vpop.f32.mrf.mxu0
    %v2752 = vadd.f32 %v2689, %v2751
    %v2753 = vpop.f32.mrf.mxu0
    %v2754 = vadd.f32 %v2691, %v2753
    %v2755 = vpop.f32.mrf.mxu0
    %v2756 = vadd.f32 %v2693, %v2755
    %2757 = vmatprep.mubr.bf16.mxu0 %v605
    %2758 = vmatmul.mubr.bf16.gmra.mxu0 %v604
    %v2759 = vpop.f32.mrf.mxu0
    %v2760 = vadd.f32 %v2697, %v2759
    %v2761 = vpop.f32.mrf.mxu0
    %v2762 = vadd.f32 %v2699, %v2761
    %v2763 = vpop.f32.mrf.mxu0
    %v2764 = vadd.f32 %v2701, %v2763
    %v2765 = vpop.f32.mrf.mxu0
    %v2766 = vadd.f32 %v2703, %v2765
    %2767 = vdwg.mxu0
    %2768 = vmatprep.subr.bf16.mxu0 %v2038
    %2769 = vmatpush1.bf16.msra.mxu0 %v2037
    %2770 = vmatprep.subr.bf16.mxu0 %v2034
    %2771 = vmatpush1.bf16.msra.mxu0 %v2033
    %2772 = vmatprep.subr.bf16.mxu0 %v2030
    %2773 = vmatpush1.bf16.msra.mxu0 %v2029
    %2774 = vmatprep.subr.bf16.mxu0 %v2026
    %2775 = vmatpush1.bf16.msra.mxu0 %v2025
    %2776 = vmatprep.subr.bf16.mxu0 %v2022
    %2777 = vmatpush1.bf16.msra.mxu0 %v2021
    %2778 = vmatprep.subr.bf16.mxu0 %v2018
    %2779 = vmatpush1.bf16.msra.mxu0 %v2017
    %2780 = vmatprep.subr.bf16.mxu0 %v2014
    %2781 = vmatpush1.bf16.msra.mxu0 %v2013
    %2782 = vmatprep.subr.bf16.mxu0 %v2010
    %2783 = vmatpush1.bf16.msra.mxu0 %v2009
    %2784 = vmatprep.subr.bf16.mxu0 %v2070
    %2785 = vmatpush2.bf16.msra.mxu0 %v2069
    %2786 = vmatprep.subr.bf16.mxu0 %v2066
    %2787 = vmatpush2.bf16.msra.mxu0 %v2065
    %2788 = vmatprep.subr.bf16.mxu0 %v2062
    %2789 = vmatpush2.bf16.msra.mxu0 %v2061
    %2790 = vmatprep.subr.bf16.mxu0 %v2058
    %2791 = vmatpush2.bf16.msra.mxu0 %v2057
    %2792 = vmatprep.subr.bf16.mxu0 %v2054
    %2793 = vmatpush2.bf16.msra.mxu0 %v2053
    %2794 = vmatprep.subr.bf16.mxu0 %v2050
    %2795 = vmatpush2.bf16.msra.mxu0 %v2049
    %2796 = vmatprep.subr.bf16.mxu0 %v2046
    %2797 = vmatpush2.bf16.msra.mxu0 %v2045
    %2798 = vmatprep.subr.bf16.mxu0 %v2042
    %2799 = vmatpush2.bf16.msra.mxu0 %v2041
    %2800 = vmatprep.mubr.bf16.mxu0 %v583
    %2801 = vmatmul.mubr.bf16.gmra.mxu0 %v582
    %v2802 = vpop.f32.mrf.mxu0
    %v2803 = vadd.f32 %v2740, %v2802
    %v2804 = vpop.f32.mrf.mxu0
    %v2805 = vadd.f32 %v2742, %v2804
    %v2806 = vpop.f32.mrf.mxu0
    %v2807 = vadd.f32 %v2744, %v2806
    %v2808 = vpop.f32.mrf.mxu0
    %v2809 = vadd.f32 %v2746, %v2808
    %2810 = vmatprep.mubr.bf16.mxu0 %v595
    %2811 = vmatmul.mubr.bf16.gmra.mxu0 %v594
    %v2812 = vpop.f32.mrf.mxu0
    %v2813 = vadd.f32 %v2750, %v2812
    %v2814 = vpop.f32.mrf.mxu0
    %v2815 = vadd.f32 %v2752, %v2814
    %v2816 = vpop.f32.mrf.mxu0
    %v2817 = vadd.f32 %v2754, %v2816
    %v2818 = vpop.f32.mrf.mxu0
    %v2819 = vadd.f32 %v2756, %v2818
    %2820 = vmatprep.mubr.bf16.mxu0 %v607
    %2821 = vmatmul.mubr.bf16.gmra.mxu0 %v606
    %v2822 = vpop.f32.mrf.mxu0
    %v2823 = vadd.f32 %v2760, %v2822
    %v2824 = vpop.f32.mrf.mxu0
    %v2825 = vadd.f32 %v2762, %v2824
    %v2826 = vpop.f32.mrf.mxu0
    %v2827 = vadd.f32 %v2764, %v2826
    %v2828 = vpop.f32.mrf.mxu0
    %v2829 = vadd.f32 %v2766, %v2828
    %2830 = vdwg.mxu0
    %2831 = vmatprep.subr.bf16.mxu0 %v2102
    %2832 = vmatpush1.bf16.msra.mxu0 %v2101
    %2833 = vmatprep.subr.bf16.mxu0 %v2098
    %2834 = vmatpush1.bf16.msra.mxu0 %v2097
    %2835 = vmatprep.subr.bf16.mxu0 %v2094
    %2836 = vmatpush1.bf16.msra.mxu0 %v2093
    %2837 = vmatprep.subr.bf16.mxu0 %v2090
    %2838 = vmatpush1.bf16.msra.mxu0 %v2089
    %2839 = vmatprep.subr.bf16.mxu0 %v2086
    %2840 = vmatpush1.bf16.msra.mxu0 %v2085
    %2841 = vmatprep.subr.bf16.mxu0 %v2082
    %2842 = vmatpush1.bf16.msra.mxu0 %v2081
    %2843 = vmatprep.subr.bf16.mxu0 %v2078
    %2844 = vmatpush1.bf16.msra.mxu0 %v2077
    %2845 = vmatprep.subr.bf16.mxu0 %v2074
    %2846 = vmatpush1.bf16.msra.mxu0 %v2073
    %2847 = vmatprep.subr.bf16.mxu0 0
    %2848 = vmatpush2.bf16.msra.mxu0 0
    %2849 = vmatprep.subr.bf16.mxu0 0
    %2850 = vmatpush2.bf16.msra.mxu0 0
    %2851 = vmatprep.subr.bf16.mxu0 0
    %2852 = vmatpush2.bf16.msra.mxu0 0
    %2853 = vmatprep.subr.bf16.mxu0 %v2508
    %2854 = vmatpush2.bf16.msra.mxu0 %v2505
    %2855 = vmatprep.subr.bf16.mxu0 %v2118
    %2856 = vmatpush2.bf16.msra.mxu0 %v2117
    %2857 = vmatprep.subr.bf16.mxu0 %v2114
    %2858 = vmatpush2.bf16.msra.mxu0 %v2113
    %2859 = vmatprep.subr.bf16.mxu0 %v2110
    %2860 = vmatpush2.bf16.msra.mxu0 %v2109
    %2861 = vmatprep.subr.bf16.mxu0 %v2106
    %2862 = vmatpush2.bf16.msra.mxu0 %v2105
    %2863 = vmatprep.mubr.bf16.mxu0 %v2495
    %2864 = vmatmul.mubr.bf16.gmra.mxu0 %v584
    %v2865 = vpop.f32.mrf.mxu0
    %v2866 = vadd.f32 %v2803, %v2865
    %v2867 = vpop.f32.mrf.mxu0
    %v2868 = vadd.f32 %v2805, %v2867
    %v2869 = vpop.f32.mrf.mxu0
    %v2870 = vadd.f32 %v2807, %v2869
    %v2871 = vpop.f32.mrf.mxu0
    %v2872 = vadd.f32 %v2809, %v2871
    %2873 = vmatprep.mubr.bf16.mxu0 %v2498
    %2874 = vmatmul.mubr.bf16.gmra.mxu0 %v596
    %v2875 = vpop.f32.mrf.mxu0
    %v2876 = vadd.f32 %v2813, %v2875
    %v2877 = vpop.f32.mrf.mxu0
    %v2878 = vadd.f32 %v2815, %v2877
    %v2879 = vpop.f32.mrf.mxu0
    %v2880 = vadd.f32 %v2817, %v2879
    %v2881 = vpop.f32.mrf.mxu0
    %v2882 = vadd.f32 %v2819, %v2881
    %2883 = vmatprep.mubr.bf16.mxu0 %v2501
    %2884 = vmatmul.mubr.bf16.gmra.mxu0 %v608
    %v2885 = vpop.f32.mrf.mxu0
    %v2886 = vadd.f32 %v2823, %v2885
    %v2887 = vpop.f32.mrf.mxu0
    %v2888 = vadd.f32 %v2825, %v2887
    %v2889 = vpop.f32.mrf.mxu0
    %v2890 = vadd.f32 %v2827, %v2889
    %v2891 = vpop.f32.mrf.mxu0
    %v2892 = vadd.f32 %v2829, %v2891
    %2893 = vdwg.mxu0
    %2894 = vmatprep.subr.bf16.mxu0 %v1784
    %2895 = vmatpush1.bf16.msra.mxu0 %v1783
    %2896 = vmatprep.subr.bf16.mxu0 %v1780
    %2897 = vmatpush1.bf16.msra.mxu0 %v1779
    %2898 = vmatprep.subr.bf16.mxu0 %v1776
    %2899 = vmatpush1.bf16.msra.mxu0 %v1775
    %2900 = vmatprep.subr.bf16.mxu0 %v1772
    %2901 = vmatpush1.bf16.msra.mxu0 %v1771
    %2902 = vmatprep.subr.bf16.mxu0 %v1768
    %2903 = vmatpush1.bf16.msra.mxu0 %v1767
    %2904 = vmatprep.subr.bf16.mxu0 %v1764
    %2905 = vmatpush1.bf16.msra.mxu0 %v1763
    %2906 = vmatprep.subr.bf16.mxu0 %v1760
    %2907 = vmatpush1.bf16.msra.mxu0 %v1759
    %2908 = vmatprep.subr.bf16.mxu0 %v1756
    %2909 = vmatpush1.bf16.msra.mxu0 %v1755
    %2910 = vmatprep.subr.bf16.mxu0 %v1816
    %2911 = vmatpush2.bf16.msra.mxu0 %v1815
    %2912 = vmatprep.subr.bf16.mxu0 %v1812
    %2913 = vmatpush2.bf16.msra.mxu0 %v1811
    %2914 = vmatprep.subr.bf16.mxu0 %v1808
    %2915 = vmatpush2.bf16.msra.mxu0 %v1807
    %2916 = vmatprep.subr.bf16.mxu0 %v1804
    %2917 = vmatpush2.bf16.msra.mxu0 %v1803
    %2918 = vmatprep.subr.bf16.mxu0 %v1800
    %2919 = vmatpush2.bf16.msra.mxu0 %v1799
    %2920 = vmatprep.subr.bf16.mxu0 %v1796
    %2921 = vmatpush2.bf16.msra.mxu0 %v1795
    %2922 = vmatprep.subr.bf16.mxu0 %v1792
    %2923 = vmatpush2.bf16.msra.mxu0 %v1791
    %2924 = vmatprep.subr.bf16.mxu0 %v1788
    %2925 = vmatpush2.bf16.msra.mxu0 %v1787
    %2926 = vmatprep.mubr.bf16.mxu0 %v575
    %2927 = vmatmul.mubr.bf16.gmra.mxu0 %v574
    %v2928 = vpop.f32.mrf.mxu0
    %v2929 = vadd.f32 %v461, %v2928
    %v2930 = vpop.f32.mrf.mxu0
    %v2931 = vadd.f32 %v465, %v2930
    %v2932 = vpop.f32.mrf.mxu0
    %v2933 = vadd.f32 %v461, %v2932
    %v2934 = vpop.f32.mrf.mxu0
    %v2935 = vadd.f32 %v465, %v2934
    %2936 = vmatprep.mubr.bf16.mxu0 %v587
    %2937 = vmatmul.mubr.bf16.gmra.mxu0 %v586
    %v2938 = vpop.f32.mrf.mxu0
    %v2939 = vadd.f32 %v461, %v2938
    %v2940 = vpop.f32.mrf.mxu0
    %v2941 = vadd.f32 %v465, %v2940
    %v2942 = vpop.f32.mrf.mxu0
    %v2943 = vadd.f32 %v461, %v2942
    %v2944 = vpop.f32.mrf.mxu0
    %v2945 = vadd.f32 %v465, %v2944
    %2946 = vmatprep.mubr.bf16.mxu0 %v599
    %2947 = vmatmul.mubr.bf16.gmra.mxu0 %v598
    %v2948 = vpop.f32.mrf.mxu0
    %v2949 = vadd.f32 %v461, %v2948
    %v2950 = vpop.f32.mrf.mxu0
    %v2951 = vadd.f32 %v465, %v2950
    %v2952 = vpop.f32.mrf.mxu0
    %v2953 = vadd.f32 %v461, %v2952
    %v2954 = vpop.f32.mrf.mxu0
    %v2955 = vadd.f32 %v465, %v2954
    %2956 = vdwg.mxu0
    %2957 = vmatprep.subr.bf16.mxu0 %v1848
    %2958 = vmatpush1.bf16.msra.mxu0 %v1847
    %2959 = vmatprep.subr.bf16.mxu0 %v1844
    %2960 = vmatpush1.bf16.msra.mxu0 %v1843
    %2961 = vmatprep.subr.bf16.mxu0 %v1840
    %2962 = vmatpush1.bf16.msra.mxu0 %v1839
    %2963 = vmatprep.subr.bf16.mxu0 %v1836
    %2964 = vmatpush1.bf16.msra.mxu0 %v1835
    %2965 = vmatprep.subr.bf16.mxu0 %v1832
    %2966 = vmatpush1.bf16.msra.mxu0 %v1831
    %2967 = vmatprep.subr.bf16.mxu0 %v1828
    %2968 = vmatpush1.bf16.msra.mxu0 %v1827
    %2969 = vmatprep.subr.bf16.mxu0 %v1824
    %2970 = vmatpush1.bf16.msra.mxu0 %v1823
    %2971 = vmatprep.subr.bf16.mxu0 %v1820
    %2972 = vmatpush1.bf16.msra.mxu0 %v1819
    %2973 = vmatprep.subr.bf16.mxu0 %v1880
    %2974 = vmatpush2.bf16.msra.mxu0 %v1879
    %2975 = vmatprep.subr.bf16.mxu0 %v1876
    %2976 = vmatpush2.bf16.msra.mxu0 %v1875
    %2977 = vmatprep.subr.bf16.mxu0 %v1872
    %2978 = vmatpush2.bf16.msra.mxu0 %v1871
    %2979 = vmatprep.subr.bf16.mxu0 %v1868
    %2980 = vmatpush2.bf16.msra.mxu0 %v1867
    %2981 = vmatprep.subr.bf16.mxu0 %v1864
    %2982 = vmatpush2.bf16.msra.mxu0 %v1863
    %2983 = vmatprep.subr.bf16.mxu0 %v1860
    %2984 = vmatpush2.bf16.msra.mxu0 %v1859
    %2985 = vmatprep.subr.bf16.mxu0 %v1856
    %2986 = vmatpush2.bf16.msra.mxu0 %v1855
    %2987 = vmatprep.subr.bf16.mxu0 %v1852
    %2988 = vmatpush2.bf16.msra.mxu0 %v1851
    %2989 = vmatprep.mubr.bf16.mxu0 %v577
    %2990 = vmatmul.mubr.bf16.gmra.mxu0 %v576
    %v2991 = vpop.f32.mrf.mxu0
    %v2992 = vadd.f32 %v2929, %v2991
    %v2993 = vpop.f32.mrf.mxu0
    %v2994 = vadd.f32 %v2931, %v2993
    %v2995 = vpop.f32.mrf.mxu0
    %v2996 = vadd.f32 %v2933, %v2995
    %v2997 = vpop.f32.mrf.mxu0
    %v2998 = vadd.f32 %v2935, %v2997
    %2999 = vmatprep.mubr.bf16.mxu0 %v589
    %3000 = vmatmul.mubr.bf16.gmra.mxu0 %v588
    %v3001 = vpop.f32.mrf.mxu0
    %v3002 = vadd.f32 %v2939, %v3001
    %v3003 = vpop.f32.mrf.mxu0
    %v3004 = vadd.f32 %v2941, %v3003
    %v3005 = vpop.f32.mrf.mxu0
    %v3006 = vadd.f32 %v2943, %v3005
    %v3007 = vpop.f32.mrf.mxu0
    %v3008 = vadd.f32 %v2945, %v3007
    %3009 = vmatprep.mubr.bf16.mxu0 %v601
    %3010 = vmatmul.mubr.bf16.gmra.mxu0 %v600
    %v3011 = vpop.f32.mrf.mxu0
    %v3012 = vadd.f32 %v2949, %v3011
    %v3013 = vpop.f32.mrf.mxu0
    %v3014 = vadd.f32 %v2951, %v3013
    %v3015 = vpop.f32.mrf.mxu0
    %v3016 = vadd.f32 %v2953, %v3015
    %v3017 = vpop.f32.mrf.mxu0
    %v3018 = vadd.f32 %v2955, %v3017
    %3019 = vdwg.mxu0
    %3020 = vmatprep.subr.bf16.mxu0 %v1912
    %3021 = vmatpush1.bf16.msra.mxu0 %v1911
    %3022 = vmatprep.subr.bf16.mxu0 %v1908
    %3023 = vmatpush1.bf16.msra.mxu0 %v1907
    %3024 = vmatprep.subr.bf16.mxu0 %v1904
    %3025 = vmatpush1.bf16.msra.mxu0 %v1903
    %3026 = vmatprep.subr.bf16.mxu0 %v1900
    %3027 = vmatpush1.bf16.msra.mxu0 %v1899
    %3028 = vmatprep.subr.bf16.mxu0 %v1896
    %3029 = vmatpush1.bf16.msra.mxu0 %v1895
    %3030 = vmatprep.subr.bf16.mxu0 %v1892
    %3031 = vmatpush1.bf16.msra.mxu0 %v1891
    %3032 = vmatprep.subr.bf16.mxu0 %v1888
    %3033 = vmatpush1.bf16.msra.mxu0 %v1887
    %3034 = vmatprep.subr.bf16.mxu0 %v1884
    %3035 = vmatpush1.bf16.msra.mxu0 %v1883
    %3036 = vmatprep.subr.bf16.mxu0 %v1944
    %3037 = vmatpush2.bf16.msra.mxu0 %v1943
    %3038 = vmatprep.subr.bf16.mxu0 %v1940
    %3039 = vmatpush2.bf16.msra.mxu0 %v1939
    %3040 = vmatprep.subr.bf16.mxu0 %v1936
    %3041 = vmatpush2.bf16.msra.mxu0 %v1935
    %3042 = vmatprep.subr.bf16.mxu0 %v1932
    %3043 = vmatpush2.bf16.msra.mxu0 %v1931
    %3044 = vmatprep.subr.bf16.mxu0 %v1928
    %3045 = vmatpush2.bf16.msra.mxu0 %v1927
    %3046 = vmatprep.subr.bf16.mxu0 %v1924
    %3047 = vmatpush2.bf16.msra.mxu0 %v1923
    %3048 = vmatprep.subr.bf16.mxu0 %v1920
    %3049 = vmatpush2.bf16.msra.mxu0 %v1919
    %3050 = vmatprep.subr.bf16.mxu0 %v1916
    %3051 = vmatpush2.bf16.msra.mxu0 %v1915
    %3052 = vmatprep.mubr.bf16.mxu0 %v579
    %3053 = vmatmul.mubr.bf16.gmra.mxu0 %v578
    %v3054 = vpop.f32.mrf.mxu0
    %v3055 = vadd.f32 %v2992, %v3054
    %v3056 = vpop.f32.mrf.mxu0
    %v3057 = vadd.f32 %v2994, %v3056
    %v3058 = vpop.f32.mrf.mxu0
    %v3059 = vadd.f32 %v2996, %v3058
    %v3060 = vpop.f32.mrf.mxu0
    %v3061 = vadd.f32 %v2998, %v3060
    %3062 = vmatprep.mubr.bf16.mxu0 %v591
    %3063 = vmatmul.mubr.bf16.gmra.mxu0 %v590
    %v3064 = vpop.f32.mrf.mxu0
    %v3065 = vadd.f32 %v3002, %v3064
    %v3066 = vpop.f32.mrf.mxu0
    %v3067 = vadd.f32 %v3004, %v3066
    %v3068 = vpop.f32.mrf.mxu0
    %v3069 = vadd.f32 %v3006, %v3068
    %v3070 = vpop.f32.mrf.mxu0
    %v3071 = vadd.f32 %v3008, %v3070
    %3072 = vmatprep.mubr.bf16.mxu0 %v603
    %3073 = vmatmul.mubr.bf16.gmra.mxu0 %v602
    %v3074 = vpop.f32.mrf.mxu0
    %v3075 = vadd.f32 %v3012, %v3074
    %v3076 = vpop.f32.mrf.mxu0
    %v3077 = vadd.f32 %v3014, %v3076
    %v3078 = vpop.f32.mrf.mxu0
    %v3079 = vadd.f32 %v3016, %v3078
    %v3080 = vpop.f32.mrf.mxu0
    %v3081 = vadd.f32 %v3018, %v3080
    %3082 = vdwg.mxu0
    %3083 = vmatprep.subr.bf16.mxu0 %v1976
    %3084 = vmatpush1.bf16.msra.mxu0 %v1975
    %3085 = vmatprep.subr.bf16.mxu0 %v1972
    %3086 = vmatpush1.bf16.msra.mxu0 %v1971
    %3087 = vmatprep.subr.bf16.mxu0 %v1968
    %3088 = vmatpush1.bf16.msra.mxu0 %v1967
    %3089 = vmatprep.subr.bf16.mxu0 %v1964
    %3090 = vmatpush1.bf16.msra.mxu0 %v1963
    %3091 = vmatprep.subr.bf16.mxu0 %v1960
    %3092 = vmatpush1.bf16.msra.mxu0 %v1959
    %3093 = vmatprep.subr.bf16.mxu0 %v1956
    %3094 = vmatpush1.bf16.msra.mxu0 %v1955
    %3095 = vmatprep.subr.bf16.mxu0 %v1952
    %3096 = vmatpush1.bf16.msra.mxu0 %v1951
    %3097 = vmatprep.subr.bf16.mxu0 %v1948
    %3098 = vmatpush1.bf16.msra.mxu0 %v1947
    %3099 = vmatprep.subr.bf16.mxu0 %v2008
    %3100 = vmatpush2.bf16.msra.mxu0 %v2007
    %3101 = vmatprep.subr.bf16.mxu0 %v2004
    %3102 = vmatpush2.bf16.msra.mxu0 %v2003
    %3103 = vmatprep.subr.bf16.mxu0 %v2000
    %3104 = vmatpush2.bf16.msra.mxu0 %v1999
    %3105 = vmatprep.subr.bf16.mxu0 %v1996
    %3106 = vmatpush2.bf16.msra.mxu0 %v1995
    %3107 = vmatprep.subr.bf16.mxu0 %v1992
    %3108 = vmatpush2.bf16.msra.mxu0 %v1991
    %3109 = vmatprep.subr.bf16.mxu0 %v1988
    %3110 = vmatpush2.bf16.msra.mxu0 %v1987
    %3111 = vmatprep.subr.bf16.mxu0 %v1984
    %3112 = vmatpush2.bf16.msra.mxu0 %v1983
    %3113 = vmatprep.subr.bf16.mxu0 %v1980
    %3114 = vmatpush2.bf16.msra.mxu0 %v1979
    %3115 = vmatprep.mubr.bf16.mxu0 %v581
    %3116 = vmatmul.mubr.bf16.gmra.mxu0 %v580
    %v3117 = vpop.f32.mrf.mxu0
    %v3118 = vadd.f32 %v3055, %v3117
    %v3119 = vpop.f32.mrf.mxu0
    %v3120 = vadd.f32 %v3057, %v3119
    %v3121 = vpop.f32.mrf.mxu0
    %v3122 = vadd.f32 %v3059, %v3121
    %v3123 = vpop.f32.mrf.mxu0
    %v3124 = vadd.f32 %v3061, %v3123
    %3125 = vmatprep.mubr.bf16.mxu0 %v593
    %3126 = vmatmul.mubr.bf16.gmra.mxu0 %v592
    %v3127 = vpop.f32.mrf.mxu0
    %v3128 = vadd.f32 %v3065, %v3127
    %v3129 = vpop.f32.mrf.mxu0
    %v3130 = vadd.f32 %v3067, %v3129
    %v3131 = vpop.f32.mrf.mxu0
    %v3132 = vadd.f32 %v3069, %v3131
    %v3133 = vpop.f32.mrf.mxu0
    %v3134 = vadd.f32 %v3071, %v3133
    %3135 = vmatprep.mubr.bf16.mxu0 %v605
    %3136 = vmatmul.mubr.bf16.gmra.mxu0 %v604
    %v3137 = vpop.f32.mrf.mxu0
    %v3138 = vadd.f32 %v3075, %v3137
    %v3139 = vpop.f32.mrf.mxu0
    %v3140 = vadd.f32 %v3077, %v3139
    %v3141 = vpop.f32.mrf.mxu0
    %v3142 = vadd.f32 %v3079, %v3141
    %v3143 = vpop.f32.mrf.mxu0
    %v3144 = vadd.f32 %v3081, %v3143
    %3145 = vdwg.mxu0
    %3146 = vmatprep.subr.bf16.mxu0 %v2040
    %3147 = vmatpush1.bf16.msra.mxu0 %v2039
    %3148 = vmatprep.subr.bf16.mxu0 %v2036
    %3149 = vmatpush1.bf16.msra.mxu0 %v2035
    %3150 = vmatprep.subr.bf16.mxu0 %v2032
    %3151 = vmatpush1.bf16.msra.mxu0 %v2031
    %3152 = vmatprep.subr.bf16.mxu0 %v2028
    %3153 = vmatpush1.bf16.msra.mxu0 %v2027
    %3154 = vmatprep.subr.bf16.mxu0 %v2024
    %3155 = vmatpush1.bf16.msra.mxu0 %v2023
    %3156 = vmatprep.subr.bf16.mxu0 %v2020
    %3157 = vmatpush1.bf16.msra.mxu0 %v2019
    %3158 = vmatprep.subr.bf16.mxu0 %v2016
    %3159 = vmatpush1.bf16.msra.mxu0 %v2015
    %3160 = vmatprep.subr.bf16.mxu0 %v2012
    %3161 = vmatpush1.bf16.msra.mxu0 %v2011
    %3162 = vmatprep.subr.bf16.mxu0 %v2072
    %3163 = vmatpush2.bf16.msra.mxu0 %v2071
    %3164 = vmatprep.subr.bf16.mxu0 %v2068
    %3165 = vmatpush2.bf16.msra.mxu0 %v2067
    %3166 = vmatprep.subr.bf16.mxu0 %v2064
    %3167 = vmatpush2.bf16.msra.mxu0 %v2063
    %3168 = vmatprep.subr.bf16.mxu0 %v2060
    %3169 = vmatpush2.bf16.msra.mxu0 %v2059
    %3170 = vmatprep.subr.bf16.mxu0 %v2056
    %3171 = vmatpush2.bf16.msra.mxu0 %v2055
    %3172 = vmatprep.subr.bf16.mxu0 %v2052
    %3173 = vmatpush2.bf16.msra.mxu0 %v2051
    %3174 = vmatprep.subr.bf16.mxu0 %v2048
    %3175 = vmatpush2.bf16.msra.mxu0 %v2047
    %3176 = vmatprep.subr.bf16.mxu0 %v2044
    %3177 = vmatpush2.bf16.msra.mxu0 %v2043
    %3178 = vmatprep.mubr.bf16.mxu0 %v583
    %3179 = vmatmul.mubr.bf16.gmra.mxu0 %v582
    %v3180 = vpop.f32.mrf.mxu0
    %v3181 = vadd.f32 %v3118, %v3180
    %v3182 = vpop.f32.mrf.mxu0
    %v3183 = vadd.f32 %v3120, %v3182
    %v3184 = vpop.f32.mrf.mxu0
    %v3185 = vadd.f32 %v3122, %v3184
    %v3186 = vpop.f32.mrf.mxu0
    %v3187 = vadd.f32 %v3124, %v3186
    %3188 = vmatprep.mubr.bf16.mxu0 %v595
    %3189 = vmatmul.mubr.bf16.gmra.mxu0 %v594
    %v3190 = vpop.f32.mrf.mxu0
    %v3191 = vadd.f32 %v3128, %v3190
    %v3192 = vpop.f32.mrf.mxu0
    %v3193 = vadd.f32 %v3130, %v3192
    %v3194 = vpop.f32.mrf.mxu0
    %v3195 = vadd.f32 %v3132, %v3194
    %v3196 = vpop.f32.mrf.mxu0
    %v3197 = vadd.f32 %v3134, %v3196
    %3198 = vmatprep.mubr.bf16.mxu0 %v607
    %3199 = vmatmul.mubr.bf16.gmra.mxu0 %v606
    %v3200 = vpop.f32.mrf.mxu0
    %v3201 = vadd.f32 %v3138, %v3200
    %v3202 = vpop.f32.mrf.mxu0
    %v3203 = vadd.f32 %v3140, %v3202
    %v3204 = vpop.f32.mrf.mxu0
    %v3205 = vadd.f32 %v3142, %v3204
    %v3206 = vpop.f32.mrf.mxu0
    %v3207 = vadd.f32 %v3144, %v3206
    %3208 = vdwg.mxu0
    %3209 = vmatprep.subr.bf16.mxu0 %v2104
    %3210 = vmatpush1.bf16.msra.mxu0 %v2103
    %3211 = vmatprep.subr.bf16.mxu0 %v2100
    %3212 = vmatpush1.bf16.msra.mxu0 %v2099
    %3213 = vmatprep.subr.bf16.mxu0 %v2096
    %3214 = vmatpush1.bf16.msra.mxu0 %v2095
    %3215 = vmatprep.subr.bf16.mxu0 %v2092
    %3216 = vmatpush1.bf16.msra.mxu0 %v2091
    %3217 = vmatprep.subr.bf16.mxu0 %v2088
    %3218 = vmatpush1.bf16.msra.mxu0 %v2087
    %3219 = vmatprep.subr.bf16.mxu0 %v2084
    %3220 = vmatpush1.bf16.msra.mxu0 %v2083
    %3221 = vmatprep.subr.bf16.mxu0 %v2080
    %3222 = vmatpush1.bf16.msra.mxu0 %v2079
    %3223 = vmatprep.subr.bf16.mxu0 %v2076
    %3224 = vmatpush1.bf16.msra.mxu0 %v2075
    %3225 = vmatprep.subr.bf16.mxu0 0
    %3226 = vmatpush2.bf16.msra.mxu0 0
    %3227 = vmatprep.subr.bf16.mxu0 0
    %3228 = vmatpush2.bf16.msra.mxu0 0
    %3229 = vmatprep.subr.bf16.mxu0 0
    %3230 = vmatpush2.bf16.msra.mxu0 0
    %3231 = vmatprep.subr.bf16.mxu0 %v2514
    %3232 = vmatpush2.bf16.msra.mxu0 %v2511
    %3233 = vmatprep.subr.bf16.mxu0 %v2120
    %3234 = vmatpush2.bf16.msra.mxu0 %v2119
    %3235 = vmatprep.subr.bf16.mxu0 %v2116
    %3236 = vmatpush2.bf16.msra.mxu0 %v2115
    %3237 = vmatprep.subr.bf16.mxu0 %v2112
    %3238 = vmatpush2.bf16.msra.mxu0 %v2111
    %3239 = vmatprep.subr.bf16.mxu0 %v2108
    %3240 = vmatpush2.bf16.msra.mxu0 %v2107
    %3241 = vmatprep.mubr.bf16.mxu0 %v2495
    %3242 = vmatmul.mubr.bf16.gmra.mxu0 %v584
    %v3243 = vpop.f32.mrf.mxu0
    %v3244 = vadd.f32 %v3181, %v3243
    %v3245 = vpop.f32.mrf.mxu0
    %v3246 = vadd.f32 %v3183, %v3245
    %v3247 = vpop.f32.mrf.mxu0
    %v3248 = vadd.f32 %v3185, %v3247
    %v3249 = vpop.f32.mrf.mxu0
    %v3250 = vadd.f32 %v3187, %v3249
    %3251 = vmatprep.mubr.bf16.mxu0 %v2498
    %3252 = vmatmul.mubr.bf16.gmra.mxu0 %v596
    %v3253 = vpop.f32.mrf.mxu0
    %v3254 = vadd.f32 %v3191, %v3253
    %v3255 = vpop.f32.mrf.mxu0
    %v3256 = vadd.f32 %v3193, %v3255
    %v3257 = vpop.f32.mrf.mxu0
    %v3258 = vadd.f32 %v3195, %v3257
    %v3259 = vpop.f32.mrf.mxu0
    %v3260 = vadd.f32 %v3197, %v3259
    %3261 = vmatprep.mubr.bf16.mxu0 %v2501
    %3262 = vmatmul.mubr.bf16.gmra.mxu0 %v608
    %v3263 = vpop.f32.mrf.mxu0
    %v3264 = vadd.f32 %v3201, %v3263
    %v3265 = vpop.f32.mrf.mxu0
    %v3266 = vadd.f32 %v3203, %v3265
    %v3267 = vpop.f32.mrf.mxu0
    %v3268 = vadd.f32 %v3205, %v3267
    %v3269 = vpop.f32.mrf.mxu0
    %v3270 = vadd.f32 %v3207, %v3269
    %3271 = vdwg.mxu0
    %v3272 = vmax.f32 %v2866, 0.0
    %v3273 = vmax.f32 %v2868, 0.0
    %v3274 = vmax.f32 %v3244, 0.0
    %v3275 = vmax.f32 %v3246, 0.0
    %v3276 = vmax.f32 %v2870, 0.0
    %v3277 = vmax.f32 %v2872, 0.0
    %v3278 = vmax.f32 %v3248, 0.0
    %v3279 = vmax.f32 %v3250, 0.0
    %v3280 = vmax.f32 %v2876, 0.0
    %v3281 = vmax.f32 %v2878, 0.0
    %v3282 = vmax.f32 %v3254, 0.0
    %v3283 = vmax.f32 %v3256, 0.0
    %v3284 = vmax.f32 %v2880, 0.0
    %v3285 = vmax.f32 %v2882, 0.0
    %v3286 = vmax.f32 %v3258, 0.0
    %v3287 = vmax.f32 %v3260, 0.0
    %v3288 = vmax.f32 %v2886, 0.0
    %v3289 = vmax.f32 %v2888, 0.0
    %v3290 = vmax.f32 %v3264, 0.0
    %v3291 = vmax.f32 %v3266, 0.0
    %v3292 = vmax.f32 %v2890, 0.0
    %v3293 = vmax.f32 %v2892, 0.0
    %v3294 = vmax.f32 %v3268, 0.0
    %v3295 = vmax.f32 %v3270, 0.0
    %v3296 = vmin.f32 %v3272, 20.0
    %v3297 = vmin.f32 %v3273, 20.0
    %v3298 = vmin.f32 %v3274, 20.0
    %v3299 = vmin.f32 %v3275, 20.0
    %v3300 = vmin.f32 %v3276, 20.0
    %v3301 = vmin.f32 %v3277, 20.0
    %v3302 = vmin.f32 %v3278, 20.0
    %v3303 = vmin.f32 %v3279, 20.0
    %v3304 = vmin.f32 %v3280, 20.0
    %v3305 = vmin.f32 %v3281, 20.0
    %v3306 = vmin.f32 %v3282, 20.0
    %v3307 = vmin.f32 %v3283, 20.0
    %v3308 = vmin.f32 %v3284, 20.0
    %v3309 = vmin.f32 %v3285, 20.0
    %v3310 = vmin.f32 %v3286, 20.0
    %v3311 = vmin.f32 %v3287, 20.0
    %v3312 = vmin.f32 %v3288, 20.0
    %v3313 = vmin.f32 %v3289, 20.0
    %v3314 = vmin.f32 %v3290, 20.0
    %v3315 = vmin.f32 %v3291, 20.0
    %v3316 = vmin.f32 %v3292, 20.0
    %v3317 = vmin.f32 %v3293, 20.0
    %v3318 = vmin.f32 %v3294, 20.0
    %v3319 = vmin.f32 %v3295, 20.0
    %v3320 = vpack.c.bf16 %v3300, %v3296
    %v3321 = vpack.c.bf16 %v3301, %v3297
    %v3322 = vpack.c.bf16 %v3302, %v3298
    %v3323 = vpack.c.bf16 %v3303, %v3299
    %v3324 = vpack.c.bf16 %v3308, %v3304
    %v3325 = vpack.c.bf16 %v3309, %v3305
    %v3326 = vpack.c.bf16 %v3310, %v3306
    %v3327 = vpack.c.bf16 %v3311, %v3307
    %v3328 = vpack.c.bf16 %v3316, %v3312
    %v3329 = vpack.c.bf16 %v3317, %v3313
    %v3330 = vpack.c.bf16 %v3318, %v3314
    %v3331 = vpack.c.bf16 %v3319, %v3315
    %v3335 = vrot.slane %v3320, 7
    %v3336 = vrot.slane %v3321, 7
    %v3337 = vrot.slane %v3322, 7
    %3338 = vrot.lane.b32.xlu0 %v3335, 96
    %v3339 = vpop.permute.xlu0 %3338
    %3340 = vrot.lane.b32.xlu0 %v3336, 96
    %v3341 = vpop.permute.xlu0 %3340
    %3342 = vrot.lane.b32.xlu0 %v3337, 96
    %v3343 = vpop.permute.xlu0 %3342
    %vm3344 = vcmask 785408
    %v3345 = vsel %vm3344, %v3339, %v3341
    %v3346 = vsel %vm3344, %v3341, %v3343
    %v3348 = vrot.slane %v3320, 6
    %v3349 = vrot.slane %v3321, 6
    %v3350 = vrot.slane %v3322, 6
    %v3351 = vrot.slane %v3323, 6
    %3352 = vrot.lane.b32.xlu0 %v3348, 64
    %v3353 = vpop.permute.xlu0 %3352
    %3354 = vrot.lane.b32.xlu0 %v3349, 64
    %v3355 = vpop.permute.xlu0 %3354
    %3356 = vrot.lane.b32.xlu0 %v3350, 64
    %v3357 = vpop.permute.xlu0 %3356
    %3358 = vrot.lane.b32.xlu0 %v3351, 64
    %v3359 = vpop.permute.xlu0 %3358
    %vm3360 = vcmask 523264
    %v3361 = vsel %vm3360, %v3353, %v3355
    %v3362 = vsel %vm3360, %v3355, %v3357
    %v3363 = vsel %vm3360, %v3357, %v3359
    %vm3364 = vcmask 1040384
    %v3367 = vsel %vm3364, %v3320, %v3345
    %v3370 = vsel %vm3364, %v3321, %v3346
    %v3373 = vsel %vm3364, %v3322, %v3343
    %v3375 = vsel %vm2503, %v3367, %v3361
    %v3378 = vsel %vm2503, %v3370, %v3362
    %v3381 = vsel %vm2503, %v3373, %v3363
    %v3382 = vld [vmem:[%s2] sm:$0xf]
    %v3383 = vld [vmem:[%s2 + $0x18] sm:$0xf]
    %v3384 = vld [vmem:[%s2 + $0x30] sm:$0xf]
    %v3385 = vld [vmem:[%s2 + $0x48] sm:$0xf]
    %v3386 = vld [vmem:[%s2 + $0x60] sm:$0xf]
    %v3387 = vld [vmem:[%s2 + $0x78] sm:$0xf]
    %v3388 = vld [vmem:[%s2 + $0x90] sm:$0xf]
    %v3389 = vld [vmem:[%s2 + $0xa8] sm:$0xf]
    %v3390 = vld [vmem:[%s2 + $0xc0] sm:$0xf]
    %v3391 = vld [vmem:[%s2 + $0xd8] sm:$0xf]
    %v3392 = vld [vmem:[%s2 + $0xf0] sm:$0xf]
    %v3393 = vld [vmem:[%s2 + $0x108] sm:$0xf]
    %v3394 = vld [vmem:[%s2 + $0x120] sm:$0xf]
    %v3395 = vld [vmem:[%s2 + $0x138] sm:$0xf]
    %v3396 = vld [vmem:[%s2 + $0x150] sm:$0xf]
    %v3397 = vld [vmem:[%s2 + $0x168] sm:$0xf]
    %v3398 = vld [vmem:[%s2 + $0x180] sm:$0xf]
    %v3399 = vld [vmem:[%s2 + $0x198] sm:$0xf]
    %v3400 = vld [vmem:[%s2 + $0x1b0] sm:$0xf]
    %v3401 = vld [vmem:[%s2 + $0x1c8] sm:$0xf]
    %v3402 = vld [vmem:[%s2 + $0x1e0] sm:$0xf]
    %v3403 = vld [vmem:[%s2 + $0x1f8] sm:$0xf]
    %v3404 = vld [vmem:[%s2 + $0x210] sm:$0xf]
    %v3405 = vld [vmem:[%s2 + $0x228] sm:$0xf]
    %v3406 = vld [vmem:[%s2 + $0x240] sm:$0xf]
    %v3407 = vld [vmem:[%s2 + $0x258] sm:$0xf]
    %v3408 = vld [vmem:[%s2 + $0x270] sm:$0xf]
    %v3409 = vld [vmem:[%s2 + $0x288] sm:$0xf]
    %v3410 = vld [vmem:[%s2 + $0x2a0] sm:$0xf]
    %v3411 = vld [vmem:[%s2 + $0x2b8] sm:$0xf]
    %v3412 = vld [vmem:[%s2 + $0x2d0] sm:$0xf]
    %v3413 = vld [vmem:[%s2 + $0x2e8] sm:$0xf]
    %v3414 = vld [vmem:[%s2 + $0x300] sm:$0xf]
    %v3415 = vld [vmem:[%s2 + $0x318] sm:$0xf]
    %v3416 = vld [vmem:[%s2 + $0x330] sm:$0xf]
    %v3417 = vld [vmem:[%s2 + $0x348] sm:$0xf]
    %v3418 = vld [vmem:[%s2 + $0x360] sm:$0xf]
    %v3419 = vld [vmem:[%s2 + $0x378] sm:$0xf]
    %v3420 = vld [vmem:[%s2 + $0x390] sm:$0xf]
    %v3421 = vld [vmem:[%s2 + $0x3a8] sm:$0xf]
    %v3422 = vld [vmem:[%s2 + $0x3c0] sm:$0xf]
    %v3423 = vld [vmem:[%s2 + $0x3d8] sm:$0xf]
    %v3424 = vld [vmem:[%s2 + $0x3f0] sm:$0xf]
    %v3425 = vld [vmem:[%s2 + $0x408] sm:$0xf]
    %v3426 = vrot.slane %v3320, 1
    %v3427 = vrot.slane %v3321, 1
    %v3428 = vrot.slane %v3322, 1
    %3429 = vrot.lane.b32.xlu0 %v3320, 96
    %v3430 = vpop.permute.xlu0 %3429
    %3431 = vrot.lane.b32.xlu0 %v3321, 96
    %v3432 = vpop.permute.xlu0 %3431
    %3433 = vrot.lane.b32.xlu0 %v3322, 96
    %v3434 = vpop.permute.xlu0 %3433
    %v3435 = vsel %vm3344, %v3430, %v3432
    %v3436 = vsel %vm3344, %v3432, %v3434
    %v3437 = vrot.slane %v3323, 7
    %3438 = vrot.lane.b32.xlu0 %v3335, 64
    %v3439 = vpop.permute.xlu0 %3438
    %3440 = vrot.lane.b32.xlu0 %v3336, 64
    %v3441 = vpop.permute.xlu0 %3440
    %3442 = vrot.lane.b32.xlu0 %v3337, 64
    %v3443 = vpop.permute.xlu0 %3442
    %3444 = vrot.lane.b32.xlu0 %v3437, 64
    %v3445 = vpop.permute.xlu0 %3444
    %v3446 = vsel %vm3360, %v3439, %v3441
    %v3447 = vsel %vm3360, %v3441, %v3443
    %v3448 = vsel %vm3360, %v3443, %v3445
    %v3451 = vsel %vm3364, %v3426, %v3435
    %v3454 = vsel %vm3364, %v3427, %v3436
    %v3457 = vsel %vm3364, %v3428, %v3434
    %v3459 = vsel %vm2503, %v3451, %v3446
    %v3462 = vsel %vm2503, %v3454, %v3447
    %v3465 = vsel %vm2503, %v3457, %v3448
    %v3510 = vunpack.c.l.b16 %v3382
    %v3511 = vunpack.c.l.b16 %v3383
    %v3512 = vunpack.c.l.b16 %v3384
    %v3513 = vunpack.c.l.b16 %v3385
    %v3514 = vunpack.c.l.b16 %v3386
    %v3515 = vunpack.c.l.b16 %v3387
    %v3516 = vunpack.c.l.b16 %v3388
    %v3517 = vunpack.c.l.b16 %v3389
    %v3518 = vunpack.c.l.b16 %v3390
    %v3519 = vunpack.c.l.b16 %v3391
    %v3520 = vunpack.c.l.b16 %v3392
    %v3521 = vunpack.c.l.b16 %v3393
    %v3522 = vunpack.c.l.b16 %v3394
    %v3523 = vunpack.c.l.b16 %v3395
    %v3524 = vunpack.c.l.b16 %v3396
    %v3525 = vunpack.c.l.b16 %v3397
    %v3526 = vunpack.c.l.b16 %v3398
    %v3527 = vunpack.c.l.b16 %v3399
    %v3528 = vunpack.c.l.b16 %v3400
    %v3529 = vunpack.c.l.b16 %v3401
    %v3530 = vunpack.c.l.b16 %v3402
    %v3531 = vunpack.c.l.b16 %v3403
    %v3532 = vunpack.c.l.b16 %v3404
    %v3533 = vunpack.c.l.b16 %v3405
    %v3534 = vunpack.c.l.b16 %v3406
    %v3535 = vunpack.c.l.b16 %v3407
    %v3536 = vunpack.c.l.b16 %v3408
    %v3537 = vunpack.c.l.b16 %v3409
    %v3538 = vunpack.c.l.b16 %v3410
    %v3539 = vunpack.c.l.b16 %v3411
    %v3540 = vunpack.c.l.b16 %v3412
    %v3541 = vunpack.c.l.b16 %v3413
    %v3542 = vunpack.c.l.b16 %v3414
    %v3543 = vunpack.c.l.b16 %v3415
    %v3544 = vunpack.c.l.b16 %v3416
    %v3545 = vunpack.c.l.b16 %v3417
    %v3546 = vunpack.c.l.b16 %v3418
    %v3547 = vunpack.c.l.b16 %v3419
    %v3548 = vunpack.c.l.b16 %v3420
    %v3549 = vunpack.c.l.b16 %v3421
    %v3550 = vunpack.c.l.b16 %v3422
    %v3551 = vunpack.c.l.b16 %v3423
    %v3552 = vunpack.c.l.b16 %v3424
    %v3553 = vunpack.c.l.b16 %v3425
    %v3554 = vpack.c.b16 %v3511, %v3510
    %v3555 = vpack.c.b16 %v3513, %v3512
    %v3556 = vpack.c.b16 %v3515, %v3514
    %v3557 = vpack.c.b16 %v3517, %v3516
    %v3558 = vpack.c.b16 %v3519, %v3518
    %v3559 = vpack.c.b16 %v3521, %v3520
    %v3560 = vpack.c.b16 %v3523, %v3522
    %v3561 = vpack.c.b16 %v3525, %v3524
    %v3562 = vpack.c.b16 %v3527, %v3526
    %v3563 = vpack.c.b16 %v3529, %v3528
    %v3564 = vpack.c.b16 %v3531, %v3530
    %v3565 = vpack.c.b16 %v3533, %v3532
    %v3566 = vpack.c.b16 %v3535, %v3534
    %v3567 = vpack.c.b16 %v3537, %v3536
    %v3568 = vpack.c.b16 %v3539, %v3538
    %v3569 = vpack.c.b16 %v3541, %v3540
    %v3570 = vpack.c.b16 %v3543, %v3542
    %v3571 = vpack.c.b16 %v3545, %v3544
    %v3572 = vpack.c.b16 %v3547, %v3546
    %v3573 = vpack.c.b16 %v3549, %v3548
    %v3574 = vpack.c.b16 %v3551, %v3550
    %v3575 = vpack.c.b16 %v3553, %v3552
    %3576 = vrot.lane.b32.xlu0 %v3554, 96
    %v3577 = vpop.permute.xlu0 %3576
    %3578 = vrot.lane.b32.xlu0 %v3555, 96
    %v3579 = vpop.permute.xlu0 %3578
    %3580 = vrot.lane.b32.xlu0 %v3556, 96
    %v3581 = vpop.permute.xlu0 %3580
    %3582 = vrot.lane.b32.xlu0 %v3557, 96
    %v3583 = vpop.permute.xlu0 %3582
    %3584 = vrot.lane.b32.xlu0 %v3558, 96
    %v3585 = vpop.permute.xlu0 %3584
    %3586 = vrot.lane.b32.xlu0 %v3559, 96
    %v3587 = vpop.permute.xlu0 %3586
    %3588 = vrot.lane.b32.xlu0 %v3560, 96
    %v3589 = vpop.permute.xlu0 %3588
    %3590 = vrot.lane.b32.xlu0 %v3561, 96
    %v3591 = vpop.permute.xlu0 %3590
    %3592 = vrot.lane.b32.xlu0 %v3562, 96
    %v3593 = vpop.permute.xlu0 %3592
    %3594 = vrot.lane.b32.xlu0 %v3563, 96
    %v3595 = vpop.permute.xlu0 %3594
    %3596 = vrot.lane.b32.xlu0 %v3564, 96
    %v3597 = vpop.permute.xlu0 %3596
    %3598 = vrot.lane.b32.xlu0 %v3565, 96
    %v3599 = vpop.permute.xlu0 %3598
    %3600 = vrot.lane.b32.xlu0 %v3566, 96
    %v3601 = vpop.permute.xlu0 %3600
    %3602 = vrot.lane.b32.xlu0 %v3567, 96
    %v3603 = vpop.permute.xlu0 %3602
    %3604 = vrot.lane.b32.xlu0 %v3568, 96
    %v3605 = vpop.permute.xlu0 %3604
    %3606 = vrot.lane.b32.xlu0 %v3569, 96
    %v3607 = vpop.permute.xlu0 %3606
    %3608 = vrot.lane.b32.xlu0 %v3570, 96
    %v3609 = vpop.permute.xlu0 %3608
    %3610 = vrot.lane.b32.xlu0 %v3571, 96
    %v3611 = vpop.permute.xlu0 %3610
    %3612 = vrot.lane.b32.xlu0 %v3572, 96
    %v3613 = vpop.permute.xlu0 %3612
    %3614 = vrot.lane.b32.xlu0 %v3573, 96
    %v3615 = vpop.permute.xlu0 %3614
    %3616 = vrot.lane.b32.xlu0 %v3574, 96
    %v3617 = vpop.permute.xlu0 %3616
    %3618 = vrot.lane.b32.xlu0 %v3575, 96
    %v3619 = vpop.permute.xlu0 %3618
    %vm3642 = vcmask 785408
    %v3643 = vsel %vm3642, %v3465, 0
    %3645 = vmatprep.subr.bf16.mxu0 0
    %3646 = vmatpush1.bf16.msra.mxu0 %v3591
    %3647 = vmatprep.subr.bf16.mxu0 0
    %3648 = vmatpush1.bf16.msra.mxu0 %v3589
    %3649 = vmatprep.subr.bf16.mxu0 0
    %3650 = vmatpush1.bf16.msra.mxu0 %v3587
    %3651 = vmatprep.subr.bf16.mxu0 0
    %3652 = vmatpush1.bf16.msra.mxu0 %v3585
    %3653 = vmatprep.subr.bf16.mxu0 0
    %3654 = vmatpush1.bf16.msra.mxu0 %v3583
    %3655 = vmatprep.subr.bf16.mxu0 0
    %3656 = vmatpush1.bf16.msra.mxu0 %v3581
    %3657 = vmatprep.subr.bf16.mxu0 0
    %3658 = vmatpush1.bf16.msra.mxu0 %v3579
    %3659 = vmatprep.subr.bf16.mxu0 0
    %3660 = vmatpush1.bf16.msra.mxu0 %v3577
    %3661 = vmatprep.subr.bf16.mxu0 0
    %3662 = vmatpush2.bf16.msra.mxu0 %v3607
    %3663 = vmatprep.subr.bf16.mxu0 0
    %3664 = vmatpush2.bf16.msra.mxu0 %v3605
    %3665 = vmatprep.subr.bf16.mxu0 0
    %3666 = vmatpush2.bf16.msra.mxu0 %v3603
    %3667 = vmatprep.subr.bf16.mxu0 0
    %3668 = vmatpush2.bf16.msra.mxu0 %v3601
    %3669 = vmatprep.subr.bf16.mxu0 0
    %3670 = vmatpush2.bf16.msra.mxu0 %v3599
    %3671 = vmatprep.subr.bf16.mxu0 0
    %3672 = vmatpush2.bf16.msra.mxu0 %v3597
    %3673 = vmatprep.subr.bf16.mxu0 0
    %3674 = vmatpush2.bf16.msra.mxu0 %v3595
    %3675 = vmatprep.subr.bf16.mxu0 0
    %3676 = vmatpush2.bf16.msra.mxu0 %v3593
    %3677 = vmatprep.mubr.bf16.mxu0 %v3462
    %3678 = vmatmul.mubr.bf16.gmra.mxu0 %v3459
    %v3679 = vpop.f32.mrf.mxu0
    %v3680 = vadd.f32 0.0, %v3679
    %v3681 = vpop.f32.mrf.mxu0
    %v3682 = vpop.f32.mrf.mxu0
    %v3683 = vpop.f32.mrf.mxu0
    %3684 = vdwg.mxu0
    %3685 = vmatprep.subr.bf16.mxu0 0
    %3686 = vmatpush1.bf16.msra.mxu0 0
    %3687 = vmatprep.subr.bf16.mxu0 0
    %3688 = vmatpush1.bf16.msra.mxu0 0
    %3689 = vmatprep.subr.bf16.mxu0 0
    %3690 = vmatpush1.bf16.msra.mxu0 %v3619
    %3691 = vmatprep.subr.bf16.mxu0 0
    %3692 = vmatpush1.bf16.msra.mxu0 %v3617
    %3693 = vmatprep.subr.bf16.mxu0 0
    %3694 = vmatpush1.bf16.msra.mxu0 %v3615
    %3695 = vmatprep.subr.bf16.mxu0 0
    %3696 = vmatpush1.bf16.msra.mxu0 %v3613
    %3697 = vmatprep.subr.bf16.mxu0 0
    %3698 = vmatpush1.bf16.msra.mxu0 %v3611
    %3699 = vmatprep.subr.bf16.mxu0 0
    %3700 = vmatpush1.bf16.msra.mxu0 %v3609
    %3701 = vmatprep.subr.bf16.mxu0 0
    %3702 = vmatpush2.bf16.msra.mxu0 0
    %3703 = vmatprep.subr.bf16.mxu0 0
    %3704 = vmatpush2.bf16.msra.mxu0 0
    %3705 = vmatprep.subr.bf16.mxu0 0
    %3706 = vmatpush2.bf16.msra.mxu0 0
    %3707 = vmatprep.subr.bf16.mxu0 0
    %3708 = vmatpush2.bf16.msra.mxu0 0
    %3709 = vmatprep.subr.bf16.mxu0 0
    %3710 = vmatpush2.bf16.msra.mxu0 0
    %3711 = vmatprep.subr.bf16.mxu0 0
    %3712 = vmatpush2.bf16.msra.mxu0 0
    %3713 = vmatprep.subr.bf16.mxu0 0
    %3714 = vmatpush2.bf16.msra.mxu0 0
    %3715 = vmatprep.subr.bf16.mxu0 0
    %3716 = vmatpush2.bf16.msra.mxu0 0
    %3717 = vmatprep.mubr.bf16.mxu0 0
    %3718 = vmatmul.mubr.bf16.gmra.mxu0 %v3643
    %v3719 = vpop.f32.mrf.mxu0
    %v3720 = vadd.f32 %v3680, %v3719
    %v3721 = vpop.f32.mrf.mxu0
    %v3722 = vpop.f32.mrf.mxu0
    %v3723 = vpop.f32.mrf.mxu0
    %3724 = vdwg.mxu0
    %v3747 = vsel %vm3642, %v3381, 0
    %3749 = vmatprep.subr.bf16.mxu0 0
    %3750 = vmatpush1.bf16.msra.mxu0 %v3561
    %3751 = vmatprep.subr.bf16.mxu0 0
    %3752 = vmatpush1.bf16.msra.mxu0 %v3560
    %3753 = vmatprep.subr.bf16.mxu0 0
    %3754 = vmatpush1.bf16.msra.mxu0 %v3559
    %3755 = vmatprep.subr.bf16.mxu0 0
    %3756 = vmatpush1.bf16.msra.mxu0 %v3558
    %3757 = vmatprep.subr.bf16.mxu0 0
    %3758 = vmatpush1.bf16.msra.mxu0 %v3557
    %3759 = vmatprep.subr.bf16.mxu0 0
    %3760 = vmatpush1.bf16.msra.mxu0 %v3556
    %3761 = vmatprep.subr.bf16.mxu0 0
    %3762 = vmatpush1.bf16.msra.mxu0 %v3555
    %3763 = vmatprep.subr.bf16.mxu0 0
    %3764 = vmatpush1.bf16.msra.mxu0 %v3554
    %3765 = vmatprep.subr.bf16.mxu0 0
    %3766 = vmatpush2.bf16.msra.mxu0 %v3569
    %3767 = vmatprep.subr.bf16.mxu0 0
    %3768 = vmatpush2.bf16.msra.mxu0 %v3568
    %3769 = vmatprep.subr.bf16.mxu0 0
    %3770 = vmatpush2.bf16.msra.mxu0 %v3567
    %3771 = vmatprep.subr.bf16.mxu0 0
    %3772 = vmatpush2.bf16.msra.mxu0 %v3566
    %3773 = vmatprep.subr.bf16.mxu0 0
    %3774 = vmatpush2.bf16.msra.mxu0 %v3565
    %3775 = vmatprep.subr.bf16.mxu0 0
    %3776 = vmatpush2.bf16.msra.mxu0 %v3564
    %3777 = vmatprep.subr.bf16.mxu0 0
    %3778 = vmatpush2.bf16.msra.mxu0 %v3563
    %3779 = vmatprep.subr.bf16.mxu0 0
    %3780 = vmatpush2.bf16.msra.mxu0 %v3562
    %3781 = vmatprep.mubr.bf16.mxu0 %v3378
    %3782 = vmatmul.mubr.bf16.gmra.mxu0 %v3375
    %v3783 = vpop.f32.mrf.mxu0
    %v3784 = vadd.f32 %v3720, %v3783
    %v3785 = vpop.f32.mrf.mxu0
    %v3786 = vpop.f32.mrf.mxu0
    %v3787 = vpop.f32.mrf.mxu0
    %3788 = vdwg.mxu0
    %3789 = vmatprep.subr.bf16.mxu0 0
    %3790 = vmatpush1.bf16.msra.mxu0 0
    %3791 = vmatprep.subr.bf16.mxu0 0
    %3792 = vmatpush1.bf16.msra.mxu0 0
    %3793 = vmatprep.subr.bf16.mxu0 0
    %3794 = vmatpush1.bf16.msra.mxu0 %v3575
    %3795 = vmatprep.subr.bf16.mxu0 0
    %3796 = vmatpush1.bf16.msra.mxu0 %v3574
    %3797 = vmatprep.subr.bf16.mxu0 0
    %3798 = vmatpush1.bf16.msra.mxu0 %v3573
    %3799 = vmatprep.subr.bf16.mxu0 0
    %3800 = vmatpush1.bf16.msra.mxu0 %v3572
    %3801 = vmatprep.subr.bf16.mxu0 0
    %3802 = vmatpush1.bf16.msra.mxu0 %v3571
    %3803 = vmatprep.subr.bf16.mxu0 0
    %3804 = vmatpush1.bf16.msra.mxu0 %v3570
    %3805 = vmatprep.subr.bf16.mxu0 0
    %3806 = vmatpush2.bf16.msra.mxu0 0
    %3807 = vmatprep.subr.bf16.mxu0 0
    %3808 = vmatpush2.bf16.msra.mxu0 0
    %3809 = vmatprep.subr.bf16.mxu0 0
    %3810 = vmatpush2.bf16.msra.mxu0 0
    %3811 = vmatprep.subr.bf16.mxu0 0
    %3812 = vmatpush2.bf16.msra.mxu0 0
    %3813 = vmatprep.subr.bf16.mxu0 0
    %3814 = vmatpush2.bf16.msra.mxu0 0
    %3815 = vmatprep.subr.bf16.mxu0 0
    %3816 = vmatpush2.bf16.msra.mxu0 0
    %3817 = vmatprep.subr.bf16.mxu0 0
    %3818 = vmatpush2.bf16.msra.mxu0 0
    %3819 = vmatprep.subr.bf16.mxu0 0
    %3820 = vmatpush2.bf16.msra.mxu0 0
    %3821 = vmatprep.mubr.bf16.mxu0 0
    %3822 = vmatmul.mubr.bf16.gmra.mxu0 %v3747
    %v3823 = vpop.f32.mrf.mxu0
    %v3824 = vadd.f32 %v3784, %v3823
    %v3825 = vpop.f32.mrf.mxu0
    %v3826 = vpop.f32.mrf.mxu0
    %v3827 = vpop.f32.mrf.mxu0
    %3828 = vdwg.mxu0
    %v3829 = vrot.slane %v3320, 2
    %v3830 = vrot.slane %v3321, 2
    %v3831 = vrot.slane %v3322, 2
    %3832 = vrot.lane.b32.xlu0 %v3426, 96
    %v3833 = vpop.permute.xlu0 %3832
    %3834 = vrot.lane.b32.xlu0 %v3427, 96
    %v3835 = vpop.permute.xlu0 %3834
    %3836 = vrot.lane.b32.xlu0 %v3428, 96
    %v3837 = vpop.permute.xlu0 %3836
    %v3838 = vsel %vm3344, %v3833, %v3835
    %v3839 = vsel %vm3344, %v3835, %v3837
    %3840 = vrot.lane.b32.xlu0 %v3320, 64
    %v3841 = vpop.permute.xlu0 %3840
    %3842 = vrot.lane.b32.xlu0 %v3321, 64
    %v3843 = vpop.permute.xlu0 %3842
    %3844 = vrot.lane.b32.xlu0 %v3322, 64
    %v3845 = vpop.permute.xlu0 %3844
    %3846 = vrot.lane.b32.xlu0 %v3323, 64
    %v3847 = vpop.permute.xlu0 %3846
    %v3848 = vsel %vm3360, %v3841, %v3843
    %v3849 = vsel %vm3360, %v3843, %v3845
    %v3850 = vsel %vm3360, %v3845, %v3847
    %v3853 = vsel %vm3364, %v3829, %v3838
    %v3856 = vsel %vm3364, %v3830, %v3839
    %v3859 = vsel %vm3364, %v3831, %v3837
    %v3861 = vsel %vm2503, %v3853, %v3848
    %v3864 = vsel %vm2503, %v3856, %v3849
    %v3867 = vsel %vm2503, %v3859, %v3850
    %3868 = vrot.lane.b32.xlu0 %v3554, 64
    %v3869 = vpop.permute.xlu0 %3868
    %3870 = vrot.lane.b32.xlu0 %v3555, 64
    %v3871 = vpop.permute.xlu0 %3870
    %3872 = vrot.lane.b32.xlu0 %v3556, 64
    %v3873 = vpop.permute.xlu0 %3872
    %3874 = vrot.lane.b32.xlu0 %v3557, 64
    %v3875 = vpop.permute.xlu0 %3874
    %3876 = vrot.lane.b32.xlu0 %v3558, 64
    %v3877 = vpop.permute.xlu0 %3876
    %3878 = vrot.lane.b32.xlu0 %v3559, 64
    %v3879 = vpop.permute.xlu0 %3878
    %3880 = vrot.lane.b32.xlu0 %v3560, 64
    %v3881 = vpop.permute.xlu0 %3880
    %3882 = vrot.lane.b32.xlu0 %v3561, 64
    %v3883 = vpop.permute.xlu0 %3882
    %3884 = vrot.lane.b32.xlu0 %v3562, 64
    %v3885 = vpop.permute.xlu0 %3884
    %3886 = vrot.lane.b32.xlu0 %v3563, 64
    %v3887 = vpop.permute.xlu0 %3886
    %3888 = vrot.lane.b32.xlu0 %v3564, 64
    %v3889 = vpop.permute.xlu0 %3888
    %3890 = vrot.lane.b32.xlu0 %v3565, 64
    %v3891 = vpop.permute.xlu0 %3890
    %3892 = vrot.lane.b32.xlu0 %v3566, 64
    %v3893 = vpop.permute.xlu0 %3892
    %3894 = vrot.lane.b32.xlu0 %v3567, 64
    %v3895 = vpop.permute.xlu0 %3894
    %3896 = vrot.lane.b32.xlu0 %v3568, 64
    %v3897 = vpop.permute.xlu0 %3896
    %3898 = vrot.lane.b32.xlu0 %v3569, 64
    %v3899 = vpop.permute.xlu0 %3898
    %3900 = vrot.lane.b32.xlu0 %v3570, 64
    %v3901 = vpop.permute.xlu0 %3900
    %3902 = vrot.lane.b32.xlu0 %v3571, 64
    %v3903 = vpop.permute.xlu0 %3902
    %3904 = vrot.lane.b32.xlu0 %v3572, 64
    %v3905 = vpop.permute.xlu0 %3904
    %3906 = vrot.lane.b32.xlu0 %v3573, 64
    %v3907 = vpop.permute.xlu0 %3906
    %3908 = vrot.lane.b32.xlu0 %v3574, 64
    %v3909 = vpop.permute.xlu0 %3908
    %3910 = vrot.lane.b32.xlu0 %v3575, 64
    %v3911 = vpop.permute.xlu0 %3910
    %v3934 = vsel %vm3642, %v3867, 0
    %3936 = vmatprep.subr.bf16.mxu0 0
    %3937 = vmatpush1.bf16.msra.mxu0 %v3883
    %3938 = vmatprep.subr.bf16.mxu0 0
    %3939 = vmatpush1.bf16.msra.mxu0 %v3881
    %3940 = vmatprep.subr.bf16.mxu0 0
    %3941 = vmatpush1.bf16.msra.mxu0 %v3879
    %3942 = vmatprep.subr.bf16.mxu0 0
    %3943 = vmatpush1.bf16.msra.mxu0 %v3877
    %3944 = vmatprep.subr.bf16.mxu0 0
    %3945 = vmatpush1.bf16.msra.mxu0 %v3875
    %3946 = vmatprep.subr.bf16.mxu0 0
    %3947 = vmatpush1.bf16.msra.mxu0 %v3873
    %3948 = vmatprep.subr.bf16.mxu0 0
    %3949 = vmatpush1.bf16.msra.mxu0 %v3871
    %3950 = vmatprep.subr.bf16.mxu0 0
    %3951 = vmatpush1.bf16.msra.mxu0 %v3869
    %3952 = vmatprep.subr.bf16.mxu0 0
    %3953 = vmatpush2.bf16.msra.mxu0 %v3899
    %3954 = vmatprep.subr.bf16.mxu0 0
    %3955 = vmatpush2.bf16.msra.mxu0 %v3897
    %3956 = vmatprep.subr.bf16.mxu0 0
    %3957 = vmatpush2.bf16.msra.mxu0 %v3895
    %3958 = vmatprep.subr.bf16.mxu0 0
    %3959 = vmatpush2.bf16.msra.mxu0 %v3893
    %3960 = vmatprep.subr.bf16.mxu0 0
    %3961 = vmatpush2.bf16.msra.mxu0 %v3891
    %3962 = vmatprep.subr.bf16.mxu0 0
    %3963 = vmatpush2.bf16.msra.mxu0 %v3889
    %3964 = vmatprep.subr.bf16.mxu0 0
    %3965 = vmatpush2.bf16.msra.mxu0 %v3887
    %3966 = vmatprep.subr.bf16.mxu0 0
    %3967 = vmatpush2.bf16.msra.mxu0 %v3885
    %3968 = vmatprep.mubr.bf16.mxu0 %v3864
    %3969 = vmatmul.mubr.bf16.gmra.mxu0 %v3861
    %v3970 = vpop.f32.mrf.mxu0
    %v3971 = vadd.f32 0.0, %v3970
    %v3972 = vpop.f32.mrf.mxu0
    %v3973 = vpop.f32.mrf.mxu0
    %v3974 = vpop.f32.mrf.mxu0
    %3975 = vdwg.mxu0
    %3976 = vmatprep.subr.bf16.mxu0 0
    %3977 = vmatpush1.bf16.msra.mxu0 0
    %3978 = vmatprep.subr.bf16.mxu0 0
    %3979 = vmatpush1.bf16.msra.mxu0 0
    %3980 = vmatprep.subr.bf16.mxu0 0
    %3981 = vmatpush1.bf16.msra.mxu0 %v3911
    %3982 = vmatprep.subr.bf16.mxu0 0
    %3983 = vmatpush1.bf16.msra.mxu0 %v3909
    %3984 = vmatprep.subr.bf16.mxu0 0
    %3985 = vmatpush1.bf16.msra.mxu0 %v3907
    %3986 = vmatprep.subr.bf16.mxu0 0
    %3987 = vmatpush1.bf16.msra.mxu0 %v3905
    %3988 = vmatprep.subr.bf16.mxu0 0
    %3989 = vmatpush1.bf16.msra.mxu0 %v3903
    %3990 = vmatprep.subr.bf16.mxu0 0
    %3991 = vmatpush1.bf16.msra.mxu0 %v3901
    %3992 = vmatprep.subr.bf16.mxu0 0
    %3993 = vmatpush2.bf16.msra.mxu0 0
    %3994 = vmatprep.subr.bf16.mxu0 0
    %3995 = vmatpush2.bf16.msra.mxu0 0
    %3996 = vmatprep.subr.bf16.mxu0 0
    %3997 = vmatpush2.bf16.msra.mxu0 0
    %3998 = vmatprep.subr.bf16.mxu0 0
    %3999 = vmatpush2.bf16.msra.mxu0 0
    %4000 = vmatprep.subr.bf16.mxu0 0
    %4001 = vmatpush2.bf16.msra.mxu0 0
    %4002 = vmatprep.subr.bf16.mxu0 0
    %4003 = vmatpush2.bf16.msra.mxu0 0
    %4004 = vmatprep.subr.bf16.mxu0 0
    %4005 = vmatpush2.bf16.msra.mxu0 0
    %4006 = vmatprep.subr.bf16.mxu0 0
    %4007 = vmatpush2.bf16.msra.mxu0 0
    %4008 = vmatprep.mubr.bf16.mxu0 0
    %4009 = vmatmul.mubr.bf16.gmra.mxu0 %v3934
    %v4010 = vpop.f32.mrf.mxu0
    %v4011 = vadd.f32 %v3971, %v4010
    %v4012 = vpop.f32.mrf.mxu0
    %v4013 = vpop.f32.mrf.mxu0
    %v4014 = vpop.f32.mrf.mxu0
    %4015 = vdwg.mxu0
    %v4016 = vadd.f32 %v3824, %v4011
    %v4017 = vrot.slane %v3320, 3
    %v4018 = vrot.slane %v3321, 3
    %v4019 = vrot.slane %v3322, 3
    %4020 = vrot.lane.b32.xlu0 %v3829, 96
    %v4021 = vpop.permute.xlu0 %4020
    %4022 = vrot.lane.b32.xlu0 %v3830, 96
    %v4023 = vpop.permute.xlu0 %4022
    %4024 = vrot.lane.b32.xlu0 %v3831, 96
    %v4025 = vpop.permute.xlu0 %4024
    %v4026 = vsel %vm3344, %v4021, %v4023
    %v4027 = vsel %vm3344, %v4023, %v4025
    %v4028 = vrot.slane %v3323, 1
    %4029 = vrot.lane.b32.xlu0 %v3426, 64
    %v4030 = vpop.permute.xlu0 %4029
    %4031 = vrot.lane.b32.xlu0 %v3427, 64
    %v4032 = vpop.permute.xlu0 %4031
    %4033 = vrot.lane.b32.xlu0 %v3428, 64
    %v4034 = vpop.permute.xlu0 %4033
    %4035 = vrot.lane.b32.xlu0 %v4028, 64
    %v4036 = vpop.permute.xlu0 %4035
    %v4037 = vsel %vm3360, %v4030, %v4032
    %v4038 = vsel %vm3360, %v4032, %v4034
    %v4039 = vsel %vm3360, %v4034, %v4036
    %v4042 = vsel %vm3364, %v4017, %v4026
    %v4045 = vsel %vm3364, %v4018, %v4027
    %v4048 = vsel %vm3364, %v4019, %v4025
    %v4050 = vsel %vm2503, %v4042, %v4037
    %v4053 = vsel %vm2503, %v4045, %v4038
    %v4056 = vsel %vm2503, %v4048, %v4039
    %4057 = vrot.lane.b32.xlu0 %v3554, 32
    %v4058 = vpop.permute.xlu0 %4057
    %4059 = vrot.lane.b32.xlu0 %v3555, 32
    %v4060 = vpop.permute.xlu0 %4059
    %4061 = vrot.lane.b32.xlu0 %v3556, 32
    %v4062 = vpop.permute.xlu0 %4061
    %4063 = vrot.lane.b32.xlu0 %v3557, 32
    %v4064 = vpop.permute.xlu0 %4063
    %4065 = vrot.lane.b32.xlu0 %v3558, 32
    %v4066 = vpop.permute.xlu0 %4065
    %4067 = vrot.lane.b32.xlu0 %v3559, 32
    %v4068 = vpop.permute.xlu0 %4067
    %4069 = vrot.lane.b32.xlu0 %v3560, 32
    %v4070 = vpop.permute.xlu0 %4069
    %4071 = vrot.lane.b32.xlu0 %v3561, 32
    %v4072 = vpop.permute.xlu0 %4071
    %4073 = vrot.lane.b32.xlu0 %v3562, 32
    %v4074 = vpop.permute.xlu0 %4073
    %4075 = vrot.lane.b32.xlu0 %v3563, 32
    %v4076 = vpop.permute.xlu0 %4075
    %4077 = vrot.lane.b32.xlu0 %v3564, 32
    %v4078 = vpop.permute.xlu0 %4077
    %4079 = vrot.lane.b32.xlu0 %v3565, 32
    %v4080 = vpop.permute.xlu0 %4079
    %4081 = vrot.lane.b32.xlu0 %v3566, 32
    %v4082 = vpop.permute.xlu0 %4081
    %4083 = vrot.lane.b32.xlu0 %v3567, 32
    %v4084 = vpop.permute.xlu0 %4083
    %4085 = vrot.lane.b32.xlu0 %v3568, 32
    %v4086 = vpop.permute.xlu0 %4085
    %4087 = vrot.lane.b32.xlu0 %v3569, 32
    %v4088 = vpop.permute.xlu0 %4087
    %4089 = vrot.lane.b32.xlu0 %v3570, 32
    %v4090 = vpop.permute.xlu0 %4089
    %4091 = vrot.lane.b32.xlu0 %v3571, 32
    %v4092 = vpop.permute.xlu0 %4091
    %4093 = vrot.lane.b32.xlu0 %v3572, 32
    %v4094 = vpop.permute.xlu0 %4093
    %4095 = vrot.lane.b32.xlu0 %v3573, 32
    %v4096 = vpop.permute.xlu0 %4095
    %4097 = vrot.lane.b32.xlu0 %v3574, 32
    %v4098 = vpop.permute.xlu0 %4097
    %4099 = vrot.lane.b32.xlu0 %v3575, 32
    %v4100 = vpop.permute.xlu0 %4099
    %v4123 = vsel %vm3642, %v4056, 0
    %4125 = vmatprep.subr.bf16.mxu0 0
    %4126 = vmatpush1.bf16.msra.mxu0 %v4072
    %4127 = vmatprep.subr.bf16.mxu0 0
    %4128 = vmatpush1.bf16.msra.mxu0 %v4070
    %4129 = vmatprep.subr.bf16.mxu0 0
    %4130 = vmatpush1.bf16.msra.mxu0 %v4068
    %4131 = vmatprep.subr.bf16.mxu0 0
    %4132 = vmatpush1.bf16.msra.mxu0 %v4066
    %4133 = vmatprep.subr.bf16.mxu0 0
    %4134 = vmatpush1.bf16.msra.mxu0 %v4064
    %4135 = vmatprep.subr.bf16.mxu0 0
    %4136 = vmatpush1.bf16.msra.mxu0 %v4062
    %4137 = vmatprep.subr.bf16.mxu0 0
    %4138 = vmatpush1.bf16.msra.mxu0 %v4060
    %4139 = vmatprep.subr.bf16.mxu0 0
    %4140 = vmatpush1.bf16.msra.mxu0 %v4058
    %4141 = vmatprep.subr.bf16.mxu0 0
    %4142 = vmatpush2.bf16.msra.mxu0 %v4088
    %4143 = vmatprep.subr.bf16.mxu0 0
    %4144 = vmatpush2.bf16.msra.mxu0 %v4086
    %4145 = vmatprep.subr.bf16.mxu0 0
    %4146 = vmatpush2.bf16.msra.mxu0 %v4084
    %4147 = vmatprep.subr.bf16.mxu0 0
    %4148 = vmatpush2.bf16.msra.mxu0 %v4082
    %4149 = vmatprep.subr.bf16.mxu0 0
    %4150 = vmatpush2.bf16.msra.mxu0 %v4080
    %4151 = vmatprep.subr.bf16.mxu0 0
    %4152 = vmatpush2.bf16.msra.mxu0 %v4078
    %4153 = vmatprep.subr.bf16.mxu0 0
    %4154 = vmatpush2.bf16.msra.mxu0 %v4076
    %4155 = vmatprep.subr.bf16.mxu0 0
    %4156 = vmatpush2.bf16.msra.mxu0 %v4074
    %4157 = vmatprep.mubr.bf16.mxu0 %v4053
    %4158 = vmatmul.mubr.bf16.gmra.mxu0 %v4050
    %v4159 = vpop.f32.mrf.mxu0
    %v4160 = vadd.f32 0.0, %v4159
    %v4161 = vpop.f32.mrf.mxu0
    %v4162 = vpop.f32.mrf.mxu0
    %v4163 = vpop.f32.mrf.mxu0
    %4164 = vdwg.mxu0
    %4165 = vmatprep.subr.bf16.mxu0 0
    %4166 = vmatpush1.bf16.msra.mxu0 0
    %4167 = vmatprep.subr.bf16.mxu0 0
    %4168 = vmatpush1.bf16.msra.mxu0 0
    %4169 = vmatprep.subr.bf16.mxu0 0
    %4170 = vmatpush1.bf16.msra.mxu0 %v4100
    %4171 = vmatprep.subr.bf16.mxu0 0
    %4172 = vmatpush1.bf16.msra.mxu0 %v4098
    %4173 = vmatprep.subr.bf16.mxu0 0
    %4174 = vmatpush1.bf16.msra.mxu0 %v4096
    %4175 = vmatprep.subr.bf16.mxu0 0
    %4176 = vmatpush1.bf16.msra.mxu0 %v4094
    %4177 = vmatprep.subr.bf16.mxu0 0
    %4178 = vmatpush1.bf16.msra.mxu0 %v4092
    %4179 = vmatprep.subr.bf16.mxu0 0
    %4180 = vmatpush1.bf16.msra.mxu0 %v4090
    %4181 = vmatprep.subr.bf16.mxu0 0
    %4182 = vmatpush2.bf16.msra.mxu0 0
    %4183 = vmatprep.subr.bf16.mxu0 0
    %4184 = vmatpush2.bf16.msra.mxu0 0
    %4185 = vmatprep.subr.bf16.mxu0 0
    %4186 = vmatpush2.bf16.msra.mxu0 0
    %4187 = vmatprep.subr.bf16.mxu0 0
    %4188 = vmatpush2.bf16.msra.mxu0 0
    %4189 = vmatprep.subr.bf16.mxu0 0
    %4190 = vmatpush2.bf16.msra.mxu0 0
    %4191 = vmatprep.subr.bf16.mxu0 0
    %4192 = vmatpush2.bf16.msra.mxu0 0
    %4193 = vmatprep.subr.bf16.mxu0 0
    %4194 = vmatpush2.bf16.msra.mxu0 0
    %4195 = vmatprep.subr.bf16.mxu0 0
    %4196 = vmatpush2.bf16.msra.mxu0 0
    %4197 = vmatprep.mubr.bf16.mxu0 0
    %4198 = vmatmul.mubr.bf16.gmra.mxu0 %v4123
    %v4199 = vpop.f32.mrf.mxu0
    %v4200 = vadd.f32 %v4160, %v4199
    %v4201 = vpop.f32.mrf.mxu0
    %v4202 = vpop.f32.mrf.mxu0
    %v4203 = vpop.f32.mrf.mxu0
    %4204 = vdwg.mxu0
    %v4205 = vadd.f32 %v4016, %v4200
    %v4206 = vrot.slane %v3320, 4
    %v4207 = vrot.slane %v3321, 4
    %v4208 = vrot.slane %v3322, 4
    %4209 = vrot.lane.b32.xlu0 %v4017, 96
    %v4210 = vpop.permute.xlu0 %4209
    %4211 = vrot.lane.b32.xlu0 %v4018, 96
    %v4212 = vpop.permute.xlu0 %4211
    %4213 = vrot.lane.b32.xlu0 %v4019, 96
    %v4214 = vpop.permute.xlu0 %4213
    %v4215 = vsel %vm3344, %v4210, %v4212
    %v4216 = vsel %vm3344, %v4212, %v4214
    %v4217 = vrot.slane %v3323, 2
    %4218 = vrot.lane.b32.xlu0 %v3829, 64
    %v4219 = vpop.permute.xlu0 %4218
    %4220 = vrot.lane.b32.xlu0 %v3830, 64
    %v4221 = vpop.permute.xlu0 %4220
    %4222 = vrot.lane.b32.xlu0 %v3831, 64
    %v4223 = vpop.permute.xlu0 %4222
    %4224 = vrot.lane.b32.xlu0 %v4217, 64
    %v4225 = vpop.permute.xlu0 %4224
    %v4226 = vsel %vm3360, %v4219, %v4221
    %v4227 = vsel %vm3360, %v4221, %v4223
    %v4228 = vsel %vm3360, %v4223, %v4225
    %v4231 = vsel %vm3364, %v4206, %v4215
    %v4234 = vsel %vm3364, %v4207, %v4216
    %v4237 = vsel %vm3364, %v4208, %v4214
    %v4239 = vsel %vm2503, %v4231, %v4226
    %v4242 = vsel %vm2503, %v4234, %v4227
    %v4245 = vsel %vm2503, %v4237, %v4228
    %v4246 = vld [vmem:[%s2 + $0x4] sm:$0xf]
    %v4247 = vld [vmem:[%s2 + $0x1c] sm:$0xf]
    %v4248 = vld [vmem:[%s2 + $0x34] sm:$0xf]
    %v4249 = vld [vmem:[%s2 + $0x4c] sm:$0xf]
    %v4250 = vld [vmem:[%s2 + $0x64] sm:$0xf]
    %v4251 = vld [vmem:[%s2 + $0x7c] sm:$0xf]
    %v4252 = vld [vmem:[%s2 + $0x94] sm:$0xf]
    %v4253 = vld [vmem:[%s2 + $0xac] sm:$0xf]
    %v4254 = vld [vmem:[%s2 + $0xc4] sm:$0xf]
    %v4255 = vld [vmem:[%s2 + $0xdc] sm:$0xf]
    %v4256 = vld [vmem:[%s2 + $0xf4] sm:$0xf]
    %v4257 = vld [vmem:[%s2 + $0x10c] sm:$0xf]
    %v4258 = vld [vmem:[%s2 + $0x124] sm:$0xf]
    %v4259 = vld [vmem:[%s2 + $0x13c] sm:$0xf]
    %v4260 = vld [vmem:[%s2 + $0x154] sm:$0xf]
    %v4261 = vld [vmem:[%s2 + $0x16c] sm:$0xf]
    %v4262 = vld [vmem:[%s2 + $0x184] sm:$0xf]
    %v4263 = vld [vmem:[%s2 + $0x19c] sm:$0xf]
    %v4264 = vld [vmem:[%s2 + $0x1b4] sm:$0xf]
    %v4265 = vld [vmem:[%s2 + $0x1cc] sm:$0xf]
    %v4266 = vld [vmem:[%s2 + $0x1e4] sm:$0xf]
    %v4267 = vld [vmem:[%s2 + $0x1fc] sm:$0xf]
    %v4268 = vld [vmem:[%s2 + $0x214] sm:$0xf]
    %v4269 = vld [vmem:[%s2 + $0x22c] sm:$0xf]
    %v4270 = vld [vmem:[%s2 + $0x244] sm:$0xf]
    %v4271 = vld [vmem:[%s2 + $0x25c] sm:$0xf]
    %v4272 = vld [vmem:[%s2 + $0x274] sm:$0xf]
    %v4273 = vld [vmem:[%s2 + $0x28c] sm:$0xf]
    %v4274 = vld [vmem:[%s2 + $0x2a4] sm:$0xf]
    %v4275 = vld [vmem:[%s2 + $0x2bc] sm:$0xf]
    %v4276 = vld [vmem:[%s2 + $0x2d4] sm:$0xf]
    %v4277 = vld [vmem:[%s2 + $0x2ec] sm:$0xf]
    %v4278 = vld [vmem:[%s2 + $0x304] sm:$0xf]
    %v4279 = vld [vmem:[%s2 + $0x31c] sm:$0xf]
    %v4280 = vld [vmem:[%s2 + $0x334] sm:$0xf]
    %v4281 = vld [vmem:[%s2 + $0x34c] sm:$0xf]
    %v4282 = vld [vmem:[%s2 + $0x364] sm:$0xf]
    %v4283 = vld [vmem:[%s2 + $0x37c] sm:$0xf]
    %v4284 = vld [vmem:[%s2 + $0x394] sm:$0xf]
    %v4285 = vld [vmem:[%s2 + $0x3ac] sm:$0xf]
    %v4286 = vld [vmem:[%s2 + $0x3c4] sm:$0xf]
    %v4287 = vld [vmem:[%s2 + $0x3dc] sm:$0xf]
    %v4288 = vld [vmem:[%s2 + $0x3f4] sm:$0xf]
    %v4289 = vld [vmem:[%s2 + $0x40c] sm:$0xf]
    %v4334 = vunpack.c.l.b16 %v4246
    %v4335 = vunpack.c.l.b16 %v4247
    %v4336 = vunpack.c.l.b16 %v4248
    %v4337 = vunpack.c.l.b16 %v4249
    %v4338 = vunpack.c.l.b16 %v4250
    %v4339 = vunpack.c.l.b16 %v4251
    %v4340 = vunpack.c.l.b16 %v4252
    %v4341 = vunpack.c.l.b16 %v4253
    %v4342 = vunpack.c.l.b16 %v4254
    %v4343 = vunpack.c.l.b16 %v4255
    %v4344 = vunpack.c.l.b16 %v4256
    %v4345 = vunpack.c.l.b16 %v4257
    %v4346 = vunpack.c.l.b16 %v4258
    %v4347 = vunpack.c.l.b16 %v4259
    %v4348 = vunpack.c.l.b16 %v4260
    %v4349 = vunpack.c.l.b16 %v4261
    %v4350 = vunpack.c.l.b16 %v4262
    %v4351 = vunpack.c.l.b16 %v4263
    %v4352 = vunpack.c.l.b16 %v4264
    %v4353 = vunpack.c.l.b16 %v4265
    %v4354 = vunpack.c.l.b16 %v4266
    %v4355 = vunpack.c.l.b16 %v4267
    %v4356 = vunpack.c.l.b16 %v4268
    %v4357 = vunpack.c.l.b16 %v4269
    %v4358 = vunpack.c.l.b16 %v4270
    %v4359 = vunpack.c.l.b16 %v4271
    %v4360 = vunpack.c.l.b16 %v4272
    %v4361 = vunpack.c.l.b16 %v4273
    %v4362 = vunpack.c.l.b16 %v4274
    %v4363 = vunpack.c.l.b16 %v4275
    %v4364 = vunpack.c.l.b16 %v4276
    %v4365 = vunpack.c.l.b16 %v4277
    %v4366 = vunpack.c.l.b16 %v4278
    %v4367 = vunpack.c.l.b16 %v4279
    %v4368 = vunpack.c.l.b16 %v4280
    %v4369 = vunpack.c.l.b16 %v4281
    %v4370 = vunpack.c.l.b16 %v4282
    %v4371 = vunpack.c.l.b16 %v4283
    %v4372 = vunpack.c.l.b16 %v4284
    %v4373 = vunpack.c.l.b16 %v4285
    %v4374 = vunpack.c.l.b16 %v4286
    %v4375 = vunpack.c.l.b16 %v4287
    %v4376 = vunpack.c.l.b16 %v4288
    %v4377 = vunpack.c.l.b16 %v4289
    %v4378 = vpack.c.b16 %v4335, %v4334
    %v4379 = vpack.c.b16 %v4337, %v4336
    %v4380 = vpack.c.b16 %v4339, %v4338
    %v4381 = vpack.c.b16 %v4341, %v4340
    %v4382 = vpack.c.b16 %v4343, %v4342
    %v4383 = vpack.c.b16 %v4345, %v4344
    %v4384 = vpack.c.b16 %v4347, %v4346
    %v4385 = vpack.c.b16 %v4349, %v4348
    %v4386 = vpack.c.b16 %v4351, %v4350
    %v4387 = vpack.c.b16 %v4353, %v4352
    %v4388 = vpack.c.b16 %v4355, %v4354
    %v4389 = vpack.c.b16 %v4357, %v4356
    %v4390 = vpack.c.b16 %v4359, %v4358
    %v4391 = vpack.c.b16 %v4361, %v4360
    %v4392 = vpack.c.b16 %v4363, %v4362
    %v4393 = vpack.c.b16 %v4365, %v4364
    %v4394 = vpack.c.b16 %v4367, %v4366
    %v4395 = vpack.c.b16 %v4369, %v4368
    %v4396 = vpack.c.b16 %v4371, %v4370
    %v4397 = vpack.c.b16 %v4373, %v4372
    %v4398 = vpack.c.b16 %v4375, %v4374
    %v4399 = vpack.c.b16 %v4377, %v4376
    %v4422 = vsel %vm3642, %v4245, 0
    %4424 = vmatprep.subr.bf16.mxu0 0
    %4425 = vmatpush1.bf16.msra.mxu0 %v4385
    %4426 = vmatprep.subr.bf16.mxu0 0
    %4427 = vmatpush1.bf16.msra.mxu0 %v4384
    %4428 = vmatprep.subr.bf16.mxu0 0
    %4429 = vmatpush1.bf16.msra.mxu0 %v4383
    %4430 = vmatprep.subr.bf16.mxu0 0
    %4431 = vmatpush1.bf16.msra.mxu0 %v4382
    %4432 = vmatprep.subr.bf16.mxu0 0
    %4433 = vmatpush1.bf16.msra.mxu0 %v4381
    %4434 = vmatprep.subr.bf16.mxu0 0
    %4435 = vmatpush1.bf16.msra.mxu0 %v4380
    %4436 = vmatprep.subr.bf16.mxu0 0
    %4437 = vmatpush1.bf16.msra.mxu0 %v4379
    %4438 = vmatprep.subr.bf16.mxu0 0
    %4439 = vmatpush1.bf16.msra.mxu0 %v4378
    %4440 = vmatprep.subr.bf16.mxu0 0
    %4441 = vmatpush2.bf16.msra.mxu0 %v4393
    %4442 = vmatprep.subr.bf16.mxu0 0
    %4443 = vmatpush2.bf16.msra.mxu0 %v4392
    %4444 = vmatprep.subr.bf16.mxu0 0
    %4445 = vmatpush2.bf16.msra.mxu0 %v4391
    %4446 = vmatprep.subr.bf16.mxu0 0
    %4447 = vmatpush2.bf16.msra.mxu0 %v4390
    %4448 = vmatprep.subr.bf16.mxu0 0
    %4449 = vmatpush2.bf16.msra.mxu0 %v4389
    %4450 = vmatprep.subr.bf16.mxu0 0
    %4451 = vmatpush2.bf16.msra.mxu0 %v4388
    %4452 = vmatprep.subr.bf16.mxu0 0
    %4453 = vmatpush2.bf16.msra.mxu0 %v4387
    %4454 = vmatprep.subr.bf16.mxu0 0
    %4455 = vmatpush2.bf16.msra.mxu0 %v4386
    %4456 = vmatprep.mubr.bf16.mxu0 %v4242
    %4457 = vmatmul.mubr.bf16.gmra.mxu0 %v4239
    %v4458 = vpop.f32.mrf.mxu0
    %v4459 = vadd.f32 0.0, %v4458
    %v4460 = vpop.f32.mrf.mxu0
    %v4461 = vpop.f32.mrf.mxu0
    %v4462 = vpop.f32.mrf.mxu0
    %4463 = vdwg.mxu0
    %4464 = vmatprep.subr.bf16.mxu0 0
    %4465 = vmatpush1.bf16.msra.mxu0 0
    %4466 = vmatprep.subr.bf16.mxu0 0
    %4467 = vmatpush1.bf16.msra.mxu0 0
    %4468 = vmatprep.subr.bf16.mxu0 0
    %4469 = vmatpush1.bf16.msra.mxu0 %v4399
    %4470 = vmatprep.subr.bf16.mxu0 0
    %4471 = vmatpush1.bf16.msra.mxu0 %v4398
    %4472 = vmatprep.subr.bf16.mxu0 0
    %4473 = vmatpush1.bf16.msra.mxu0 %v4397
    %4474 = vmatprep.subr.bf16.mxu0 0
    %4475 = vmatpush1.bf16.msra.mxu0 %v4396
    %4476 = vmatprep.subr.bf16.mxu0 0
    %4477 = vmatpush1.bf16.msra.mxu0 %v4395
    %4478 = vmatprep.subr.bf16.mxu0 0
    %4479 = vmatpush1.bf16.msra.mxu0 %v4394
    %4480 = vmatprep.subr.bf16.mxu0 0
    %4481 = vmatpush2.bf16.msra.mxu0 0
    %4482 = vmatprep.subr.bf16.mxu0 0
    %4483 = vmatpush2.bf16.msra.mxu0 0
    %4484 = vmatprep.subr.bf16.mxu0 0
    %4485 = vmatpush2.bf16.msra.mxu0 0
    %4486 = vmatprep.subr.bf16.mxu0 0
    %4487 = vmatpush2.bf16.msra.mxu0 0
    %4488 = vmatprep.subr.bf16.mxu0 0
    %4489 = vmatpush2.bf16.msra.mxu0 0
    %4490 = vmatprep.subr.bf16.mxu0 0
    %4491 = vmatpush2.bf16.msra.mxu0 0
    %4492 = vmatprep.subr.bf16.mxu0 0
    %4493 = vmatpush2.bf16.msra.mxu0 0
    %4494 = vmatprep.subr.bf16.mxu0 0
    %4495 = vmatpush2.bf16.msra.mxu0 0
    %4496 = vmatprep.mubr.bf16.mxu0 0
    %4497 = vmatmul.mubr.bf16.gmra.mxu0 %v4422
    %v4498 = vpop.f32.mrf.mxu0
    %v4499 = vadd.f32 %v4459, %v4498
    %v4500 = vpop.f32.mrf.mxu0
    %v4501 = vpop.f32.mrf.mxu0
    %v4502 = vpop.f32.mrf.mxu0
    %4503 = vdwg.mxu0
    %v4504 = vadd.f32 %v4205, %v4499
    %v4505 = vrot.slane %v3320, 5
    %v4506 = vrot.slane %v3321, 5
    %v4507 = vrot.slane %v3322, 5
    %4508 = vrot.lane.b32.xlu0 %v4206, 96
    %v4509 = vpop.permute.xlu0 %4508
    %4510 = vrot.lane.b32.xlu0 %v4207, 96
    %v4511 = vpop.permute.xlu0 %4510
    %4512 = vrot.lane.b32.xlu0 %v4208, 96
    %v4513 = vpop.permute.xlu0 %4512
    %v4514 = vsel %vm3344, %v4509, %v4511
    %v4515 = vsel %vm3344, %v4511, %v4513
    %v4516 = vrot.slane %v3323, 3
    %4517 = vrot.lane.b32.xlu0 %v4017, 64
    %v4518 = vpop.permute.xlu0 %4517
    %4519 = vrot.lane.b32.xlu0 %v4018, 64
    %v4520 = vpop.permute.xlu0 %4519
    %4521 = vrot.lane.b32.xlu0 %v4019, 64
    %v4522 = vpop.permute.xlu0 %4521
    %4523 = vrot.lane.b32.xlu0 %v4516, 64
    %v4524 = vpop.permute.xlu0 %4523
    %v4525 = vsel %vm3360, %v4518, %v4520
    %v4526 = vsel %vm3360, %v4520, %v4522
    %v4527 = vsel %vm3360, %v4522, %v4524
    %v4530 = vsel %vm3364, %v4505, %v4514
    %v4533 = vsel %vm3364, %v4506, %v4515
    %v4536 = vsel %vm3364, %v4507, %v4513
    %v4538 = vsel %vm2503, %v4530, %v4525
    %v4541 = vsel %vm2503, %v4533, %v4526
    %v4544 = vsel %vm2503, %v4536, %v4527
    %4545 = vrot.lane.b32.xlu0 %v4378, 96
    %v4546 = vpop.permute.xlu0 %4545
    %4547 = vrot.lane.b32.xlu0 %v4379, 96
    %v4548 = vpop.permute.xlu0 %4547
    %4549 = vrot.lane.b32.xlu0 %v4380, 96
    %v4550 = vpop.permute.xlu0 %4549
    %4551 = vrot.lane.b32.xlu0 %v4381, 96
    %v4552 = vpop.permute.xlu0 %4551
    %4553 = vrot.lane.b32.xlu0 %v4382, 96
    %v4554 = vpop.permute.xlu0 %4553
    %4555 = vrot.lane.b32.xlu0 %v4383, 96
    %v4556 = vpop.permute.xlu0 %4555
    %4557 = vrot.lane.b32.xlu0 %v4384, 96
    %v4558 = vpop.permute.xlu0 %4557
    %4559 = vrot.lane.b32.xlu0 %v4385, 96
    %v4560 = vpop.permute.xlu0 %4559
    %4561 = vrot.lane.b32.xlu0 %v4386, 96
    %v4562 = vpop.permute.xlu0 %4561
    %4563 = vrot.lane.b32.xlu0 %v4387, 96
    %v4564 = vpop.permute.xlu0 %4563
    %4565 = vrot.lane.b32.xlu0 %v4388, 96
    %v4566 = vpop.permute.xlu0 %4565
    %4567 = vrot.lane.b32.xlu0 %v4389, 96
    %v4568 = vpop.permute.xlu0 %4567
    %4569 = vrot.lane.b32.xlu0 %v4390, 96
    %v4570 = vpop.permute.xlu0 %4569
    %4571 = vrot.lane.b32.xlu0 %v4391, 96
    %v4572 = vpop.permute.xlu0 %4571
    %4573 = vrot.lane.b32.xlu0 %v4392, 96
    %v4574 = vpop.permute.xlu0 %4573
    %4575 = vrot.lane.b32.xlu0 %v4393, 96
    %v4576 = vpop.permute.xlu0 %4575
    %4577 = vrot.lane.b32.xlu0 %v4394, 96
    %v4578 = vpop.permute.xlu0 %4577
    %4579 = vrot.lane.b32.xlu0 %v4395, 96
    %v4580 = vpop.permute.xlu0 %4579
    %4581 = vrot.lane.b32.xlu0 %v4396, 96
    %v4582 = vpop.permute.xlu0 %4581
    %4583 = vrot.lane.b32.xlu0 %v4397, 96
    %v4584 = vpop.permute.xlu0 %4583
    %4585 = vrot.lane.b32.xlu0 %v4398, 96
    %v4586 = vpop.permute.xlu0 %4585
    %4587 = vrot.lane.b32.xlu0 %v4399, 96
    %v4588 = vpop.permute.xlu0 %4587
    %v4611 = vsel %vm3642, %v4544, 0
    %4613 = vmatprep.subr.bf16.mxu0 0
    %4614 = vmatpush1.bf16.msra.mxu0 %v4560
    %4615 = vmatprep.subr.bf16.mxu0 0
    %4616 = vmatpush1.bf16.msra.mxu0 %v4558
    %4617 = vmatprep.subr.bf16.mxu0 0
    %4618 = vmatpush1.bf16.msra.mxu0 %v4556
    %4619 = vmatprep.subr.bf16.mxu0 0
    %4620 = vmatpush1.bf16.msra.mxu0 %v4554
    %4621 = vmatprep.subr.bf16.mxu0 0
    %4622 = vmatpush1.bf16.msra.mxu0 %v4552
    %4623 = vmatprep.subr.bf16.mxu0 0
    %4624 = vmatpush1.bf16.msra.mxu0 %v4550
    %4625 = vmatprep.subr.bf16.mxu0 0
    %4626 = vmatpush1.bf16.msra.mxu0 %v4548
    %4627 = vmatprep.subr.bf16.mxu0 0
    %4628 = vmatpush1.bf16.msra.mxu0 %v4546
    %4629 = vmatprep.subr.bf16.mxu0 0
    %4630 = vmatpush2.bf16.msra.mxu0 %v4576
    %4631 = vmatprep.subr.bf16.mxu0 0
    %4632 = vmatpush2.bf16.msra.mxu0 %v4574
    %4633 = vmatprep.subr.bf16.mxu0 0
    %4634 = vmatpush2.bf16.msra.mxu0 %v4572
    %4635 = vmatprep.subr.bf16.mxu0 0
    %4636 = vmatpush2.bf16.msra.mxu0 %v4570
    %4637 = vmatprep.subr.bf16.mxu0 0
    %4638 = vmatpush2.bf16.msra.mxu0 %v4568
    %4639 = vmatprep.subr.bf16.mxu0 0
    %4640 = vmatpush2.bf16.msra.mxu0 %v4566
    %4641 = vmatprep.subr.bf16.mxu0 0
    %4642 = vmatpush2.bf16.msra.mxu0 %v4564
    %4643 = vmatprep.subr.bf16.mxu0 0
    %4644 = vmatpush2.bf16.msra.mxu0 %v4562
    %4645 = vmatprep.mubr.bf16.mxu0 %v4541
    %4646 = vmatmul.mubr.bf16.gmra.mxu0 %v4538
    %v4647 = vpop.f32.mrf.mxu0
    %v4648 = vadd.f32 0.0, %v4647
    %v4649 = vpop.f32.mrf.mxu0
    %v4650 = vpop.f32.mrf.mxu0
    %v4651 = vpop.f32.mrf.mxu0
    %4652 = vdwg.mxu0
    %4653 = vmatprep.subr.bf16.mxu0 0
    %4654 = vmatpush1.bf16.msra.mxu0 0
    %4655 = vmatprep.subr.bf16.mxu0 0
    %4656 = vmatpush1.bf16.msra.mxu0 0
    %4657 = vmatprep.subr.bf16.mxu0 0
    %4658 = vmatpush1.bf16.msra.mxu0 %v4588
    %4659 = vmatprep.subr.bf16.mxu0 0
    %4660 = vmatpush1.bf16.msra.mxu0 %v4586
    %4661 = vmatprep.subr.bf16.mxu0 0
    %4662 = vmatpush1.bf16.msra.mxu0 %v4584
    %4663 = vmatprep.subr.bf16.mxu0 0
    %4664 = vmatpush1.bf16.msra.mxu0 %v4582
    %4665 = vmatprep.subr.bf16.mxu0 0
    %4666 = vmatpush1.bf16.msra.mxu0 %v4580
    %4667 = vmatprep.subr.bf16.mxu0 0
    %4668 = vmatpush1.bf16.msra.mxu0 %v4578
    %4669 = vmatprep.subr.bf16.mxu0 0
    %4670 = vmatpush2.bf16.msra.mxu0 0
    %4671 = vmatprep.subr.bf16.mxu0 0
    %4672 = vmatpush2.bf16.msra.mxu0 0
    %4673 = vmatprep.subr.bf16.mxu0 0
    %4674 = vmatpush2.bf16.msra.mxu0 0
    %4675 = vmatprep.subr.bf16.mxu0 0
    %4676 = vmatpush2.bf16.msra.mxu0 0
    %4677 = vmatprep.subr.bf16.mxu0 0
    %4678 = vmatpush2.bf16.msra.mxu0 0
    %4679 = vmatprep.subr.bf16.mxu0 0
    %4680 = vmatpush2.bf16.msra.mxu0 0
    %4681 = vmatprep.subr.bf16.mxu0 0
    %4682 = vmatpush2.bf16.msra.mxu0 0
    %4683 = vmatprep.subr.bf16.mxu0 0
    %4684 = vmatpush2.bf16.msra.mxu0 0
    %4685 = vmatprep.mubr.bf16.mxu0 0
    %4686 = vmatmul.mubr.bf16.gmra.mxu0 %v4611
    %v4687 = vpop.f32.mrf.mxu0
    %v4688 = vadd.f32 %v4648, %v4687
    %v4689 = vpop.f32.mrf.mxu0
    %v4690 = vpop.f32.mrf.mxu0
    %v4691 = vpop.f32.mrf.mxu0
    %4692 = vdwg.mxu0
    %v4693 = vadd.f32 %v4504, %v4688
    %4694 = vrot.lane.b32.xlu0 %v4505, 96
    %v4695 = vpop.permute.xlu0 %4694
    %4696 = vrot.lane.b32.xlu0 %v4506, 96
    %v4697 = vpop.permute.xlu0 %4696
    %4698 = vrot.lane.b32.xlu0 %v4507, 96
    %v4699 = vpop.permute.xlu0 %4698
    %v4700 = vsel %vm3344, %v4695, %v4697
    %v4701 = vsel %vm3344, %v4697, %v4699
    %v4702 = vrot.slane %v3323, 4
    %4703 = vrot.lane.b32.xlu0 %v4206, 64
    %v4704 = vpop.permute.xlu0 %4703
    %4705 = vrot.lane.b32.xlu0 %v4207, 64
    %v4706 = vpop.permute.xlu0 %4705
    %4707 = vrot.lane.b32.xlu0 %v4208, 64
    %v4708 = vpop.permute.xlu0 %4707
    %4709 = vrot.lane.b32.xlu0 %v4702, 64
    %v4710 = vpop.permute.xlu0 %4709
    %v4711 = vsel %vm3360, %v4704, %v4706
    %v4712 = vsel %vm3360, %v4706, %v4708
    %v4713 = vsel %vm3360, %v4708, %v4710
    %v4716 = vsel %vm3364, %v3348, %v4700
    %v4719 = vsel %vm3364, %v3349, %v4701
    %v4722 = vsel %vm3364, %v3350, %v4699
    %v4724 = vsel %vm2503, %v4716, %v4711
    %v4727 = vsel %vm2503, %v4719, %v4712
    %v4730 = vsel %vm2503, %v4722, %v4713
    %4731 = vrot.lane.b32.xlu0 %v4378, 64
    %v4732 = vpop.permute.xlu0 %4731
    %4733 = vrot.lane.b32.xlu0 %v4379, 64
    %v4734 = vpop.permute.xlu0 %4733
    %4735 = vrot.lane.b32.xlu0 %v4380, 64
    %v4736 = vpop.permute.xlu0 %4735
    %4737 = vrot.lane.b32.xlu0 %v4381, 64
    %v4738 = vpop.permute.xlu0 %4737
    %4739 = vrot.lane.b32.xlu0 %v4382, 64
    %v4740 = vpop.permute.xlu0 %4739
    %4741 = vrot.lane.b32.xlu0 %v4383, 64
    %v4742 = vpop.permute.xlu0 %4741
    %4743 = vrot.lane.b32.xlu0 %v4384, 64
    %v4744 = vpop.permute.xlu0 %4743
    %4745 = vrot.lane.b32.xlu0 %v4385, 64
    %v4746 = vpop.permute.xlu0 %4745
    %4747 = vrot.lane.b32.xlu0 %v4386, 64
    %v4748 = vpop.permute.xlu0 %4747
    %4749 = vrot.lane.b32.xlu0 %v4387, 64
    %v4750 = vpop.permute.xlu0 %4749
    %4751 = vrot.lane.b32.xlu0 %v4388, 64
    %v4752 = vpop.permute.xlu0 %4751
    %4753 = vrot.lane.b32.xlu0 %v4389, 64
    %v4754 = vpop.permute.xlu0 %4753
    %4755 = vrot.lane.b32.xlu0 %v4390, 64
    %v4756 = vpop.permute.xlu0 %4755
    %4757 = vrot.lane.b32.xlu0 %v4391, 64
    %v4758 = vpop.permute.xlu0 %4757
    %4759 = vrot.lane.b32.xlu0 %v4392, 64
    %v4760 = vpop.permute.xlu0 %4759
    %4761 = vrot.lane.b32.xlu0 %v4393, 64
    %v4762 = vpop.permute.xlu0 %4761
    %4763 = vrot.lane.b32.xlu0 %v4394, 64
    %v4764 = vpop.permute.xlu0 %4763
    %4765 = vrot.lane.b32.xlu0 %v4395, 64
    %v4766 = vpop.permute.xlu0 %4765
    %4767 = vrot.lane.b32.xlu0 %v4396, 64
    %v4768 = vpop.permute.xlu0 %4767
    %4769 = vrot.lane.b32.xlu0 %v4397, 64
    %v4770 = vpop.permute.xlu0 %4769
    %4771 = vrot.lane.b32.xlu0 %v4398, 64
    %v4772 = vpop.permute.xlu0 %4771
    %4773 = vrot.lane.b32.xlu0 %v4399, 64
    %v4774 = vpop.permute.xlu0 %4773
    %v4797 = vsel %vm3642, %v4730, 0
    %4799 = vmatprep.subr.bf16.mxu0 0
    %4800 = vmatpush1.bf16.msra.mxu0 %v4746
    %4801 = vmatprep.subr.bf16.mxu0 0
    %4802 = vmatpush1.bf16.msra.mxu0 %v4744
    %4803 = vmatprep.subr.bf16.mxu0 0
    %4804 = vmatpush1.bf16.msra.mxu0 %v4742
    %4805 = vmatprep.subr.bf16.mxu0 0
    %4806 = vmatpush1.bf16.msra.mxu0 %v4740
    %4807 = vmatprep.subr.bf16.mxu0 0
    %4808 = vmatpush1.bf16.msra.mxu0 %v4738
    %4809 = vmatprep.subr.bf16.mxu0 0
    %4810 = vmatpush1.bf16.msra.mxu0 %v4736
    %4811 = vmatprep.subr.bf16.mxu0 0
    %4812 = vmatpush1.bf16.msra.mxu0 %v4734
    %4813 = vmatprep.subr.bf16.mxu0 0
    %4814 = vmatpush1.bf16.msra.mxu0 %v4732
    %4815 = vmatprep.subr.bf16.mxu0 0
    %4816 = vmatpush2.bf16.msra.mxu0 %v4762
    %4817 = vmatprep.subr.bf16.mxu0 0
    %4818 = vmatpush2.bf16.msra.mxu0 %v4760
    %4819 = vmatprep.subr.bf16.mxu0 0
    %4820 = vmatpush2.bf16.msra.mxu0 %v4758
    %4821 = vmatprep.subr.bf16.mxu0 0
    %4822 = vmatpush2.bf16.msra.mxu0 %v4756
    %4823 = vmatprep.subr.bf16.mxu0 0
    %4824 = vmatpush2.bf16.msra.mxu0 %v4754
    %4825 = vmatprep.subr.bf16.mxu0 0
    %4826 = vmatpush2.bf16.msra.mxu0 %v4752
    %4827 = vmatprep.subr.bf16.mxu0 0
    %4828 = vmatpush2.bf16.msra.mxu0 %v4750
    %4829 = vmatprep.subr.bf16.mxu0 0
    %4830 = vmatpush2.bf16.msra.mxu0 %v4748
    %4831 = vmatprep.mubr.bf16.mxu0 %v4727
    %4832 = vmatmul.mubr.bf16.gmra.mxu0 %v4724
    %v4833 = vpop.f32.mrf.mxu0
    %v4834 = vadd.f32 0.0, %v4833
    %v4835 = vpop.f32.mrf.mxu0
    %v4836 = vpop.f32.mrf.mxu0
    %v4837 = vpop.f32.mrf.mxu0
    %4838 = vdwg.mxu0
    %4839 = vmatprep.subr.bf16.mxu0 0
    %4840 = vmatpush1.bf16.msra.mxu0 0
    %4841 = vmatprep.subr.bf16.mxu0 0
    %4842 = vmatpush1.bf16.msra.mxu0 0
    %4843 = vmatprep.subr.bf16.mxu0 0
    %4844 = vmatpush1.bf16.msra.mxu0 %v4774
    %4845 = vmatprep.subr.bf16.mxu0 0
    %4846 = vmatpush1.bf16.msra.mxu0 %v4772
    %4847 = vmatprep.subr.bf16.mxu0 0
    %4848 = vmatpush1.bf16.msra.mxu0 %v4770
    %4849 = vmatprep.subr.bf16.mxu0 0
    %4850 = vmatpush1.bf16.msra.mxu0 %v4768
    %4851 = vmatprep.subr.bf16.mxu0 0
    %4852 = vmatpush1.bf16.msra.mxu0 %v4766
    %4853 = vmatprep.subr.bf16.mxu0 0
    %4854 = vmatpush1.bf16.msra.mxu0 %v4764
    %4855 = vmatprep.subr.bf16.mxu0 0
    %4856 = vmatpush2.bf16.msra.mxu0 0
    %4857 = vmatprep.subr.bf16.mxu0 0
    %4858 = vmatpush2.bf16.msra.mxu0 0
    %4859 = vmatprep.subr.bf16.mxu0 0
    %4860 = vmatpush2.bf16.msra.mxu0 0
    %4861 = vmatprep.subr.bf16.mxu0 0
    %4862 = vmatpush2.bf16.msra.mxu0 0
    %4863 = vmatprep.subr.bf16.mxu0 0
    %4864 = vmatpush2.bf16.msra.mxu0 0
    %4865 = vmatprep.subr.bf16.mxu0 0
    %4866 = vmatpush2.bf16.msra.mxu0 0
    %4867 = vmatprep.subr.bf16.mxu0 0
    %4868 = vmatpush2.bf16.msra.mxu0 0
    %4869 = vmatprep.subr.bf16.mxu0 0
    %4870 = vmatpush2.bf16.msra.mxu0 0
    %4871 = vmatprep.mubr.bf16.mxu0 0
    %4872 = vmatmul.mubr.bf16.gmra.mxu0 %v4797
    %v4873 = vpop.f32.mrf.mxu0
    %v4874 = vadd.f32 %v4834, %v4873
    %v4875 = vpop.f32.mrf.mxu0
    %v4876 = vpop.f32.mrf.mxu0
    %v4877 = vpop.f32.mrf.mxu0
    %4878 = vdwg.mxu0
    %v4879 = vadd.f32 %v4693, %v4874
    %4880 = vrot.lane.b32.xlu0 %v3348, 96
    %v4881 = vpop.permute.xlu0 %4880
    %4882 = vrot.lane.b32.xlu0 %v3349, 96
    %v4883 = vpop.permute.xlu0 %4882
    %4884 = vrot.lane.b32.xlu0 %v3350, 96
    %v4885 = vpop.permute.xlu0 %4884
    %v4886 = vsel %vm3344, %v4881, %v4883
    %v4887 = vsel %vm3344, %v4883, %v4885
    %v4888 = vrot.slane %v3323, 5
    %4889 = vrot.lane.b32.xlu0 %v4505, 64
    %v4890 = vpop.permute.xlu0 %4889
    %4891 = vrot.lane.b32.xlu0 %v4506, 64
    %v4892 = vpop.permute.xlu0 %4891
    %4893 = vrot.lane.b32.xlu0 %v4507, 64
    %v4894 = vpop.permute.xlu0 %4893
    %4895 = vrot.lane.b32.xlu0 %v4888, 64
    %v4896 = vpop.permute.xlu0 %4895
    %v4897 = vsel %vm3360, %v4890, %v4892
    %v4898 = vsel %vm3360, %v4892, %v4894
    %v4899 = vsel %vm3360, %v4894, %v4896
    %v4902 = vsel %vm3364, %v3335, %v4886
    %v4905 = vsel %vm3364, %v3336, %v4887
    %v4908 = vsel %vm3364, %v3337, %v4885
    %v4910 = vsel %vm2503, %v4902, %v4897
    %v4913 = vsel %vm2503, %v4905, %v4898
    %v4916 = vsel %vm2503, %v4908, %v4899
    %4917 = vrot.lane.b32.xlu0 %v4378, 32
    %v4918 = vpop.permute.xlu0 %4917
    %4919 = vrot.lane.b32.xlu0 %v4379, 32
    %v4920 = vpop.permute.xlu0 %4919
    %4921 = vrot.lane.b32.xlu0 %v4380, 32
    %v4922 = vpop.permute.xlu0 %4921
    %4923 = vrot.lane.b32.xlu0 %v4381, 32
    %v4924 = vpop.permute.xlu0 %4923
    %4925 = vrot.lane.b32.xlu0 %v4382, 32
    %v4926 = vpop.permute.xlu0 %4925
    %4927 = vrot.lane.b32.xlu0 %v4383, 32
    %v4928 = vpop.permute.xlu0 %4927
    %4929 = vrot.lane.b32.xlu0 %v4384, 32
    %v4930 = vpop.permute.xlu0 %4929
    %4931 = vrot.lane.b32.xlu0 %v4385, 32
    %v4932 = vpop.permute.xlu0 %4931
    %4933 = vrot.lane.b32.xlu0 %v4386, 32
    %v4934 = vpop.permute.xlu0 %4933
    %4935 = vrot.lane.b32.xlu0 %v4387, 32
    %v4936 = vpop.permute.xlu0 %4935
    %4937 = vrot.lane.b32.xlu0 %v4388, 32
    %v4938 = vpop.permute.xlu0 %4937
    %4939 = vrot.lane.b32.xlu0 %v4389, 32
    %v4940 = vpop.permute.xlu0 %4939
    %4941 = vrot.lane.b32.xlu0 %v4390, 32
    %v4942 = vpop.permute.xlu0 %4941
    %4943 = vrot.lane.b32.xlu0 %v4391, 32
    %v4944 = vpop.permute.xlu0 %4943
    %4945 = vrot.lane.b32.xlu0 %v4392, 32
    %v4946 = vpop.permute.xlu0 %4945
    %4947 = vrot.lane.b32.xlu0 %v4393, 32
    %v4948 = vpop.permute.xlu0 %4947
    %4949 = vrot.lane.b32.xlu0 %v4394, 32
    %v4950 = vpop.permute.xlu0 %4949
    %4951 = vrot.lane.b32.xlu0 %v4395, 32
    %v4952 = vpop.permute.xlu0 %4951
    %4953 = vrot.lane.b32.xlu0 %v4396, 32
    %v4954 = vpop.permute.xlu0 %4953
    %4955 = vrot.lane.b32.xlu0 %v4397, 32
    %v4956 = vpop.permute.xlu0 %4955
    %4957 = vrot.lane.b32.xlu0 %v4398, 32
    %v4958 = vpop.permute.xlu0 %4957
    %4959 = vrot.lane.b32.xlu0 %v4399, 32
    %v4960 = vpop.permute.xlu0 %4959
    %v4983 = vsel %vm3642, %v4916, 0
    %4985 = vmatprep.subr.bf16.mxu0 0
    %4986 = vmatpush1.bf16.msra.mxu0 %v4932
    %4987 = vmatprep.subr.bf16.mxu0 0
    %4988 = vmatpush1.bf16.msra.mxu0 %v4930
    %4989 = vmatprep.subr.bf16.mxu0 0
    %4990 = vmatpush1.bf16.msra.mxu0 %v4928
    %4991 = vmatprep.subr.bf16.mxu0 0
    %4992 = vmatpush1.bf16.msra.mxu0 %v4926
    %4993 = vmatprep.subr.bf16.mxu0 0
    %4994 = vmatpush1.bf16.msra.mxu0 %v4924
    %4995 = vmatprep.subr.bf16.mxu0 0
    %4996 = vmatpush1.bf16.msra.mxu0 %v4922
    %4997 = vmatprep.subr.bf16.mxu0 0
    %4998 = vmatpush1.bf16.msra.mxu0 %v4920
    %4999 = vmatprep.subr.bf16.mxu0 0
    %5000 = vmatpush1.bf16.msra.mxu0 %v4918
    %5001 = vmatprep.subr.bf16.mxu0 0
    %5002 = vmatpush2.bf16.msra.mxu0 %v4948
    %5003 = vmatprep.subr.bf16.mxu0 0
    %5004 = vmatpush2.bf16.msra.mxu0 %v4946
    %5005 = vmatprep.subr.bf16.mxu0 0
    %5006 = vmatpush2.bf16.msra.mxu0 %v4944
    %5007 = vmatprep.subr.bf16.mxu0 0
    %5008 = vmatpush2.bf16.msra.mxu0 %v4942
    %5009 = vmatprep.subr.bf16.mxu0 0
    %5010 = vmatpush2.bf16.msra.mxu0 %v4940
    %5011 = vmatprep.subr.bf16.mxu0 0
    %5012 = vmatpush2.bf16.msra.mxu0 %v4938
    %5013 = vmatprep.subr.bf16.mxu0 0
    %5014 = vmatpush2.bf16.msra.mxu0 %v4936
    %5015 = vmatprep.subr.bf16.mxu0 0
    %5016 = vmatpush2.bf16.msra.mxu0 %v4934
    %5017 = vmatprep.mubr.bf16.mxu0 %v4913
    %5018 = vmatmul.mubr.bf16.gmra.mxu0 %v4910
    %v5019 = vpop.f32.mrf.mxu0
    %v5020 = vadd.f32 0.0, %v5019
    %v5021 = vpop.f32.mrf.mxu0
    %v5022 = vpop.f32.mrf.mxu0
    %v5023 = vpop.f32.mrf.mxu0
    %5024 = vdwg.mxu0
    %5025 = vmatprep.subr.bf16.mxu0 0
    %5026 = vmatpush1.bf16.msra.mxu0 0
    %5027 = vmatprep.subr.bf16.mxu0 0
    %5028 = vmatpush1.bf16.msra.mxu0 0
    %5029 = vmatprep.subr.bf16.mxu0 0
    %5030 = vmatpush1.bf16.msra.mxu0 %v4960
    %5031 = vmatprep.subr.bf16.mxu0 0
    %5032 = vmatpush1.bf16.msra.mxu0 %v4958
    %5033 = vmatprep.subr.bf16.mxu0 0
    %5034 = vmatpush1.bf16.msra.mxu0 %v4956
    %5035 = vmatprep.subr.bf16.mxu0 0
    %5036 = vmatpush1.bf16.msra.mxu0 %v4954
    %5037 = vmatprep.subr.bf16.mxu0 0
    %5038 = vmatpush1.bf16.msra.mxu0 %v4952
    %5039 = vmatprep.subr.bf16.mxu0 0
    %5040 = vmatpush1.bf16.msra.mxu0 %v4950
    %5041 = vmatprep.subr.bf16.mxu0 0
    %5042 = vmatpush2.bf16.msra.mxu0 0
    %5043 = vmatprep.subr.bf16.mxu0 0
    %5044 = vmatpush2.bf16.msra.mxu0 0
    %5045 = vmatprep.subr.bf16.mxu0 0
    %5046 = vmatpush2.bf16.msra.mxu0 0
    %5047 = vmatprep.subr.bf16.mxu0 0
    %5048 = vmatpush2.bf16.msra.mxu0 0
    %5049 = vmatprep.subr.bf16.mxu0 0
    %5050 = vmatpush2.bf16.msra.mxu0 0
    %5051 = vmatprep.subr.bf16.mxu0 0
    %5052 = vmatpush2.bf16.msra.mxu0 0
    %5053 = vmatprep.subr.bf16.mxu0 0
    %5054 = vmatpush2.bf16.msra.mxu0 0
    %5055 = vmatprep.subr.bf16.mxu0 0
    %5056 = vmatpush2.bf16.msra.mxu0 0
    %5057 = vmatprep.mubr.bf16.mxu0 0
    %5058 = vmatmul.mubr.bf16.gmra.mxu0 %v4983
    %v5059 = vpop.f32.mrf.mxu0
    %v5060 = vadd.f32 %v5020, %v5059
    %v5061 = vpop.f32.mrf.mxu0
    %v5062 = vpop.f32.mrf.mxu0
    %v5063 = vpop.f32.mrf.mxu0
    %5064 = vdwg.mxu0
    %v5065 = vadd.f32 %v4879, %v5060
    %v5069 = vrot.slane %v3324, 7
    %v5070 = vrot.slane %v3325, 7
    %v5071 = vrot.slane %v3326, 7
    %5072 = vrot.lane.b32.xlu0 %v5069, 96
    %v5073 = vpop.permute.xlu0 %5072
    %5074 = vrot.lane.b32.xlu0 %v5070, 96
    %v5075 = vpop.permute.xlu0 %5074
    %5076 = vrot.lane.b32.xlu0 %v5071, 96
    %v5077 = vpop.permute.xlu0 %5076
    %v5078 = vsel %vm3344, %v5073, %v5075
    %v5079 = vsel %vm3344, %v5075, %v5077
    %v5081 = vrot.slane %v3324, 6
    %v5082 = vrot.slane %v3325, 6
    %v5083 = vrot.slane %v3326, 6
    %v5084 = vrot.slane %v3327, 6
    %5085 = vrot.lane.b32.xlu0 %v5081, 64
    %v5086 = vpop.permute.xlu0 %5085
    %5087 = vrot.lane.b32.xlu0 %v5082, 64
    %v5088 = vpop.permute.xlu0 %5087
    %5089 = vrot.lane.b32.xlu0 %v5083, 64
    %v5090 = vpop.permute.xlu0 %5089
    %5091 = vrot.lane.b32.xlu0 %v5084, 64
    %v5092 = vpop.permute.xlu0 %5091
    %v5093 = vsel %vm3360, %v5086, %v5088
    %v5094 = vsel %vm3360, %v5088, %v5090
    %v5095 = vsel %vm3360, %v5090, %v5092
    %v5098 = vsel %vm3364, %v3324, %v5078
    %v5101 = vsel %vm3364, %v3325, %v5079
    %v5104 = vsel %vm3364, %v3326, %v5077
    %v5106 = vsel %vm2503, %v5098, %v5093
    %v5109 = vsel %vm2503, %v5101, %v5094
    %v5112 = vsel %vm2503, %v5104, %v5095
    %v5113 = vld [vmem:[%s2 + $0x8] sm:$0xf]
    %v5114 = vld [vmem:[%s2 + $0x20] sm:$0xf]
    %v5115 = vld [vmem:[%s2 + $0x38] sm:$0xf]
    %v5116 = vld [vmem:[%s2 + $0x50] sm:$0xf]
    %v5117 = vld [vmem:[%s2 + $0x68] sm:$0xf]
    %v5118 = vld [vmem:[%s2 + $0x80] sm:$0xf]
    %v5119 = vld [vmem:[%s2 + $0x98] sm:$0xf]
    %v5120 = vld [vmem:[%s2 + $0xb0] sm:$0xf]
    %v5121 = vld [vmem:[%s2 + $0xc8] sm:$0xf]
    %v5122 = vld [vmem:[%s2 + $0xe0] sm:$0xf]
    %v5123 = vld [vmem:[%s2 + $0xf8] sm:$0xf]
    %v5124 = vld [vmem:[%s2 + $0x110] sm:$0xf]
    %v5125 = vld [vmem:[%s2 + $0x128] sm:$0xf]
    %v5126 = vld [vmem:[%s2 + $0x140] sm:$0xf]
    %v5127 = vld [vmem:[%s2 + $0x158] sm:$0xf]
    %v5128 = vld [vmem:[%s2 + $0x170] sm:$0xf]
    %v5129 = vld [vmem:[%s2 + $0x188] sm:$0xf]
    %v5130 = vld [vmem:[%s2 + $0x1a0] sm:$0xf]
    %v5131 = vld [vmem:[%s2 + $0x1b8] sm:$0xf]
    %v5132 = vld [vmem:[%s2 + $0x1d0] sm:$0xf]
    %v5133 = vld [vmem:[%s2 + $0x1e8] sm:$0xf]
    %v5134 = vld [vmem:[%s2 + $0x200] sm:$0xf]
    %v5135 = vld [vmem:[%s2 + $0x218] sm:$0xf]
    %v5136 = vld [vmem:[%s2 + $0x230] sm:$0xf]
    %v5137 = vld [vmem:[%s2 + $0x248] sm:$0xf]
    %v5138 = vld [vmem:[%s2 + $0x260] sm:$0xf]
    %v5139 = vld [vmem:[%s2 + $0x278] sm:$0xf]
    %v5140 = vld [vmem:[%s2 + $0x290] sm:$0xf]
    %v5141 = vld [vmem:[%s2 + $0x2a8] sm:$0xf]
    %v5142 = vld [vmem:[%s2 + $0x2c0] sm:$0xf]
    %v5143 = vld [vmem:[%s2 + $0x2d8] sm:$0xf]
    %v5144 = vld [vmem:[%s2 + $0x2f0] sm:$0xf]
    %v5145 = vld [vmem:[%s2 + $0x308] sm:$0xf]
    %v5146 = vld [vmem:[%s2 + $0x320] sm:$0xf]
    %v5147 = vld [vmem:[%s2 + $0x338] sm:$0xf]
    %v5148 = vld [vmem:[%s2 + $0x350] sm:$0xf]
    %v5149 = vld [vmem:[%s2 + $0x368] sm:$0xf]
    %v5150 = vld [vmem:[%s2 + $0x380] sm:$0xf]
    %v5151 = vld [vmem:[%s2 + $0x398] sm:$0xf]
    %v5152 = vld [vmem:[%s2 + $0x3b0] sm:$0xf]
    %v5153 = vld [vmem:[%s2 + $0x3c8] sm:$0xf]
    %v5154 = vld [vmem:[%s2 + $0x3e0] sm:$0xf]
    %v5155 = vld [vmem:[%s2 + $0x3f8] sm:$0xf]
    %v5156 = vld [vmem:[%s2 + $0x410] sm:$0xf]
    %v5201 = vunpack.c.l.b16 %v5113
    %v5202 = vunpack.c.l.b16 %v5114
    %v5203 = vunpack.c.l.b16 %v5115
    %v5204 = vunpack.c.l.b16 %v5116
    %v5205 = vunpack.c.l.b16 %v5117
    %v5206 = vunpack.c.l.b16 %v5118
    %v5207 = vunpack.c.l.b16 %v5119
    %v5208 = vunpack.c.l.b16 %v5120
    %v5209 = vunpack.c.l.b16 %v5121
    %v5210 = vunpack.c.l.b16 %v5122
    %v5211 = vunpack.c.l.b16 %v5123
    %v5212 = vunpack.c.l.b16 %v5124
    %v5213 = vunpack.c.l.b16 %v5125
    %v5214 = vunpack.c.l.b16 %v5126
    %v5215 = vunpack.c.l.b16 %v5127
    %v5216 = vunpack.c.l.b16 %v5128
    %v5217 = vunpack.c.l.b16 %v5129
    %v5218 = vunpack.c.l.b16 %v5130
    %v5219 = vunpack.c.l.b16 %v5131
    %v5220 = vunpack.c.l.b16 %v5132
    %v5221 = vunpack.c.l.b16 %v5133
    %v5222 = vunpack.c.l.b16 %v5134
    %v5223 = vunpack.c.l.b16 %v5135
    %v5224 = vunpack.c.l.b16 %v5136
    %v5225 = vunpack.c.l.b16 %v5137
    %v5226 = vunpack.c.l.b16 %v5138
    %v5227 = vunpack.c.l.b16 %v5139
    %v5228 = vunpack.c.l.b16 %v5140
    %v5229 = vunpack.c.l.b16 %v5141
    %v5230 = vunpack.c.l.b16 %v5142
    %v5231 = vunpack.c.l.b16 %v5143
    %v5232 = vunpack.c.l.b16 %v5144
    %v5233 = vunpack.c.l.b16 %v5145
    %v5234 = vunpack.c.l.b16 %v5146
    %v5235 = vunpack.c.l.b16 %v5147
    %v5236 = vunpack.c.l.b16 %v5148
    %v5237 = vunpack.c.l.b16 %v5149
    %v5238 = vunpack.c.l.b16 %v5150
    %v5239 = vunpack.c.l.b16 %v5151
    %v5240 = vunpack.c.l.b16 %v5152
    %v5241 = vunpack.c.l.b16 %v5153
    %v5242 = vunpack.c.l.b16 %v5154
    %v5243 = vunpack.c.l.b16 %v5155
    %v5244 = vunpack.c.l.b16 %v5156
    %v5245 = vpack.c.b16 %v5202, %v5201
    %v5246 = vpack.c.b16 %v5204, %v5203
    %v5247 = vpack.c.b16 %v5206, %v5205
    %v5248 = vpack.c.b16 %v5208, %v5207
    %v5249 = vpack.c.b16 %v5210, %v5209
    %v5250 = vpack.c.b16 %v5212, %v5211
    %v5251 = vpack.c.b16 %v5214, %v5213
    %v5252 = vpack.c.b16 %v5216, %v5215
    %v5253 = vpack.c.b16 %v5218, %v5217
    %v5254 = vpack.c.b16 %v5220, %v5219
    %v5255 = vpack.c.b16 %v5222, %v5221
    %v5256 = vpack.c.b16 %v5224, %v5223
    %v5257 = vpack.c.b16 %v5226, %v5225
    %v5258 = vpack.c.b16 %v5228, %v5227
    %v5259 = vpack.c.b16 %v5230, %v5229
    %v5260 = vpack.c.b16 %v5232, %v5231
    %v5261 = vpack.c.b16 %v5234, %v5233
    %v5262 = vpack.c.b16 %v5236, %v5235
    %v5263 = vpack.c.b16 %v5238, %v5237
    %v5264 = vpack.c.b16 %v5240, %v5239
    %v5265 = vpack.c.b16 %v5242, %v5241
    %v5266 = vpack.c.b16 %v5244, %v5243
    %v5289 = vsel %vm3642, %v5112, 0
    %5291 = vmatprep.subr.bf16.mxu0 0
    %5292 = vmatpush1.bf16.msra.mxu0 %v5252
    %5293 = vmatprep.subr.bf16.mxu0 0
    %5294 = vmatpush1.bf16.msra.mxu0 %v5251
    %5295 = vmatprep.subr.bf16.mxu0 0
    %5296 = vmatpush1.bf16.msra.mxu0 %v5250
    %5297 = vmatprep.subr.bf16.mxu0 0
    %5298 = vmatpush1.bf16.msra.mxu0 %v5249
    %5299 = vmatprep.subr.bf16.mxu0 0
    %5300 = vmatpush1.bf16.msra.mxu0 %v5248
    %5301 = vmatprep.subr.bf16.mxu0 0
    %5302 = vmatpush1.bf16.msra.mxu0 %v5247
    %5303 = vmatprep.subr.bf16.mxu0 0
    %5304 = vmatpush1.bf16.msra.mxu0 %v5246
    %5305 = vmatprep.subr.bf16.mxu0 0
    %5306 = vmatpush1.bf16.msra.mxu0 %v5245
    %5307 = vmatprep.subr.bf16.mxu0 0
    %5308 = vmatpush2.bf16.msra.mxu0 %v5260
    %5309 = vmatprep.subr.bf16.mxu0 0
    %5310 = vmatpush2.bf16.msra.mxu0 %v5259
    %5311 = vmatprep.subr.bf16.mxu0 0
    %5312 = vmatpush2.bf16.msra.mxu0 %v5258
    %5313 = vmatprep.subr.bf16.mxu0 0
    %5314 = vmatpush2.bf16.msra.mxu0 %v5257
    %5315 = vmatprep.subr.bf16.mxu0 0
    %5316 = vmatpush2.bf16.msra.mxu0 %v5256
    %5317 = vmatprep.subr.bf16.mxu0 0
    %5318 = vmatpush2.bf16.msra.mxu0 %v5255
    %5319 = vmatprep.subr.bf16.mxu0 0
    %5320 = vmatpush2.bf16.msra.mxu0 %v5254
    %5321 = vmatprep.subr.bf16.mxu0 0
    %5322 = vmatpush2.bf16.msra.mxu0 %v5253
    %5323 = vmatprep.mubr.bf16.mxu0 %v5109
    %5324 = vmatmul.mubr.bf16.gmra.mxu0 %v5106
    %v5325 = vpop.f32.mrf.mxu0
    %v5326 = vadd.f32 0.0, %v5325
    %v5327 = vpop.f32.mrf.mxu0
    %v5328 = vpop.f32.mrf.mxu0
    %v5329 = vpop.f32.mrf.mxu0
    %5330 = vdwg.mxu0
    %5331 = vmatprep.subr.bf16.mxu0 0
    %5332 = vmatpush1.bf16.msra.mxu0 0
    %5333 = vmatprep.subr.bf16.mxu0 0
    %5334 = vmatpush1.bf16.msra.mxu0 0
    %5335 = vmatprep.subr.bf16.mxu0 0
    %5336 = vmatpush1.bf16.msra.mxu0 %v5266
    %5337 = vmatprep.subr.bf16.mxu0 0
    %5338 = vmatpush1.bf16.msra.mxu0 %v5265
    %5339 = vmatprep.subr.bf16.mxu0 0
    %5340 = vmatpush1.bf16.msra.mxu0 %v5264
    %5341 = vmatprep.subr.bf16.mxu0 0
    %5342 = vmatpush1.bf16.msra.mxu0 %v5263
    %5343 = vmatprep.subr.bf16.mxu0 0
    %5344 = vmatpush1.bf16.msra.mxu0 %v5262
    %5345 = vmatprep.subr.bf16.mxu0 0
    %5346 = vmatpush1.bf16.msra.mxu0 %v5261
    %5347 = vmatprep.subr.bf16.mxu0 0
    %5348 = vmatpush2.bf16.msra.mxu0 0
    %5349 = vmatprep.subr.bf16.mxu0 0
    %5350 = vmatpush2.bf16.msra.mxu0 0
    %5351 = vmatprep.subr.bf16.mxu0 0
    %5352 = vmatpush2.bf16.msra.mxu0 0
    %5353 = vmatprep.subr.bf16.mxu0 0
    %5354 = vmatpush2.bf16.msra.mxu0 0
    %5355 = vmatprep.subr.bf16.mxu0 0
    %5356 = vmatpush2.bf16.msra.mxu0 0
    %5357 = vmatprep.subr.bf16.mxu0 0
    %5358 = vmatpush2.bf16.msra.mxu0 0
    %5359 = vmatprep.subr.bf16.mxu0 0
    %5360 = vmatpush2.bf16.msra.mxu0 0
    %5361 = vmatprep.subr.bf16.mxu0 0
    %5362 = vmatpush2.bf16.msra.mxu0 0
    %5363 = vmatprep.mubr.bf16.mxu0 0
    %5364 = vmatmul.mubr.bf16.gmra.mxu0 %v5289
    %v5365 = vpop.f32.mrf.mxu0
    %v5366 = vadd.f32 %v5326, %v5365
    %v5367 = vpop.f32.mrf.mxu0
    %v5368 = vpop.f32.mrf.mxu0
    %v5369 = vpop.f32.mrf.mxu0
    %5370 = vdwg.mxu0
    %v5371 = vadd.f32 %v5065, %v5366
    %v5372 = vrot.slane %v3324, 1
    %v5373 = vrot.slane %v3325, 1
    %v5374 = vrot.slane %v3326, 1
    %5375 = vrot.lane.b32.xlu0 %v3324, 96
    %v5376 = vpop.permute.xlu0 %5375
    %5377 = vrot.lane.b32.xlu0 %v3325, 96
    %v5378 = vpop.permute.xlu0 %5377
    %5379 = vrot.lane.b32.xlu0 %v3326, 96
    %v5380 = vpop.permute.xlu0 %5379
    %v5381 = vsel %vm3344, %v5376, %v5378
    %v5382 = vsel %vm3344, %v5378, %v5380
    %v5383 = vrot.slane %v3327, 7
    %5384 = vrot.lane.b32.xlu0 %v5069, 64
    %v5385 = vpop.permute.xlu0 %5384
    %5386 = vrot.lane.b32.xlu0 %v5070, 64
    %v5387 = vpop.permute.xlu0 %5386
    %5388 = vrot.lane.b32.xlu0 %v5071, 64
    %v5389 = vpop.permute.xlu0 %5388
    %5390 = vrot.lane.b32.xlu0 %v5383, 64
    %v5391 = vpop.permute.xlu0 %5390
    %v5392 = vsel %vm3360, %v5385, %v5387
    %v5393 = vsel %vm3360, %v5387, %v5389
    %v5394 = vsel %vm3360, %v5389, %v5391
    %v5397 = vsel %vm3364, %v5372, %v5381
    %v5400 = vsel %vm3364, %v5373, %v5382
    %v5403 = vsel %vm3364, %v5374, %v5380
    %v5405 = vsel %vm2503, %v5397, %v5392
    %v5408 = vsel %vm2503, %v5400, %v5393
    %v5411 = vsel %vm2503, %v5403, %v5394
    %5412 = vrot.lane.b32.xlu0 %v5245, 96
    %v5413 = vpop.permute.xlu0 %5412
    %5414 = vrot.lane.b32.xlu0 %v5246, 96
    %v5415 = vpop.permute.xlu0 %5414
    %5416 = vrot.lane.b32.xlu0 %v5247, 96
    %v5417 = vpop.permute.xlu0 %5416
    %5418 = vrot.lane.b32.xlu0 %v5248, 96
    %v5419 = vpop.permute.xlu0 %5418
    %5420 = vrot.lane.b32.xlu0 %v5249, 96
    %v5421 = vpop.permute.xlu0 %5420
    %5422 = vrot.lane.b32.xlu0 %v5250, 96
    %v5423 = vpop.permute.xlu0 %5422
    %5424 = vrot.lane.b32.xlu0 %v5251, 96
    %v5425 = vpop.permute.xlu0 %5424
    %5426 = vrot.lane.b32.xlu0 %v5252, 96
    %v5427 = vpop.permute.xlu0 %5426
    %5428 = vrot.lane.b32.xlu0 %v5253, 96
    %v5429 = vpop.permute.xlu0 %5428
    %5430 = vrot.lane.b32.xlu0 %v5254, 96
    %v5431 = vpop.permute.xlu0 %5430
    %5432 = vrot.lane.b32.xlu0 %v5255, 96
    %v5433 = vpop.permute.xlu0 %5432
    %5434 = vrot.lane.b32.xlu0 %v5256, 96
    %v5435 = vpop.permute.xlu0 %5434
    %5436 = vrot.lane.b32.xlu0 %v5257, 96
    %v5437 = vpop.permute.xlu0 %5436
    %5438 = vrot.lane.b32.xlu0 %v5258, 96
    %v5439 = vpop.permute.xlu0 %5438
    %5440 = vrot.lane.b32.xlu0 %v5259, 96
    %v5441 = vpop.permute.xlu0 %5440
    %5442 = vrot.lane.b32.xlu0 %v5260, 96
    %v5443 = vpop.permute.xlu0 %5442
    %5444 = vrot.lane.b32.xlu0 %v5261, 96
    %v5445 = vpop.permute.xlu0 %5444
    %5446 = vrot.lane.b32.xlu0 %v5262, 96
    %v5447 = vpop.permute.xlu0 %5446
    %5448 = vrot.lane.b32.xlu0 %v5263, 96
    %v5449 = vpop.permute.xlu0 %5448
    %5450 = vrot.lane.b32.xlu0 %v5264, 96
    %v5451 = vpop.permute.xlu0 %5450
    %5452 = vrot.lane.b32.xlu0 %v5265, 96
    %v5453 = vpop.permute.xlu0 %5452
    %5454 = vrot.lane.b32.xlu0 %v5266, 96
    %v5455 = vpop.permute.xlu0 %5454
    %v5478 = vsel %vm3642, %v5411, 0
    %5480 = vmatprep.subr.bf16.mxu0 0
    %5481 = vmatpush1.bf16.msra.mxu0 %v5427
    %5482 = vmatprep.subr.bf16.mxu0 0
    %5483 = vmatpush1.bf16.msra.mxu0 %v5425
    %5484 = vmatprep.subr.bf16.mxu0 0
    %5485 = vmatpush1.bf16.msra.mxu0 %v5423
    %5486 = vmatprep.subr.bf16.mxu0 0
    %5487 = vmatpush1.bf16.msra.mxu0 %v5421
    %5488 = vmatprep.subr.bf16.mxu0 0
    %5489 = vmatpush1.bf16.msra.mxu0 %v5419
    %5490 = vmatprep.subr.bf16.mxu0 0
    %5491 = vmatpush1.bf16.msra.mxu0 %v5417
    %5492 = vmatprep.subr.bf16.mxu0 0
    %5493 = vmatpush1.bf16.msra.mxu0 %v5415
    %5494 = vmatprep.subr.bf16.mxu0 0
    %5495 = vmatpush1.bf16.msra.mxu0 %v5413
    %5496 = vmatprep.subr.bf16.mxu0 0
    %5497 = vmatpush2.bf16.msra.mxu0 %v5443
    %5498 = vmatprep.subr.bf16.mxu0 0
    %5499 = vmatpush2.bf16.msra.mxu0 %v5441
    %5500 = vmatprep.subr.bf16.mxu0 0
    %5501 = vmatpush2.bf16.msra.mxu0 %v5439
    %5502 = vmatprep.subr.bf16.mxu0 0
    %5503 = vmatpush2.bf16.msra.mxu0 %v5437
    %5504 = vmatprep.subr.bf16.mxu0 0
    %5505 = vmatpush2.bf16.msra.mxu0 %v5435
    %5506 = vmatprep.subr.bf16.mxu0 0
    %5507 = vmatpush2.bf16.msra.mxu0 %v5433
    %5508 = vmatprep.subr.bf16.mxu0 0
    %5509 = vmatpush2.bf16.msra.mxu0 %v5431
    %5510 = vmatprep.subr.bf16.mxu0 0
    %5511 = vmatpush2.bf16.msra.mxu0 %v5429
    %5512 = vmatprep.mubr.bf16.mxu0 %v5408
    %5513 = vmatmul.mubr.bf16.gmra.mxu0 %v5405
    %v5514 = vpop.f32.mrf.mxu0
    %v5515 = vadd.f32 0.0, %v5514
    %v5516 = vpop.f32.mrf.mxu0
    %v5517 = vpop.f32.mrf.mxu0
    %v5518 = vpop.f32.mrf.mxu0
    %5519 = vdwg.mxu0
    %5520 = vmatprep.subr.bf16.mxu0 0
    %5521 = vmatpush1.bf16.msra.mxu0 0
    %5522 = vmatprep.subr.bf16.mxu0 0
    %5523 = vmatpush1.bf16.msra.mxu0 0
    %5524 = vmatprep.subr.bf16.mxu0 0
    %5525 = vmatpush1.bf16.msra.mxu0 %v5455
    %5526 = vmatprep.subr.bf16.mxu0 0
    %5527 = vmatpush1.bf16.msra.mxu0 %v5453
    %5528 = vmatprep.subr.bf16.mxu0 0
    %5529 = vmatpush1.bf16.msra.mxu0 %v5451
    %5530 = vmatprep.subr.bf16.mxu0 0
    %5531 = vmatpush1.bf16.msra.mxu0 %v5449
    %5532 = vmatprep.subr.bf16.mxu0 0
    %5533 = vmatpush1.bf16.msra.mxu0 %v5447
    %5534 = vmatprep.subr.bf16.mxu0 0
    %5535 = vmatpush1.bf16.msra.mxu0 %v5445
    %5536 = vmatprep.subr.bf16.mxu0 0
    %5537 = vmatpush2.bf16.msra.mxu0 0
    %5538 = vmatprep.subr.bf16.mxu0 0
    %5539 = vmatpush2.bf16.msra.mxu0 0
    %5540 = vmatprep.subr.bf16.mxu0 0
    %5541 = vmatpush2.bf16.msra.mxu0 0
    %5542 = vmatprep.subr.bf16.mxu0 0
    %5543 = vmatpush2.bf16.msra.mxu0 0
    %5544 = vmatprep.subr.bf16.mxu0 0
    %5545 = vmatpush2.bf16.msra.mxu0 0
    %5546 = vmatprep.subr.bf16.mxu0 0
    %5547 = vmatpush2.bf16.msra.mxu0 0
    %5548 = vmatprep.subr.bf16.mxu0 0
    %5549 = vmatpush2.bf16.msra.mxu0 0
    %5550 = vmatprep.subr.bf16.mxu0 0
    %5551 = vmatpush2.bf16.msra.mxu0 0
    %5552 = vmatprep.mubr.bf16.mxu0 0
    %5553 = vmatmul.mubr.bf16.gmra.mxu0 %v5478
    %v5554 = vpop.f32.mrf.mxu0
    %v5555 = vadd.f32 %v5515, %v5554
    %v5556 = vpop.f32.mrf.mxu0
    %v5557 = vpop.f32.mrf.mxu0
    %v5558 = vpop.f32.mrf.mxu0
    %5559 = vdwg.mxu0
    %v5560 = vadd.f32 %v5371, %v5555
    %v5561 = vrot.slane %v3324, 2
    %v5562 = vrot.slane %v3325, 2
    %v5563 = vrot.slane %v3326, 2
    %5564 = vrot.lane.b32.xlu0 %v5372, 96
    %v5565 = vpop.permute.xlu0 %5564
    %5566 = vrot.lane.b32.xlu0 %v5373, 96
    %v5567 = vpop.permute.xlu0 %5566
    %5568 = vrot.lane.b32.xlu0 %v5374, 96
    %v5569 = vpop.permute.xlu0 %5568
    %v5570 = vsel %vm3344, %v5565, %v5567
    %v5571 = vsel %vm3344, %v5567, %v5569
    %5572 = vrot.lane.b32.xlu0 %v3324, 64
    %v5573 = vpop.permute.xlu0 %5572
    %5574 = vrot.lane.b32.xlu0 %v3325, 64
    %v5575 = vpop.permute.xlu0 %5574
    %5576 = vrot.lane.b32.xlu0 %v3326, 64
    %v5577 = vpop.permute.xlu0 %5576
    %5578 = vrot.lane.b32.xlu0 %v3327, 64
    %v5579 = vpop.permute.xlu0 %5578
    %v5580 = vsel %vm3360, %v5573, %v5575
    %v5581 = vsel %vm3360, %v5575, %v5577
    %v5582 = vsel %vm3360, %v5577, %v5579
    %v5585 = vsel %vm3364, %v5561, %v5570
    %v5588 = vsel %vm3364, %v5562, %v5571
    %v5591 = vsel %vm3364, %v5563, %v5569
    %v5593 = vsel %vm2503, %v5585, %v5580
    %v5596 = vsel %vm2503, %v5588, %v5581
    %v5599 = vsel %vm2503, %v5591, %v5582
    %5600 = vrot.lane.b32.xlu0 %v5245, 64
    %v5601 = vpop.permute.xlu0 %5600
    %5602 = vrot.lane.b32.xlu0 %v5246, 64
    %v5603 = vpop.permute.xlu0 %5602
    %5604 = vrot.lane.b32.xlu0 %v5247, 64
    %v5605 = vpop.permute.xlu0 %5604
    %5606 = vrot.lane.b32.xlu0 %v5248, 64
    %v5607 = vpop.permute.xlu0 %5606
    %5608 = vrot.lane.b32.xlu0 %v5249, 64
    %v5609 = vpop.permute.xlu0 %5608
    %5610 = vrot.lane.b32.xlu0 %v5250, 64
    %v5611 = vpop.permute.xlu0 %5610
    %5612 = vrot.lane.b32.xlu0 %v5251, 64
    %v5613 = vpop.permute.xlu0 %5612
    %5614 = vrot.lane.b32.xlu0 %v5252, 64
    %v5615 = vpop.permute.xlu0 %5614
    %5616 = vrot.lane.b32.xlu0 %v5253, 64
    %v5617 = vpop.permute.xlu0 %5616
    %5618 = vrot.lane.b32.xlu0 %v5254, 64
    %v5619 = vpop.permute.xlu0 %5618
    %5620 = vrot.lane.b32.xlu0 %v5255, 64
    %v5621 = vpop.permute.xlu0 %5620
    %5622 = vrot.lane.b32.xlu0 %v5256, 64
    %v5623 = vpop.permute.xlu0 %5622
    %5624 = vrot.lane.b32.xlu0 %v5257, 64
    %v5625 = vpop.permute.xlu0 %5624
    %5626 = vrot.lane.b32.xlu0 %v5258, 64
    %v5627 = vpop.permute.xlu0 %5626
    %5628 = vrot.lane.b32.xlu0 %v5259, 64
    %v5629 = vpop.permute.xlu0 %5628
    %5630 = vrot.lane.b32.xlu0 %v5260, 64
    %v5631 = vpop.permute.xlu0 %5630
    %5632 = vrot.lane.b32.xlu0 %v5261, 64
    %v5633 = vpop.permute.xlu0 %5632
    %5634 = vrot.lane.b32.xlu0 %v5262, 64
    %v5635 = vpop.permute.xlu0 %5634
    %5636 = vrot.lane.b32.xlu0 %v5263, 64
    %v5637 = vpop.permute.xlu0 %5636
    %5638 = vrot.lane.b32.xlu0 %v5264, 64
    %v5639 = vpop.permute.xlu0 %5638
    %5640 = vrot.lane.b32.xlu0 %v5265, 64
    %v5641 = vpop.permute.xlu0 %5640
    %5642 = vrot.lane.b32.xlu0 %v5266, 64
    %v5643 = vpop.permute.xlu0 %5642
    %v5666 = vsel %vm3642, %v5599, 0
    %5668 = vmatprep.subr.bf16.mxu0 0
    %5669 = vmatpush1.bf16.msra.mxu0 %v5615
    %5670 = vmatprep.subr.bf16.mxu0 0
    %5671 = vmatpush1.bf16.msra.mxu0 %v5613
    %5672 = vmatprep.subr.bf16.mxu0 0
    %5673 = vmatpush1.bf16.msra.mxu0 %v5611
    %5674 = vmatprep.subr.bf16.mxu0 0
    %5675 = vmatpush1.bf16.msra.mxu0 %v5609
    %5676 = vmatprep.subr.bf16.mxu0 0
    %5677 = vmatpush1.bf16.msra.mxu0 %v5607
    %5678 = vmatprep.subr.bf16.mxu0 0
    %5679 = vmatpush1.bf16.msra.mxu0 %v5605
    %5680 = vmatprep.subr.bf16.mxu0 0
    %5681 = vmatpush1.bf16.msra.mxu0 %v5603
    %5682 = vmatprep.subr.bf16.mxu0 0
    %5683 = vmatpush1.bf16.msra.mxu0 %v5601
    %5684 = vmatprep.subr.bf16.mxu0 0
    %5685 = vmatpush2.bf16.msra.mxu0 %v5631
    %5686 = vmatprep.subr.bf16.mxu0 0
    %5687 = vmatpush2.bf16.msra.mxu0 %v5629
    %5688 = vmatprep.subr.bf16.mxu0 0
    %5689 = vmatpush2.bf16.msra.mxu0 %v5627
    %5690 = vmatprep.subr.bf16.mxu0 0
    %5691 = vmatpush2.bf16.msra.mxu0 %v5625
    %5692 = vmatprep.subr.bf16.mxu0 0
    %5693 = vmatpush2.bf16.msra.mxu0 %v5623
    %5694 = vmatprep.subr.bf16.mxu0 0
    %5695 = vmatpush2.bf16.msra.mxu0 %v5621
    %5696 = vmatprep.subr.bf16.mxu0 0
    %5697 = vmatpush2.bf16.msra.mxu0 %v5619
    %5698 = vmatprep.subr.bf16.mxu0 0
    %5699 = vmatpush2.bf16.msra.mxu0 %v5617
    %5700 = vmatprep.mubr.bf16.mxu0 %v5596
    %5701 = vmatmul.mubr.bf16.gmra.mxu0 %v5593
    %v5702 = vpop.f32.mrf.mxu0
    %v5703 = vadd.f32 0.0, %v5702
    %v5704 = vpop.f32.mrf.mxu0
    %v5705 = vpop.f32.mrf.mxu0
    %v5706 = vpop.f32.mrf.mxu0
    %5707 = vdwg.mxu0
    %5708 = vmatprep.subr.bf16.mxu0 0
    %5709 = vmatpush1.bf16.msra.mxu0 0
    %5710 = vmatprep.subr.bf16.mxu0 0
    %5711 = vmatpush1.bf16.msra.mxu0 0
    %5712 = vmatprep.subr.bf16.mxu0 0
    %5713 = vmatpush1.bf16.msra.mxu0 %v5643
    %5714 = vmatprep.subr.bf16.mxu0 0
    %5715 = vmatpush1.bf16.msra.mxu0 %v5641
    %5716 = vmatprep.subr.bf16.mxu0 0
    %5717 = vmatpush1.bf16.msra.mxu0 %v5639
    %5718 = vmatprep.subr.bf16.mxu0 0
    %5719 = vmatpush1.bf16.msra.mxu0 %v5637
    %5720 = vmatprep.subr.bf16.mxu0 0
    %5721 = vmatpush1.bf16.msra.mxu0 %v5635
    %5722 = vmatprep.subr.bf16.mxu0 0
    %5723 = vmatpush1.bf16.msra.mxu0 %v5633
    %5724 = vmatprep.subr.bf16.mxu0 0
    %5725 = vmatpush2.bf16.msra.mxu0 0
    %5726 = vmatprep.subr.bf16.mxu0 0
    %5727 = vmatpush2.bf16.msra.mxu0 0
    %5728 = vmatprep.subr.bf16.mxu0 0
    %5729 = vmatpush2.bf16.msra.mxu0 0
    %5730 = vmatprep.subr.bf16.mxu0 0
    %5731 = vmatpush2.bf16.msra.mxu0 0
    %5732 = vmatprep.subr.bf16.mxu0 0
    %5733 = vmatpush2.bf16.msra.mxu0 0
    %5734 = vmatprep.subr.bf16.mxu0 0
    %5735 = vmatpush2.bf16.msra.mxu0 0
    %5736 = vmatprep.subr.bf16.mxu0 0
    %5737 = vmatpush2.bf16.msra.mxu0 0
    %5738 = vmatprep.subr.bf16.mxu0 0
    %5739 = vmatpush2.bf16.msra.mxu0 0
    %5740 = vmatprep.mubr.bf16.mxu0 0
    %5741 = vmatmul.mubr.bf16.gmra.mxu0 %v5666
    %v5742 = vpop.f32.mrf.mxu0
    %v5743 = vadd.f32 %v5703, %v5742
    %v5744 = vpop.f32.mrf.mxu0
    %v5745 = vpop.f32.mrf.mxu0
    %v5746 = vpop.f32.mrf.mxu0
    %5747 = vdwg.mxu0
    %v5748 = vadd.f32 %v5560, %v5743
    %v5749 = vrot.slane %v3324, 3
    %v5750 = vrot.slane %v3325, 3
    %v5751 = vrot.slane %v3326, 3
    %5752 = vrot.lane.b32.xlu0 %v5561, 96
    %v5753 = vpop.permute.xlu0 %5752
    %5754 = vrot.lane.b32.xlu0 %v5562, 96
    %v5755 = vpop.permute.xlu0 %5754
    %5756 = vrot.lane.b32.xlu0 %v5563, 96
    %v5757 = vpop.permute.xlu0 %5756
    %v5758 = vsel %vm3344, %v5753, %v5755
    %v5759 = vsel %vm3344, %v5755, %v5757
    %v5760 = vrot.slane %v3327, 1
    %5761 = vrot.lane.b32.xlu0 %v5372, 64
    %v5762 = vpop.permute.xlu0 %5761
    %5763 = vrot.lane.b32.xlu0 %v5373, 64
    %v5764 = vpop.permute.xlu0 %5763
    %5765 = vrot.lane.b32.xlu0 %v5374, 64
    %v5766 = vpop.permute.xlu0 %5765
    %5767 = vrot.lane.b32.xlu0 %v5760, 64
    %v5768 = vpop.permute.xlu0 %5767
    %v5769 = vsel %vm3360, %v5762, %v5764
    %v5770 = vsel %vm3360, %v5764, %v5766
    %v5771 = vsel %vm3360, %v5766, %v5768
    %v5774 = vsel %vm3364, %v5749, %v5758
    %v5777 = vsel %vm3364, %v5750, %v5759
    %v5780 = vsel %vm3364, %v5751, %v5757
    %v5782 = vsel %vm2503, %v5774, %v5769
    %v5785 = vsel %vm2503, %v5777, %v5770
    %v5788 = vsel %vm2503, %v5780, %v5771
    %5789 = vrot.lane.b32.xlu0 %v5245, 32
    %v5790 = vpop.permute.xlu0 %5789
    %5791 = vrot.lane.b32.xlu0 %v5246, 32
    %v5792 = vpop.permute.xlu0 %5791
    %5793 = vrot.lane.b32.xlu0 %v5247, 32
    %v5794 = vpop.permute.xlu0 %5793
    %5795 = vrot.lane.b32.xlu0 %v5248, 32
    %v5796 = vpop.permute.xlu0 %5795
    %5797 = vrot.lane.b32.xlu0 %v5249, 32
    %v5798 = vpop.permute.xlu0 %5797
    %5799 = vrot.lane.b32.xlu0 %v5250, 32
    %v5800 = vpop.permute.xlu0 %5799
    %5801 = vrot.lane.b32.xlu0 %v5251, 32
    %v5802 = vpop.permute.xlu0 %5801
    %5803 = vrot.lane.b32.xlu0 %v5252, 32
    %v5804 = vpop.permute.xlu0 %5803
    %5805 = vrot.lane.b32.xlu0 %v5253, 32
    %v5806 = vpop.permute.xlu0 %5805
    %5807 = vrot.lane.b32.xlu0 %v5254, 32
    %v5808 = vpop.permute.xlu0 %5807
    %5809 = vrot.lane.b32.xlu0 %v5255, 32
    %v5810 = vpop.permute.xlu0 %5809
    %5811 = vrot.lane.b32.xlu0 %v5256, 32
    %v5812 = vpop.permute.xlu0 %5811
    %5813 = vrot.lane.b32.xlu0 %v5257, 32
    %v5814 = vpop.permute.xlu0 %5813
    %5815 = vrot.lane.b32.xlu0 %v5258, 32
    %v5816 = vpop.permute.xlu0 %5815
    %5817 = vrot.lane.b32.xlu0 %v5259, 32
    %v5818 = vpop.permute.xlu0 %5817
    %5819 = vrot.lane.b32.xlu0 %v5260, 32
    %v5820 = vpop.permute.xlu0 %5819
    %5821 = vrot.lane.b32.xlu0 %v5261, 32
    %v5822 = vpop.permute.xlu0 %5821
    %5823 = vrot.lane.b32.xlu0 %v5262, 32
    %v5824 = vpop.permute.xlu0 %5823
    %5825 = vrot.lane.b32.xlu0 %v5263, 32
    %v5826 = vpop.permute.xlu0 %5825
    %5827 = vrot.lane.b32.xlu0 %v5264, 32
    %v5828 = vpop.permute.xlu0 %5827
    %5829 = vrot.lane.b32.xlu0 %v5265, 32
    %v5830 = vpop.permute.xlu0 %5829
    %5831 = vrot.lane.b32.xlu0 %v5266, 32
    %v5832 = vpop.permute.xlu0 %5831
    %v5855 = vsel %vm3642, %v5788, 0
    %5857 = vmatprep.subr.bf16.mxu0 0
    %5858 = vmatpush1.bf16.msra.mxu0 %v5804
    %5859 = vmatprep.subr.bf16.mxu0 0
    %5860 = vmatpush1.bf16.msra.mxu0 %v5802
    %5861 = vmatprep.subr.bf16.mxu0 0
    %5862 = vmatpush1.bf16.msra.mxu0 %v5800
    %5863 = vmatprep.subr.bf16.mxu0 0
    %5864 = vmatpush1.bf16.msra.mxu0 %v5798
    %5865 = vmatprep.subr.bf16.mxu0 0
    %5866 = vmatpush1.bf16.msra.mxu0 %v5796
    %5867 = vmatprep.subr.bf16.mxu0 0
    %5868 = vmatpush1.bf16.msra.mxu0 %v5794
    %5869 = vmatprep.subr.bf16.mxu0 0
    %5870 = vmatpush1.bf16.msra.mxu0 %v5792
    %5871 = vmatprep.subr.bf16.mxu0 0
    %5872 = vmatpush1.bf16.msra.mxu0 %v5790
    %5873 = vmatprep.subr.bf16.mxu0 0
    %5874 = vmatpush2.bf16.msra.mxu0 %v5820
    %5875 = vmatprep.subr.bf16.mxu0 0
    %5876 = vmatpush2.bf16.msra.mxu0 %v5818
    %5877 = vmatprep.subr.bf16.mxu0 0
    %5878 = vmatpush2.bf16.msra.mxu0 %v5816
    %5879 = vmatprep.subr.bf16.mxu0 0
    %5880 = vmatpush2.bf16.msra.mxu0 %v5814
    %5881 = vmatprep.subr.bf16.mxu0 0
    %5882 = vmatpush2.bf16.msra.mxu0 %v5812
    %5883 = vmatprep.subr.bf16.mxu0 0
    %5884 = vmatpush2.bf16.msra.mxu0 %v5810
    %5885 = vmatprep.subr.bf16.mxu0 0
    %5886 = vmatpush2.bf16.msra.mxu0 %v5808
    %5887 = vmatprep.subr.bf16.mxu0 0
    %5888 = vmatpush2.bf16.msra.mxu0 %v5806
    %5889 = vmatprep.mubr.bf16.mxu0 %v5785
    %5890 = vmatmul.mubr.bf16.gmra.mxu0 %v5782
    %v5891 = vpop.f32.mrf.mxu0
    %v5892 = vadd.f32 0.0, %v5891
    %v5893 = vpop.f32.mrf.mxu0
    %v5894 = vpop.f32.mrf.mxu0
    %v5895 = vpop.f32.mrf.mxu0
    %5896 = vdwg.mxu0
    %5897 = vmatprep.subr.bf16.mxu0 0
    %5898 = vmatpush1.bf16.msra.mxu0 0
    %5899 = vmatprep.subr.bf16.mxu0 0
    %5900 = vmatpush1.bf16.msra.mxu0 0
    %5901 = vmatprep.subr.bf16.mxu0 0
    %5902 = vmatpush1.bf16.msra.mxu0 %v5832
    %5903 = vmatprep.subr.bf16.mxu0 0
    %5904 = vmatpush1.bf16.msra.mxu0 %v5830
    %5905 = vmatprep.subr.bf16.mxu0 0
    %5906 = vmatpush1.bf16.msra.mxu0 %v5828
    %5907 = vmatprep.subr.bf16.mxu0 0
    %5908 = vmatpush1.bf16.msra.mxu0 %v5826
    %5909 = vmatprep.subr.bf16.mxu0 0
    %5910 = vmatpush1.bf16.msra.mxu0 %v5824
    %5911 = vmatprep.subr.bf16.mxu0 0
    %5912 = vmatpush1.bf16.msra.mxu0 %v5822
    %5913 = vmatprep.subr.bf16.mxu0 0
    %5914 = vmatpush2.bf16.msra.mxu0 0
    %5915 = vmatprep.subr.bf16.mxu0 0
    %5916 = vmatpush2.bf16.msra.mxu0 0
    %5917 = vmatprep.subr.bf16.mxu0 0
    %5918 = vmatpush2.bf16.msra.mxu0 0
    %5919 = vmatprep.subr.bf16.mxu0 0
    %5920 = vmatpush2.bf16.msra.mxu0 0
    %5921 = vmatprep.subr.bf16.mxu0 0
    %5922 = vmatpush2.bf16.msra.mxu0 0
    %5923 = vmatprep.subr.bf16.mxu0 0
    %5924 = vmatpush2.bf16.msra.mxu0 0
    %5925 = vmatprep.subr.bf16.mxu0 0
    %5926 = vmatpush2.bf16.msra.mxu0 0
    %5927 = vmatprep.subr.bf16.mxu0 0
    %5928 = vmatpush2.bf16.msra.mxu0 0
    %5929 = vmatprep.mubr.bf16.mxu0 0
    %5930 = vmatmul.mubr.bf16.gmra.mxu0 %v5855
    %v5931 = vpop.f32.mrf.mxu0
    %v5932 = vadd.f32 %v5892, %v5931
    %v5933 = vpop.f32.mrf.mxu0
    %v5934 = vpop.f32.mrf.mxu0
    %v5935 = vpop.f32.mrf.mxu0
    %5936 = vdwg.mxu0
    %v5937 = vadd.f32 %v5748, %v5932
    %v5938 = vrot.slane %v3324, 4
    %v5939 = vrot.slane %v3325, 4
    %v5940 = vrot.slane %v3326, 4
    %5941 = vrot.lane.b32.xlu0 %v5749, 96
    %v5942 = vpop.permute.xlu0 %5941
    %5943 = vrot.lane.b32.xlu0 %v5750, 96
    %v5944 = vpop.permute.xlu0 %5943
    %5945 = vrot.lane.b32.xlu0 %v5751, 96
    %v5946 = vpop.permute.xlu0 %5945
    %v5947 = vsel %vm3344, %v5942, %v5944
    %v5948 = vsel %vm3344, %v5944, %v5946
    %v5949 = vrot.slane %v3327, 2
    %5950 = vrot.lane.b32.xlu0 %v5561, 64
    %v5951 = vpop.permute.xlu0 %5950
    %5952 = vrot.lane.b32.xlu0 %v5562, 64
    %v5953 = vpop.permute.xlu0 %5952
    %5954 = vrot.lane.b32.xlu0 %v5563, 64
    %v5955 = vpop.permute.xlu0 %5954
    %5956 = vrot.lane.b32.xlu0 %v5949, 64
    %v5957 = vpop.permute.xlu0 %5956
    %v5958 = vsel %vm3360, %v5951, %v5953
    %v5959 = vsel %vm3360, %v5953, %v5955
    %v5960 = vsel %vm3360, %v5955, %v5957
    %v5963 = vsel %vm3364, %v5938, %v5947
    %v5966 = vsel %vm3364, %v5939, %v5948
    %v5969 = vsel %vm3364, %v5940, %v5946
    %v5971 = vsel %vm2503, %v5963, %v5958
    %v5974 = vsel %vm2503, %v5966, %v5959
    %v5977 = vsel %vm2503, %v5969, %v5960
    %v5978 = vld [vmem:[%s2 + $0xc] sm:$0xf]
    %v5979 = vld [vmem:[%s2 + $0x24] sm:$0xf]
    %v5980 = vld [vmem:[%s2 + $0x3c] sm:$0xf]
    %v5981 = vld [vmem:[%s2 + $0x54] sm:$0xf]
    %v5982 = vld [vmem:[%s2 + $0x6c] sm:$0xf]
    %v5983 = vld [vmem:[%s2 + $0x84] sm:$0xf]
    %v5984 = vld [vmem:[%s2 + $0x9c] sm:$0xf]
    %v5985 = vld [vmem:[%s2 + $0xb4] sm:$0xf]
    %v5986 = vld [vmem:[%s2 + $0xcc] sm:$0xf]
    %v5987 = vld [vmem:[%s2 + $0xe4] sm:$0xf]
    %v5988 = vld [vmem:[%s2 + $0xfc] sm:$0xf]
    %v5989 = vld [vmem:[%s2 + $0x114] sm:$0xf]
    %v5990 = vld [vmem:[%s2 + $0x12c] sm:$0xf]
    %v5991 = vld [vmem:[%s2 + $0x144] sm:$0xf]
    %v5992 = vld [vmem:[%s2 + $0x15c] sm:$0xf]
    %v5993 = vld [vmem:[%s2 + $0x174] sm:$0xf]
    %v5994 = vld [vmem:[%s2 + $0x18c] sm:$0xf]
    %v5995 = vld [vmem:[%s2 + $0x1a4] sm:$0xf]
    %v5996 = vld [vmem:[%s2 + $0x1bc] sm:$0xf]
    %v5997 = vld [vmem:[%s2 + $0x1d4] sm:$0xf]
    %v5998 = vld [vmem:[%s2 + $0x1ec] sm:$0xf]
    %v5999 = vld [vmem:[%s2 + $0x204] sm:$0xf]
    %v6000 = vld [vmem:[%s2 + $0x21c] sm:$0xf]
    %v6001 = vld [vmem:[%s2 + $0x234] sm:$0xf]
    %v6002 = vld [vmem:[%s2 + $0x24c] sm:$0xf]
    %v6003 = vld [vmem:[%s2 + $0x264] sm:$0xf]
    %v6004 = vld [vmem:[%s2 + $0x27c] sm:$0xf]
    %v6005 = vld [vmem:[%s2 + $0x294] sm:$0xf]
    %v6006 = vld [vmem:[%s2 + $0x2ac] sm:$0xf]
    %v6007 = vld [vmem:[%s2 + $0x2c4] sm:$0xf]
    %v6008 = vld [vmem:[%s2 + $0x2dc] sm:$0xf]
    %v6009 = vld [vmem:[%s2 + $0x2f4] sm:$0xf]
    %v6010 = vld [vmem:[%s2 + $0x30c] sm:$0xf]
    %v6011 = vld [vmem:[%s2 + $0x324] sm:$0xf]
    %v6012 = vld [vmem:[%s2 + $0x33c] sm:$0xf]
    %v6013 = vld [vmem:[%s2 + $0x354] sm:$0xf]
    %v6014 = vld [vmem:[%s2 + $0x36c] sm:$0xf]
    %v6015 = vld [vmem:[%s2 + $0x384] sm:$0xf]
    %v6016 = vld [vmem:[%s2 + $0x39c] sm:$0xf]
    %v6017 = vld [vmem:[%s2 + $0x3b4] sm:$0xf]
    %v6018 = vld [vmem:[%s2 + $0x3cc] sm:$0xf]
    %v6019 = vld [vmem:[%s2 + $0x3e4] sm:$0xf]
    %v6020 = vld [vmem:[%s2 + $0x3fc] sm:$0xf]
    %v6021 = vld [vmem:[%s2 + $0x414] sm:$0xf]
    %v6066 = vunpack.c.l.b16 %v5978
    %v6067 = vunpack.c.l.b16 %v5979
    %v6068 = vunpack.c.l.b16 %v5980
    %v6069 = vunpack.c.l.b16 %v5981
    %v6070 = vunpack.c.l.b16 %v5982
    %v6071 = vunpack.c.l.b16 %v5983
    %v6072 = vunpack.c.l.b16 %v5984
    %v6073 = vunpack.c.l.b16 %v5985
    %v6074 = vunpack.c.l.b16 %v5986
    %v6075 = vunpack.c.l.b16 %v5987
    %v6076 = vunpack.c.l.b16 %v5988
    %v6077 = vunpack.c.l.b16 %v5989
    %v6078 = vunpack.c.l.b16 %v5990
    %v6079 = vunpack.c.l.b16 %v5991
    %v6080 = vunpack.c.l.b16 %v5992
    %v6081 = vunpack.c.l.b16 %v5993
    %v6082 = vunpack.c.l.b16 %v5994
    %v6083 = vunpack.c.l.b16 %v5995
    %v6084 = vunpack.c.l.b16 %v5996
    %v6085 = vunpack.c.l.b16 %v5997
    %v6086 = vunpack.c.l.b16 %v5998
    %v6087 = vunpack.c.l.b16 %v5999
    %v6088 = vunpack.c.l.b16 %v6000
    %v6089 = vunpack.c.l.b16 %v6001
    %v6090 = vunpack.c.l.b16 %v6002
    %v6091 = vunpack.c.l.b16 %v6003
    %v6092 = vunpack.c.l.b16 %v6004
    %v6093 = vunpack.c.l.b16 %v6005
    %v6094 = vunpack.c.l.b16 %v6006
    %v6095 = vunpack.c.l.b16 %v6007
    %v6096 = vunpack.c.l.b16 %v6008
    %v6097 = vunpack.c.l.b16 %v6009
    %v6098 = vunpack.c.l.b16 %v6010
    %v6099 = vunpack.c.l.b16 %v6011
    %v6100 = vunpack.c.l.b16 %v6012
    %v6101 = vunpack.c.l.b16 %v6013
    %v6102 = vunpack.c.l.b16 %v6014
    %v6103 = vunpack.c.l.b16 %v6015
    %v6104 = vunpack.c.l.b16 %v6016
    %v6105 = vunpack.c.l.b16 %v6017
    %v6106 = vunpack.c.l.b16 %v6018
    %v6107 = vunpack.c.l.b16 %v6019
    %v6108 = vunpack.c.l.b16 %v6020
    %v6109 = vunpack.c.l.b16 %v6021
    %v6110 = vpack.c.b16 %v6067, %v6066
    %v6111 = vpack.c.b16 %v6069, %v6068
    %v6112 = vpack.c.b16 %v6071, %v6070
    %v6113 = vpack.c.b16 %v6073, %v6072
    %v6114 = vpack.c.b16 %v6075, %v6074
    %v6115 = vpack.c.b16 %v6077, %v6076
    %v6116 = vpack.c.b16 %v6079, %v6078
    %v6117 = vpack.c.b16 %v6081, %v6080
    %v6118 = vpack.c.b16 %v6083, %v6082
    %v6119 = vpack.c.b16 %v6085, %v6084
    %v6120 = vpack.c.b16 %v6087, %v6086
    %v6121 = vpack.c.b16 %v6089, %v6088
    %v6122 = vpack.c.b16 %v6091, %v6090
    %v6123 = vpack.c.b16 %v6093, %v6092
    %v6124 = vpack.c.b16 %v6095, %v6094
    %v6125 = vpack.c.b16 %v6097, %v6096
    %v6126 = vpack.c.b16 %v6099, %v6098
    %v6127 = vpack.c.b16 %v6101, %v6100
    %v6128 = vpack.c.b16 %v6103, %v6102
    %v6129 = vpack.c.b16 %v6105, %v6104
    %v6130 = vpack.c.b16 %v6107, %v6106
    %v6131 = vpack.c.b16 %v6109, %v6108
    %v6154 = vsel %vm3642, %v5977, 0
    %6156 = vmatprep.subr.bf16.mxu0 0
    %6157 = vmatpush1.bf16.msra.mxu0 %v6117
    %6158 = vmatprep.subr.bf16.mxu0 0
    %6159 = vmatpush1.bf16.msra.mxu0 %v6116
    %6160 = vmatprep.subr.bf16.mxu0 0
    %6161 = vmatpush1.bf16.msra.mxu0 %v6115
    %6162 = vmatprep.subr.bf16.mxu0 0
    %6163 = vmatpush1.bf16.msra.mxu0 %v6114
    %6164 = vmatprep.subr.bf16.mxu0 0
    %6165 = vmatpush1.bf16.msra.mxu0 %v6113
    %6166 = vmatprep.subr.bf16.mxu0 0
    %6167 = vmatpush1.bf16.msra.mxu0 %v6112
    %6168 = vmatprep.subr.bf16.mxu0 0
    %6169 = vmatpush1.bf16.msra.mxu0 %v6111
    %6170 = vmatprep.subr.bf16.mxu0 0
    %6171 = vmatpush1.bf16.msra.mxu0 %v6110
    %6172 = vmatprep.subr.bf16.mxu0 0
    %6173 = vmatpush2.bf16.msra.mxu0 %v6125
    %6174 = vmatprep.subr.bf16.mxu0 0
    %6175 = vmatpush2.bf16.msra.mxu0 %v6124
    %6176 = vmatprep.subr.bf16.mxu0 0
    %6177 = vmatpush2.bf16.msra.mxu0 %v6123
    %6178 = vmatprep.subr.bf16.mxu0 0
    %6179 = vmatpush2.bf16.msra.mxu0 %v6122
    %6180 = vmatprep.subr.bf16.mxu0 0
    %6181 = vmatpush2.bf16.msra.mxu0 %v6121
    %6182 = vmatprep.subr.bf16.mxu0 0
    %6183 = vmatpush2.bf16.msra.mxu0 %v6120
    %6184 = vmatprep.subr.bf16.mxu0 0
    %6185 = vmatpush2.bf16.msra.mxu0 %v6119
    %6186 = vmatprep.subr.bf16.mxu0 0
    %6187 = vmatpush2.bf16.msra.mxu0 %v6118
    %6188 = vmatprep.mubr.bf16.mxu0 %v5974
    %6189 = vmatmul.mubr.bf16.gmra.mxu0 %v5971
    %v6190 = vpop.f32.mrf.mxu0
    %v6191 = vadd.f32 0.0, %v6190
    %v6192 = vpop.f32.mrf.mxu0
    %v6193 = vpop.f32.mrf.mxu0
    %v6194 = vpop.f32.mrf.mxu0
    %6195 = vdwg.mxu0
    %6196 = vmatprep.subr.bf16.mxu0 0
    %6197 = vmatpush1.bf16.msra.mxu0 0
    %6198 = vmatprep.subr.bf16.mxu0 0
    %6199 = vmatpush1.bf16.msra.mxu0 0
    %6200 = vmatprep.subr.bf16.mxu0 0
    %6201 = vmatpush1.bf16.msra.mxu0 %v6131
    %6202 = vmatprep.subr.bf16.mxu0 0
    %6203 = vmatpush1.bf16.msra.mxu0 %v6130
    %6204 = vmatprep.subr.bf16.mxu0 0
    %6205 = vmatpush1.bf16.msra.mxu0 %v6129
    %6206 = vmatprep.subr.bf16.mxu0 0
    %6207 = vmatpush1.bf16.msra.mxu0 %v6128
    %6208 = vmatprep.subr.bf16.mxu0 0
    %6209 = vmatpush1.bf16.msra.mxu0 %v6127
    %6210 = vmatprep.subr.bf16.mxu0 0
    %6211 = vmatpush1.bf16.msra.mxu0 %v6126
    %6212 = vmatprep.subr.bf16.mxu0 0
    %6213 = vmatpush2.bf16.msra.mxu0 0
    %6214 = vmatprep.subr.bf16.mxu0 0
    %6215 = vmatpush2.bf16.msra.mxu0 0
    %6216 = vmatprep.subr.bf16.mxu0 0
    %6217 = vmatpush2.bf16.msra.mxu0 0
    %6218 = vmatprep.subr.bf16.mxu0 0
    %6219 = vmatpush2.bf16.msra.mxu0 0
    %6220 = vmatprep.subr.bf16.mxu0 0
    %6221 = vmatpush2.bf16.msra.mxu0 0
    %6222 = vmatprep.subr.bf16.mxu0 0
    %6223 = vmatpush2.bf16.msra.mxu0 0
    %6224 = vmatprep.subr.bf16.mxu0 0
    %6225 = vmatpush2.bf16.msra.mxu0 0
    %6226 = vmatprep.subr.bf16.mxu0 0
    %6227 = vmatpush2.bf16.msra.mxu0 0
    %6228 = vmatprep.mubr.bf16.mxu0 0
    %6229 = vmatmul.mubr.bf16.gmra.mxu0 %v6154
    %v6230 = vpop.f32.mrf.mxu0
    %v6231 = vadd.f32 %v6191, %v6230
    %v6232 = vpop.f32.mrf.mxu0
    %v6233 = vpop.f32.mrf.mxu0
    %v6234 = vpop.f32.mrf.mxu0
    %6235 = vdwg.mxu0
    %v6236 = vadd.f32 %v5937, %v6231
    %v6237 = vrot.slane %v3324, 5
    %v6238 = vrot.slane %v3325, 5
    %v6239 = vrot.slane %v3326, 5
    %6240 = vrot.lane.b32.xlu0 %v5938, 96
    %v6241 = vpop.permute.xlu0 %6240
    %6242 = vrot.lane.b32.xlu0 %v5939, 96
    %v6243 = vpop.permute.xlu0 %6242
    %6244 = vrot.lane.b32.xlu0 %v5940, 96
    %v6245 = vpop.permute.xlu0 %6244
    %v6246 = vsel %vm3344, %v6241, %v6243
    %v6247 = vsel %vm3344, %v6243, %v6245
    %v6248 = vrot.slane %v3327, 3
    %6249 = vrot.lane.b32.xlu0 %v5749, 64
    %v6250 = vpop.permute.xlu0 %6249
    %6251 = vrot.lane.b32.xlu0 %v5750, 64
    %v6252 = vpop.permute.xlu0 %6251
    %6253 = vrot.lane.b32.xlu0 %v5751, 64
    %v6254 = vpop.permute.xlu0 %6253
    %6255 = vrot.lane.b32.xlu0 %v6248, 64
    %v6256 = vpop.permute.xlu0 %6255
    %v6257 = vsel %vm3360, %v6250, %v6252
    %v6258 = vsel %vm3360, %v6252, %v6254
    %v6259 = vsel %vm3360, %v6254, %v6256
    %v6262 = vsel %vm3364, %v6237, %v6246
    %v6265 = vsel %vm3364, %v6238, %v6247
    %v6268 = vsel %vm3364, %v6239, %v6245
    %v6270 = vsel %vm2503, %v6262, %v6257
    %v6273 = vsel %vm2503, %v6265, %v6258
    %v6276 = vsel %vm2503, %v6268, %v6259
    %6277 = vrot.lane.b32.xlu0 %v6110, 96
    %v6278 = vpop.permute.xlu0 %6277
    %6279 = vrot.lane.b32.xlu0 %v6111, 96
    %v6280 = vpop.permute.xlu0 %6279
    %6281 = vrot.lane.b32.xlu0 %v6112, 96
    %v6282 = vpop.permute.xlu0 %6281
    %6283 = vrot.lane.b32.xlu0 %v6113, 96
    %v6284 = vpop.permute.xlu0 %6283
    %6285 = vrot.lane.b32.xlu0 %v6114, 96
    %v6286 = vpop.permute.xlu0 %6285
    %6287 = vrot.lane.b32.xlu0 %v6115, 96
    %v6288 = vpop.permute.xlu0 %6287
    %6289 = vrot.lane.b32.xlu0 %v6116, 96
    %v6290 = vpop.permute.xlu0 %6289
    %6291 = vrot.lane.b32.xlu0 %v6117, 96
    %v6292 = vpop.permute.xlu0 %6291
    %6293 = vrot.lane.b32.xlu0 %v6118, 96
    %v6294 = vpop.permute.xlu0 %6293
    %6295 = vrot.lane.b32.xlu0 %v6119, 96
    %v6296 = vpop.permute.xlu0 %6295
    %6297 = vrot.lane.b32.xlu0 %v6120, 96
    %v6298 = vpop.permute.xlu0 %6297
    %6299 = vrot.lane.b32.xlu0 %v6121, 96
    %v6300 = vpop.permute.xlu0 %6299
    %6301 = vrot.lane.b32.xlu0 %v6122, 96
    %v6302 = vpop.permute.xlu0 %6301
    %6303 = vrot.lane.b32.xlu0 %v6123, 96
    %v6304 = vpop.permute.xlu0 %6303
    %6305 = vrot.lane.b32.xlu0 %v6124, 96
    %v6306 = vpop.permute.xlu0 %6305
    %6307 = vrot.lane.b32.xlu0 %v6125, 96
    %v6308 = vpop.permute.xlu0 %6307
    %6309 = vrot.lane.b32.xlu0 %v6126, 96
    %v6310 = vpop.permute.xlu0 %6309
    %6311 = vrot.lane.b32.xlu0 %v6127, 96
    %v6312 = vpop.permute.xlu0 %6311
    %6313 = vrot.lane.b32.xlu0 %v6128, 96
    %v6314 = vpop.permute.xlu0 %6313
    %6315 = vrot.lane.b32.xlu0 %v6129, 96
    %v6316 = vpop.permute.xlu0 %6315
    %6317 = vrot.lane.b32.xlu0 %v6130, 96
    %v6318 = vpop.permute.xlu0 %6317
    %6319 = vrot.lane.b32.xlu0 %v6131, 96
    %v6320 = vpop.permute.xlu0 %6319
    %v6343 = vsel %vm3642, %v6276, 0
    %6345 = vmatprep.subr.bf16.mxu0 0
    %6346 = vmatpush1.bf16.msra.mxu0 %v6292
    %6347 = vmatprep.subr.bf16.mxu0 0
    %6348 = vmatpush1.bf16.msra.mxu0 %v6290
    %6349 = vmatprep.subr.bf16.mxu0 0
    %6350 = vmatpush1.bf16.msra.mxu0 %v6288
    %6351 = vmatprep.subr.bf16.mxu0 0
    %6352 = vmatpush1.bf16.msra.mxu0 %v6286
    %6353 = vmatprep.subr.bf16.mxu0 0
    %6354 = vmatpush1.bf16.msra.mxu0 %v6284
    %6355 = vmatprep.subr.bf16.mxu0 0
    %6356 = vmatpush1.bf16.msra.mxu0 %v6282
    %6357 = vmatprep.subr.bf16.mxu0 0
    %6358 = vmatpush1.bf16.msra.mxu0 %v6280
    %6359 = vmatprep.subr.bf16.mxu0 0
    %6360 = vmatpush1.bf16.msra.mxu0 %v6278
    %6361 = vmatprep.subr.bf16.mxu0 0
    %6362 = vmatpush2.bf16.msra.mxu0 %v6308
    %6363 = vmatprep.subr.bf16.mxu0 0
    %6364 = vmatpush2.bf16.msra.mxu0 %v6306
    %6365 = vmatprep.subr.bf16.mxu0 0
    %6366 = vmatpush2.bf16.msra.mxu0 %v6304
    %6367 = vmatprep.subr.bf16.mxu0 0
    %6368 = vmatpush2.bf16.msra.mxu0 %v6302
    %6369 = vmatprep.subr.bf16.mxu0 0
    %6370 = vmatpush2.bf16.msra.mxu0 %v6300
    %6371 = vmatprep.subr.bf16.mxu0 0
    %6372 = vmatpush2.bf16.msra.mxu0 %v6298
    %6373 = vmatprep.subr.bf16.mxu0 0
    %6374 = vmatpush2.bf16.msra.mxu0 %v6296
    %6375 = vmatprep.subr.bf16.mxu0 0
    %6376 = vmatpush2.bf16.msra.mxu0 %v6294
    %6377 = vmatprep.mubr.bf16.mxu0 %v6273
    %6378 = vmatmul.mubr.bf16.gmra.mxu0 %v6270
    %v6379 = vpop.f32.mrf.mxu0
    %v6380 = vadd.f32 0.0, %v6379
    %v6381 = vpop.f32.mrf.mxu0
    %v6382 = vpop.f32.mrf.mxu0
    %v6383 = vpop.f32.mrf.mxu0
    %6384 = vdwg.mxu0
    %6385 = vmatprep.subr.bf16.mxu0 0
    %6386 = vmatpush1.bf16.msra.mxu0 0
    %6387 = vmatprep.subr.bf16.mxu0 0
    %6388 = vmatpush1.bf16.msra.mxu0 0
    %6389 = vmatprep.subr.bf16.mxu0 0
    %6390 = vmatpush1.bf16.msra.mxu0 %v6320
    %6391 = vmatprep.subr.bf16.mxu0 0
    %6392 = vmatpush1.bf16.msra.mxu0 %v6318
    %6393 = vmatprep.subr.bf16.mxu0 0
    %6394 = vmatpush1.bf16.msra.mxu0 %v6316
    %6395 = vmatprep.subr.bf16.mxu0 0
    %6396 = vmatpush1.bf16.msra.mxu0 %v6314
    %6397 = vmatprep.subr.bf16.mxu0 0
    %6398 = vmatpush1.bf16.msra.mxu0 %v6312
    %6399 = vmatprep.subr.bf16.mxu0 0
    %6400 = vmatpush1.bf16.msra.mxu0 %v6310
    %6401 = vmatprep.subr.bf16.mxu0 0
    %6402 = vmatpush2.bf16.msra.mxu0 0
    %6403 = vmatprep.subr.bf16.mxu0 0
    %6404 = vmatpush2.bf16.msra.mxu0 0
    %6405 = vmatprep.subr.bf16.mxu0 0
    %6406 = vmatpush2.bf16.msra.mxu0 0
    %6407 = vmatprep.subr.bf16.mxu0 0
    %6408 = vmatpush2.bf16.msra.mxu0 0
    %6409 = vmatprep.subr.bf16.mxu0 0
    %6410 = vmatpush2.bf16.msra.mxu0 0
    %6411 = vmatprep.subr.bf16.mxu0 0
    %6412 = vmatpush2.bf16.msra.mxu0 0
    %6413 = vmatprep.subr.bf16.mxu0 0
    %6414 = vmatpush2.bf16.msra.mxu0 0
    %6415 = vmatprep.subr.bf16.mxu0 0
    %6416 = vmatpush2.bf16.msra.mxu0 0
    %6417 = vmatprep.mubr.bf16.mxu0 0
    %6418 = vmatmul.mubr.bf16.gmra.mxu0 %v6343
    %v6419 = vpop.f32.mrf.mxu0
    %v6420 = vadd.f32 %v6380, %v6419
    %v6421 = vpop.f32.mrf.mxu0
    %v6422 = vpop.f32.mrf.mxu0
    %v6423 = vpop.f32.mrf.mxu0
    %6424 = vdwg.mxu0
    %v6425 = vadd.f32 %v6236, %v6420
    %6426 = vrot.lane.b32.xlu0 %v6237, 96
    %v6427 = vpop.permute.xlu0 %6426
    %6428 = vrot.lane.b32.xlu0 %v6238, 96
    %v6429 = vpop.permute.xlu0 %6428
    %6430 = vrot.lane.b32.xlu0 %v6239, 96
    %v6431 = vpop.permute.xlu0 %6430
    %v6432 = vsel %vm3344, %v6427, %v6429
    %v6433 = vsel %vm3344, %v6429, %v6431
    %v6434 = vrot.slane %v3327, 4
    %6435 = vrot.lane.b32.xlu0 %v5938, 64
    %v6436 = vpop.permute.xlu0 %6435
    %6437 = vrot.lane.b32.xlu0 %v5939, 64
    %v6438 = vpop.permute.xlu0 %6437
    %6439 = vrot.lane.b32.xlu0 %v5940, 64
    %v6440 = vpop.permute.xlu0 %6439
    %6441 = vrot.lane.b32.xlu0 %v6434, 64
    %v6442 = vpop.permute.xlu0 %6441
    %v6443 = vsel %vm3360, %v6436, %v6438
    %v6444 = vsel %vm3360, %v6438, %v6440
    %v6445 = vsel %vm3360, %v6440, %v6442
    %v6448 = vsel %vm3364, %v5081, %v6432
    %v6451 = vsel %vm3364, %v5082, %v6433
    %v6454 = vsel %vm3364, %v5083, %v6431
    %v6456 = vsel %vm2503, %v6448, %v6443
    %v6459 = vsel %vm2503, %v6451, %v6444
    %v6462 = vsel %vm2503, %v6454, %v6445
    %6463 = vrot.lane.b32.xlu0 %v6110, 64
    %v6464 = vpop.permute.xlu0 %6463
    %6465 = vrot.lane.b32.xlu0 %v6111, 64
    %v6466 = vpop.permute.xlu0 %6465
    %6467 = vrot.lane.b32.xlu0 %v6112, 64
    %v6468 = vpop.permute.xlu0 %6467
    %6469 = vrot.lane.b32.xlu0 %v6113, 64
    %v6470 = vpop.permute.xlu0 %6469
    %6471 = vrot.lane.b32.xlu0 %v6114, 64
    %v6472 = vpop.permute.xlu0 %6471
    %6473 = vrot.lane.b32.xlu0 %v6115, 64
    %v6474 = vpop.permute.xlu0 %6473
    %6475 = vrot.lane.b32.xlu0 %v6116, 64
    %v6476 = vpop.permute.xlu0 %6475
    %6477 = vrot.lane.b32.xlu0 %v6117, 64
    %v6478 = vpop.permute.xlu0 %6477
    %6479 = vrot.lane.b32.xlu0 %v6118, 64
    %v6480 = vpop.permute.xlu0 %6479
    %6481 = vrot.lane.b32.xlu0 %v6119, 64
    %v6482 = vpop.permute.xlu0 %6481
    %6483 = vrot.lane.b32.xlu0 %v6120, 64
    %v6484 = vpop.permute.xlu0 %6483
    %6485 = vrot.lane.b32.xlu0 %v6121, 64
    %v6486 = vpop.permute.xlu0 %6485
    %6487 = vrot.lane.b32.xlu0 %v6122, 64
    %v6488 = vpop.permute.xlu0 %6487
    %6489 = vrot.lane.b32.xlu0 %v6123, 64
    %v6490 = vpop.permute.xlu0 %6489
    %6491 = vrot.lane.b32.xlu0 %v6124, 64
    %v6492 = vpop.permute.xlu0 %6491
    %6493 = vrot.lane.b32.xlu0 %v6125, 64
    %v6494 = vpop.permute.xlu0 %6493
    %6495 = vrot.lane.b32.xlu0 %v6126, 64
    %v6496 = vpop.permute.xlu0 %6495
    %6497 = vrot.lane.b32.xlu0 %v6127, 64
    %v6498 = vpop.permute.xlu0 %6497
    %6499 = vrot.lane.b32.xlu0 %v6128, 64
    %v6500 = vpop.permute.xlu0 %6499
    %6501 = vrot.lane.b32.xlu0 %v6129, 64
    %v6502 = vpop.permute.xlu0 %6501
    %6503 = vrot.lane.b32.xlu0 %v6130, 64
    %v6504 = vpop.permute.xlu0 %6503
    %6505 = vrot.lane.b32.xlu0 %v6131, 64
    %v6506 = vpop.permute.xlu0 %6505
    %v6529 = vsel %vm3642, %v6462, 0
    %6531 = vmatprep.subr.bf16.mxu0 0
    %6532 = vmatpush1.bf16.msra.mxu0 %v6478
    %6533 = vmatprep.subr.bf16.mxu0 0
    %6534 = vmatpush1.bf16.msra.mxu0 %v6476
    %6535 = vmatprep.subr.bf16.mxu0 0
    %6536 = vmatpush1.bf16.msra.mxu0 %v6474
    %6537 = vmatprep.subr.bf16.mxu0 0
    %6538 = vmatpush1.bf16.msra.mxu0 %v6472
    %6539 = vmatprep.subr.bf16.mxu0 0
    %6540 = vmatpush1.bf16.msra.mxu0 %v6470
    %6541 = vmatprep.subr.bf16.mxu0 0
    %6542 = vmatpush1.bf16.msra.mxu0 %v6468
    %6543 = vmatprep.subr.bf16.mxu0 0
    %6544 = vmatpush1.bf16.msra.mxu0 %v6466
    %6545 = vmatprep.subr.bf16.mxu0 0
    %6546 = vmatpush1.bf16.msra.mxu0 %v6464
    %6547 = vmatprep.subr.bf16.mxu0 0
    %6548 = vmatpush2.bf16.msra.mxu0 %v6494
    %6549 = vmatprep.subr.bf16.mxu0 0
    %6550 = vmatpush2.bf16.msra.mxu0 %v6492
    %6551 = vmatprep.subr.bf16.mxu0 0
    %6552 = vmatpush2.bf16.msra.mxu0 %v6490
    %6553 = vmatprep.subr.bf16.mxu0 0
    %6554 = vmatpush2.bf16.msra.mxu0 %v6488
    %6555 = vmatprep.subr.bf16.mxu0 0
    %6556 = vmatpush2.bf16.msra.mxu0 %v6486
    %6557 = vmatprep.subr.bf16.mxu0 0
    %6558 = vmatpush2.bf16.msra.mxu0 %v6484
    %6559 = vmatprep.subr.bf16.mxu0 0
    %6560 = vmatpush2.bf16.msra.mxu0 %v6482
    %6561 = vmatprep.subr.bf16.mxu0 0
    %6562 = vmatpush2.bf16.msra.mxu0 %v6480
    %6563 = vmatprep.mubr.bf16.mxu0 %v6459
    %6564 = vmatmul.mubr.bf16.gmra.mxu0 %v6456
    %v6565 = vpop.f32.mrf.mxu0
    %v6566 = vadd.f32 0.0, %v6565
    %v6567 = vpop.f32.mrf.mxu0
    %v6568 = vpop.f32.mrf.mxu0
    %v6569 = vpop.f32.mrf.mxu0
    %6570 = vdwg.mxu0
    %6571 = vmatprep.subr.bf16.mxu0 0
    %6572 = vmatpush1.bf16.msra.mxu0 0
    %6573 = vmatprep.subr.bf16.mxu0 0
    %6574 = vmatpush1.bf16.msra.mxu0 0
    %6575 = vmatprep.subr.bf16.mxu0 0
    %6576 = vmatpush1.bf16.msra.mxu0 %v6506
    %6577 = vmatprep.subr.bf16.mxu0 0
    %6578 = vmatpush1.bf16.msra.mxu0 %v6504
    %6579 = vmatprep.subr.bf16.mxu0 0
    %6580 = vmatpush1.bf16.msra.mxu0 %v6502
    %6581 = vmatprep.subr.bf16.mxu0 0
    %6582 = vmatpush1.bf16.msra.mxu0 %v6500
    %6583 = vmatprep.subr.bf16.mxu0 0
    %6584 = vmatpush1.bf16.msra.mxu0 %v6498
    %6585 = vmatprep.subr.bf16.mxu0 0
    %6586 = vmatpush1.bf16.msra.mxu0 %v6496
    %6587 = vmatprep.subr.bf16.mxu0 0
    %6588 = vmatpush2.bf16.msra.mxu0 0
    %6589 = vmatprep.subr.bf16.mxu0 0
    %6590 = vmatpush2.bf16.msra.mxu0 0
    %6591 = vmatprep.subr.bf16.mxu0 0
    %6592 = vmatpush2.bf16.msra.mxu0 0
    %6593 = vmatprep.subr.bf16.mxu0 0
    %6594 = vmatpush2.bf16.msra.mxu0 0
    %6595 = vmatprep.subr.bf16.mxu0 0
    %6596 = vmatpush2.bf16.msra.mxu0 0
    %6597 = vmatprep.subr.bf16.mxu0 0
    %6598 = vmatpush2.bf16.msra.mxu0 0
    %6599 = vmatprep.subr.bf16.mxu0 0
    %6600 = vmatpush2.bf16.msra.mxu0 0
    %6601 = vmatprep.subr.bf16.mxu0 0
    %6602 = vmatpush2.bf16.msra.mxu0 0
    %6603 = vmatprep.mubr.bf16.mxu0 0
    %6604 = vmatmul.mubr.bf16.gmra.mxu0 %v6529
    %v6605 = vpop.f32.mrf.mxu0
    %v6606 = vadd.f32 %v6566, %v6605
    %v6607 = vpop.f32.mrf.mxu0
    %v6608 = vpop.f32.mrf.mxu0
    %v6609 = vpop.f32.mrf.mxu0
    %6610 = vdwg.mxu0
    %v6611 = vadd.f32 %v6425, %v6606
    %6612 = vrot.lane.b32.xlu0 %v5081, 96
    %v6613 = vpop.permute.xlu0 %6612
    %6614 = vrot.lane.b32.xlu0 %v5082, 96
    %v6615 = vpop.permute.xlu0 %6614
    %6616 = vrot.lane.b32.xlu0 %v5083, 96
    %v6617 = vpop.permute.xlu0 %6616
    %v6618 = vsel %vm3344, %v6613, %v6615
    %v6619 = vsel %vm3344, %v6615, %v6617
    %v6620 = vrot.slane %v3327, 5
    %6621 = vrot.lane.b32.xlu0 %v6237, 64
    %v6622 = vpop.permute.xlu0 %6621
    %6623 = vrot.lane.b32.xlu0 %v6238, 64
    %v6624 = vpop.permute.xlu0 %6623
    %6625 = vrot.lane.b32.xlu0 %v6239, 64
    %v6626 = vpop.permute.xlu0 %6625
    %6627 = vrot.lane.b32.xlu0 %v6620, 64
    %v6628 = vpop.permute.xlu0 %6627
    %v6629 = vsel %vm3360, %v6622, %v6624
    %v6630 = vsel %vm3360, %v6624, %v6626
    %v6631 = vsel %vm3360, %v6626, %v6628
    %v6634 = vsel %vm3364, %v5069, %v6618
    %v6637 = vsel %vm3364, %v5070, %v6619
    %v6640 = vsel %vm3364, %v5071, %v6617
    %v6642 = vsel %vm2503, %v6634, %v6629
    %v6645 = vsel %vm2503, %v6637, %v6630
    %v6648 = vsel %vm2503, %v6640, %v6631
    %6649 = vrot.lane.b32.xlu0 %v6110, 32
    %v6650 = vpop.permute.xlu0 %6649
    %6651 = vrot.lane.b32.xlu0 %v6111, 32
    %v6652 = vpop.permute.xlu0 %6651
    %6653 = vrot.lane.b32.xlu0 %v6112, 32
    %v6654 = vpop.permute.xlu0 %6653
    %6655 = vrot.lane.b32.xlu0 %v6113, 32
    %v6656 = vpop.permute.xlu0 %6655
    %6657 = vrot.lane.b32.xlu0 %v6114, 32
    %v6658 = vpop.permute.xlu0 %6657
    %6659 = vrot.lane.b32.xlu0 %v6115, 32
    %v6660 = vpop.permute.xlu0 %6659
    %6661 = vrot.lane.b32.xlu0 %v6116, 32
    %v6662 = vpop.permute.xlu0 %6661
    %6663 = vrot.lane.b32.xlu0 %v6117, 32
    %v6664 = vpop.permute.xlu0 %6663
    %6665 = vrot.lane.b32.xlu0 %v6118, 32
    %v6666 = vpop.permute.xlu0 %6665
    %6667 = vrot.lane.b32.xlu0 %v6119, 32
    %v6668 = vpop.permute.xlu0 %6667
    %6669 = vrot.lane.b32.xlu0 %v6120, 32
    %v6670 = vpop.permute.xlu0 %6669
    %6671 = vrot.lane.b32.xlu0 %v6121, 32
    %v6672 = vpop.permute.xlu0 %6671
    %6673 = vrot.lane.b32.xlu0 %v6122, 32
    %v6674 = vpop.permute.xlu0 %6673
    %6675 = vrot.lane.b32.xlu0 %v6123, 32
    %v6676 = vpop.permute.xlu0 %6675
    %6677 = vrot.lane.b32.xlu0 %v6124, 32
    %v6678 = vpop.permute.xlu0 %6677
    %6679 = vrot.lane.b32.xlu0 %v6125, 32
    %v6680 = vpop.permute.xlu0 %6679
    %6681 = vrot.lane.b32.xlu0 %v6126, 32
    %v6682 = vpop.permute.xlu0 %6681
    %6683 = vrot.lane.b32.xlu0 %v6127, 32
    %v6684 = vpop.permute.xlu0 %6683
    %6685 = vrot.lane.b32.xlu0 %v6128, 32
    %v6686 = vpop.permute.xlu0 %6685
    %6687 = vrot.lane.b32.xlu0 %v6129, 32
    %v6688 = vpop.permute.xlu0 %6687
    %6689 = vrot.lane.b32.xlu0 %v6130, 32
    %v6690 = vpop.permute.xlu0 %6689
    %6691 = vrot.lane.b32.xlu0 %v6131, 32
    %v6692 = vpop.permute.xlu0 %6691
    %v6715 = vsel %vm3642, %v6648, 0
    %6717 = vmatprep.subr.bf16.mxu0 0
    %6718 = vmatpush1.bf16.msra.mxu0 %v6664
    %6719 = vmatprep.subr.bf16.mxu0 0
    %6720 = vmatpush1.bf16.msra.mxu0 %v6662
    %6721 = vmatprep.subr.bf16.mxu0 0
    %6722 = vmatpush1.bf16.msra.mxu0 %v6660
    %6723 = vmatprep.subr.bf16.mxu0 0
    %6724 = vmatpush1.bf16.msra.mxu0 %v6658
    %6725 = vmatprep.subr.bf16.mxu0 0
    %6726 = vmatpush1.bf16.msra.mxu0 %v6656
    %6727 = vmatprep.subr.bf16.mxu0 0
    %6728 = vmatpush1.bf16.msra.mxu0 %v6654
    %6729 = vmatprep.subr.bf16.mxu0 0
    %6730 = vmatpush1.bf16.msra.mxu0 %v6652
    %6731 = vmatprep.subr.bf16.mxu0 0
    %6732 = vmatpush1.bf16.msra.mxu0 %v6650
    %6733 = vmatprep.subr.bf16.mxu0 0
    %6734 = vmatpush2.bf16.msra.mxu0 %v6680
    %6735 = vmatprep.subr.bf16.mxu0 0
    %6736 = vmatpush2.bf16.msra.mxu0 %v6678
    %6737 = vmatprep.subr.bf16.mxu0 0
    %6738 = vmatpush2.bf16.msra.mxu0 %v6676
    %6739 = vmatprep.subr.bf16.mxu0 0
    %6740 = vmatpush2.bf16.msra.mxu0 %v6674
    %6741 = vmatprep.subr.bf16.mxu0 0
    %6742 = vmatpush2.bf16.msra.mxu0 %v6672
    %6743 = vmatprep.subr.bf16.mxu0 0
    %6744 = vmatpush2.bf16.msra.mxu0 %v6670
    %6745 = vmatprep.subr.bf16.mxu0 0
    %6746 = vmatpush2.bf16.msra.mxu0 %v6668
    %6747 = vmatprep.subr.bf16.mxu0 0
    %6748 = vmatpush2.bf16.msra.mxu0 %v6666
    %6749 = vmatprep.mubr.bf16.mxu0 %v6645
    %6750 = vmatmul.mubr.bf16.gmra.mxu0 %v6642
    %v6751 = vpop.f32.mrf.mxu0
    %v6752 = vadd.f32 0.0, %v6751
    %v6753 = vpop.f32.mrf.mxu0
    %v6754 = vpop.f32.mrf.mxu0
    %v6755 = vpop.f32.mrf.mxu0
    %6756 = vdwg.mxu0
    %6757 = vmatprep.subr.bf16.mxu0 0
    %6758 = vmatpush1.bf16.msra.mxu0 0
    %6759 = vmatprep.subr.bf16.mxu0 0
    %6760 = vmatpush1.bf16.msra.mxu0 0
    %6761 = vmatprep.subr.bf16.mxu0 0
    %6762 = vmatpush1.bf16.msra.mxu0 %v6692
    %6763 = vmatprep.subr.bf16.mxu0 0
    %6764 = vmatpush1.bf16.msra.mxu0 %v6690
    %6765 = vmatprep.subr.bf16.mxu0 0
    %6766 = vmatpush1.bf16.msra.mxu0 %v6688
    %6767 = vmatprep.subr.bf16.mxu0 0
    %6768 = vmatpush1.bf16.msra.mxu0 %v6686
    %6769 = vmatprep.subr.bf16.mxu0 0
    %6770 = vmatpush1.bf16.msra.mxu0 %v6684
    %6771 = vmatprep.subr.bf16.mxu0 0
    %6772 = vmatpush1.bf16.msra.mxu0 %v6682
    %6773 = vmatprep.subr.bf16.mxu0 0
    %6774 = vmatpush2.bf16.msra.mxu0 0
    %6775 = vmatprep.subr.bf16.mxu0 0
    %6776 = vmatpush2.bf16.msra.mxu0 0
    %6777 = vmatprep.subr.bf16.mxu0 0
    %6778 = vmatpush2.bf16.msra.mxu0 0
    %6779 = vmatprep.subr.bf16.mxu0 0
    %6780 = vmatpush2.bf16.msra.mxu0 0
    %6781 = vmatprep.subr.bf16.mxu0 0
    %6782 = vmatpush2.bf16.msra.mxu0 0
    %6783 = vmatprep.subr.bf16.mxu0 0
    %6784 = vmatpush2.bf16.msra.mxu0 0
    %6785 = vmatprep.subr.bf16.mxu0 0
    %6786 = vmatpush2.bf16.msra.mxu0 0
    %6787 = vmatprep.subr.bf16.mxu0 0
    %6788 = vmatpush2.bf16.msra.mxu0 0
    %6789 = vmatprep.mubr.bf16.mxu0 0
    %6790 = vmatmul.mubr.bf16.gmra.mxu0 %v6715
    %v6791 = vpop.f32.mrf.mxu0
    %v6792 = vadd.f32 %v6752, %v6791
    %v6793 = vpop.f32.mrf.mxu0
    %v6794 = vpop.f32.mrf.mxu0
    %v6795 = vpop.f32.mrf.mxu0
    %6796 = vdwg.mxu0
    %v6797 = vadd.f32 %v6611, %v6792
    %v6801 = vrot.slane %v3328, 7
    %v6802 = vrot.slane %v3329, 7
    %v6803 = vrot.slane %v3330, 7
    %6804 = vrot.lane.b32.xlu0 %v6801, 96
    %v6805 = vpop.permute.xlu0 %6804
    %6806 = vrot.lane.b32.xlu0 %v6802, 96
    %v6807 = vpop.permute.xlu0 %6806
    %6808 = vrot.lane.b32.xlu0 %v6803, 96
    %v6809 = vpop.permute.xlu0 %6808
    %v6810 = vsel %vm3344, %v6805, %v6807
    %v6811 = vsel %vm3344, %v6807, %v6809
    %v6813 = vrot.slane %v3328, 6
    %v6814 = vrot.slane %v3329, 6
    %v6815 = vrot.slane %v3330, 6
    %v6816 = vrot.slane %v3331, 6
    %6817 = vrot.lane.b32.xlu0 %v6813, 64
    %v6818 = vpop.permute.xlu0 %6817
    %6819 = vrot.lane.b32.xlu0 %v6814, 64
    %v6820 = vpop.permute.xlu0 %6819
    %6821 = vrot.lane.b32.xlu0 %v6815, 64
    %v6822 = vpop.permute.xlu0 %6821
    %6823 = vrot.lane.b32.xlu0 %v6816, 64
    %v6824 = vpop.permute.xlu0 %6823
    %v6825 = vsel %vm3360, %v6818, %v6820
    %v6826 = vsel %vm3360, %v6820, %v6822
    %v6827 = vsel %vm3360, %v6822, %v6824
    %v6830 = vsel %vm3364, %v3328, %v6810
    %v6833 = vsel %vm3364, %v3329, %v6811
    %v6836 = vsel %vm3364, %v3330, %v6809
    %v6838 = vsel %vm2503, %v6830, %v6825
    %v6841 = vsel %vm2503, %v6833, %v6826
    %v6844 = vsel %vm2503, %v6836, %v6827
    %v6845 = vld [vmem:[%s2 + $0x10] sm:$0xf]
    %v6846 = vld [vmem:[%s2 + $0x28] sm:$0xf]
    %v6847 = vld [vmem:[%s2 + $0x40] sm:$0xf]
    %v6848 = vld [vmem:[%s2 + $0x58] sm:$0xf]
    %v6849 = vld [vmem:[%s2 + $0x70] sm:$0xf]
    %v6850 = vld [vmem:[%s2 + $0x88] sm:$0xf]
    %v6851 = vld [vmem:[%s2 + $0xa0] sm:$0xf]
    %v6852 = vld [vmem:[%s2 + $0xb8] sm:$0xf]
    %v6853 = vld [vmem:[%s2 + $0xd0] sm:$0xf]
    %v6854 = vld [vmem:[%s2 + $0xe8] sm:$0xf]
    %v6855 = vld [vmem:[%s2 + $0x100] sm:$0xf]
    %v6856 = vld [vmem:[%s2 + $0x118] sm:$0xf]
    %v6857 = vld [vmem:[%s2 + $0x130] sm:$0xf]
    %v6858 = vld [vmem:[%s2 + $0x148] sm:$0xf]
    %v6859 = vld [vmem:[%s2 + $0x160] sm:$0xf]
    %v6860 = vld [vmem:[%s2 + $0x178] sm:$0xf]
    %v6861 = vld [vmem:[%s2 + $0x190] sm:$0xf]
    %v6862 = vld [vmem:[%s2 + $0x1a8] sm:$0xf]
    %v6863 = vld [vmem:[%s2 + $0x1c0] sm:$0xf]
    %v6864 = vld [vmem:[%s2 + $0x1d8] sm:$0xf]
    %v6865 = vld [vmem:[%s2 + $0x1f0] sm:$0xf]
    %v6866 = vld [vmem:[%s2 + $0x208] sm:$0xf]
    %v6867 = vld [vmem:[%s2 + $0x220] sm:$0xf]
    %v6868 = vld [vmem:[%s2 + $0x238] sm:$0xf]
    %v6869 = vld [vmem:[%s2 + $0x250] sm:$0xf]
    %v6870 = vld [vmem:[%s2 + $0x268] sm:$0xf]
    %v6871 = vld [vmem:[%s2 + $0x280] sm:$0xf]
    %v6872 = vld [vmem:[%s2 + $0x298] sm:$0xf]
    %v6873 = vld [vmem:[%s2 + $0x2b0] sm:$0xf]
    %v6874 = vld [vmem:[%s2 + $0x2c8] sm:$0xf]
    %v6875 = vld [vmem:[%s2 + $0x2e0] sm:$0xf]
    %v6876 = vld [vmem:[%s2 + $0x2f8] sm:$0xf]
    %v6877 = vld [vmem:[%s2 + $0x310] sm:$0xf]
    %v6878 = vld [vmem:[%s2 + $0x328] sm:$0xf]
    %v6879 = vld [vmem:[%s2 + $0x340] sm:$0xf]
    %v6880 = vld [vmem:[%s2 + $0x358] sm:$0xf]
    %v6881 = vld [vmem:[%s2 + $0x370] sm:$0xf]
    %v6882 = vld [vmem:[%s2 + $0x388] sm:$0xf]
    %v6883 = vld [vmem:[%s2 + $0x3a0] sm:$0xf]
    %v6884 = vld [vmem:[%s2 + $0x3b8] sm:$0xf]
    %v6885 = vld [vmem:[%s2 + $0x3d0] sm:$0xf]
    %v6886 = vld [vmem:[%s2 + $0x3e8] sm:$0xf]
    %v6887 = vld [vmem:[%s2 + $0x400] sm:$0xf]
    %v6888 = vld [vmem:[%s2 + $0x418] sm:$0xf]
    %v6933 = vunpack.c.l.b16 %v6845
    %v6934 = vunpack.c.l.b16 %v6846
    %v6935 = vunpack.c.l.b16 %v6847
    %v6936 = vunpack.c.l.b16 %v6848
    %v6937 = vunpack.c.l.b16 %v6849
    %v6938 = vunpack.c.l.b16 %v6850
    %v6939 = vunpack.c.l.b16 %v6851
    %v6940 = vunpack.c.l.b16 %v6852
    %v6941 = vunpack.c.l.b16 %v6853
    %v6942 = vunpack.c.l.b16 %v6854
    %v6943 = vunpack.c.l.b16 %v6855
    %v6944 = vunpack.c.l.b16 %v6856
    %v6945 = vunpack.c.l.b16 %v6857
    %v6946 = vunpack.c.l.b16 %v6858
    %v6947 = vunpack.c.l.b16 %v6859
    %v6948 = vunpack.c.l.b16 %v6860
    %v6949 = vunpack.c.l.b16 %v6861
    %v6950 = vunpack.c.l.b16 %v6862
    %v6951 = vunpack.c.l.b16 %v6863
    %v6952 = vunpack.c.l.b16 %v6864
    %v6953 = vunpack.c.l.b16 %v6865
    %v6954 = vunpack.c.l.b16 %v6866
    %v6955 = vunpack.c.l.b16 %v6867
    %v6956 = vunpack.c.l.b16 %v6868
    %v6957 = vunpack.c.l.b16 %v6869
    %v6958 = vunpack.c.l.b16 %v6870
    %v6959 = vunpack.c.l.b16 %v6871
    %v6960 = vunpack.c.l.b16 %v6872
    %v6961 = vunpack.c.l.b16 %v6873
    %v6962 = vunpack.c.l.b16 %v6874
    %v6963 = vunpack.c.l.b16 %v6875
    %v6964 = vunpack.c.l.b16 %v6876
    %v6965 = vunpack.c.l.b16 %v6877
    %v6966 = vunpack.c.l.b16 %v6878
    %v6967 = vunpack.c.l.b16 %v6879
    %v6968 = vunpack.c.l.b16 %v6880
    %v6969 = vunpack.c.l.b16 %v6881
    %v6970 = vunpack.c.l.b16 %v6882
    %v6971 = vunpack.c.l.b16 %v6883
    %v6972 = vunpack.c.l.b16 %v6884
    %v6973 = vunpack.c.l.b16 %v6885
    %v6974 = vunpack.c.l.b16 %v6886
    %v6975 = vunpack.c.l.b16 %v6887
    %v6976 = vunpack.c.l.b16 %v6888
    %v6977 = vpack.c.b16 %v6934, %v6933
    %v6978 = vpack.c.b16 %v6936, %v6935
    %v6979 = vpack.c.b16 %v6938, %v6937
    %v6980 = vpack.c.b16 %v6940, %v6939
    %v6981 = vpack.c.b16 %v6942, %v6941
    %v6982 = vpack.c.b16 %v6944, %v6943
    %v6983 = vpack.c.b16 %v6946, %v6945
    %v6984 = vpack.c.b16 %v6948, %v6947
    %v6985 = vpack.c.b16 %v6950, %v6949
    %v6986 = vpack.c.b16 %v6952, %v6951
    %v6987 = vpack.c.b16 %v6954, %v6953
    %v6988 = vpack.c.b16 %v6956, %v6955
    %v6989 = vpack.c.b16 %v6958, %v6957
    %v6990 = vpack.c.b16 %v6960, %v6959
    %v6991 = vpack.c.b16 %v6962, %v6961
    %v6992 = vpack.c.b16 %v6964, %v6963
    %v6993 = vpack.c.b16 %v6966, %v6965
    %v6994 = vpack.c.b16 %v6968, %v6967
    %v6995 = vpack.c.b16 %v6970, %v6969
    %v6996 = vpack.c.b16 %v6972, %v6971
    %v6997 = vpack.c.b16 %v6974, %v6973
    %v6998 = vpack.c.b16 %v6976, %v6975
    %v7021 = vsel %vm3642, %v6844, 0
    %7023 = vmatprep.subr.bf16.mxu0 0
    %7024 = vmatpush1.bf16.msra.mxu0 %v6984
    %7025 = vmatprep.subr.bf16.mxu0 0
    %7026 = vmatpush1.bf16.msra.mxu0 %v6983
    %7027 = vmatprep.subr.bf16.mxu0 0
    %7028 = vmatpush1.bf16.msra.mxu0 %v6982
    %7029 = vmatprep.subr.bf16.mxu0 0
    %7030 = vmatpush1.bf16.msra.mxu0 %v6981
    %7031 = vmatprep.subr.bf16.mxu0 0
    %7032 = vmatpush1.bf16.msra.mxu0 %v6980
    %7033 = vmatprep.subr.bf16.mxu0 0
    %7034 = vmatpush1.bf16.msra.mxu0 %v6979
    %7035 = vmatprep.subr.bf16.mxu0 0
    %7036 = vmatpush1.bf16.msra.mxu0 %v6978
    %7037 = vmatprep.subr.bf16.mxu0 0
    %7038 = vmatpush1.bf16.msra.mxu0 %v6977
    %7039 = vmatprep.subr.bf16.mxu0 0
    %7040 = vmatpush2.bf16.msra.mxu0 %v6992
    %7041 = vmatprep.subr.bf16.mxu0 0
    %7042 = vmatpush2.bf16.msra.mxu0 %v6991
    %7043 = vmatprep.subr.bf16.mxu0 0
    %7044 = vmatpush2.bf16.msra.mxu0 %v6990
    %7045 = vmatprep.subr.bf16.mxu0 0
    %7046 = vmatpush2.bf16.msra.mxu0 %v6989
    %7047 = vmatprep.subr.bf16.mxu0 0
    %7048 = vmatpush2.bf16.msra.mxu0 %v6988
    %7049 = vmatprep.subr.bf16.mxu0 0
    %7050 = vmatpush2.bf16.msra.mxu0 %v6987
    %7051 = vmatprep.subr.bf16.mxu0 0
    %7052 = vmatpush2.bf16.msra.mxu0 %v6986
    %7053 = vmatprep.subr.bf16.mxu0 0
    %7054 = vmatpush2.bf16.msra.mxu0 %v6985
    %7055 = vmatprep.mubr.bf16.mxu0 %v6841
    %7056 = vmatmul.mubr.bf16.gmra.mxu0 %v6838
    %v7057 = vpop.f32.mrf.mxu0
    %v7058 = vadd.f32 0.0, %v7057
    %v7059 = vpop.f32.mrf.mxu0
    %v7060 = vpop.f32.mrf.mxu0
    %v7061 = vpop.f32.mrf.mxu0
    %7062 = vdwg.mxu0
    %7063 = vmatprep.subr.bf16.mxu0 0
    %7064 = vmatpush1.bf16.msra.mxu0 0
    %7065 = vmatprep.subr.bf16.mxu0 0
    %7066 = vmatpush1.bf16.msra.mxu0 0
    %7067 = vmatprep.subr.bf16.mxu0 0
    %7068 = vmatpush1.bf16.msra.mxu0 %v6998
    %7069 = vmatprep.subr.bf16.mxu0 0
    %7070 = vmatpush1.bf16.msra.mxu0 %v6997
    %7071 = vmatprep.subr.bf16.mxu0 0
    %7072 = vmatpush1.bf16.msra.mxu0 %v6996
    %7073 = vmatprep.subr.bf16.mxu0 0
    %7074 = vmatpush1.bf16.msra.mxu0 %v6995
    %7075 = vmatprep.subr.bf16.mxu0 0
    %7076 = vmatpush1.bf16.msra.mxu0 %v6994
    %7077 = vmatprep.subr.bf16.mxu0 0
    %7078 = vmatpush1.bf16.msra.mxu0 %v6993
    %7079 = vmatprep.subr.bf16.mxu0 0
    %7080 = vmatpush2.bf16.msra.mxu0 0
    %7081 = vmatprep.subr.bf16.mxu0 0
    %7082 = vmatpush2.bf16.msra.mxu0 0
    %7083 = vmatprep.subr.bf16.mxu0 0
    %7084 = vmatpush2.bf16.msra.mxu0 0
    %7085 = vmatprep.subr.bf16.mxu0 0
    %7086 = vmatpush2.bf16.msra.mxu0 0
    %7087 = vmatprep.subr.bf16.mxu0 0
    %7088 = vmatpush2.bf16.msra.mxu0 0
    %7089 = vmatprep.subr.bf16.mxu0 0
    %7090 = vmatpush2.bf16.msra.mxu0 0
    %7091 = vmatprep.subr.bf16.mxu0 0
    %7092 = vmatpush2.bf16.msra.mxu0 0
    %7093 = vmatprep.subr.bf16.mxu0 0
    %7094 = vmatpush2.bf16.msra.mxu0 0
    %7095 = vmatprep.mubr.bf16.mxu0 0
    %7096 = vmatmul.mubr.bf16.gmra.mxu0 %v7021
    %v7097 = vpop.f32.mrf.mxu0
    %v7098 = vadd.f32 %v7058, %v7097
    %v7099 = vpop.f32.mrf.mxu0
    %v7100 = vpop.f32.mrf.mxu0
    %v7101 = vpop.f32.mrf.mxu0
    %7102 = vdwg.mxu0
    %v7103 = vadd.f32 %v6797, %v7098
    %v7104 = vrot.slane %v3328, 1
    %v7105 = vrot.slane %v3329, 1
    %v7106 = vrot.slane %v3330, 1
    %7107 = vrot.lane.b32.xlu0 %v3328, 96
    %v7108 = vpop.permute.xlu0 %7107
    %7109 = vrot.lane.b32.xlu0 %v3329, 96
    %v7110 = vpop.permute.xlu0 %7109
    %7111 = vrot.lane.b32.xlu0 %v3330, 96
    %v7112 = vpop.permute.xlu0 %7111
    %v7113 = vsel %vm3344, %v7108, %v7110
    %v7114 = vsel %vm3344, %v7110, %v7112
    %v7115 = vrot.slane %v3331, 7
    %7116 = vrot.lane.b32.xlu0 %v6801, 64
    %v7117 = vpop.permute.xlu0 %7116
    %7118 = vrot.lane.b32.xlu0 %v6802, 64
    %v7119 = vpop.permute.xlu0 %7118
    %7120 = vrot.lane.b32.xlu0 %v6803, 64
    %v7121 = vpop.permute.xlu0 %7120
    %7122 = vrot.lane.b32.xlu0 %v7115, 64
    %v7123 = vpop.permute.xlu0 %7122
    %v7124 = vsel %vm3360, %v7117, %v7119
    %v7125 = vsel %vm3360, %v7119, %v7121
    %v7126 = vsel %vm3360, %v7121, %v7123
    %v7129 = vsel %vm3364, %v7104, %v7113
    %v7132 = vsel %vm3364, %v7105, %v7114
    %v7135 = vsel %vm3364, %v7106, %v7112
    %v7137 = vsel %vm2503, %v7129, %v7124
    %v7140 = vsel %vm2503, %v7132, %v7125
    %v7143 = vsel %vm2503, %v7135, %v7126
    %7144 = vrot.lane.b32.xlu0 %v6977, 96
    %v7145 = vpop.permute.xlu0 %7144
    %7146 = vrot.lane.b32.xlu0 %v6978, 96
    %v7147 = vpop.permute.xlu0 %7146
    %7148 = vrot.lane.b32.xlu0 %v6979, 96
    %v7149 = vpop.permute.xlu0 %7148
    %7150 = vrot.lane.b32.xlu0 %v6980, 96
    %v7151 = vpop.permute.xlu0 %7150
    %7152 = vrot.lane.b32.xlu0 %v6981, 96
    %v7153 = vpop.permute.xlu0 %7152
    %7154 = vrot.lane.b32.xlu0 %v6982, 96
    %v7155 = vpop.permute.xlu0 %7154
    %7156 = vrot.lane.b32.xlu0 %v6983, 96
    %v7157 = vpop.permute.xlu0 %7156
    %7158 = vrot.lane.b32.xlu0 %v6984, 96
    %v7159 = vpop.permute.xlu0 %7158
    %7160 = vrot.lane.b32.xlu0 %v6985, 96
    %v7161 = vpop.permute.xlu0 %7160
    %7162 = vrot.lane.b32.xlu0 %v6986, 96
    %v7163 = vpop.permute.xlu0 %7162
    %7164 = vrot.lane.b32.xlu0 %v6987, 96
    %v7165 = vpop.permute.xlu0 %7164
    %7166 = vrot.lane.b32.xlu0 %v6988, 96
    %v7167 = vpop.permute.xlu0 %7166
    %7168 = vrot.lane.b32.xlu0 %v6989, 96
    %v7169 = vpop.permute.xlu0 %7168
    %7170 = vrot.lane.b32.xlu0 %v6990, 96
    %v7171 = vpop.permute.xlu0 %7170
    %7172 = vrot.lane.b32.xlu0 %v6991, 96
    %v7173 = vpop.permute.xlu0 %7172
    %7174 = vrot.lane.b32.xlu0 %v6992, 96
    %v7175 = vpop.permute.xlu0 %7174
    %7176 = vrot.lane.b32.xlu0 %v6993, 96
    %v7177 = vpop.permute.xlu0 %7176
    %7178 = vrot.lane.b32.xlu0 %v6994, 96
    %v7179 = vpop.permute.xlu0 %7178
    %7180 = vrot.lane.b32.xlu0 %v6995, 96
    %v7181 = vpop.permute.xlu0 %7180
    %7182 = vrot.lane.b32.xlu0 %v6996, 96
    %v7183 = vpop.permute.xlu0 %7182
    %7184 = vrot.lane.b32.xlu0 %v6997, 96
    %v7185 = vpop.permute.xlu0 %7184
    %7186 = vrot.lane.b32.xlu0 %v6998, 96
    %v7187 = vpop.permute.xlu0 %7186
    %v7210 = vsel %vm3642, %v7143, 0
    %7212 = vmatprep.subr.bf16.mxu0 0
    %7213 = vmatpush1.bf16.msra.mxu0 %v7159
    %7214 = vmatprep.subr.bf16.mxu0 0
    %7215 = vmatpush1.bf16.msra.mxu0 %v7157
    %7216 = vmatprep.subr.bf16.mxu0 0
    %7217 = vmatpush1.bf16.msra.mxu0 %v7155
    %7218 = vmatprep.subr.bf16.mxu0 0
    %7219 = vmatpush1.bf16.msra.mxu0 %v7153
    %7220 = vmatprep.subr.bf16.mxu0 0
    %7221 = vmatpush1.bf16.msra.mxu0 %v7151
    %7222 = vmatprep.subr.bf16.mxu0 0
    %7223 = vmatpush1.bf16.msra.mxu0 %v7149
    %7224 = vmatprep.subr.bf16.mxu0 0
    %7225 = vmatpush1.bf16.msra.mxu0 %v7147
    %7226 = vmatprep.subr.bf16.mxu0 0
    %7227 = vmatpush1.bf16.msra.mxu0 %v7145
    %7228 = vmatprep.subr.bf16.mxu0 0
    %7229 = vmatpush2.bf16.msra.mxu0 %v7175
    %7230 = vmatprep.subr.bf16.mxu0 0
    %7231 = vmatpush2.bf16.msra.mxu0 %v7173
    %7232 = vmatprep.subr.bf16.mxu0 0
    %7233 = vmatpush2.bf16.msra.mxu0 %v7171
    %7234 = vmatprep.subr.bf16.mxu0 0
    %7235 = vmatpush2.bf16.msra.mxu0 %v7169
    %7236 = vmatprep.subr.bf16.mxu0 0
    %7237 = vmatpush2.bf16.msra.mxu0 %v7167
    %7238 = vmatprep.subr.bf16.mxu0 0
    %7239 = vmatpush2.bf16.msra.mxu0 %v7165
    %7240 = vmatprep.subr.bf16.mxu0 0
    %7241 = vmatpush2.bf16.msra.mxu0 %v7163
    %7242 = vmatprep.subr.bf16.mxu0 0
    %7243 = vmatpush2.bf16.msra.mxu0 %v7161
    %7244 = vmatprep.mubr.bf16.mxu0 %v7140
    %7245 = vmatmul.mubr.bf16.gmra.mxu0 %v7137
    %v7246 = vpop.f32.mrf.mxu0
    %v7247 = vadd.f32 0.0, %v7246
    %v7248 = vpop.f32.mrf.mxu0
    %v7249 = vpop.f32.mrf.mxu0
    %v7250 = vpop.f32.mrf.mxu0
    %7251 = vdwg.mxu0
    %7252 = vmatprep.subr.bf16.mxu0 0
    %7253 = vmatpush1.bf16.msra.mxu0 0
    %7254 = vmatprep.subr.bf16.mxu0 0
    %7255 = vmatpush1.bf16.msra.mxu0 0
    %7256 = vmatprep.subr.bf16.mxu0 0
    %7257 = vmatpush1.bf16.msra.mxu0 %v7187
    %7258 = vmatprep.subr.bf16.mxu0 0
    %7259 = vmatpush1.bf16.msra.mxu0 %v7185
    %7260 = vmatprep.subr.bf16.mxu0 0
    %7261 = vmatpush1.bf16.msra.mxu0 %v7183
    %7262 = vmatprep.subr.bf16.mxu0 0
    %7263 = vmatpush1.bf16.msra.mxu0 %v7181
    %7264 = vmatprep.subr.bf16.mxu0 0
    %7265 = vmatpush1.bf16.msra.mxu0 %v7179
    %7266 = vmatprep.subr.bf16.mxu0 0
    %7267 = vmatpush1.bf16.msra.mxu0 %v7177
    %7268 = vmatprep.subr.bf16.mxu0 0
    %7269 = vmatpush2.bf16.msra.mxu0 0
    %7270 = vmatprep.subr.bf16.mxu0 0
    %7271 = vmatpush2.bf16.msra.mxu0 0
    %7272 = vmatprep.subr.bf16.mxu0 0
    %7273 = vmatpush2.bf16.msra.mxu0 0
    %7274 = vmatprep.subr.bf16.mxu0 0
    %7275 = vmatpush2.bf16.msra.mxu0 0
    %7276 = vmatprep.subr.bf16.mxu0 0
    %7277 = vmatpush2.bf16.msra.mxu0 0
    %7278 = vmatprep.subr.bf16.mxu0 0
    %7279 = vmatpush2.bf16.msra.mxu0 0
    %7280 = vmatprep.subr.bf16.mxu0 0
    %7281 = vmatpush2.bf16.msra.mxu0 0
    %7282 = vmatprep.subr.bf16.mxu0 0
    %7283 = vmatpush2.bf16.msra.mxu0 0
    %7284 = vmatprep.mubr.bf16.mxu0 0
    %7285 = vmatmul.mubr.bf16.gmra.mxu0 %v7210
    %v7286 = vpop.f32.mrf.mxu0
    %v7287 = vadd.f32 %v7247, %v7286
    %v7288 = vpop.f32.mrf.mxu0
    %v7289 = vpop.f32.mrf.mxu0
    %v7290 = vpop.f32.mrf.mxu0
    %7291 = vdwg.mxu0
    %v7292 = vadd.f32 %v7103, %v7287
    %v7293 = vrot.slane %v3328, 2
    %v7294 = vrot.slane %v3329, 2
    %v7295 = vrot.slane %v3330, 2
    %7296 = vrot.lane.b32.xlu0 %v7104, 96
    %v7297 = vpop.permute.xlu0 %7296
    %7298 = vrot.lane.b32.xlu0 %v7105, 96
    %v7299 = vpop.permute.xlu0 %7298
    %7300 = vrot.lane.b32.xlu0 %v7106, 96
    %v7301 = vpop.permute.xlu0 %7300
    %v7302 = vsel %vm3344, %v7297, %v7299
    %v7303 = vsel %vm3344, %v7299, %v7301
    %7304 = vrot.lane.b32.xlu0 %v3328, 64
    %v7305 = vpop.permute.xlu0 %7304
    %7306 = vrot.lane.b32.xlu0 %v3329, 64
    %v7307 = vpop.permute.xlu0 %7306
    %7308 = vrot.lane.b32.xlu0 %v3330, 64
    %v7309 = vpop.permute.xlu0 %7308
    %7310 = vrot.lane.b32.xlu0 %v3331, 64
    %v7311 = vpop.permute.xlu0 %7310
    %v7312 = vsel %vm3360, %v7305, %v7307
    %v7313 = vsel %vm3360, %v7307, %v7309
    %v7314 = vsel %vm3360, %v7309, %v7311
    %v7317 = vsel %vm3364, %v7293, %v7302
    %v7320 = vsel %vm3364, %v7294, %v7303
    %v7323 = vsel %vm3364, %v7295, %v7301
    %v7325 = vsel %vm2503, %v7317, %v7312
    %v7328 = vsel %vm2503, %v7320, %v7313
    %v7331 = vsel %vm2503, %v7323, %v7314
    %7332 = vrot.lane.b32.xlu0 %v6977, 64
    %v7333 = vpop.permute.xlu0 %7332
    %7334 = vrot.lane.b32.xlu0 %v6978, 64
    %v7335 = vpop.permute.xlu0 %7334
    %7336 = vrot.lane.b32.xlu0 %v6979, 64
    %v7337 = vpop.permute.xlu0 %7336
    %7338 = vrot.lane.b32.xlu0 %v6980, 64
    %v7339 = vpop.permute.xlu0 %7338
    %7340 = vrot.lane.b32.xlu0 %v6981, 64
    %v7341 = vpop.permute.xlu0 %7340
    %7342 = vrot.lane.b32.xlu0 %v6982, 64
    %v7343 = vpop.permute.xlu0 %7342
    %7344 = vrot.lane.b32.xlu0 %v6983, 64
    %v7345 = vpop.permute.xlu0 %7344
    %7346 = vrot.lane.b32.xlu0 %v6984, 64
    %v7347 = vpop.permute.xlu0 %7346
    %7348 = vrot.lane.b32.xlu0 %v6985, 64
    %v7349 = vpop.permute.xlu0 %7348
    %7350 = vrot.lane.b32.xlu0 %v6986, 64
    %v7351 = vpop.permute.xlu0 %7350
    %7352 = vrot.lane.b32.xlu0 %v6987, 64
    %v7353 = vpop.permute.xlu0 %7352
    %7354 = vrot.lane.b32.xlu0 %v6988, 64
    %v7355 = vpop.permute.xlu0 %7354
    %7356 = vrot.lane.b32.xlu0 %v6989, 64
    %v7357 = vpop.permute.xlu0 %7356
    %7358 = vrot.lane.b32.xlu0 %v6990, 64
    %v7359 = vpop.permute.xlu0 %7358
    %7360 = vrot.lane.b32.xlu0 %v6991, 64
    %v7361 = vpop.permute.xlu0 %7360
    %7362 = vrot.lane.b32.xlu0 %v6992, 64
    %v7363 = vpop.permute.xlu0 %7362
    %7364 = vrot.lane.b32.xlu0 %v6993, 64
    %v7365 = vpop.permute.xlu0 %7364
    %7366 = vrot.lane.b32.xlu0 %v6994, 64
    %v7367 = vpop.permute.xlu0 %7366
    %7368 = vrot.lane.b32.xlu0 %v6995, 64
    %v7369 = vpop.permute.xlu0 %7368
    %7370 = vrot.lane.b32.xlu0 %v6996, 64
    %v7371 = vpop.permute.xlu0 %7370
    %7372 = vrot.lane.b32.xlu0 %v6997, 64
    %v7373 = vpop.permute.xlu0 %7372
    %7374 = vrot.lane.b32.xlu0 %v6998, 64
    %v7375 = vpop.permute.xlu0 %7374
    %v7398 = vsel %vm3642, %v7331, 0
    %7400 = vmatprep.subr.bf16.mxu0 0
    %7401 = vmatpush1.bf16.msra.mxu0 %v7347
    %7402 = vmatprep.subr.bf16.mxu0 0
    %7403 = vmatpush1.bf16.msra.mxu0 %v7345
    %7404 = vmatprep.subr.bf16.mxu0 0
    %7405 = vmatpush1.bf16.msra.mxu0 %v7343
    %7406 = vmatprep.subr.bf16.mxu0 0
    %7407 = vmatpush1.bf16.msra.mxu0 %v7341
    %7408 = vmatprep.subr.bf16.mxu0 0
    %7409 = vmatpush1.bf16.msra.mxu0 %v7339
    %7410 = vmatprep.subr.bf16.mxu0 0
    %7411 = vmatpush1.bf16.msra.mxu0 %v7337
    %7412 = vmatprep.subr.bf16.mxu0 0
    %7413 = vmatpush1.bf16.msra.mxu0 %v7335
    %7414 = vmatprep.subr.bf16.mxu0 0
    %7415 = vmatpush1.bf16.msra.mxu0 %v7333
    %7416 = vmatprep.subr.bf16.mxu0 0
    %7417 = vmatpush2.bf16.msra.mxu0 %v7363
    %7418 = vmatprep.subr.bf16.mxu0 0
    %7419 = vmatpush2.bf16.msra.mxu0 %v7361
    %7420 = vmatprep.subr.bf16.mxu0 0
    %7421 = vmatpush2.bf16.msra.mxu0 %v7359
    %7422 = vmatprep.subr.bf16.mxu0 0
    %7423 = vmatpush2.bf16.msra.mxu0 %v7357
    %7424 = vmatprep.subr.bf16.mxu0 0
    %7425 = vmatpush2.bf16.msra.mxu0 %v7355
    %7426 = vmatprep.subr.bf16.mxu0 0
    %7427 = vmatpush2.bf16.msra.mxu0 %v7353
    %7428 = vmatprep.subr.bf16.mxu0 0
    %7429 = vmatpush2.bf16.msra.mxu0 %v7351
    %7430 = vmatprep.subr.bf16.mxu0 0
    %7431 = vmatpush2.bf16.msra.mxu0 %v7349
    %7432 = vmatprep.mubr.bf16.mxu0 %v7328
    %7433 = vmatmul.mubr.bf16.gmra.mxu0 %v7325
    %v7434 = vpop.f32.mrf.mxu0
    %v7435 = vadd.f32 0.0, %v7434
    %v7436 = vpop.f32.mrf.mxu0
    %v7437 = vpop.f32.mrf.mxu0
    %v7438 = vpop.f32.mrf.mxu0
    %7439 = vdwg.mxu0
    %7440 = vmatprep.subr.bf16.mxu0 0
    %7441 = vmatpush1.bf16.msra.mxu0 0
    %7442 = vmatprep.subr.bf16.mxu0 0
    %7443 = vmatpush1.bf16.msra.mxu0 0
    %7444 = vmatprep.subr.bf16.mxu0 0
    %7445 = vmatpush1.bf16.msra.mxu0 %v7375
    %7446 = vmatprep.subr.bf16.mxu0 0
    %7447 = vmatpush1.bf16.msra.mxu0 %v7373
    %7448 = vmatprep.subr.bf16.mxu0 0
    %7449 = vmatpush1.bf16.msra.mxu0 %v7371
    %7450 = vmatprep.subr.bf16.mxu0 0
    %7451 = vmatpush1.bf16.msra.mxu0 %v7369
    %7452 = vmatprep.subr.bf16.mxu0 0
    %7453 = vmatpush1.bf16.msra.mxu0 %v7367
    %7454 = vmatprep.subr.bf16.mxu0 0
    %7455 = vmatpush1.bf16.msra.mxu0 %v7365
    %7456 = vmatprep.subr.bf16.mxu0 0
    %7457 = vmatpush2.bf16.msra.mxu0 0
    %7458 = vmatprep.subr.bf16.mxu0 0
    %7459 = vmatpush2.bf16.msra.mxu0 0
    %7460 = vmatprep.subr.bf16.mxu0 0
    %7461 = vmatpush2.bf16.msra.mxu0 0
    %7462 = vmatprep.subr.bf16.mxu0 0
    %7463 = vmatpush2.bf16.msra.mxu0 0
    %7464 = vmatprep.subr.bf16.mxu0 0
    %7465 = vmatpush2.bf16.msra.mxu0 0
    %7466 = vmatprep.subr.bf16.mxu0 0
    %7467 = vmatpush2.bf16.msra.mxu0 0
    %7468 = vmatprep.subr.bf16.mxu0 0
    %7469 = vmatpush2.bf16.msra.mxu0 0
    %7470 = vmatprep.subr.bf16.mxu0 0
    %7471 = vmatpush2.bf16.msra.mxu0 0
    %7472 = vmatprep.mubr.bf16.mxu0 0
    %7473 = vmatmul.mubr.bf16.gmra.mxu0 %v7398
    %v7474 = vpop.f32.mrf.mxu0
    %v7475 = vadd.f32 %v7435, %v7474
    %v7476 = vpop.f32.mrf.mxu0
    %v7477 = vpop.f32.mrf.mxu0
    %v7478 = vpop.f32.mrf.mxu0
    %7479 = vdwg.mxu0
    %v7480 = vadd.f32 %v7292, %v7475
    %v7481 = vrot.slane %v3328, 3
    %v7482 = vrot.slane %v3329, 3
    %v7483 = vrot.slane %v3330, 3
    %7484 = vrot.lane.b32.xlu0 %v7293, 96
    %v7485 = vpop.permute.xlu0 %7484
    %7486 = vrot.lane.b32.xlu0 %v7294, 96
    %v7487 = vpop.permute.xlu0 %7486
    %7488 = vrot.lane.b32.xlu0 %v7295, 96
    %v7489 = vpop.permute.xlu0 %7488
    %v7490 = vsel %vm3344, %v7485, %v7487
    %v7491 = vsel %vm3344, %v7487, %v7489
    %v7492 = vrot.slane %v3331, 1
    %7493 = vrot.lane.b32.xlu0 %v7104, 64
    %v7494 = vpop.permute.xlu0 %7493
    %7495 = vrot.lane.b32.xlu0 %v7105, 64
    %v7496 = vpop.permute.xlu0 %7495
    %7497 = vrot.lane.b32.xlu0 %v7106, 64
    %v7498 = vpop.permute.xlu0 %7497
    %7499 = vrot.lane.b32.xlu0 %v7492, 64
    %v7500 = vpop.permute.xlu0 %7499
    %v7501 = vsel %vm3360, %v7494, %v7496
    %v7502 = vsel %vm3360, %v7496, %v7498
    %v7503 = vsel %vm3360, %v7498, %v7500
    %v7506 = vsel %vm3364, %v7481, %v7490
    %v7509 = vsel %vm3364, %v7482, %v7491
    %v7512 = vsel %vm3364, %v7483, %v7489
    %v7514 = vsel %vm2503, %v7506, %v7501
    %v7517 = vsel %vm2503, %v7509, %v7502
    %v7520 = vsel %vm2503, %v7512, %v7503
    %7521 = vrot.lane.b32.xlu0 %v6977, 32
    %v7522 = vpop.permute.xlu0 %7521
    %7523 = vrot.lane.b32.xlu0 %v6978, 32
    %v7524 = vpop.permute.xlu0 %7523
    %7525 = vrot.lane.b32.xlu0 %v6979, 32
    %v7526 = vpop.permute.xlu0 %7525
    %7527 = vrot.lane.b32.xlu0 %v6980, 32
    %v7528 = vpop.permute.xlu0 %7527
    %7529 = vrot.lane.b32.xlu0 %v6981, 32
    %v7530 = vpop.permute.xlu0 %7529
    %7531 = vrot.lane.b32.xlu0 %v6982, 32
    %v7532 = vpop.permute.xlu0 %7531
    %7533 = vrot.lane.b32.xlu0 %v6983, 32
    %v7534 = vpop.permute.xlu0 %7533
    %7535 = vrot.lane.b32.xlu0 %v6984, 32
    %v7536 = vpop.permute.xlu0 %7535
    %7537 = vrot.lane.b32.xlu0 %v6985, 32
    %v7538 = vpop.permute.xlu0 %7537
    %7539 = vrot.lane.b32.xlu0 %v6986, 32
    %v7540 = vpop.permute.xlu0 %7539
    %7541 = vrot.lane.b32.xlu0 %v6987, 32
    %v7542 = vpop.permute.xlu0 %7541
    %7543 = vrot.lane.b32.xlu0 %v6988, 32
    %v7544 = vpop.permute.xlu0 %7543
    %7545 = vrot.lane.b32.xlu0 %v6989, 32
    %v7546 = vpop.permute.xlu0 %7545
    %7547 = vrot.lane.b32.xlu0 %v6990, 32
    %v7548 = vpop.permute.xlu0 %7547
    %7549 = vrot.lane.b32.xlu0 %v6991, 32
    %v7550 = vpop.permute.xlu0 %7549
    %7551 = vrot.lane.b32.xlu0 %v6992, 32
    %v7552 = vpop.permute.xlu0 %7551
    %7553 = vrot.lane.b32.xlu0 %v6993, 32
    %v7554 = vpop.permute.xlu0 %7553
    %7555 = vrot.lane.b32.xlu0 %v6994, 32
    %v7556 = vpop.permute.xlu0 %7555
    %7557 = vrot.lane.b32.xlu0 %v6995, 32
    %v7558 = vpop.permute.xlu0 %7557
    %7559 = vrot.lane.b32.xlu0 %v6996, 32
    %v7560 = vpop.permute.xlu0 %7559
    %7561 = vrot.lane.b32.xlu0 %v6997, 32
    %v7562 = vpop.permute.xlu0 %7561
    %7563 = vrot.lane.b32.xlu0 %v6998, 32
    %v7564 = vpop.permute.xlu0 %7563
    %v7587 = vsel %vm3642, %v7520, 0
    %7589 = vmatprep.subr.bf16.mxu0 0
    %7590 = vmatpush1.bf16.msra.mxu0 %v7536
    %7591 = vmatprep.subr.bf16.mxu0 0
    %7592 = vmatpush1.bf16.msra.mxu0 %v7534
    %7593 = vmatprep.subr.bf16.mxu0 0
    %7594 = vmatpush1.bf16.msra.mxu0 %v7532
    %7595 = vmatprep.subr.bf16.mxu0 0
    %7596 = vmatpush1.bf16.msra.mxu0 %v7530
    %7597 = vmatprep.subr.bf16.mxu0 0
    %7598 = vmatpush1.bf16.msra.mxu0 %v7528
    %7599 = vmatprep.subr.bf16.mxu0 0
    %7600 = vmatpush1.bf16.msra.mxu0 %v7526
    %7601 = vmatprep.subr.bf16.mxu0 0
    %7602 = vmatpush1.bf16.msra.mxu0 %v7524
    %7603 = vmatprep.subr.bf16.mxu0 0
    %7604 = vmatpush1.bf16.msra.mxu0 %v7522
    %7605 = vmatprep.subr.bf16.mxu0 0
    %7606 = vmatpush2.bf16.msra.mxu0 %v7552
    %7607 = vmatprep.subr.bf16.mxu0 0
    %7608 = vmatpush2.bf16.msra.mxu0 %v7550
    %7609 = vmatprep.subr.bf16.mxu0 0
    %7610 = vmatpush2.bf16.msra.mxu0 %v7548
    %7611 = vmatprep.subr.bf16.mxu0 0
    %7612 = vmatpush2.bf16.msra.mxu0 %v7546
    %7613 = vmatprep.subr.bf16.mxu0 0
    %7614 = vmatpush2.bf16.msra.mxu0 %v7544
    %7615 = vmatprep.subr.bf16.mxu0 0
    %7616 = vmatpush2.bf16.msra.mxu0 %v7542
    %7617 = vmatprep.subr.bf16.mxu0 0
    %7618 = vmatpush2.bf16.msra.mxu0 %v7540
    %7619 = vmatprep.subr.bf16.mxu0 0
    %7620 = vmatpush2.bf16.msra.mxu0 %v7538
    %7621 = vmatprep.mubr.bf16.mxu0 %v7517
    %7622 = vmatmul.mubr.bf16.gmra.mxu0 %v7514
    %v7623 = vpop.f32.mrf.mxu0
    %v7624 = vadd.f32 0.0, %v7623
    %v7625 = vpop.f32.mrf.mxu0
    %v7626 = vpop.f32.mrf.mxu0
    %v7627 = vpop.f32.mrf.mxu0
    %7628 = vdwg.mxu0
    %7629 = vmatprep.subr.bf16.mxu0 0
    %7630 = vmatpush1.bf16.msra.mxu0 0
    %7631 = vmatprep.subr.bf16.mxu0 0
    %7632 = vmatpush1.bf16.msra.mxu0 0
    %7633 = vmatprep.subr.bf16.mxu0 0
    %7634 = vmatpush1.bf16.msra.mxu0 %v7564
    %7635 = vmatprep.subr.bf16.mxu0 0
    %7636 = vmatpush1.bf16.msra.mxu0 %v7562
    %7637 = vmatprep.subr.bf16.mxu0 0
    %7638 = vmatpush1.bf16.msra.mxu0 %v7560
    %7639 = vmatprep.subr.bf16.mxu0 0
    %7640 = vmatpush1.bf16.msra.mxu0 %v7558
    %7641 = vmatprep.subr.bf16.mxu0 0
    %7642 = vmatpush1.bf16.msra.mxu0 %v7556
    %7643 = vmatprep.subr.bf16.mxu0 0
    %7644 = vmatpush1.bf16.msra.mxu0 %v7554
    %7645 = vmatprep.subr.bf16.mxu0 0
    %7646 = vmatpush2.bf16.msra.mxu0 0
    %7647 = vmatprep.subr.bf16.mxu0 0
    %7648 = vmatpush2.bf16.msra.mxu0 0
    %7649 = vmatprep.subr.bf16.mxu0 0
    %7650 = vmatpush2.bf16.msra.mxu0 0
    %7651 = vmatprep.subr.bf16.mxu0 0
    %7652 = vmatpush2.bf16.msra.mxu0 0
    %7653 = vmatprep.subr.bf16.mxu0 0
    %7654 = vmatpush2.bf16.msra.mxu0 0
    %7655 = vmatprep.subr.bf16.mxu0 0
    %7656 = vmatpush2.bf16.msra.mxu0 0
    %7657 = vmatprep.subr.bf16.mxu0 0
    %7658 = vmatpush2.bf16.msra.mxu0 0
    %7659 = vmatprep.subr.bf16.mxu0 0
    %7660 = vmatpush2.bf16.msra.mxu0 0
    %7661 = vmatprep.mubr.bf16.mxu0 0
    %7662 = vmatmul.mubr.bf16.gmra.mxu0 %v7587
    %v7663 = vpop.f32.mrf.mxu0
    %v7664 = vadd.f32 %v7624, %v7663
    %v7665 = vpop.f32.mrf.mxu0
    %v7666 = vpop.f32.mrf.mxu0
    %v7667 = vpop.f32.mrf.mxu0
    %7668 = vdwg.mxu0
    %v7669 = vadd.f32 %v7480, %v7664
    %v7670 = vrot.slane %v3328, 4
    %v7671 = vrot.slane %v3329, 4
    %v7672 = vrot.slane %v3330, 4
    %7673 = vrot.lane.b32.xlu0 %v7481, 96
    %v7674 = vpop.permute.xlu0 %7673
    %7675 = vrot.lane.b32.xlu0 %v7482, 96
    %v7676 = vpop.permute.xlu0 %7675
    %7677 = vrot.lane.b32.xlu0 %v7483, 96
    %v7678 = vpop.permute.xlu0 %7677
    %v7679 = vsel %vm3344, %v7674, %v7676
    %v7680 = vsel %vm3344, %v7676, %v7678
    %v7681 = vrot.slane %v3331, 2
    %7682 = vrot.lane.b32.xlu0 %v7293, 64
    %v7683 = vpop.permute.xlu0 %7682
    %7684 = vrot.lane.b32.xlu0 %v7294, 64
    %v7685 = vpop.permute.xlu0 %7684
    %7686 = vrot.lane.b32.xlu0 %v7295, 64
    %v7687 = vpop.permute.xlu0 %7686
    %7688 = vrot.lane.b32.xlu0 %v7681, 64
    %v7689 = vpop.permute.xlu0 %7688
    %v7690 = vsel %vm3360, %v7683, %v7685
    %v7691 = vsel %vm3360, %v7685, %v7687
    %v7692 = vsel %vm3360, %v7687, %v7689
    %v7695 = vsel %vm3364, %v7670, %v7679
    %v7698 = vsel %vm3364, %v7671, %v7680
    %v7701 = vsel %vm3364, %v7672, %v7678
    %v7703 = vsel %vm2503, %v7695, %v7690
    %v7706 = vsel %vm2503, %v7698, %v7691
    %v7709 = vsel %vm2503, %v7701, %v7692
    %v7710 = vld [vmem:[%s2 + $0x14] sm:$0xf]
    %v7711 = vld [vmem:[%s2 + $0x2c] sm:$0xf]
    %v7712 = vld [vmem:[%s2 + $0x44] sm:$0xf]
    %v7713 = vld [vmem:[%s2 + $0x5c] sm:$0xf]
    %v7714 = vld [vmem:[%s2 + $0x74] sm:$0xf]
    %v7715 = vld [vmem:[%s2 + $0x8c] sm:$0xf]
    %v7716 = vld [vmem:[%s2 + $0xa4] sm:$0xf]
    %v7717 = vld [vmem:[%s2 + $0xbc] sm:$0xf]
    %v7718 = vld [vmem:[%s2 + $0xd4] sm:$0xf]
    %v7719 = vld [vmem:[%s2 + $0xec] sm:$0xf]
    %v7720 = vld [vmem:[%s2 + $0x104] sm:$0xf]
    %v7721 = vld [vmem:[%s2 + $0x11c] sm:$0xf]
    %v7722 = vld [vmem:[%s2 + $0x134] sm:$0xf]
    %v7723 = vld [vmem:[%s2 + $0x14c] sm:$0xf]
    %v7724 = vld [vmem:[%s2 + $0x164] sm:$0xf]
    %v7725 = vld [vmem:[%s2 + $0x17c] sm:$0xf]
    %v7726 = vld [vmem:[%s2 + $0x194] sm:$0xf]
    %v7727 = vld [vmem:[%s2 + $0x1ac] sm:$0xf]
    %v7728 = vld [vmem:[%s2 + $0x1c4] sm:$0xf]
    %v7729 = vld [vmem:[%s2 + $0x1dc] sm:$0xf]
    %v7730 = vld [vmem:[%s2 + $0x1f4] sm:$0xf]
    %v7731 = vld [vmem:[%s2 + $0x20c] sm:$0xf]
    %v7732 = vld [vmem:[%s2 + $0x224] sm:$0xf]
    %v7733 = vld [vmem:[%s2 + $0x23c] sm:$0xf]
    %v7734 = vld [vmem:[%s2 + $0x254] sm:$0xf]
    %v7735 = vld [vmem:[%s2 + $0x26c] sm:$0xf]
    %v7736 = vld [vmem:[%s2 + $0x284] sm:$0xf]
    %v7737 = vld [vmem:[%s2 + $0x29c] sm:$0xf]
    %v7738 = vld [vmem:[%s2 + $0x2b4] sm:$0xf]
    %v7739 = vld [vmem:[%s2 + $0x2cc] sm:$0xf]
    %v7740 = vld [vmem:[%s2 + $0x2e4] sm:$0xf]
    %v7741 = vld [vmem:[%s2 + $0x2fc] sm:$0xf]
    %v7742 = vld [vmem:[%s2 + $0x314] sm:$0xf]
    %v7743 = vld [vmem:[%s2 + $0x32c] sm:$0xf]
    %v7744 = vld [vmem:[%s2 + $0x344] sm:$0xf]
    %v7745 = vld [vmem:[%s2 + $0x35c] sm:$0xf]
    %v7746 = vld [vmem:[%s2 + $0x374] sm:$0xf]
    %v7747 = vld [vmem:[%s2 + $0x38c] sm:$0xf]
    %v7748 = vld [vmem:[%s2 + $0x3a4] sm:$0xf]
    %v7749 = vld [vmem:[%s2 + $0x3bc] sm:$0xf]
    %v7750 = vld [vmem:[%s2 + $0x3d4] sm:$0xf]
    %v7751 = vld [vmem:[%s2 + $0x3ec] sm:$0xf]
    %v7752 = vld [vmem:[%s2 + $0x404] sm:$0xf]
    %v7753 = vld [vmem:[%s2 + $0x41c] sm:$0xf]
    %v7798 = vunpack.c.l.b16 %v7710
    %v7799 = vunpack.c.l.b16 %v7711
    %v7800 = vunpack.c.l.b16 %v7712
    %v7801 = vunpack.c.l.b16 %v7713
    %v7802 = vunpack.c.l.b16 %v7714
    %v7803 = vunpack.c.l.b16 %v7715
    %v7804 = vunpack.c.l.b16 %v7716
    %v7805 = vunpack.c.l.b16 %v7717
    %v7806 = vunpack.c.l.b16 %v7718
    %v7807 = vunpack.c.l.b16 %v7719
    %v7808 = vunpack.c.l.b16 %v7720
    %v7809 = vunpack.c.l.b16 %v7721
    %v7810 = vunpack.c.l.b16 %v7722
    %v7811 = vunpack.c.l.b16 %v7723
    %v7812 = vunpack.c.l.b16 %v7724
    %v7813 = vunpack.c.l.b16 %v7725
    %v7814 = vunpack.c.l.b16 %v7726
    %v7815 = vunpack.c.l.b16 %v7727
    %v7816 = vunpack.c.l.b16 %v7728
    %v7817 = vunpack.c.l.b16 %v7729
    %v7818 = vunpack.c.l.b16 %v7730
    %v7819 = vunpack.c.l.b16 %v7731
    %v7820 = vunpack.c.l.b16 %v7732
    %v7821 = vunpack.c.l.b16 %v7733
    %v7822 = vunpack.c.l.b16 %v7734
    %v7823 = vunpack.c.l.b16 %v7735
    %v7824 = vunpack.c.l.b16 %v7736
    %v7825 = vunpack.c.l.b16 %v7737
    %v7826 = vunpack.c.l.b16 %v7738
    %v7827 = vunpack.c.l.b16 %v7739
    %v7828 = vunpack.c.l.b16 %v7740
    %v7829 = vunpack.c.l.b16 %v7741
    %v7830 = vunpack.c.l.b16 %v7742
    %v7831 = vunpack.c.l.b16 %v7743
    %v7832 = vunpack.c.l.b16 %v7744
    %v7833 = vunpack.c.l.b16 %v7745
    %v7834 = vunpack.c.l.b16 %v7746
    %v7835 = vunpack.c.l.b16 %v7747
    %v7836 = vunpack.c.l.b16 %v7748
    %v7837 = vunpack.c.l.b16 %v7749
    %v7838 = vunpack.c.l.b16 %v7750
    %v7839 = vunpack.c.l.b16 %v7751
    %v7840 = vunpack.c.l.b16 %v7752
    %v7841 = vunpack.c.l.b16 %v7753
    %v7842 = vpack.c.b16 %v7799, %v7798
    %v7843 = vpack.c.b16 %v7801, %v7800
    %v7844 = vpack.c.b16 %v7803, %v7802
    %v7845 = vpack.c.b16 %v7805, %v7804
    %v7846 = vpack.c.b16 %v7807, %v7806
    %v7847 = vpack.c.b16 %v7809, %v7808
    %v7848 = vpack.c.b16 %v7811, %v7810
    %v7849 = vpack.c.b16 %v7813, %v7812
    %v7850 = vpack.c.b16 %v7815, %v7814
    %v7851 = vpack.c.b16 %v7817, %v7816
    %v7852 = vpack.c.b16 %v7819, %v7818
    %v7853 = vpack.c.b16 %v7821, %v7820
    %v7854 = vpack.c.b16 %v7823, %v7822
    %v7855 = vpack.c.b16 %v7825, %v7824
    %v7856 = vpack.c.b16 %v7827, %v7826
    %v7857 = vpack.c.b16 %v7829, %v7828
    %v7858 = vpack.c.b16 %v7831, %v7830
    %v7859 = vpack.c.b16 %v7833, %v7832
    %v7860 = vpack.c.b16 %v7835, %v7834
    %v7861 = vpack.c.b16 %v7837, %v7836
    %v7862 = vpack.c.b16 %v7839, %v7838
    %v7863 = vpack.c.b16 %v7841, %v7840
    %v7886 = vsel %vm3642, %v7709, 0
    %7888 = vmatprep.subr.bf16.mxu0 0
    %7889 = vmatpush1.bf16.msra.mxu0 %v7849
    %7890 = vmatprep.subr.bf16.mxu0 0
    %7891 = vmatpush1.bf16.msra.mxu0 %v7848
    %7892 = vmatprep.subr.bf16.mxu0 0
    %7893 = vmatpush1.bf16.msra.mxu0 %v7847
    %7894 = vmatprep.subr.bf16.mxu0 0
    %7895 = vmatpush1.bf16.msra.mxu0 %v7846
    %7896 = vmatprep.subr.bf16.mxu0 0
    %7897 = vmatpush1.bf16.msra.mxu0 %v7845
    %7898 = vmatprep.subr.bf16.mxu0 0
    %7899 = vmatpush1.bf16.msra.mxu0 %v7844
    %7900 = vmatprep.subr.bf16.mxu0 0
    %7901 = vmatpush1.bf16.msra.mxu0 %v7843
    %7902 = vmatprep.subr.bf16.mxu0 0
    %7903 = vmatpush1.bf16.msra.mxu0 %v7842
    %7904 = vmatprep.subr.bf16.mxu0 0
    %7905 = vmatpush2.bf16.msra.mxu0 %v7857
    %7906 = vmatprep.subr.bf16.mxu0 0
    %7907 = vmatpush2.bf16.msra.mxu0 %v7856
    %7908 = vmatprep.subr.bf16.mxu0 0
    %7909 = vmatpush2.bf16.msra.mxu0 %v7855
    %7910 = vmatprep.subr.bf16.mxu0 0
    %7911 = vmatpush2.bf16.msra.mxu0 %v7854
    %7912 = vmatprep.subr.bf16.mxu0 0
    %7913 = vmatpush2.bf16.msra.mxu0 %v7853
    %7914 = vmatprep.subr.bf16.mxu0 0
    %7915 = vmatpush2.bf16.msra.mxu0 %v7852
    %7916 = vmatprep.subr.bf16.mxu0 0
    %7917 = vmatpush2.bf16.msra.mxu0 %v7851
    %7918 = vmatprep.subr.bf16.mxu0 0
    %7919 = vmatpush2.bf16.msra.mxu0 %v7850
    %7920 = vmatprep.mubr.bf16.mxu0 %v7706
    %7921 = vmatmul.mubr.bf16.gmra.mxu0 %v7703
    %v7922 = vpop.f32.mrf.mxu0
    %v7923 = vadd.f32 0.0, %v7922
    %v7924 = vpop.f32.mrf.mxu0
    %v7925 = vpop.f32.mrf.mxu0
    %v7926 = vpop.f32.mrf.mxu0
    %7927 = vdwg.mxu0
    %7928 = vmatprep.subr.bf16.mxu0 0
    %7929 = vmatpush1.bf16.msra.mxu0 0
    %7930 = vmatprep.subr.bf16.mxu0 0
    %7931 = vmatpush1.bf16.msra.mxu0 0
    %7932 = vmatprep.subr.bf16.mxu0 0
    %7933 = vmatpush1.bf16.msra.mxu0 %v7863
    %7934 = vmatprep.subr.bf16.mxu0 0
    %7935 = vmatpush1.bf16.msra.mxu0 %v7862
    %7936 = vmatprep.subr.bf16.mxu0 0
    %7937 = vmatpush1.bf16.msra.mxu0 %v7861
    %7938 = vmatprep.subr.bf16.mxu0 0
    %7939 = vmatpush1.bf16.msra.mxu0 %v7860
    %7940 = vmatprep.subr.bf16.mxu0 0
    %7941 = vmatpush1.bf16.msra.mxu0 %v7859
    %7942 = vmatprep.subr.bf16.mxu0 0
    %7943 = vmatpush1.bf16.msra.mxu0 %v7858
    %7944 = vmatprep.subr.bf16.mxu0 0
    %7945 = vmatpush2.bf16.msra.mxu0 0
    %7946 = vmatprep.subr.bf16.mxu0 0
    %7947 = vmatpush2.bf16.msra.mxu0 0
    %7948 = vmatprep.subr.bf16.mxu0 0
    %7949 = vmatpush2.bf16.msra.mxu0 0
    %7950 = vmatprep.subr.bf16.mxu0 0
    %7951 = vmatpush2.bf16.msra.mxu0 0
    %7952 = vmatprep.subr.bf16.mxu0 0
    %7953 = vmatpush2.bf16.msra.mxu0 0
    %7954 = vmatprep.subr.bf16.mxu0 0
    %7955 = vmatpush2.bf16.msra.mxu0 0
    %7956 = vmatprep.subr.bf16.mxu0 0
    %7957 = vmatpush2.bf16.msra.mxu0 0
    %7958 = vmatprep.subr.bf16.mxu0 0
    %7959 = vmatpush2.bf16.msra.mxu0 0
    %7960 = vmatprep.mubr.bf16.mxu0 0
    %7961 = vmatmul.mubr.bf16.gmra.mxu0 %v7886
    %v7962 = vpop.f32.mrf.mxu0
    %v7963 = vadd.f32 %v7923, %v7962
    %v7964 = vpop.f32.mrf.mxu0
    %v7965 = vpop.f32.mrf.mxu0
    %v7966 = vpop.f32.mrf.mxu0
    %7967 = vdwg.mxu0
    %v7968 = vadd.f32 %v7669, %v7963
    %v7969 = vlaneseq
    %v7970 = vshrl.u32 %v7969, 7
    %v7971 = vsub.s32 1, %v7970
    %v7972 = vrot.slane %v22, %v7971
    %v7973 = vadd.f32 %v7968, %v7972
    %v7974 = vmax.f32 %v7973, 0.0
    %v7975 = vmin.f32 %v7974, 20.0
    %v7976 = vadd.f32 %v7975, 0.0
    %v7978 = vrot.slane %v7975, 2
    %v7980 = vadd.f32 %v7976, %v7978
    %v7981 = vrot.slane %v7975, 4
    %v7983 = vadd.f32 %v7980, %v7981
    %v7984 = vmul.f32 %v7983, 0.33333334
    %v7985 = vadd.f32 %v7984, 0.33333334
    %v7986 = vld [vmem:[%s4] sm:$0xff]
    %v7987 = vld [vmem:[%s4 + $0x8] sm:$0xff]
    %v7988 = vld [vmem:[%s4 + $0x10] sm:$0xff]
    %v7989 = vld [vmem:[%s4 + $0x18] sm:$0xff]
    %v7990 = vld [vmem:[%s4 + $0x20] sm:$0xff]
    %v7991 = vld [vmem:[%s4 + $0x28] sm:$0xff]
    %v7992 = vld [vmem:[%s4 + $0x30] sm:$0xff]
    %v7993 = vld [vmem:[%s4 + $0x38] sm:$0xff]
    %v7994 = vld [vmem:[%s4 + $0x40] sm:$0xff]
    %v7995 = vld [vmem:[%s4 + $0x48] sm:$0xff]
    %v7996 = vld [vmem:[%s4 + $0x50] sm:$0xff]
    %v7997 = vld [vmem:[%s4 + $0x58] sm:$0xff]
    %v7998 = vld [vmem:[%s4 + $0x60] sm:$0xff]
    %v7999 = vld [vmem:[%s4 + $0x68] sm:$0xff]
    %v8000 = vld [vmem:[%s4 + $0x70] sm:$0xff]
    %v8001 = vld [vmem:[%s4 + $0x78] sm:$0xff]
    %v8002 = vld [vmem:[%s4 + $0x80] sm:$0x1]
    %v8003 = vld [vmem:[%s4 + $0x81] sm:$0x1]
    %v8004 = vld [vmem:[%s4 + $0x82] sm:$0x1]
    %v8005 = vld [vmem:[%s4 + $0x83] sm:$0x1]
    %v8006 = vld [vmem:[%s4 + $0x84] sm:$0x1]
    %v8007 = vld [vmem:[%s4 + $0x85] sm:$0x1]
    %v8008 = vld [vmem:[%s4 + $0x86] sm:$0x1]
    %v8009 = vld [vmem:[%s4 + $0x87] sm:$0x1]
    %v8010 = vld [vmem:[%s4 + $0x88] sm:$0x1]
    %v8011 = vld [vmem:[%s4 + $0x89] sm:$0x1]
    %v8012 = vld [vmem:[%s4 + $0x8a] sm:$0x1]
    %v8013 = vld [vmem:[%s4 + $0x8b] sm:$0x1]
    %v8014 = vld [vmem:[%s4 + $0x8c] sm:$0x1]
    %v8015 = vld [vmem:[%s4 + $0x8d] sm:$0x3]
    %v8016 = vlaneseq
    %v8017 = vshrl.u32 %v8016, 7
    %v8018 = vsub.s32 0, %v8017
    %v8019 = vrot.slane %v8002, %v8018
    %vm8020 = vcmask 261120
    %v8022 = vsel %vm8020, %v7985, 0
    %8024 = vmatprep.subr.mxu0 0.0
    %8025 = vmatpush1.msra.mxu0 0.0
    %8026 = vmatprep.subr.mxu0 0.0
    %8027 = vmatpush1.msra.mxu0 0.0
    %8028 = vmatprep.subr.mxu0 0.0
    %8029 = vmatpush1.msra.mxu0 0.0
    %8030 = vmatprep.subr.mxu0 0.0
    %8031 = vmatpush1.msra.mxu0 0.0
    %8032 = vmatprep.subr.mxu0 0.0
    %8033 = vmatpush1.msra.mxu0 0.0
    %8034 = vmatprep.subr.mxu0 0.0
    %8035 = vmatpush1.msra.mxu0 0.0
    %8036 = vmatprep.subr.mxu0 0.0
    %8037 = vmatpush1.msra.mxu0 0.0
    %8038 = vmatprep.subr.mxu0 0.0
    %8039 = vmatpush1.msra.mxu0 0.0
    %8040 = vmatprep.subr.mxu0 0.0
    %8041 = vmatpush1.msra.mxu0 0.0
    %8042 = vmatprep.subr.mxu0 0.0
    %8043 = vmatpush1.msra.mxu0 0.0
    %8044 = vmatprep.subr.mxu0 0.0
    %8045 = vmatpush1.msra.mxu0 0.0
    %8046 = vmatprep.subr.mxu0 0.0
    %8047 = vmatpush1.msra.mxu0 0.0
    %8048 = vmatprep.subr.mxu0 0.0
    %8049 = vmatpush1.msra.mxu0 %v7989
    %8050 = vmatprep.subr.mxu0 0.0
    %8051 = vmatpush1.msra.mxu0 %v7988
    %8052 = vmatprep.subr.mxu0 0.0
    %8053 = vmatpush1.msra.mxu0 %v7987
    %8054 = vmatprep.subr.mxu0 0.0
    %8055 = vmatpush1.msra.mxu0 %v7986
    %8056 = vmatprep.subr.mxu0 0.0
    %8057 = vmatpush2.msra.mxu0 0.0
    %8058 = vmatprep.subr.mxu0 0.0
    %8059 = vmatpush2.msra.mxu0 0.0
    %8060 = vmatprep.subr.mxu0 0.0
    %8061 = vmatpush2.msra.mxu0 0.0
    %8062 = vmatprep.subr.mxu0 0.0
    %8063 = vmatpush2.msra.mxu0 0.0
    %8064 = vmatprep.subr.mxu0 0.0
    %8065 = vmatpush2.msra.mxu0 0.0
    %8066 = vmatprep.subr.mxu0 0.0
    %8067 = vmatpush2.msra.mxu0 0.0
    %8068 = vmatprep.subr.mxu0 0.0
    %8069 = vmatpush2.msra.mxu0 0.0
    %8070 = vmatprep.subr.mxu0 0.0
    %8071 = vmatpush2.msra.mxu0 0.0
    %8072 = vmatprep.subr.mxu0 0.0
    %8073 = vmatpush2.msra.mxu0 0.0
    %8074 = vmatprep.subr.mxu0 0.0
    %8075 = vmatpush2.msra.mxu0 0.0
    %8076 = vmatprep.subr.mxu0 0.0
    %8077 = vmatpush2.msra.mxu0 0.0
    %8078 = vmatprep.subr.mxu0 0.0
    %8079 = vmatpush2.msra.mxu0 0.0
    %8080 = vmatprep.subr.mxu0 0.0
    %8081 = vmatpush2.msra.mxu0 0.0
    %8082 = vmatprep.subr.mxu0 0.0
    %8083 = vmatpush2.msra.mxu0 0.0
    %8084 = vmatprep.subr.mxu0 0.0
    %8085 = vmatpush2.msra.mxu0 0.0
    %8086 = vmatprep.subr.mxu0 0.0
    %8087 = vmatpush2.msra.mxu0 0.0
    %8088 = vmatprep.mubr.f32.mxu0 0.0
    %8089 = vmatmul.mubr.f32.gmra.mxu0 %v8022
    %v8090 = vpop.f32.mrf.mxu0
    %v8091 = vadd.f32 %v8019, %v8090
    %v8092 = vpop.f32.mrf.mxu0
    %8093 = vdwg.mxu0
    %vm8094 = vcmask 254976
    %v8095 = vsel %vm8094, %v8091, 0.0
    %8096 = vadd.xlane.f32.xlu0 %v8095
    %v8097 = vpop.xlane.xlu0 %8096
    %v8098 = vrcp.pop 32.0
    %v8099 = vmul.f32 %v8097, %v8098
    %v8100 = vsub.f32 %v8091, %v8099
    %v8101 = vmul.f32 %v8100, %v8100
    %v8102 = vsel %vm8094, %v8101, 0.0
    %8103 = vadd.xlane.f32.xlu0 %v8102
    %v8104 = vpop.xlane.xlu0 %8103
    %v8105 = vmul.f32 %v8104, %v8098
    %v8106 = vadd.f32 %v8105, 1e-05
    %v8107 = vrsqrt.pop %v8106
    %v8108 = vmul.f32 %v8100, %v8107
    %v8109 = vlaneseq
    %v8110 = vshrl.u32 %v8109, 7
    %v8111 = vsub.s32 0, %v8110
    %v8112 = vrot.slane %v8003, %v8111
    %v8113 = vmul.f32 %v8108, %v8112
    %v8114 = vlaneseq
    %v8115 = vshrl.u32 %v8114, 7
    %v8116 = vsub.s32 0, %v8115
    %v8117 = vrot.slane %v8004, %v8116
    %v8118 = vadd.f32 %v8113, %v8117
    %v8119 = vadd.f32 %v8118, %v8015
    %v8120 = vlaneseq
    %v8121 = vshrl.u32 %v8120, 7
    %v8122 = vsub.s32 0, %v8121
    %v8123 = vrot.slane %v8005, %v8122
    %8128 = vrot.lane.b32.xlu0 %v7986, 96
    %v8129 = vpop.permute.xlu0 %8128
    %8130 = vrot.lane.b32.xlu0 %v7987, 96
    %v8131 = vpop.permute.xlu0 %8130
    %8132 = vrot.lane.b32.xlu0 %v7988, 96
    %v8133 = vpop.permute.xlu0 %8132
    %8134 = vrot.lane.b32.xlu0 %v7989, 96
    %v8135 = vpop.permute.xlu0 %8134
    %v8141 = vsel %vm8020, %v8119, 0
    %8143 = vmatprep.subr.mxu0 0.0
    %8144 = vmatpush1.msra.mxu0 0.0
    %8145 = vmatprep.subr.mxu0 0.0
    %8146 = vmatpush1.msra.mxu0 0.0
    %8147 = vmatprep.subr.mxu0 0.0
    %8148 = vmatpush1.msra.mxu0 0.0
    %8149 = vmatprep.subr.mxu0 0.0
    %8150 = vmatpush1.msra.mxu0 0.0
    %8151 = vmatprep.subr.mxu0 0.0
    %8152 = vmatpush1.msra.mxu0 0.0
    %8153 = vmatprep.subr.mxu0 0.0
    %8154 = vmatpush1.msra.mxu0 0.0
    %8155 = vmatprep.subr.mxu0 0.0
    %8156 = vmatpush1.msra.mxu0 0.0
    %8157 = vmatprep.subr.mxu0 0.0
    %8158 = vmatpush1.msra.mxu0 0.0
    %8159 = vmatprep.subr.mxu0 0.0
    %8160 = vmatpush1.msra.mxu0 0.0
    %8161 = vmatprep.subr.mxu0 0.0
    %8162 = vmatpush1.msra.mxu0 0.0
    %8163 = vmatprep.subr.mxu0 0.0
    %8164 = vmatpush1.msra.mxu0 0.0
    %8165 = vmatprep.subr.mxu0 0.0
    %8166 = vmatpush1.msra.mxu0 0.0
    %8167 = vmatprep.subr.mxu0 0.0
    %8168 = vmatpush1.msra.mxu0 %v8135
    %8169 = vmatprep.subr.mxu0 0.0
    %8170 = vmatpush1.msra.mxu0 %v8133
    %8171 = vmatprep.subr.mxu0 0.0
    %8172 = vmatpush1.msra.mxu0 %v8131
    %8173 = vmatprep.subr.mxu0 0.0
    %8174 = vmatpush1.msra.mxu0 %v8129
    %8175 = vmatprep.subr.mxu0 0.0
    %8176 = vmatpush2.msra.mxu0 0.0
    %8177 = vmatprep.subr.mxu0 0.0
    %8178 = vmatpush2.msra.mxu0 0.0
    %8179 = vmatprep.subr.mxu0 0.0
    %8180 = vmatpush2.msra.mxu0 0.0
    %8181 = vmatprep.subr.mxu0 0.0
    %8182 = vmatpush2.msra.mxu0 0.0
    %8183 = vmatprep.subr.mxu0 0.0
    %8184 = vmatpush2.msra.mxu0 0.0
    %8185 = vmatprep.subr.mxu0 0.0
    %8186 = vmatpush2.msra.mxu0 0.0
    %8187 = vmatprep.subr.mxu0 0.0
    %8188 = vmatpush2.msra.mxu0 0.0
    %8189 = vmatprep.subr.mxu0 0.0
    %8190 = vmatpush2.msra.mxu0 0.0
    %8191 = vmatprep.subr.mxu0 0.0
    %8192 = vmatpush2.msra.mxu0 0.0
    %8193 = vmatprep.subr.mxu0 0.0
    %8194 = vmatpush2.msra.mxu0 0.0
    %8195 = vmatprep.subr.mxu0 0.0
    %8196 = vmatpush2.msra.mxu0 0.0
    %8197 = vmatprep.subr.mxu0 0.0
    %8198 = vmatpush2.msra.mxu0 0.0
    %8199 = vmatprep.subr.mxu0 0.0
    %8200 = vmatpush2.msra.mxu0 0.0
    %8201 = vmatprep.subr.mxu0 0.0
    %8202 = vmatpush2.msra.mxu0 0.0
    %8203 = vmatprep.subr.mxu0 0.0
    %8204 = vmatpush2.msra.mxu0 0.0
    %8205 = vmatprep.subr.mxu0 0.0
    %8206 = vmatpush2.msra.mxu0 0.0
    %8207 = vmatprep.mubr.f32.mxu0 0.0
    %8208 = vmatmul.mubr.f32.gmra.mxu0 %v8141
    %v8209 = vpop.f32.mrf.mxu0
    %v8210 = vadd.f32 %v8123, %v8209
    %v8211 = vpop.f32.mrf.mxu0
    %8212 = vdwg.mxu0
    %v8213 = vlaneseq
    %v8214 = vshrl.u32 %v8213, 7
    %v8215 = vsub.s32 0, %v8214
    %v8216 = vrot.slane %v8006, %v8215
    %8217 = vrot.lane.b32.xlu0 %v7986, 64
    %v8218 = vpop.permute.xlu0 %8217
    %8219 = vrot.lane.b32.xlu0 %v7987, 64
    %v8220 = vpop.permute.xlu0 %8219
    %8221 = vrot.lane.b32.xlu0 %v7988, 64
    %v8222 = vpop.permute.xlu0 %8221
    %8223 = vrot.lane.b32.xlu0 %v7989, 64
    %v8224 = vpop.permute.xlu0 %8223
    %v8230 = vsel %vm8020, %v8210, 0
    %8232 = vmatprep.subr.mxu0 0.0
    %8233 = vmatpush1.msra.mxu0 0.0
    %8234 = vmatprep.subr.mxu0 0.0
    %8235 = vmatpush1.msra.mxu0 0.0
    %8236 = vmatprep.subr.mxu0 0.0
    %8237 = vmatpush1.msra.mxu0 0.0
    %8238 = vmatprep.subr.mxu0 0.0
    %8239 = vmatpush1.msra.mxu0 0.0
    %8240 = vmatprep.subr.mxu0 0.0
    %8241 = vmatpush1.msra.mxu0 0.0
    %8242 = vmatprep.subr.mxu0 0.0
    %8243 = vmatpush1.msra.mxu0 0.0
    %8244 = vmatprep.subr.mxu0 0.0
    %8245 = vmatpush1.msra.mxu0 0.0
    %8246 = vmatprep.subr.mxu0 0.0
    %8247 = vmatpush1.msra.mxu0 0.0
    %8248 = vmatprep.subr.mxu0 0.0
    %8249 = vmatpush1.msra.mxu0 0.0
    %8250 = vmatprep.subr.mxu0 0.0
    %8251 = vmatpush1.msra.mxu0 0.0
    %8252 = vmatprep.subr.mxu0 0.0
    %8253 = vmatpush1.msra.mxu0 0.0
    %8254 = vmatprep.subr.mxu0 0.0
    %8255 = vmatpush1.msra.mxu0 0.0
    %8256 = vmatprep.subr.mxu0 0.0
    %8257 = vmatpush1.msra.mxu0 %v8224
    %8258 = vmatprep.subr.mxu0 0.0
    %8259 = vmatpush1.msra.mxu0 %v8222
    %8260 = vmatprep.subr.mxu0 0.0
    %8261 = vmatpush1.msra.mxu0 %v8220
    %8262 = vmatprep.subr.mxu0 0.0
    %8263 = vmatpush1.msra.mxu0 %v8218
    %8264 = vmatprep.subr.mxu0 0.0
    %8265 = vmatpush2.msra.mxu0 0.0
    %8266 = vmatprep.subr.mxu0 0.0
    %8267 = vmatpush2.msra.mxu0 0.0
    %8268 = vmatprep.subr.mxu0 0.0
    %8269 = vmatpush2.msra.mxu0 0.0
    %8270 = vmatprep.subr.mxu0 0.0
    %8271 = vmatpush2.msra.mxu0 0.0
    %8272 = vmatprep.subr.mxu0 0.0
    %8273 = vmatpush2.msra.mxu0 0.0
    %8274 = vmatprep.subr.mxu0 0.0
    %8275 = vmatpush2.msra.mxu0 0.0
    %8276 = vmatprep.subr.mxu0 0.0
    %8277 = vmatpush2.msra.mxu0 0.0
    %8278 = vmatprep.subr.mxu0 0.0
    %8279 = vmatpush2.msra.mxu0 0.0
    %8280 = vmatprep.subr.mxu0 0.0
    %8281 = vmatpush2.msra.mxu0 0.0
    %8282 = vmatprep.subr.mxu0 0.0
    %8283 = vmatpush2.msra.mxu0 0.0
    %8284 = vmatprep.subr.mxu0 0.0
    %8285 = vmatpush2.msra.mxu0 0.0
    %8286 = vmatprep.subr.mxu0 0.0
    %8287 = vmatpush2.msra.mxu0 0.0
    %8288 = vmatprep.subr.mxu0 0.0
    %8289 = vmatpush2.msra.mxu0 0.0
    %8290 = vmatprep.subr.mxu0 0.0
    %8291 = vmatpush2.msra.mxu0 0.0
    %8292 = vmatprep.subr.mxu0 0.0
    %8293 = vmatpush2.msra.mxu0 0.0
    %8294 = vmatprep.subr.mxu0 0.0
    %8295 = vmatpush2.msra.mxu0 0.0
    %8296 = vmatprep.mubr.f32.mxu0 0.0
    %8297 = vmatmul.mubr.f32.gmra.mxu0 %v8230
    %v8298 = vpop.f32.mrf.mxu0
    %v8299 = vadd.f32 %v8216, %v8298
    %v8300 = vpop.f32.mrf.mxu0
    %8301 = vdwg.mxu0
    %v8302 = vlaneseq
    %v8303 = vshrl.u32 %v8302, 7
    %v8304 = vsub.s32 0, %v8303
    %v8305 = vrot.slane %v8007, %v8304
    %8306 = vrot.lane.b32.xlu0 %v7986, 32
    %v8307 = vpop.permute.xlu0 %8306
    %8308 = vrot.lane.b32.xlu0 %v7987, 32
    %v8309 = vpop.permute.xlu0 %8308
    %8310 = vrot.lane.b32.xlu0 %v7988, 32
    %v8311 = vpop.permute.xlu0 %8310
    %8312 = vrot.lane.b32.xlu0 %v7989, 32
    %v8313 = vpop.permute.xlu0 %8312
    %v8319 = vsel %vm8020, %v8299, 0
    %8321 = vmatprep.subr.mxu0 0.0
    %8322 = vmatpush1.msra.mxu0 0.0
    %8323 = vmatprep.subr.mxu0 0.0
    %8324 = vmatpush1.msra.mxu0 0.0
    %8325 = vmatprep.subr.mxu0 0.0
    %8326 = vmatpush1.msra.mxu0 0.0
    %8327 = vmatprep.subr.mxu0 0.0
    %8328 = vmatpush1.msra.mxu0 0.0
    %8329 = vmatprep.subr.mxu0 0.0
    %8330 = vmatpush1.msra.mxu0 0.0
    %8331 = vmatprep.subr.mxu0 0.0
    %8332 = vmatpush1.msra.mxu0 0.0
    %8333 = vmatprep.subr.mxu0 0.0
    %8334 = vmatpush1.msra.mxu0 0.0
    %8335 = vmatprep.subr.mxu0 0.0
    %8336 = vmatpush1.msra.mxu0 0.0
    %8337 = vmatprep.subr.mxu0 0.0
    %8338 = vmatpush1.msra.mxu0 0.0
    %8339 = vmatprep.subr.mxu0 0.0
    %8340 = vmatpush1.msra.mxu0 0.0
    %8341 = vmatprep.subr.mxu0 0.0
    %8342 = vmatpush1.msra.mxu0 0.0
    %8343 = vmatprep.subr.mxu0 0.0
    %8344 = vmatpush1.msra.mxu0 0.0
    %8345 = vmatprep.subr.mxu0 0.0
    %8346 = vmatpush1.msra.mxu0 %v8313
    %8347 = vmatprep.subr.mxu0 0.0
    %8348 = vmatpush1.msra.mxu0 %v8311
    %8349 = vmatprep.subr.mxu0 0.0
    %8350 = vmatpush1.msra.mxu0 %v8309
    %8351 = vmatprep.subr.mxu0 0.0
    %8352 = vmatpush1.msra.mxu0 %v8307
    %8353 = vmatprep.subr.mxu0 0.0
    %8354 = vmatpush2.msra.mxu0 0.0
    %8355 = vmatprep.subr.mxu0 0.0
    %8356 = vmatpush2.msra.mxu0 0.0
    %8357 = vmatprep.subr.mxu0 0.0
    %8358 = vmatpush2.msra.mxu0 0.0
    %8359 = vmatprep.subr.mxu0 0.0
    %8360 = vmatpush2.msra.mxu0 0.0
    %8361 = vmatprep.subr.mxu0 0.0
    %8362 = vmatpush2.msra.mxu0 0.0
    %8363 = vmatprep.subr.mxu0 0.0
    %8364 = vmatpush2.msra.mxu0 0.0
    %8365 = vmatprep.subr.mxu0 0.0
    %8366 = vmatpush2.msra.mxu0 0.0
    %8367 = vmatprep.subr.mxu0 0.0
    %8368 = vmatpush2.msra.mxu0 0.0
    %8369 = vmatprep.subr.mxu0 0.0
    %8370 = vmatpush2.msra.mxu0 0.0
    %8371 = vmatprep.subr.mxu0 0.0
    %8372 = vmatpush2.msra.mxu0 0.0
    %8373 = vmatprep.subr.mxu0 0.0
    %8374 = vmatpush2.msra.mxu0 0.0
    %8375 = vmatprep.subr.mxu0 0.0
    %8376 = vmatpush2.msra.mxu0 0.0
    %8377 = vmatprep.subr.mxu0 0.0
    %8378 = vmatpush2.msra.mxu0 0.0
    %8379 = vmatprep.subr.mxu0 0.0
    %8380 = vmatpush2.msra.mxu0 0.0
    %8381 = vmatprep.subr.mxu0 0.0
    %8382 = vmatpush2.msra.mxu0 0.0
    %8383 = vmatprep.subr.mxu0 0.0
    %8384 = vmatpush2.msra.mxu0 0.0
    %8385 = vmatprep.mubr.f32.mxu0 0.0
    %8386 = vmatmul.mubr.f32.gmra.mxu0 %v8319
    %v8387 = vpop.f32.mrf.mxu0
    %v8388 = vadd.f32 %v8305, %v8387
    %v8389 = vpop.f32.mrf.mxu0
    %8390 = vdwg.mxu0
    %v8391 = vsel %vm8094, %v8388, -inf
    %8392 = vmax.xlane.f32.xlu0 %v8391
    %v8393 = vpop.xlane.xlu0 %8392
    %v8394 = vsub.f32 %v8388, %v8393
    %v8395 = vmul.f32 %v8394, 1.442695
    %v8396 = vpow.pop %v8395
    %v8397 = vsel %vm8094, %v8396, 0.0
    %8398 = vadd.xlane.f32.xlu0 %v8397
    %v8399 = vpop.xlane.xlu0 %8398
    %v8400 = vrcp.pop %v8399
    %v8401 = vmul.f32 %v8396, %v8400
    %v8402 = vlaneseq
    %v8403 = vshrl.u32 %v8402, 7
    %v8404 = vsub.s32 0, %v8403
    %v8405 = vrot.slane %v8008, %v8404
    %v8407 = vsel %vm8020, %v8401, 0
    %8409 = vmatprep.subr.mxu0 0.0
    %8410 = vmatpush1.msra.mxu0 0.0
    %8411 = vmatprep.subr.mxu0 0.0
    %8412 = vmatpush1.msra.mxu0 0.0
    %8413 = vmatprep.subr.mxu0 0.0
    %8414 = vmatpush1.msra.mxu0 0.0
    %8415 = vmatprep.subr.mxu0 0.0
    %8416 = vmatpush1.msra.mxu0 0.0
    %8417 = vmatprep.subr.mxu0 0.0
    %8418 = vmatpush1.msra.mxu0 0.0
    %8419 = vmatprep.subr.mxu0 0.0
    %8420 = vmatpush1.msra.mxu0 0.0
    %8421 = vmatprep.subr.mxu0 0.0
    %8422 = vmatpush1.msra.mxu0 0.0
    %8423 = vmatprep.subr.mxu0 0.0
    %8424 = vmatpush1.msra.mxu0 0.0
    %8425 = vmatprep.subr.mxu0 0.0
    %8426 = vmatpush1.msra.mxu0 0.0
    %8427 = vmatprep.subr.mxu0 0.0
    %8428 = vmatpush1.msra.mxu0 0.0
    %8429 = vmatprep.subr.mxu0 0.0
    %8430 = vmatpush1.msra.mxu0 0.0
    %8431 = vmatprep.subr.mxu0 0.0
    %8432 = vmatpush1.msra.mxu0 0.0
    %8433 = vmatprep.subr.mxu0 0.0
    %8434 = vmatpush1.msra.mxu0 %v7993
    %8435 = vmatprep.subr.mxu0 0.0
    %8436 = vmatpush1.msra.mxu0 %v7992
    %8437 = vmatprep.subr.mxu0 0.0
    %8438 = vmatpush1.msra.mxu0 %v7991
    %8439 = vmatprep.subr.mxu0 0.0
    %8440 = vmatpush1.msra.mxu0 %v7990
    %8441 = vmatprep.subr.mxu0 0.0
    %8442 = vmatpush2.msra.mxu0 0.0
    %8443 = vmatprep.subr.mxu0 0.0
    %8444 = vmatpush2.msra.mxu0 0.0
    %8445 = vmatprep.subr.mxu0 0.0
    %8446 = vmatpush2.msra.mxu0 0.0
    %8447 = vmatprep.subr.mxu0 0.0
    %8448 = vmatpush2.msra.mxu0 0.0
    %8449 = vmatprep.subr.mxu0 0.0
    %8450 = vmatpush2.msra.mxu0 0.0
    %8451 = vmatprep.subr.mxu0 0.0
    %8452 = vmatpush2.msra.mxu0 0.0
    %8453 = vmatprep.subr.mxu0 0.0
    %8454 = vmatpush2.msra.mxu0 0.0
    %8455 = vmatprep.subr.mxu0 0.0
    %8456 = vmatpush2.msra.mxu0 0.0
    %8457 = vmatprep.subr.mxu0 0.0
    %8458 = vmatpush2.msra.mxu0 0.0
    %8459 = vmatprep.subr.mxu0 0.0
    %8460 = vmatpush2.msra.mxu0 0.0
    %8461 = vmatprep.subr.mxu0 0.0
    %8462 = vmatpush2.msra.mxu0 0.0
    %8463 = vmatprep.subr.mxu0 0.0
    %8464 = vmatpush2.msra.mxu0 0.0
    %8465 = vmatprep.subr.mxu0 0.0
    %8466 = vmatpush2.msra.mxu0 0.0
    %8467 = vmatprep.subr.mxu0 0.0
    %8468 = vmatpush2.msra.mxu0 0.0
    %8469 = vmatprep.subr.mxu0 0.0
    %8470 = vmatpush2.msra.mxu0 0.0
    %8471 = vmatprep.subr.mxu0 0.0
    %8472 = vmatpush2.msra.mxu0 0.0
    %8473 = vmatprep.mubr.f32.mxu0 0.0
    %8474 = vmatmul.mubr.f32.gmra.mxu0 %v8407
    %v8475 = vpop.f32.mrf.mxu0
    %v8476 = vadd.f32 %v8405, %v8475
    %v8477 = vpop.f32.mrf.mxu0
    %8478 = vdwg.mxu0
    %v8479 = vsel %vm8094, %v8476, 0.0
    %8480 = vadd.xlane.f32.xlu0 %v8479
    %v8481 = vpop.xlane.xlu0 %8480
    %v8482 = vmul.f32 %v8481, %v8098
    %v8483 = vsub.f32 %v8476, %v8482
    %v8484 = vmul.f32 %v8483, %v8483
    %v8485 = vsel %vm8094, %v8484, 0.0
    %8486 = vadd.xlane.f32.xlu0 %v8485
    %v8487 = vpop.xlane.xlu0 %8486
    %v8488 = vmul.f32 %v8487, %v8098
    %v8489 = vadd.f32 %v8488, 1e-05
    %v8490 = vrsqrt.pop %v8489
    %v8491 = vmul.f32 %v8483, %v8490
    %v8492 = vlaneseq
    %v8493 = vshrl.u32 %v8492, 7
    %v8494 = vsub.s32 0, %v8493
    %v8495 = vrot.slane %v8009, %v8494
    %v8496 = vmul.f32 %v8491, %v8495
    %v8497 = vlaneseq
    %v8498 = vshrl.u32 %v8497, 7
    %v8499 = vsub.s32 0, %v8498
    %v8500 = vrot.slane %v8010, %v8499
    %v8501 = vadd.f32 %v8496, %v8500
    %v8502 = vlaneseq
    %v8503 = vshrl.u32 %v8502, 7
    %v8504 = vsub.s32 0, %v8503
    %v8505 = vrot.slane %v8011, %v8504
    %8510 = vrot.lane.b32.xlu0 %v7990, 96
    %v8511 = vpop.permute.xlu0 %8510
    %8512 = vrot.lane.b32.xlu0 %v7991, 96
    %v8513 = vpop.permute.xlu0 %8512
    %8514 = vrot.lane.b32.xlu0 %v7992, 96
    %v8515 = vpop.permute.xlu0 %8514
    %8516 = vrot.lane.b32.xlu0 %v7993, 96
    %v8517 = vpop.permute.xlu0 %8516
    %v8523 = vsel %vm8020, %v8501, 0
    %8525 = vmatprep.subr.mxu0 0.0
    %8526 = vmatpush1.msra.mxu0 0.0
    %8527 = vmatprep.subr.mxu0 0.0
    %8528 = vmatpush1.msra.mxu0 0.0
    %8529 = vmatprep.subr.mxu0 0.0
    %8530 = vmatpush1.msra.mxu0 0.0
    %8531 = vmatprep.subr.mxu0 0.0
    %8532 = vmatpush1.msra.mxu0 0.0
    %8533 = vmatprep.subr.mxu0 0.0
    %8534 = vmatpush1.msra.mxu0 0.0
    %8535 = vmatprep.subr.mxu0 0.0
    %8536 = vmatpush1.msra.mxu0 0.0
    %8537 = vmatprep.subr.mxu0 0.0
    %8538 = vmatpush1.msra.mxu0 0.0
    %8539 = vmatprep.subr.mxu0 0.0
    %8540 = vmatpush1.msra.mxu0 0.0
    %8541 = vmatprep.subr.mxu0 0.0
    %8542 = vmatpush1.msra.mxu0 0.0
    %8543 = vmatprep.subr.mxu0 0.0
    %8544 = vmatpush1.msra.mxu0 0.0
    %8545 = vmatprep.subr.mxu0 0.0
    %8546 = vmatpush1.msra.mxu0 0.0
    %8547 = vmatprep.subr.mxu0 0.0
    %8548 = vmatpush1.msra.mxu0 0.0
    %8549 = vmatprep.subr.mxu0 0.0
    %8550 = vmatpush1.msra.mxu0 %v8517
    %8551 = vmatprep.subr.mxu0 0.0
    %8552 = vmatpush1.msra.mxu0 %v8515
    %8553 = vmatprep.subr.mxu0 0.0
    %8554 = vmatpush1.msra.mxu0 %v8513
    %8555 = vmatprep.subr.mxu0 0.0
    %8556 = vmatpush1.msra.mxu0 %v8511
    %8557 = vmatprep.subr.mxu0 0.0
    %8558 = vmatpush2.msra.mxu0 0.0
    %8559 = vmatprep.subr.mxu0 0.0
    %8560 = vmatpush2.msra.mxu0 0.0
    %8561 = vmatprep.subr.mxu0 0.0
    %8562 = vmatpush2.msra.mxu0 0.0
    %8563 = vmatprep.subr.mxu0 0.0
    %8564 = vmatpush2.msra.mxu0 0.0
    %8565 = vmatprep.subr.mxu0 0.0
    %8566 = vmatpush2.msra.mxu0 0.0
    %8567 = vmatprep.subr.mxu0 0.0
    %8568 = vmatpush2.msra.mxu0 0.0
    %8569 = vmatprep.subr.mxu0 0.0
    %8570 = vmatpush2.msra.mxu0 0.0
    %8571 = vmatprep.subr.mxu0 0.0
    %8572 = vmatpush2.msra.mxu0 0.0
    %8573 = vmatprep.subr.mxu0 0.0
    %8574 = vmatpush2.msra.mxu0 0.0
    %8575 = vmatprep.subr.mxu0 0.0
    %8576 = vmatpush2.msra.mxu0 0.0
    %8577 = vmatprep.subr.mxu0 0.0
    %8578 = vmatpush2.msra.mxu0 0.0
    %8579 = vmatprep.subr.mxu0 0.0
    %8580 = vmatpush2.msra.mxu0 0.0
    %8581 = vmatprep.subr.mxu0 0.0
    %8582 = vmatpush2.msra.mxu0 0.0
    %8583 = vmatprep.subr.mxu0 0.0
    %8584 = vmatpush2.msra.mxu0 0.0
    %8585 = vmatprep.subr.mxu0 0.0
    %8586 = vmatpush2.msra.mxu0 0.0
    %8587 = vmatprep.subr.mxu0 0.0
    %8588 = vmatpush2.msra.mxu0 0.0
    %8589 = vmatprep.mubr.f32.mxu0 0.0
    %8590 = vmatmul.mubr.f32.gmra.mxu0 %v8523
    %v8591 = vpop.f32.mrf.mxu0
    %v8592 = vadd.f32 %v8505, %v8591
    %v8593 = vpop.f32.mrf.mxu0
    %8594 = vdwg.mxu0
    %v8595 = vlaneseq
    %v8596 = vshrl.u32 %v8595, 7
    %v8597 = vsub.s32 0, %v8596
    %v8598 = vrot.slane %v8012, %v8597
    %vm8599 = vcmask 523264
    %v8601 = vsel %vm8599, %v8592, 0
    %8603 = vmatprep.subr.mxu0 0.0
    %8604 = vmatpush1.msra.mxu0 0.0
    %8605 = vmatprep.subr.mxu0 0.0
    %8606 = vmatpush1.msra.mxu0 0.0
    %8607 = vmatprep.subr.mxu0 0.0
    %8608 = vmatpush1.msra.mxu0 0.0
    %8609 = vmatprep.subr.mxu0 0.0
    %8610 = vmatpush1.msra.mxu0 0.0
    %8611 = vmatprep.subr.mxu0 0.0
    %8612 = vmatpush1.msra.mxu0 0.0
    %8613 = vmatprep.subr.mxu0 0.0
    %8614 = vmatpush1.msra.mxu0 0.0
    %8615 = vmatprep.subr.mxu0 0.0
    %8616 = vmatpush1.msra.mxu0 0.0
    %8617 = vmatprep.subr.mxu0 0.0
    %8618 = vmatpush1.msra.mxu0 0.0
    %8619 = vmatprep.subr.mxu0 0.0
    %8620 = vmatpush1.msra.mxu0 %v8001
    %8621 = vmatprep.subr.mxu0 0.0
    %8622 = vmatpush1.msra.mxu0 %v8000
    %8623 = vmatprep.subr.mxu0 0.0
    %8624 = vmatpush1.msra.mxu0 %v7999
    %8625 = vmatprep.subr.mxu0 0.0
    %8626 = vmatpush1.msra.mxu0 %v7998
    %8627 = vmatprep.subr.mxu0 0.0
    %8628 = vmatpush1.msra.mxu0 %v7997
    %8629 = vmatprep.subr.mxu0 0.0
    %8630 = vmatpush1.msra.mxu0 %v7996
    %8631 = vmatprep.subr.mxu0 0.0
    %8632 = vmatpush1.msra.mxu0 %v7995
    %8633 = vmatprep.subr.mxu0 0.0
    %8634 = vmatpush1.msra.mxu0 %v7994
    %8635 = vmatprep.subr.mxu0 0.0
    %8636 = vmatpush2.msra.mxu0 0.0
    %8637 = vmatprep.subr.mxu0 0.0
    %8638 = vmatpush2.msra.mxu0 0.0
    %8639 = vmatprep.subr.mxu0 0.0
    %8640 = vmatpush2.msra.mxu0 0.0
    %8641 = vmatprep.subr.mxu0 0.0
    %8642 = vmatpush2.msra.mxu0 0.0
    %8643 = vmatprep.subr.mxu0 0.0
    %8644 = vmatpush2.msra.mxu0 0.0
    %8645 = vmatprep.subr.mxu0 0.0
    %8646 = vmatpush2.msra.mxu0 0.0
    %8647 = vmatprep.subr.mxu0 0.0
    %8648 = vmatpush2.msra.mxu0 0.0
    %8649 = vmatprep.subr.mxu0 0.0
    %8650 = vmatpush2.msra.mxu0 0.0
    %8651 = vmatprep.subr.mxu0 0.0
    %8652 = vmatpush2.msra.mxu0 0.0
    %8653 = vmatprep.subr.mxu0 0.0
    %8654 = vmatpush2.msra.mxu0 0.0
    %8655 = vmatprep.subr.mxu0 0.0
    %8656 = vmatpush2.msra.mxu0 0.0
    %8657 = vmatprep.subr.mxu0 0.0
    %8658 = vmatpush2.msra.mxu0 0.0
    %8659 = vmatprep.subr.mxu0 0.0
    %8660 = vmatpush2.msra.mxu0 0.0
    %8661 = vmatprep.subr.mxu0 0.0
    %8662 = vmatpush2.msra.mxu0 0.0
    %8663 = vmatprep.subr.mxu0 0.0
    %8664 = vmatpush2.msra.mxu0 0.0
    %8665 = vmatprep.subr.mxu0 0.0
    %8666 = vmatpush2.msra.mxu0 0.0
    %8667 = vmatprep.mubr.f32.mxu0 0.0
    %8668 = vmatmul.mubr.f32.gmra.mxu0 %v8601
    %v8669 = vpop.f32.mrf.mxu0
    %v8670 = vadd.f32 %v8598, %v8669
    %v8671 = vpop.f32.mrf.mxu0
    %8672 = vdwg.mxu0
    %v8673 = vsel %vm8094, %v8670, 0.0
    %8674 = vadd.xlane.f32.xlu0 %v8673
    %v8675 = vpop.xlane.xlu0 %8674
    %v8676 = vmul.f32 %v8675, %v8098
    %v8677 = vsub.f32 %v8670, %v8676
    %v8678 = vmul.f32 %v8677, %v8677
    %v8679 = vsel %vm8094, %v8678, 0.0
    %8680 = vadd.xlane.f32.xlu0 %v8679
    %v8681 = vpop.xlane.xlu0 %8680
    %v8682 = vmul.f32 %v8681, %v8098
    %v8683 = vadd.f32 %v8682, 1e-05
    %v8684 = vrsqrt.pop %v8683
    %v8685 = vmul.f32 %v8677, %v8684
    %v8686 = vlaneseq
    %v8687 = vshrl.u32 %v8686, 7
    %v8688 = vsub.s32 0, %v8687
    %v8689 = vrot.slane %v8013, %v8688
    %v8690 = vmul.f32 %v8685, %v8689
    %v8691 = vlaneseq
    %v8692 = vshrl.u32 %v8691, 7
    %v8693 = vsub.s32 0, %v8692
    %v8694 = vrot.slane %v8014, %v8693
    %v8695 = vadd.f32 %v8690, %v8694
    %v8696 = vmul.f32 %v8695, 2.0
    %8697 = vst.msk [vmem:[#allocation2] sm:$0x3] %vm8094, %v8696
    // Predicated region
    $region22: #{net_forward.1} parent=1 // pred_check
      _
    $region23: #{net_forward.1} parent=1 // pred_check_branch
      %8699 = sbr.rel (0) target = $region25
    $region24: #{net_forward.1} parent=1 // pred_region
      %s8701 = ssub.s32 32, 32
      %8702 = vsyncadd [#allocation3], %s8701
      %s8704 = sshll.u32 [#allocation2], 4
      %s8705 = int_to_ptr.vmem [resolvable:$true] %s8704
      %8707 = dma.vmem_to_hbm [thread:$0]  %s8705, 32, %s5, [#allocation3]
    $region25: #{net_forward.1} parent=1 // pred_fallthru
      _
    // Predicated region
    $region26: #{net_forward.1} parent=1 // pred_check
      _
    $region27: #{net_forward.1} parent=1 // pred_check_branch
      %8709 = sbr.rel (0) target = $region29
    $region28: #{net_forward.1} parent=1 // pred_region
      %8710 = dma.done [#allocation3], 32
    $region29: #{net_forward.1} parent=1 // pred_fallthru
      _
    %8711 = vsyncpa [#allocation3], 1

</llo_original>
